<compile_context>
chip_gen: v6e
topology: v6e:2x2x1
jax: 0.10.0
libtpu: 0.0.40
codegen_flags: <defaults>
</compile_context>

<pallas_src>
import functools

import numpy as np
import jax
import jax.numpy as jnp
from jax.experimental import pallas as pl
from jax.experimental.pallas import tpu as pltpu


# ---------------------------------------------------------------------------
# Architecture table (mirrors the PyTorch module).
#   (name, kind, Cin, Cout, kernel, stride, padding, output_padding, act)
# ---------------------------------------------------------------------------
LAYERS = (
    ("enc1",      "conv",  3,  32, (5, 5), (3, 3), (1, 1), (0, 0), "relu"),
    ("enc2",      "conv",  32, 16, (3, 3), (2, 2), (1, 1), (0, 0), "relu"),
    ("enc_large", "conv",  16, 4,  (3, 3), (1, 1), (1, 1), (0, 0), "none"),
    ("enc_small", "conv",  16, 8,  (3, 3), (2, 2), (1, 1), (0, 0), "none"),
    ("dec1",      "convT", 8,  8,  (3, 3), (2, 2), (1, 1), (1, 1), "relu"),
    ("dec2",      "convT", 12, 8,  (5, 5), (2, 2), (1, 1), (0, 0), "relu"),
    ("dec3",      "convT", 8,  3,  (5, 5), (3, 3), (2, 4), (0, 0), "tanh"),
)

# spatial / channel feeder of each layer ("dec2" handled specially: cat of
# enc_large and dec1 along channels, both with the same spatial size)
_SRC = {"enc2": "enc1", "enc_large": "enc2", "enc_small": "enc2",
        "dec1": "enc_small", "dec3": "dec2"}


def _round_up(x, m):
    return ((x + m - 1) // m) * m


def _out_hw(kind, H, W, k, s, p, op):
    if kind == "conv":
        return ((H + 2 * p[0] - k[0]) // s[0] + 1,
                (W + 2 * p[1] - k[1]) // s[1] + 1)
    return ((H - 1) * s[0] - 2 * p[0] + k[0] + op[0],
            (W - 1) * s[1] - 2 * p[1] + k[1] + op[1])


def _selectors(kind, H, W, OH, OW, k, s, p):
    """Per-image 0/1 vertical row-selection Sy[ky,oy,iy] and horizontal
    tap-placement Px[kx,ix,ox] (padding folded in: out-of-range -> 0)."""
    kh, kw = k
    Sy = np.zeros((kh, OH, H), np.float32)
    Px = np.zeros((kw, W, OW), np.float32)
    if kind == "conv":
        for ky in range(kh):
            for oy in range(OH):
                iy = oy * s[0] + ky - p[0]
                if 0 <= iy < H:
                    Sy[ky, oy, iy] = 1.0
        for kx in range(kw):
            for ox in range(OW):
                ix = ox * s[1] + kx - p[1]
                if 0 <= ix < W:
                    Px[kx, ix, ox] = 1.0
    else:  # ConvTranspose2d scatter semantics: oy = iy*s - p + ky
        for ky in range(kh):
            for iy in range(H):
                oy = iy * s[0] - p[0] + ky
                if 0 <= oy < OH:
                    Sy[ky, oy, iy] = 1.0
        for kx in range(kw):
            for ix in range(W):
                ox = ix * s[1] - p[1] + kx
                if 0 <= ox < OW:
                    Px[kx, ix, ox] = 1.0
    return Sy, Px


# ---------------------------------------------------------------------------
# Offline operand folding (runs once, numpy)
# ---------------------------------------------------------------------------
def prepare(params, in_hw=(24, 24), nb=8):
    H0, W0 = in_hw
    rows_in0 = _round_up(nb * H0, 8)
    lw0 = _round_up(W0 * 3, 128)

    s_blocks, m_blocks, b_rows, meta = [], [], [], []
    s_off = 0
    m_off = 0
    out_info = {}

    for (name, kind, cin, cout, k, s, p, opad, act) in LAYERS:
        # --- input slab geometry ------------------------------------------
        if name == "enc1":
            hin, win = H0, W0
            rows_in, lw_in = rows_in0, lw0
            in_groups = [(3, 0, 0)]                      # (cin_g, lane_off, ch_off)
        elif name == "dec2":                              # cat(enc_large, dec1)
            gl, gr = out_info["enc_large"], out_info["dec1"]
            assert (gl["oh"], gl["ow"]) == (gr["oh"], gr["ow"])
            assert gl["rows"] == gr["rows"]
            hin, win = gl["oh"], gl["ow"]
            rows_in = gl["rows"]
            lw_in = gl["lw"] + gr["lw"]                   # lane-aligned concat
            in_groups = [(gl["cout"], 0, 0), (gr["cout"], gl["lw"], gl["cout"])]
        else:
            g = out_info[_SRC[name]]
            hin, win = g["oh"], g["ow"]
            rows_in, lw_in = g["rows"], g["lw"]
            in_groups = [(g["cout"], 0, 0)]
        assert sum(gg[0] for gg in in_groups) == cin

        oh, ow = _out_hw(kind, hin, win, k, s, p, opad)
        routp = _round_up(nb * oh, 8)
        lw_out = _round_up(ow * cout, 128)
        kh, kw = k

        # --- batched, kh-stacked, block-diagonal row selection -------------
        Sy, Px = _selectors(kind, hin, win, oh, ow, k, s, p)
        S = np.zeros((kh * routp, rows_in), np.float32)
        for ky in range(kh):
            for img in range(nb):
                S[ky * routp + img * oh: ky * routp + img * oh + oh,
                  img * hin: img * hin + hin] = Sy[ky]

        # --- fold horizontal taps + weights into M[ky] ----------------------
        w, b = params[name]
        w = np.asarray(w, np.float32)
        b = np.asarray(b, np.float32)
        if kind == "conv":          # (Cout,Cin,kh,kw) -> (kh,kw,Cin,Cout)
            wt = np.transpose(w, (2, 3, 1, 0))
        else:                       # (Cin,Cout,kh,kw) -> (kh,kw,Cin,Cout)
            wt = np.transpose(w, (2, 3, 0, 1))

        M = np.zeros((kh, lw_in, lw_out), np.float32)
        for (cg, lane_off, ch_off) in in_groups:
            wt_g = wt[:, :, ch_off:ch_off + cg, :]            # (kh,kw,cg,cout)
            sub = np.einsum("axo,kacd->kxcod", Px, wt_g)      # (kh,win,cg,ow,cout)
            M[:, lane_off:lane_off + win * cg, :ow * cout] = \
                sub.reshape(kh, win * cg, ow * cout)

        brow = np.zeros((lw_out,), np.float32)
        brow[:ow * cout] = np.tile(b, ow)                     # lane = ox*Cout + co

        s_blocks.append(S)
        m_blocks.append(M.reshape(kh * lw_in, lw_out))
        b_rows.append(brow)
        meta.append(dict(name=name, kh=kh, act=act,
                         rows_in=rows_in, routp=routp,
                         s_off=s_off, s_rows=kh * routp,
                         m_off=m_off, lw_in=lw_in, lw_out=lw_out))
        s_off += kh * routp
        m_off += kh * lw_in
        out_info[name] = dict(oh=oh, ow=ow, cout=cout, rows=routp, lw=lw_out)

    # --- pack operands into 3 buffers --------------------------------------
    s_cols = max(m["rows_in"] for m in meta)
    m_cols = max(m["lw_out"] for m in meta)
    S_all = np.zeros((s_off, s_cols), np.float32)
    M_all = np.zeros((m_off, m_cols), np.float32)
    r = 0
    for blk in s_blocks:
        S_all[r:r + blk.shape[0], :blk.shape[1]] = blk
        r += blk.shape[0]
    r = 0
    for blk in m_blocks:
        M_all[r:r + blk.shape[0], :blk.shape[1]] = blk
        r += blk.shape[0]
    B_all = np.zeros((_round_up(len(LAYERS), 8), m_cols), np.float32)
    for i, br in enumerate(b_rows):
        B_all[i, :br.shape[0]] = br

    operands = (jnp.asarray(S_all, jnp.bfloat16),   # 0/1 exact in bf16
                jnp.asarray(M_all, jnp.bfloat16),
                jnp.asarray(B_all, jnp.float32))
    geom = dict(rows_in0=rows_in0, lw0=lw0, h0=H0, w0=W0, nb=nb,
                out_oh=out_info["dec3"]["oh"], out_ow=out_info["dec3"]["ow"],
                out_c=3, out_rows=out_info["dec3"]["rows"],
                out_lw=out_info["dec3"]["lw"])
    return operands, tuple(meta), geom


# ---------------------------------------------------------------------------
# The single fused Pallas kernel (Nb images per grid step)
# ---------------------------------------------------------------------------
def _make_kernel(meta):
    def mxu(a, b):
        return jnp.dot(a, b, preferred_element_type=jnp.float32)

    def kernel(x_ref, s_ref, m_ref, b_ref, out_ref):

        def layer(i, a_bf):
            cfg = meta[i]
            kh, routp = cfg["kh"], cfg["routp"]
            lw_in, lw_out = cfg["lw_in"], cfg["lw_out"]
            s_off, m_off = cfg["s_off"], cfg["m_off"]
            # one selection matmul per layer (stacked over kernel rows)
            s = s_ref[s_off: s_off + cfg["s_rows"], : cfg["rows_in"]]
            sel = mxu(s, a_bf).astype(jnp.bfloat16)          # lossless (0/1 sel)
            # kh accumulating dots, no intervening VPU work
            acc = mxu(sel[0:routp, :], m_ref[m_off: m_off + lw_in, :lw_out])
            for ky in range(1, kh):                          # static unroll (<=5)
                acc = acc + mxu(
                    sel[ky * routp:(ky + 1) * routp, :],
                    m_ref[m_off + ky * lw_in: m_off + (ky + 1) * lw_in, :lw_out])
            acc = acc + b_ref[i:i + 1, :lw_out]
            if cfg["act"] == "relu":
                acc = jnp.maximum(acc, 0.0)
            elif cfg["act"] == "tanh":
                acc = jnp.tanh(acc)
            return acc                                       # f32 (routp, lw_out)

        a0 = x_ref[...]                                      # bf16 (rows_in0, 128)
        o1 = layer(0, a0)                                    # enc1
        o2 = layer(1, o1.astype(jnp.bfloat16))               # enc2
        o2_bf = o2.astype(jnp.bfloat16)
        e_large = layer(2, o2_bf)                            # enc_layer_large
        e_small = layer(3, o2_bf)                            # enc_layer_small
        d1 = layer(4, e_small.astype(jnp.bfloat16))          # dec1
        # torch.cat((embed_large, dec1_out), dim=1): lane-aligned concat of the
        # two 128-lane-padded slabs; dec2's folded M matches this row layout.
        cat = jnp.concatenate([e_large.astype(jnp.bfloat16),
                               d1.astype(jnp.bfloat16)], axis=-1)
        d2 = layer(5, cat)                                   # dec2
        d3 = layer(6, d2.astype(jnp.bfloat16))               # dec3 (+ tanh)
        out_ref[...] = d3.astype(out_ref.dtype)

    return kernel


def build_forward(params, in_hw=(24, 24), nb=8):
    operands, meta, geom = prepare(params, in_hw, nb)
    s_all, m_all, b_all = operands
    kernel = _make_kernel(meta)
    H0, W0 = in_hw
    rows_in0, lw0 = geom["rows_in0"], geom["lw0"]
    out_rows, out_lw = geom["out_rows"], geom["out_lw"]
    oh_f, ow_f, c_f = geom["out_oh"], geom["out_ow"], geom["out_c"]

    def _call(x_slab, grid):
        return pl.pallas_call(
            kernel,
            out_shape=jax.ShapeDtypeStruct((grid * out_rows, out_lw), jnp.float32),
            grid=(grid,),
            in_specs=[
                pl.BlockSpec((rows_in0, lw0), lambda n: (n, 0)),      # Nb images
                pl.BlockSpec(s_all.shape, lambda n: (0, 0)),          # S_all
                pl.BlockSpec(m_all.shape, lambda n: (0, 0)),          # M_all
                pl.BlockSpec(b_all.shape, lambda n: (0, 0)),          # bias_all
            ],
            out_specs=pl.BlockSpec((out_rows, out_lw), lambda n: (n, 0)),
            compiler_params=pltpu.CompilerParams(
                dimension_semantics=("parallel",),        # v7x: split over 2 TCs
                vmem_limit_bytes=32 * 1024 * 1024),
        )(x_slab, s_all, m_all, b_all)

    @jax.jit
    def fwd(x_nchw):
        n = x_nchw.shape[0]
        grid = -(-n // nb)
        npad = grid * nb
        x = jnp.transpose(x_nchw, (0, 2, 3, 1)).astype(jnp.bfloat16)   # NHWC
        x = x.reshape(n, H0, W0 * 3)
        x = jnp.pad(x, ((0, npad - n), (0, 0), (0, lw0 - W0 * 3)))     # lanes->128
        x = x.reshape(grid, nb * H0, lw0)
        x = jnp.pad(x, ((0, 0), (0, rows_in0 - nb * H0), (0, 0)))
        x_slab = x.reshape(grid * rows_in0, lw0)
        out = _call(x_slab, grid)                                      # (G*rows,128)
        out = out.reshape(grid, out_rows, out_lw)[:, :nb * oh_f, :ow_f * c_f]
        out = out.reshape(grid * nb, oh_f, ow_f, c_f)[:n]
        return jnp.transpose(out, (0, 3, 1, 2)).astype(jnp.float32)    # NCHW

    return fwd


# ---------------------------------------------------------------------------
# Parameter init (PyTorch weight layouts) and pure-XLA reference for checking
# ---------------------------------------------------------------------------
def init_params(key):
    params = {}
    keys = jax.random.split(key, len(LAYERS))
    for kk, (name, kind, cin, cout, k, s, p, opad, act) in zip(keys, LAYERS):
        k1, k2 = jax.random.split(kk)
        if kind == "conv":
            w = jax.random.normal(k1, (cout, cin, k[0], k[1]), jnp.float32) * 0.05
        else:
            w = jax.random.normal(k1, (cin, cout, k[0], k[1]), jnp.float32) * 0.05
        b = jax.random.normal(k2, (cout,), jnp.float32) * 0.05
        params[name] = (w, b)
    return params


def _conv_ref(x, w, b, s, p):
    wk = jnp.transpose(w, (2, 3, 1, 0))  # HWIO
    y = jax.lax.conv_general_dilated(
        x, wk, window_strides=s, padding=[(p[0], p[0]), (p[1], p[1])],
        dimension_numbers=("NHWC", "HWIO", "NHWC"))
    return y + b


def _convT_ref(x, w, b, s, p, op):
    kh, kw = w.shape[2], w.shape[3]
    wk = jnp.transpose(w[:, :, ::-1, ::-1], (2, 3, 0, 1))  # flip -> HWIO
    y = jax.lax.conv_general_dilated(
        x, wk, window_strides=(1, 1),
        padding=[(kh - 1 - p[0], kh - 1 - p[0] + op[0]),
                 (kw - 1 - p[1], kw - 1 - p[1] + op[1])],
        lhs_dilation=s, dimension_numbers=("NHWC", "HWIO", "NHWC"))
    return y + b


def forward_reference(params, x_nchw):
    x = jnp.transpose(x_nchw, (0, 2, 3, 1)).astype(jnp.float32)
    out1 = jax.nn.relu(_conv_ref(x, *params["enc1"], (3, 3), (1, 1)))
    out2 = jax.nn.relu(_conv_ref(out1, *params["enc2"], (2, 2), (1, 1)))
    e_l = _conv_ref(out2, *params["enc_large"], (1, 1), (1, 1))
    e_s = _conv_ref(out2, *params["enc_small"], (2, 2), (1, 1))
    d1 = jax.nn.relu(_convT_ref(e_s, *params["dec1"], (2, 2), (1, 1), (1, 1)))
    cat = jnp.concatenate([e_l, d1], axis=-1)
    d2 = jax.nn.relu(_convT_ref(cat, *params["dec2"], (2, 2), (1, 1), (0, 0)))
    d3 = jnp.tanh(_convT_ref(d2, *params["dec3"], (3, 3), (2, 4), (0, 0)))
    return jnp.transpose(d3, (0, 3, 1, 2))


if __name__ == "__main__":
    key = jax.random.PRNGKey(0)
    k_param, k_x = jax.random.split(key)
    params = init_params(k_param)
    # input spatial size 24 keeps the skip-connection shapes consistent
    # (enc: 24 -> 8 -> 4, small branch -> 2, dec1 upsamples 2 -> 4).
    # N=10 with Nb=8 exercises batch padding and gives a 2-step grid (v7x 2 TCs).
    x = jax.random.normal(k_x, (10, 3, 24, 24), jnp.float32)   # NCHW like PyTorch

    fwd = build_forward(params, in_hw=(24, 24), nb=8)
    y = jax.block_until_ready(fwd(x))
    assert y.shape == (10, 3, 25, 21), y.shape
    assert bool(jnp.all(jnp.isfinite(y)))

    # numerical check against a plain-XLA f32 reference of the same network
    y_ref = jax.block_until_ready(
        jax.jit(functools.partial(forward_reference, params))(x))
    err = float(jnp.max(jnp.abs(y - y_ref)))
    assert err < 5e-2, f"max |kernel - reference| = {err}"

    print("KERNEL_OK")
</pallas_src>

<mosaic_0001>
module attributes {stable_mosaic.version = 11 : i64} {
  func.func @kernel(%arg0: i32, %arg1: memref<192x128xbf16, #tpu.memory_space<vmem>>, %arg2: memref<2016x192xbf16, #tpu.memory_space<vmem>>, %arg3: memref<4480x256xbf16, #tpu.memory_space<vmem>>, %arg4: memref<8x256xf32, #tpu.memory_space<vmem>>, %arg5: memref<200x128xf32, #tpu.memory_space<vmem>>) attributes {dimension_semantics = [#tpu.dimension_semantics<parallel>], iteration_bounds = array<i64: 2>, scalar_prefetch = 0 : i64, scratch_operands = 0 : i64, tpu.core_type = #tpu.core_type<tc>, window_params = [{transform_indices = @transform_0, window_bounds = array<i64: 192, 128>}, {pipeline_mode = #tpu.pipeline_mode<synchronous>, transform_indices = @transform_1, window_bounds = array<i64: 2016, 192>}, {pipeline_mode = #tpu.pipeline_mode<synchronous>, transform_indices = @transform_2, window_bounds = array<i64: 4480, 256>}, {pipeline_mode = #tpu.pipeline_mode<synchronous>, transform_indices = @transform_3, window_bounds = array<i64: 8, 256>}, {transform_indices = @transform_4, window_bounds = array<i64: 200, 128>}]} {
    %c0 = arith.constant 0 : index
    %c0_0 = arith.constant 0 : index
    %0 = vector.load %arg1[%c0, %c0_0] : memref<192x128xbf16, #tpu.memory_space<vmem>>, vector<192x128xbf16>
    %c0_1 = arith.constant 0 : index
    %c0_2 = arith.constant 0 : index
    %1 = vector.load %arg2[%c0_1, %c0_2] : memref<2016x192xbf16, #tpu.memory_space<vmem>>, vector<320x192xbf16>
    %cst = arith.constant dense<0.000000e+00> : vector<320x128xf32>
    %2 = tpu.matmul %1, %0, %cst {dimension_numbers = #tpu.dot_dimension_numbers<[1], [0], [0], [1], [0, 0, 1, 1], [], []>} : vector<320x192xbf16>, vector<192x128xbf16>, vector<320x128xf32> -> vector<320x128xf32>
    %3 = arith.truncf %2 : vector<320x128xf32> to vector<320x128xbf16>
    %4 = vector.extract_strided_slice %3 {offsets = [0, 0], sizes = [64, 128], strides = [1, 1]} : vector<320x128xbf16> to vector<64x128xbf16>
    %c0_3 = arith.constant 0 : index
    %c0_4 = arith.constant 0 : index
    %5 = vector.load %arg3[%c0_3, %c0_4] : memref<4480x256xbf16, #tpu.memory_space<vmem>>, vector<128x256xbf16>
    %cst_5 = arith.constant dense<0.000000e+00> : vector<64x256xf32>
    %6 = tpu.matmul %4, %5, %cst_5 {dimension_numbers = #tpu.dot_dimension_numbers<[1], [0], [0], [1], [0, 0, 1, 1], [], []>} : vector<64x128xbf16>, vector<128x256xbf16>, vector<64x256xf32> -> vector<64x256xf32>
    %7 = vector.extract_strided_slice %3 {offsets = [64, 0], sizes = [64, 128], strides = [1, 1]} : vector<320x128xbf16> to vector<64x128xbf16>
    %c128 = arith.constant 128 : index
    %c0_6 = arith.constant 0 : index
    %8 = vector.load %arg3[%c128, %c0_6] : memref<4480x256xbf16, #tpu.memory_space<vmem>>, vector<128x256xbf16>
    %cst_7 = arith.constant dense<0.000000e+00> : vector<64x256xf32>
    %9 = tpu.matmul %7, %8, %cst_7 {dimension_numbers = #tpu.dot_dimension_numbers<[1], [0], [0], [1], [0, 0, 1, 1], [], []>} : vector<64x128xbf16>, vector<128x256xbf16>, vector<64x256xf32> -> vector<64x256xf32>
    %10 = arith.addf %6, %9 : vector<64x256xf32>
    %11 = vector.extract_strided_slice %3 {offsets = [128, 0], sizes = [64, 128], strides = [1, 1]} : vector<320x128xbf16> to vector<64x128xbf16>
    %c256 = arith.constant 256 : index
    %c0_8 = arith.constant 0 : index
    %12 = vector.load %arg3[%c256, %c0_8] : memref<4480x256xbf16, #tpu.memory_space<vmem>>, vector<128x256xbf16>
    %cst_9 = arith.constant dense<0.000000e+00> : vector<64x256xf32>
    %13 = tpu.matmul %11, %12, %cst_9 {dimension_numbers = #tpu.dot_dimension_numbers<[1], [0], [0], [1], [0, 0, 1, 1], [], []>} : vector<64x128xbf16>, vector<128x256xbf16>, vector<64x256xf32> -> vector<64x256xf32>
    %14 = arith.addf %10, %13 : vector<64x256xf32>
    %15 = vector.extract_strided_slice %3 {offsets = [192, 0], sizes = [64, 128], strides = [1, 1]} : vector<320x128xbf16> to vector<64x128xbf16>
    %c384 = arith.constant 384 : index
    %c0_10 = arith.constant 0 : index
    %16 = vector.load %arg3[%c384, %c0_10] : memref<4480x256xbf16, #tpu.memory_space<vmem>>, vector<128x256xbf16>
    %cst_11 = arith.constant dense<0.000000e+00> : vector<64x256xf32>
    %17 = tpu.matmul %15, %16, %cst_11 {dimension_numbers = #tpu.dot_dimension_numbers<[1], [0], [0], [1], [0, 0, 1, 1], [], []>} : vector<64x128xbf16>, vector<128x256xbf16>, vector<64x256xf32> -> vector<64x256xf32>
    %18 = arith.addf %14, %17 : vector<64x256xf32>
    %19 = vector.extract_strided_slice %3 {offsets = [256, 0], sizes = [64, 128], strides = [1, 1]} : vector<320x128xbf16> to vector<64x128xbf16>
    %c512 = arith.constant 512 : index
    %c0_12 = arith.constant 0 : index
    %20 = vector.load %arg3[%c512, %c0_12] : memref<4480x256xbf16, #tpu.memory_space<vmem>>, vector<128x256xbf16>
    %cst_13 = arith.constant dense<0.000000e+00> : vector<64x256xf32>
    %21 = tpu.matmul %19, %20, %cst_13 {dimension_numbers = #tpu.dot_dimension_numbers<[1], [0], [0], [1], [0, 0, 1, 1], [], []>} : vector<64x128xbf16>, vector<128x256xbf16>, vector<64x256xf32> -> vector<64x256xf32>
    %22 = arith.addf %18, %21 : vector<64x256xf32>
    %c0_14 = arith.constant 0 : index
    %c0_15 = arith.constant 0 : index
    %23 = vector.load %arg4[%c0_14, %c0_15] : memref<8x256xf32, #tpu.memory_space<vmem>>, vector<1x256xf32>
    %24 = vector.broadcast %23 : vector<1x256xf32> to vector<64x256xf32>
    %25 = arith.addf %22, %24 : vector<64x256xf32>
    %cst_16 = arith.constant 0.000000e+00 : f32
    %26 = vector.broadcast %cst_16 : f32 to vector<64x256xf32>
    %27 = arith.maximumf %25, %26 : vector<64x256xf32>
    %28 = arith.truncf %27 : vector<64x256xf32> to vector<64x256xbf16>
    %c320 = arith.constant 320 : index
    %c0_17 = arith.constant 0 : index
    %29 = vector.load %arg2[%c320, %c0_17] : memref<2016x192xbf16, #tpu.memory_space<vmem>>, vector<96x64xbf16>
    %cst_18 = arith.constant dense<0.000000e+00> : vector<96x256xf32>
    %30 = tpu.matmul %29, %28, %cst_18 {dimension_numbers = #tpu.dot_dimension_numbers<[1], [0], [0], [1], [0, 0, 1, 1], [], []>} : vector<96x64xbf16>, vector<64x256xbf16>, vector<96x256xf32> -> vector<96x256xf32>
    %31 = arith.truncf %30 : vector<96x256xf32> to vector<96x256xbf16>
    %32 = vector.extract_strided_slice %31 {offsets = [0, 0], sizes = [32, 256], strides = [1, 1]} : vector<96x256xbf16> to vector<32x256xbf16>
    %c640 = arith.constant 640 : index
    %c0_19 = arith.constant 0 : index
    %33 = vector.load %arg3[%c640, %c0_19] : memref<4480x256xbf16, #tpu.memory_space<vmem>>, vector<256x128xbf16>
    %cst_20 = arith.constant dense<0.000000e+00> : vector<32x128xf32>
    %34 = tpu.matmul %32, %33, %cst_20 {dimension_numbers = #tpu.dot_dimension_numbers<[1], [0], [0], [1], [0, 0, 1, 1], [], []>} : vector<32x256xbf16>, vector<256x128xbf16>, vector<32x128xf32> -> vector<32x128xf32>
    %35 = vector.extract_strided_slice %31 {offsets = [32, 0], sizes = [32, 256], strides = [1, 1]} : vector<96x256xbf16> to vector<32x256xbf16>
    %c896 = arith.constant 896 : index
    %c0_21 = arith.constant 0 : index
    %36 = vector.load %arg3[%c896, %c0_21] : memref<4480x256xbf16, #tpu.memory_space<vmem>>, vector<256x128xbf16>
    %cst_22 = arith.constant dense<0.000000e+00> : vector<32x128xf32>
    %37 = tpu.matmul %35, %36, %cst_22 {dimension_numbers = #tpu.dot_dimension_numbers<[1], [0], [0], [1], [0, 0, 1, 1], [], []>} : vector<32x256xbf16>, vector<256x128xbf16>, vector<32x128xf32> -> vector<32x128xf32>
    %38 = arith.addf %34, %37 : vector<32x128xf32>
    %39 = vector.extract_strided_slice %31 {offsets = [64, 0], sizes = [32, 256], strides = [1, 1]} : vector<96x256xbf16> to vector<32x256xbf16>
    %c1152 = arith.constant 1152 : index
    %c0_23 = arith.constant 0 : index
    %40 = vector.load %arg3[%c1152, %c0_23] : memref<4480x256xbf16, #tpu.memory_space<vmem>>, vector<256x128xbf16>
    %cst_24 = arith.constant dense<0.000000e+00> : vector<32x128xf32>
    %41 = tpu.matmul %39, %40, %cst_24 {dimension_numbers = #tpu.dot_dimension_numbers<[1], [0], [0], [1], [0, 0, 1, 1], [], []>} : vector<32x256xbf16>, vector<256x128xbf16>, vector<32x128xf32> -> vector<32x128xf32>
    %42 = arith.addf %38, %41 : vector<32x128xf32>
    %c1 = arith.constant 1 : index
    %c0_25 = arith.constant 0 : index
    %43 = vector.load %arg4[%c1, %c0_25] : memref<8x256xf32, #tpu.memory_space<vmem>>, vector<1x128xf32>
    %44 = vector.broadcast %43 : vector<1x128xf32> to vector<32x128xf32>
    %45 = arith.addf %42, %44 : vector<32x128xf32>
    %cst_26 = arith.constant 0.000000e+00 : f32
    %46 = vector.broadcast %cst_26 : f32 to vector<32x128xf32>
    %47 = arith.maximumf %45, %46 : vector<32x128xf32>
    %48 = arith.truncf %47 : vector<32x128xf32> to vector<32x128xbf16>
    %c416 = arith.constant 416 : index
    %c0_27 = arith.constant 0 : index
    %49 = vector.load %arg2[%c416, %c0_27] : memref<2016x192xbf16, #tpu.memory_space<vmem>>, vector<96x32xbf16>
    %cst_28 = arith.constant dense<0.000000e+00> : vector<96x128xf32>
    %50 = tpu.matmul %49, %48, %cst_28 {dimension_numbers = #tpu.dot_dimension_numbers<[1], [0], [0], [1], [0, 0, 1, 1], [], []>} : vector<96x32xbf16>, vector<32x128xbf16>, vector<96x128xf32> -> vector<96x128xf32>
    %51 = arith.truncf %50 : vector<96x128xf32> to vector<96x128xbf16>
    %52 = vector.extract_strided_slice %51 {offsets = [0, 0], sizes = [32, 128], strides = [1, 1]} : vector<96x128xbf16> to vector<32x128xbf16>
    %c1408 = arith.constant 1408 : index
    %c0_29 = arith.constant 0 : index
    %53 = vector.load %arg3[%c1408, %c0_29] : memref<4480x256xbf16, #tpu.memory_space<vmem>>, vector<128x128xbf16>
    %cst_30 = arith.constant dense<0.000000e+00> : vector<32x128xf32>
    %54 = tpu.matmul %52, %53, %cst_30 {dimension_numbers = #tpu.dot_dimension_numbers<[1], [0], [0], [1], [0, 0, 1, 1], [], []>} : vector<32x128xbf16>, vector<128x128xbf16>, vector<32x128xf32> -> vector<32x128xf32>
    %55 = vector.extract_strided_slice %51 {offsets = [32, 0], sizes = [32, 128], strides = [1, 1]} : vector<96x128xbf16> to vector<32x128xbf16>
    %c1536 = arith.constant 1536 : index
    %c0_31 = arith.constant 0 : index
    %56 = vector.load %arg3[%c1536, %c0_31] : memref<4480x256xbf16, #tpu.memory_space<vmem>>, vector<128x128xbf16>
    %cst_32 = arith.constant dense<0.000000e+00> : vector<32x128xf32>
    %57 = tpu.matmul %55, %56, %cst_32 {dimension_numbers = #tpu.dot_dimension_numbers<[1], [0], [0], [1], [0, 0, 1, 1], [], []>} : vector<32x128xbf16>, vector<128x128xbf16>, vector<32x128xf32> -> vector<32x128xf32>
    %58 = arith.addf %54, %57 : vector<32x128xf32>
    %59 = vector.extract_strided_slice %51 {offsets = [64, 0], sizes = [32, 128], strides = [1, 1]} : vector<96x128xbf16> to vector<32x128xbf16>
    %c1664 = arith.constant 1664 : index
    %c0_33 = arith.constant 0 : index
    %60 = vector.load %arg3[%c1664, %c0_33] : memref<4480x256xbf16, #tpu.memory_space<vmem>>, vector<128x128xbf16>
    %cst_34 = arith.constant dense<0.000000e+00> : vector<32x128xf32>
    %61 = tpu.matmul %59, %60, %cst_34 {dimension_numbers = #tpu.dot_dimension_numbers<[1], [0], [0], [1], [0, 0, 1, 1], [], []>} : vector<32x128xbf16>, vector<128x128xbf16>, vector<32x128xf32> -> vector<32x128xf32>
    %62 = arith.addf %58, %61 : vector<32x128xf32>
    %c2 = arith.constant 2 : index
    %c0_35 = arith.constant 0 : index
    %63 = vector.load %arg4[%c2, %c0_35] : memref<8x256xf32, #tpu.memory_space<vmem>>, vector<1x128xf32>
    %64 = vector.broadcast %63 : vector<1x128xf32> to vector<32x128xf32>
    %65 = arith.addf %62, %64 : vector<32x128xf32>
    %c512_36 = arith.constant 512 : index
    %c0_37 = arith.constant 0 : index
    %66 = vector.load %arg2[%c512_36, %c0_37] : memref<2016x192xbf16, #tpu.memory_space<vmem>>, vector<48x32xbf16>
    %cst_38 = arith.constant dense<0.000000e+00> : vector<48x128xf32>
    %67 = tpu.matmul %66, %48, %cst_38 {dimension_numbers = #tpu.dot_dimension_numbers<[1], [0], [0], [1], [0, 0, 1, 1], [], []>} : vector<48x32xbf16>, vector<32x128xbf16>, vector<48x128xf32> -> vector<48x128xf32>
    %68 = arith.truncf %67 : vector<48x128xf32> to vector<48x128xbf16>
    %69 = vector.extract_strided_slice %68 {offsets = [0, 0], sizes = [16, 128], strides = [1, 1]} : vector<48x128xbf16> to vector<16x128xbf16>
    %c1792 = arith.constant 1792 : index
    %c0_39 = arith.constant 0 : index
    %70 = vector.load %arg3[%c1792, %c0_39] : memref<4480x256xbf16, #tpu.memory_space<vmem>>, vector<128x128xbf16>
    %cst_40 = arith.constant dense<0.000000e+00> : vector<16x128xf32>
    %71 = tpu.matmul %69, %70, %cst_40 {dimension_numbers = #tpu.dot_dimension_numbers<[1], [0], [0], [1], [0, 0, 1, 1], [], []>} : vector<16x128xbf16>, vector<128x128xbf16>, vector<16x128xf32> -> vector<16x128xf32>
    %72 = vector.extract_strided_slice %68 {offsets = [16, 0], sizes = [16, 128], strides = [1, 1]} : vector<48x128xbf16> to vector<16x128xbf16>
    %c1920 = arith.constant 1920 : index
    %c0_41 = arith.constant 0 : index
    %73 = vector.load %arg3[%c1920, %c0_41] : memref<4480x256xbf16, #tpu.memory_space<vmem>>, vector<128x128xbf16>
    %cst_42 = arith.constant dense<0.000000e+00> : vector<16x128xf32>
    %74 = tpu.matmul %72, %73, %cst_42 {dimension_numbers = #tpu.dot_dimension_numbers<[1], [0], [0], [1], [0, 0, 1, 1], [], []>} : vector<16x128xbf16>, vector<128x128xbf16>, vector<16x128xf32> -> vector<16x128xf32>
    %75 = arith.addf %71, %74 : vector<16x128xf32>
    %76 = vector.extract_strided_slice %68 {offsets = [32, 0], sizes = [16, 128], strides = [1, 1]} : vector<48x128xbf16> to vector<16x128xbf16>
    %c2048 = arith.constant 2048 : index
    %c0_43 = arith.constant 0 : index
    %77 = vector.load %arg3[%c2048, %c0_43] : memref<4480x256xbf16, #tpu.memory_space<vmem>>, vector<128x128xbf16>
    %cst_44 = arith.constant dense<0.000000e+00> : vector<16x128xf32>
    %78 = tpu.matmul %76, %77, %cst_44 {dimension_numbers = #tpu.dot_dimension_numbers<[1], [0], [0], [1], [0, 0, 1, 1], [], []>} : vector<16x128xbf16>, vector<128x128xbf16>, vector<16x128xf32> -> vector<16x128xf32>
    %79 = arith.addf %75, %78 : vector<16x128xf32>
    %c3 = arith.constant 3 : index
    %c0_45 = arith.constant 0 : index
    %80 = vector.load %arg4[%c3, %c0_45] : memref<8x256xf32, #tpu.memory_space<vmem>>, vector<1x128xf32>
    %81 = vector.broadcast %80 : vector<1x128xf32> to vector<16x128xf32>
    %82 = arith.addf %79, %81 : vector<16x128xf32>
    %83 = arith.truncf %82 : vector<16x128xf32> to vector<16x128xbf16>
    %c560 = arith.constant 560 : index
    %c0_46 = arith.constant 0 : index
    %84 = vector.load %arg2[%c560, %c0_46] : memref<2016x192xbf16, #tpu.memory_space<vmem>>, vector<96x16xbf16>
    %cst_47 = arith.constant dense<0.000000e+00> : vector<96x128xf32>
    %85 = tpu.matmul %84, %83, %cst_47 {dimension_numbers = #tpu.dot_dimension_numbers<[1], [0], [0], [1], [0, 0, 1, 1], [], []>} : vector<96x16xbf16>, vector<16x128xbf16>, vector<96x128xf32> -> vector<96x128xf32>
    %86 = arith.truncf %85 : vector<96x128xf32> to vector<96x128xbf16>
    %87 = vector.extract_strided_slice %86 {offsets = [0, 0], sizes = [32, 128], strides = [1, 1]} : vector<96x128xbf16> to vector<32x128xbf16>
    %c2176 = arith.constant 2176 : index
    %c0_48 = arith.constant 0 : index
    %88 = vector.load %arg3[%c2176, %c0_48] : memref<4480x256xbf16, #tpu.memory_space<vmem>>, vector<128x128xbf16>
    %cst_49 = arith.constant dense<0.000000e+00> : vector<32x128xf32>
    %89 = tpu.matmul %87, %88, %cst_49 {dimension_numbers = #tpu.dot_dimension_numbers<[1], [0], [0], [1], [0, 0, 1, 1], [], []>} : vector<32x128xbf16>, vector<128x128xbf16>, vector<32x128xf32> -> vector<32x128xf32>
    %90 = vector.extract_strided_slice %86 {offsets = [32, 0], sizes = [32, 128], strides = [1, 1]} : vector<96x128xbf16> to vector<32x128xbf16>
    %c2304 = arith.constant 2304 : index
    %c0_50 = arith.constant 0 : index
    %91 = vector.load %arg3[%c2304, %c0_50] : memref<4480x256xbf16, #tpu.memory_space<vmem>>, vector<128x128xbf16>
    %cst_51 = arith.constant dense<0.000000e+00> : vector<32x128xf32>
    %92 = tpu.matmul %90, %91, %cst_51 {dimension_numbers = #tpu.dot_dimension_numbers<[1], [0], [0], [1], [0, 0, 1, 1], [], []>} : vector<32x128xbf16>, vector<128x128xbf16>, vector<32x128xf32> -> vector<32x128xf32>
    %93 = arith.addf %89, %92 : vector<32x128xf32>
    %94 = vector.extract_strided_slice %86 {offsets = [64, 0], sizes = [32, 128], strides = [1, 1]} : vector<96x128xbf16> to vector<32x128xbf16>
    %c2432 = arith.constant 2432 : index
    %c0_52 = arith.constant 0 : index
    %95 = vector.load %arg3[%c2432, %c0_52] : memref<4480x256xbf16, #tpu.memory_space<vmem>>, vector<128x128xbf16>
    %cst_53 = arith.constant dense<0.000000e+00> : vector<32x128xf32>
    %96 = tpu.matmul %94, %95, %cst_53 {dimension_numbers = #tpu.dot_dimension_numbers<[1], [0], [0], [1], [0, 0, 1, 1], [], []>} : vector<32x128xbf16>, vector<128x128xbf16>, vector<32x128xf32> -> vector<32x128xf32>
    %97 = arith.addf %93, %96 : vector<32x128xf32>
    %c4 = arith.constant 4 : index
    %c0_54 = arith.constant 0 : index
    %98 = vector.load %arg4[%c4, %c0_54] : memref<8x256xf32, #tpu.memory_space<vmem>>, vector<1x128xf32>
    %99 = vector.broadcast %98 : vector<1x128xf32> to vector<32x128xf32>
    %100 = arith.addf %97, %99 : vector<32x128xf32>
    %cst_55 = arith.constant 0.000000e+00 : f32
    %101 = vector.broadcast %cst_55 : f32 to vector<32x128xf32>
    %102 = arith.maximumf %100, %101 : vector<32x128xf32>
    %103 = arith.truncf %65 : vector<32x128xf32> to vector<32x128xbf16>
    %104 = arith.truncf %102 : vector<32x128xf32> to vector<32x128xbf16>
    %105 = tpu.concatenate %103, %104 in 1 : vector<32x128xbf16>, vector<32x128xbf16> -> vector<32x256xbf16>
    %c656 = arith.constant 656 : index
    %c0_56 = arith.constant 0 : index
    %106 = vector.load %arg2[%c656, %c0_56] : memref<2016x192xbf16, #tpu.memory_space<vmem>>, vector<360x32xbf16>
    %cst_57 = arith.constant dense<0.000000e+00> : vector<360x256xf32>
    %107 = tpu.matmul %106, %105, %cst_57 {dimension_numbers = #tpu.dot_dimension_numbers<[1], [0], [0], [1], [0, 0, 1, 1], [], []>} : vector<360x32xbf16>, vector<32x256xbf16>, vector<360x256xf32> -> vector<360x256xf32>
    %108 = arith.truncf %107 : vector<360x256xf32> to vector<360x256xbf16>
    %109 = vector.extract_strided_slice %108 {offsets = [0, 0], sizes = [72, 256], strides = [1, 1]} : vector<360x256xbf16> to vector<72x256xbf16>
    %c2560 = arith.constant 2560 : index
    %c0_58 = arith.constant 0 : index
    %110 = vector.load %arg3[%c2560, %c0_58] : memref<4480x256xbf16, #tpu.memory_space<vmem>>, vector<256x128xbf16>
    %cst_59 = arith.constant dense<0.000000e+00> : vector<72x128xf32>
    %111 = tpu.matmul %109, %110, %cst_59 {dimension_numbers = #tpu.dot_dimension_numbers<[1], [0], [0], [1], [0, 0, 1, 1], [], []>} : vector<72x256xbf16>, vector<256x128xbf16>, vector<72x128xf32> -> vector<72x128xf32>
    %112 = vector.extract_strided_slice %108 {offsets = [72, 0], sizes = [72, 256], strides = [1, 1]} : vector<360x256xbf16> to vector<72x256xbf16>
    %c2816 = arith.constant 2816 : index
    %c0_60 = arith.constant 0 : index
    %113 = vector.load %arg3[%c2816, %c0_60] : memref<4480x256xbf16, #tpu.memory_space<vmem>>, vector<256x128xbf16>
    %cst_61 = arith.constant dense<0.000000e+00> : vector<72x128xf32>
    %114 = tpu.matmul %112, %113, %cst_61 {dimension_numbers = #tpu.dot_dimension_numbers<[1], [0], [0], [1], [0, 0, 1, 1], [], []>} : vector<72x256xbf16>, vector<256x128xbf16>, vector<72x128xf32> -> vector<72x128xf32>
    %115 = arith.addf %111, %114 : vector<72x128xf32>
    %116 = vector.extract_strided_slice %108 {offsets = [144, 0], sizes = [72, 256], strides = [1, 1]} : vector<360x256xbf16> to vector<72x256xbf16>
    %c3072 = arith.constant 3072 : index
    %c0_62 = arith.constant 0 : index
    %117 = vector.load %arg3[%c3072, %c0_62] : memref<4480x256xbf16, #tpu.memory_space<vmem>>, vector<256x128xbf16>
    %cst_63 = arith.constant dense<0.000000e+00> : vector<72x128xf32>
    %118 = tpu.matmul %116, %117, %cst_63 {dimension_numbers = #tpu.dot_dimension_numbers<[1], [0], [0], [1], [0, 0, 1, 1], [], []>} : vector<72x256xbf16>, vector<256x128xbf16>, vector<72x128xf32> -> vector<72x128xf32>
    %119 = arith.addf %115, %118 : vector<72x128xf32>
    %120 = vector.extract_strided_slice %108 {offsets = [216, 0], sizes = [72, 256], strides = [1, 1]} : vector<360x256xbf16> to vector<72x256xbf16>
    %c3328 = arith.constant 3328 : index
    %c0_64 = arith.constant 0 : index
    %121 = vector.load %arg3[%c3328, %c0_64] : memref<4480x256xbf16, #tpu.memory_space<vmem>>, vector<256x128xbf16>
    %cst_65 = arith.constant dense<0.000000e+00> : vector<72x128xf32>
    %122 = tpu.matmul %120, %121, %cst_65 {dimension_numbers = #tpu.dot_dimension_numbers<[1], [0], [0], [1], [0, 0, 1, 1], [], []>} : vector<72x256xbf16>, vector<256x128xbf16>, vector<72x128xf32> -> vector<72x128xf32>
    %123 = arith.addf %119, %122 : vector<72x128xf32>
    %124 = vector.extract_strided_slice %108 {offsets = [288, 0], sizes = [72, 256], strides = [1, 1]} : vector<360x256xbf16> to vector<72x256xbf16>
    %c3584 = arith.constant 3584 : index
    %c0_66 = arith.constant 0 : index
    %125 = vector.load %arg3[%c3584, %c0_66] : memref<4480x256xbf16, #tpu.memory_space<vmem>>, vector<256x128xbf16>
    %cst_67 = arith.constant dense<0.000000e+00> : vector<72x128xf32>
    %126 = tpu.matmul %124, %125, %cst_67 {dimension_numbers = #tpu.dot_dimension_numbers<[1], [0], [0], [1], [0, 0, 1, 1], [], []>} : vector<72x256xbf16>, vector<256x128xbf16>, vector<72x128xf32> -> vector<72x128xf32>
    %127 = arith.addf %123, %126 : vector<72x128xf32>
    %c5 = arith.constant 5 : index
    %c0_68 = arith.constant 0 : index
    %128 = vector.load %arg4[%c5, %c0_68] : memref<8x256xf32, #tpu.memory_space<vmem>>, vector<1x128xf32>
    %129 = vector.broadcast %128 : vector<1x128xf32> to vector<72x128xf32>
    %130 = arith.addf %127, %129 : vector<72x128xf32>
    %cst_69 = arith.constant 0.000000e+00 : f32
    %131 = vector.broadcast %cst_69 : f32 to vector<72x128xf32>
    %132 = arith.maximumf %130, %131 : vector<72x128xf32>
    %133 = arith.truncf %132 : vector<72x128xf32> to vector<72x128xbf16>
    %c1016 = arith.constant 1016 : index
    %c0_70 = arith.constant 0 : index
    %134 = vector.load %arg2[%c1016, %c0_70] : memref<2016x192xbf16, #tpu.memory_space<vmem>>, vector<1000x72xbf16>
    %cst_71 = arith.constant dense<0.000000e+00> : vector<1000x128xf32>
    %135 = tpu.matmul %134, %133, %cst_71 {dimension_numbers = #tpu.dot_dimension_numbers<[1], [0], [0], [1], [0, 0, 1, 1], [], []>} : vector<1000x72xbf16>, vector<72x128xbf16>, vector<1000x128xf32> -> vector<1000x128xf32>
    %136 = arith.truncf %135 : vector<1000x128xf32> to vector<1000x128xbf16>
    %137 = vector.extract_strided_slice %136 {offsets = [0, 0], sizes = [200, 128], strides = [1, 1]} : vector<1000x128xbf16> to vector<200x128xbf16>
    %c3840 = arith.constant 3840 : index
    %c0_72 = arith.constant 0 : index
    %138 = vector.load %arg3[%c3840, %c0_72] : memref<4480x256xbf16, #tpu.memory_space<vmem>>, vector<128x128xbf16>
    %cst_73 = arith.constant dense<0.000000e+00> : vector<200x128xf32>
    %139 = tpu.matmul %137, %138, %cst_73 {dimension_numbers = #tpu.dot_dimension_numbers<[1], [0], [0], [1], [0, 0, 1, 1], [], []>} : vector<200x128xbf16>, vector<128x128xbf16>, vector<200x128xf32> -> vector<200x128xf32>
    %140 = vector.extract_strided_slice %136 {offsets = [200, 0], sizes = [200, 128], strides = [1, 1]} : vector<1000x128xbf16> to vector<200x128xbf16>
    %c3968 = arith.constant 3968 : index
    %c0_74 = arith.constant 0 : index
    %141 = vector.load %arg3[%c3968, %c0_74] : memref<4480x256xbf16, #tpu.memory_space<vmem>>, vector<128x128xbf16>
    %cst_75 = arith.constant dense<0.000000e+00> : vector<200x128xf32>
    %142 = tpu.matmul %140, %141, %cst_75 {dimension_numbers = #tpu.dot_dimension_numbers<[1], [0], [0], [1], [0, 0, 1, 1], [], []>} : vector<200x128xbf16>, vector<128x128xbf16>, vector<200x128xf32> -> vector<200x128xf32>
    %143 = arith.addf %139, %142 : vector<200x128xf32>
    %144 = vector.extract_strided_slice %136 {offsets = [400, 0], sizes = [200, 128], strides = [1, 1]} : vector<1000x128xbf16> to vector<200x128xbf16>
    %c4096 = arith.constant 4096 : index
    %c0_76 = arith.constant 0 : index
    %145 = vector.load %arg3[%c4096, %c0_76] : memref<4480x256xbf16, #tpu.memory_space<vmem>>, vector<128x128xbf16>
    %cst_77 = arith.constant dense<0.000000e+00> : vector<200x128xf32>
    %146 = tpu.matmul %144, %145, %cst_77 {dimension_numbers = #tpu.dot_dimension_numbers<[1], [0], [0], [1], [0, 0, 1, 1], [], []>} : vector<200x128xbf16>, vector<128x128xbf16>, vector<200x128xf32> -> vector<200x128xf32>
    %147 = arith.addf %143, %146 : vector<200x128xf32>
    %148 = vector.extract_strided_slice %136 {offsets = [600, 0], sizes = [200, 128], strides = [1, 1]} : vector<1000x128xbf16> to vector<200x128xbf16>
    %c4224 = arith.constant 4224 : index
    %c0_78 = arith.constant 0 : index
    %149 = vector.load %arg3[%c4224, %c0_78] : memref<4480x256xbf16, #tpu.memory_space<vmem>>, vector<128x128xbf16>
    %cst_79 = arith.constant dense<0.000000e+00> : vector<200x128xf32>
    %150 = tpu.matmul %148, %149, %cst_79 {dimension_numbers = #tpu.dot_dimension_numbers<[1], [0], [0], [1], [0, 0, 1, 1], [], []>} : vector<200x128xbf16>, vector<128x128xbf16>, vector<200x128xf32> -> vector<200x128xf32>
    %151 = arith.addf %147, %150 : vector<200x128xf32>
    %152 = vector.extract_strided_slice %136 {offsets = [800, 0], sizes = [200, 128], strides = [1, 1]} : vector<1000x128xbf16> to vector<200x128xbf16>
    %c4352 = arith.constant 4352 : index
    %c0_80 = arith.constant 0 : index
    %153 = vector.load %arg3[%c4352, %c0_80] : memref<4480x256xbf16, #tpu.memory_space<vmem>>, vector<128x128xbf16>
    %cst_81 = arith.constant dense<0.000000e+00> : vector<200x128xf32>
    %154 = tpu.matmul %152, %153, %cst_81 {dimension_numbers = #tpu.dot_dimension_numbers<[1], [0], [0], [1], [0, 0, 1, 1], [], []>} : vector<200x128xbf16>, vector<128x128xbf16>, vector<200x128xf32> -> vector<200x128xf32>
    %155 = arith.addf %151, %154 : vector<200x128xf32>
    %c6 = arith.constant 6 : index
    %c0_82 = arith.constant 0 : index
    %156 = vector.load %arg4[%c6, %c0_82] : memref<8x256xf32, #tpu.memory_space<vmem>>, vector<1x128xf32>
    %157 = vector.broadcast %156 : vector<1x128xf32> to vector<200x128xf32>
    %158 = arith.addf %155, %157 : vector<200x128xf32>
    %159 = math.tanh %158 : vector<200x128xf32>
    %c0_83 = arith.constant 0 : index
    %c0_84 = arith.constant 0 : index
    %160 = vector.load %arg5[%c0_83, %c0_84] : memref<200x128xf32, #tpu.memory_space<vmem>>, vector<200x128xf32>
    tpu.vector_store %arg5[%c0_83, %c0_84], %159 {strides = array<i32>} : memref<200x128xf32, #tpu.memory_space<vmem>>, vector<200x128xf32>,
    return
  }
  func.func @transform_0(%arg0: i32) -> (i32, i32) {
    %c0_i32 = arith.constant 0 : i32
    %c0_i32_0 = arith.constant 0 : i32
    return %arg0, %c0_i32 : i32, i32
  }
  func.func @transform_1(%arg0: i32) -> (i32, i32) {
    %c0_i32 = arith.constant 0 : i32
    %c0_i32_0 = arith.constant 0 : i32
    %c0_i32_1 = arith.constant 0 : i32
    return %c0_i32, %c0_i32_0 : i32, i32
  }
  func.func @transform_2(%arg0: i32) -> (i32, i32) {
    %c0_i32 = arith.constant 0 : i32
    %c0_i32_0 = arith.constant 0 : i32
    %c0_i32_1 = arith.constant 0 : i32
    return %c0_i32, %c0_i32_0 : i32, i32
  }
  func.func @transform_3(%arg0: i32) -> (i32, i32) {
    %c0_i32 = arith.constant 0 : i32
    %c0_i32_0 = arith.constant 0 : i32
    %c0_i32_1 = arith.constant 0 : i32
    return %c0_i32, %c0_i32_0 : i32, i32
  }
  func.func @transform_4(%arg0: i32) -> (i32, i32) {
    %c0_i32 = arith.constant 0 : i32
    %c0_i32_0 = arith.constant 0 : i32
    return %arg0, %c0_i32 : i32, i32
  }
}

</mosaic_0001>

<llo_original>
// kernel: fwd.1
$region0: #{fwd.1}
  #allocation0 [shape = 'u32[]', space=smem, size = 0x4, offset = 0x4, fixed_abs, tag = 'smem constant byte address 0x4 - core index']
  #allocation1 [shape = 'u32[144,128]{1,0:T(1,128)}', space=vmem, size = 0x12000, scoped, tag = 'internal scratch']
  %s0 = inlined_call_operand.vmem [shape: bf16[384,128], index: 0, kind: input, shape index: {}]
  %s1 = inlined_call_operand.vmem [shape: bf16[2016,192], index: 1, kind: input, shape index: {}]
  %s2 = inlined_call_operand.hbm [shape: bf16[4480,256], index: 2, kind: input, shape index: {}]
  %s3 = inlined_call_operand.hbm [shape: f32[8,256], index: 3, kind: input, shape index: {}]
  %s4 = inlined_call_operand.vmem [shape: f32[400,128], index: 4, kind: output, shape index: {}]
  %s5 = sld [smem:[#allocation0]]
  $region57: #{fwd.1} parent=0
    _
  %s7 = ssub.s32 1, %s5
  %s8 = scalar_select 0, %s7, %s5
  $region1: #{fwd.1} parent=0
    #allocation2 [shape = 'u8[2293760]{0}', space=vmem, size = 0x230000, scoped, tag = 'input window, operand 2, single buffered']
    #allocation3 [shape = 's32[2]{0}', space=sflag, size = 0x8, scoped, tag = 'scoped memory for fwd.1']
    #allocation4 [shape = 'u8[8192]{0}', space=vmem, size = 0x2000, scoped, tag = 'input window, operand 3, single buffered']
    #allocation5 [shape = 's32[1]{0}', space=sflag, size = 0x4, scoped, tag = 'scoped memory for fwd.1']
    %9 = vsyncpa [#allocation3], 0
    %10 = vsyncpa [#allocation5], 0
    loop: start=0, step=1, limit=4
    $region2: #{fwd.1} parent=1 // loop_pre_header
      _
    $region3: #{fwd.1} parent=1 // loop_header
      %s12 = sphi 0, %s16
      %p13 = scmp.ge.s32.totalorder %s12, 4
      %s22 = sphi 0, %s24
      %s25 = sphi 0, %s22
      %s26 = sphi 0, %s25
      %s42 = sphi 0, %s26
      %s46 = sphi 0, %s46
      %s48 = sphi 0, %s46
      %s49 = sphi 0, %s48
      %s63 = sphi 0, %s49
      %s67 = sphi 0, %s67
      %s69 = sphi 0, %s67
      %s70 = sphi 0, %s69
      %s84 = sphi 0, %s70
      %s88 = sphi 0, %s88
      %s90 = sphi 0, %s88
      %s91 = sphi 0, %s90
      %s105 = sphi 0, %s91
      %s111 = sphi 0, %s113
      %s114 = sphi 0, %s111
      %s115 = sphi 0, %s114
      %s131 = sphi 0, %s115
    $region4: #{fwd.1} parent=1 // loop_header_branch
      %15 = sbr.rel (%p13) target = $region8
    $region5: #{fwd.1} parent=1 // loop_body
      %s17 = ssub.s32 %s12, 1
      %s18 = ssub.s32 %s12, 2
      %s19 = sadd.s32 %s12, 1
      %s20 = ssub.s32 %s12, %s19
      %p21 = scmp.eq.s32.totalorder %s20, 0
      %s23 = sadd.s32 %s22, 1
      %s24 = scalar_select %p21, %s22, %s23
      %p27 = pneg %p21
      %p28 = scmp.eq.s32.totalorder %s12, 1
      %p29 = por %p27, %p28
      %p30 = scmp.ne.s32.totalorder %s22, %s25
      %p31 = scmp.eq.s32.totalorder %s12, 0
      %p32 = por %p30, %p31
      %p33 = scmp.ne.s32.totalorder %s22, %s25
      %p34 = scmp.eq.s32.totalorder %s17, 1
      %p35 = por %p33, %p34
      %p36 = scmp.ne.s32.totalorder %s25, %s26
      %p37 = scmp.eq.s32.totalorder %s17, 0
      %p38 = por %p36, %p37
      %p39 = scmp.ne.s32.totalorder %s25, %s26
      %p40 = scmp.eq.s32.totalorder %s18, 1
      %p41 = por %p39, %p40
      %p43 = scmp.ne.s32.totalorder %s26, %s42
      %p44 = scmp.eq.s32.totalorder %s18, 0
      %p45 = por %p43, %p44
      %s47 = sadd.s32 %s46, 1
      %p50 = scmp.eq.s32.totalorder %s12, 1
      %p51 = scmp.ne.s32.totalorder %s46, %s48
      %p52 = scmp.eq.s32.totalorder %s12, 0
      %p53 = por %p51, %p52
      %p54 = scmp.ne.s32.totalorder %s46, %s48
      %p55 = scmp.eq.s32.totalorder %s17, 1
      %p56 = por %p54, %p55
      %p57 = scmp.ne.s32.totalorder %s48, %s49
      %p58 = scmp.eq.s32.totalorder %s17, 0
      %p59 = por %p57, %p58
      %p60 = scmp.ne.s32.totalorder %s48, %s49
      %p61 = scmp.eq.s32.totalorder %s18, 1
      %p62 = por %p60, %p61
      %p64 = scmp.ne.s32.totalorder %s49, %s63
      %p65 = scmp.eq.s32.totalorder %s18, 0
      %p66 = por %p64, %p65
      %s68 = sadd.s32 %s67, 1
      %p71 = scmp.eq.s32.totalorder %s12, 1
      %p72 = scmp.ne.s32.totalorder %s67, %s69
      %p73 = scmp.eq.s32.totalorder %s12, 0
      %p74 = por %p72, %p73
      %p75 = scmp.ne.s32.totalorder %s67, %s69
      %p76 = scmp.eq.s32.totalorder %s17, 1
      %p77 = por %p75, %p76
      %p78 = scmp.ne.s32.totalorder %s69, %s70
      %p79 = scmp.eq.s32.totalorder %s17, 0
      %p80 = por %p78, %p79
      %p81 = scmp.ne.s32.totalorder %s69, %s70
      %p82 = scmp.eq.s32.totalorder %s18, 1
      %p83 = por %p81, %p82
      %p85 = scmp.ne.s32.totalorder %s70, %s84
      %p86 = scmp.eq.s32.totalorder %s18, 0
      %p87 = por %p85, %p86
      %s89 = sadd.s32 %s88, 1
      %p92 = scmp.eq.s32.totalorder %s12, 1
      %p93 = scmp.ne.s32.totalorder %s88, %s90
      %p94 = scmp.eq.s32.totalorder %s12, 0
      %p95 = por %p93, %p94
      %p96 = scmp.ne.s32.totalorder %s88, %s90
      %p97 = scmp.eq.s32.totalorder %s17, 1
      %p98 = por %p96, %p97
      %p99 = scmp.ne.s32.totalorder %s90, %s91
      %p100 = scmp.eq.s32.totalorder %s17, 0
      %p101 = por %p99, %p100
      %p102 = scmp.ne.s32.totalorder %s90, %s91
      %p103 = scmp.eq.s32.totalorder %s18, 1
      %p104 = por %p102, %p103
      %p106 = scmp.ne.s32.totalorder %s91, %s105
      %p107 = scmp.eq.s32.totalorder %s18, 0
      %p108 = por %p106, %p107
      %s109 = ssub.s32 %s12, %s19
      %p110 = scmp.eq.s32.totalorder %s109, 0
      %s112 = sadd.s32 %s111, 1
      %s113 = scalar_select %p110, %s111, %s112
      %p116 = pneg %p110
      %p117 = scmp.eq.s32.totalorder %s12, 1
      %p118 = por %p116, %p117
      %p119 = scmp.ne.s32.totalorder %s111, %s114
      %p120 = scmp.eq.s32.totalorder %s12, 0
      %p121 = por %p119, %p120
      %p122 = scmp.ne.s32.totalorder %s111, %s114
      %p123 = scmp.eq.s32.totalorder %s17, 1
      %p124 = por %p122, %p123
      %p125 = scmp.ne.s32.totalorder %s114, %s115
      %p126 = scmp.eq.s32.totalorder %s17, 0
      %p127 = por %p125, %p126
      %p128 = scmp.ne.s32.totalorder %s114, %s115
      %p129 = scmp.eq.s32.totalorder %s18, 1
      %p130 = por %p128, %p129
      %p132 = scmp.ne.s32.totalorder %s115, %s131
      %p133 = scmp.eq.s32.totalorder %s18, 0
      %p134 = por %p132, %p133
      %p135 = scmp.le.s32.totalorder 1, %s12
      %p136 = scmp.lt.s32.totalorder %s12, 3
      %p137 = pnand %p135, %p136
      %p138 = pneg %p137
      // Predicated region
      $region9: #{fwd.1} parent=5 // pred_check
        _
      $region10: #{fwd.1} parent=5 // pred_check_branch
        %140 = sbr.rel (%p137) target = $region12
      $region11: #{fwd.1} parent=5 // pred_region
        %s141 = ssub.s32 %s12, 1
        // Predicated region
        $region13: #{fwd.1} parent=11 // pred_check
          %p142 = pneg %p59
        $region14: #{fwd.1} parent=11 // pred_check_branch
          %144 = sbr.rel (%p142) target = $region16
        $region15: #{fwd.1} parent=11 // pred_region
          _
        $region16: #{fwd.1} parent=11 // pred_fallthru
          _
        // Predicated region
        $region17: #{fwd.1} parent=11 // pred_check
          %p145 = pneg %p80
        $region18: #{fwd.1} parent=11 // pred_check_branch
          %147 = sbr.rel (%p145) target = $region20
        $region19: #{fwd.1} parent=11 // pred_region
          %s149 = ssub.s32 71680, 71680
          %150 = vsyncadd [#allocation3], %s149
          %s151 = sshll.u32 [#allocation2], 4
          %s152 = int_to_ptr.vmem [resolvable:$true] %s151
          %157 = dma.hbm_to_vmem [thread:$0]  %s2, 71680, %s152, [#allocation3], 128, 128, 8
        $region20: #{fwd.1} parent=11 // pred_fallthru
          _
        // Predicated region
        $region21: #{fwd.1} parent=11 // pred_check
          %p158 = pneg %p101
        $region22: #{fwd.1} parent=11 // pred_check_branch
          %160 = sbr.rel (%p158) target = $region24
        $region23: #{fwd.1} parent=11 // pred_region
          %s162 = ssub.s32 256, 256
          %163 = vsyncadd [#allocation5], %s162
          %s165 = sshll.u32 [#allocation4], 4
          %s166 = int_to_ptr.vmem [resolvable:$true] %s165
          %168 = dma.hbm_to_vmem [thread:$0]  %s3, 256, %s166, [#allocation5]
        $region24: #{fwd.1} parent=11 // pred_fallthru
          _
      $region12: #{fwd.1} parent=5 // pred_fallthru
        _
      %p169 = scmp.lt.s32.totalorder %s12, 2
      // Predicated region
      $region25: #{fwd.1} parent=5 // pred_check
        %p170 = pneg %p169
      $region26: #{fwd.1} parent=5 // pred_check_branch
        %172 = sbr.rel (%p170) target = $region28
      $region27: #{fwd.1} parent=5 // pred_region
        // Predicated region
        $region29: #{fwd.1} parent=27 // pred_check
          %p173 = pneg %p32
        $region30: #{fwd.1} parent=27 // pred_check_branch
          %175 = sbr.rel (%p173) target = $region32
        $region31: #{fwd.1} parent=27 // pred_region
          %s176 = smul.u32 24, %s12
          %p177 = scmp.lt.s32.totalorder %s176, 47
          %s178 = scalar_select %p177, %s176, 47
          %s179 = smul.addr %s178, 4
          %s180 = scalar_lea.vmem %s0, %s179
          %s181 = smul.u32 24, %s12
        $region32: #{fwd.1} parent=27 // pred_fallthru
          _
      $region28: #{fwd.1} parent=5 // pred_fallthru
        _
      %p182 = scmp.le.s32.totalorder 1, %s12
      %p183 = scmp.lt.s32.totalorder %s12, 3
      %p184 = pnand %p182, %p183
      %p185 = pneg %p184
      // Predicated region
      $region33: #{fwd.1} parent=5 // pred_check
        _
      $region34: #{fwd.1} parent=5 // pred_check_branch
        %187 = sbr.rel (%p184) target = $region36
      $region35: #{fwd.1} parent=5 // pred_region
        %s188 = ssub.s32 %s12, 1
        // Predicated region
        $region37: #{fwd.1} parent=35 // pred_check
          %p189 = pneg %p80
        $region38: #{fwd.1} parent=35 // pred_check_branch
          %191 = sbr.rel (%p189) target = $region40
        $region39: #{fwd.1} parent=35 // pred_region
          %192 = dma.done [#allocation3], 71680
        $region40: #{fwd.1} parent=35 // pred_fallthru
          _
        // Predicated region
        $region41: #{fwd.1} parent=35 // pred_check
          %p193 = pneg %p101
        $region42: #{fwd.1} parent=35 // pred_check_branch
          %195 = sbr.rel (%p193) target = $region44
        $region43: #{fwd.1} parent=35 // pred_region
          %196 = dma.done [#allocation5], 256
        $region44: #{fwd.1} parent=35 // pred_fallthru
          _
        %s197 = smul.u32 24, %s17
        %p198 = scmp.lt.s32.totalorder %s197, 47
        %s199 = scalar_select %p198, %s197, 47
        %s200 = smul.addr %s199, 4
        %s201 = scalar_lea.vmem %s0, %s200
        %p202 = pneg %p38
        %p203 = pneg %p35
        %p204 = pneg %p59
        %p205 = pneg %p56
        %p206 = pneg %p80
        %p207 = pneg %p77
        %p208 = pneg %p101
        %p209 = pneg %p98
        %p210 = pneg %p127
        %p211 = pneg %p124
        %s212 = smul.u32 25, %s17
        %p213 = scmp.lt.s32.totalorder %s212, 49
        %s214 = scalar_select %p213, %s212, 49
        %s215 = smul.addr %s214, 8
        %s216 = scalar_lea.vmem %s4, %s215
        %s217 = smul.u32 24, %s17
        %p218 = scmp.lt.s32.totalorder %s217, 47
        %s219 = scalar_select %p218, %s217, 47
        %s220 = smul.addr %s219, 4
        %s221 = scalar_lea.vmem %s0, %s220
        %s222 = smul.u32 24, %s17
        %s223 = smul.u32 25, %s17
        %p224 = scmp.lt.s32.totalorder %s223, 49
        %s225 = scalar_select %p224, %s223, 49
        %s226 = smul.addr %s225, 8
        %s227 = scalar_lea.vmem %s4, %s226
        %s228 = smul.u32 25, %s17
        %v230 = vld [vmem:[%s221] sm:$0xf]
        %v231 = vld [vmem:[%s221 + $0x4] sm:$0xf]
        %v232 = vld [vmem:[%s221 + $0x8] sm:$0xf]
        %v233 = vld [vmem:[%s221 + $0xc] sm:$0xf]
        %v234 = vld [vmem:[%s221 + $0x10] sm:$0xf]
        %v235 = vld [vmem:[%s221 + $0x14] sm:$0xf]
        %v236 = vld [vmem:[%s221 + $0x18] sm:$0xf]
        %v237 = vld [vmem:[%s221 + $0x1c] sm:$0xf]
        %v238 = vld [vmem:[%s221 + $0x20] sm:$0xf]
        %v239 = vld [vmem:[%s221 + $0x24] sm:$0xf]
        %v240 = vld [vmem:[%s221 + $0x28] sm:$0xf]
        %v241 = vld [vmem:[%s221 + $0x2c] sm:$0xf]
        %v242 = vld [vmem:[%s221 + $0x30] sm:$0xf]
        %v243 = vld [vmem:[%s221 + $0x34] sm:$0xf]
        %v244 = vld [vmem:[%s221 + $0x38] sm:$0xf]
        %v245 = vld [vmem:[%s221 + $0x3c] sm:$0xf]
        %v246 = vld [vmem:[%s221 + $0x40] sm:$0xf]
        %v247 = vld [vmem:[%s221 + $0x44] sm:$0xf]
        %v248 = vld [vmem:[%s221 + $0x48] sm:$0xf]
        %v249 = vld [vmem:[%s221 + $0x4c] sm:$0xf]
        %v250 = vld [vmem:[%s221 + $0x50] sm:$0xf]
        %v251 = vld [vmem:[%s221 + $0x54] sm:$0xf]
        %v252 = vld [vmem:[%s221 + $0x58] sm:$0xf]
        %v253 = vld [vmem:[%s221 + $0x5c] sm:$0xf]
        %v254 = vld [vmem:[%s1] sm:$0xff]
        %v255 = vld [vmem:[%s1 + $0x8] sm:$0xff]
        %v256 = vld [vmem:[%s1 + $0x10] sm:$0xff]
        %v257 = vld [vmem:[%s1 + $0x18] sm:$0xff]
        %v258 = vld [vmem:[%s1 + $0x20] sm:$0xff]
        %v259 = vld [vmem:[%s1 + $0x28] sm:$0xff]
        %v260 = vld [vmem:[%s1 + $0x30] sm:$0xff]
        %v261 = vld [vmem:[%s1 + $0x38] sm:$0xff]
        %v262 = vld [vmem:[%s1 + $0x40] sm:$0xff]
        %v263 = vld [vmem:[%s1 + $0x48] sm:$0xff]
        %v264 = vld [vmem:[%s1 + $0x50] sm:$0xff]
        %v265 = vld [vmem:[%s1 + $0x58] sm:$0xff]
        %v266 = vld [vmem:[%s1 + $0x60] sm:$0xff]
        %v267 = vld [vmem:[%s1 + $0x68] sm:$0xff]
        %v268 = vld [vmem:[%s1 + $0x70] sm:$0xff]
        %v269 = vld [vmem:[%s1 + $0x78] sm:$0xff]
        %v270 = vld [vmem:[%s1 + $0x80] sm:$0xff]
        %v271 = vld [vmem:[%s1 + $0x88] sm:$0xff]
        %v272 = vld [vmem:[%s1 + $0x90] sm:$0xff]
        %v273 = vld [vmem:[%s1 + $0x98] sm:$0xff]
        %v274 = vld [vmem:[%s1 + $0xa0] sm:$0xff]
        %v275 = vld [vmem:[%s1 + $0xa8] sm:$0xff]
        %v276 = vld [vmem:[%s1 + $0xb0] sm:$0xff]
        %v277 = vld [vmem:[%s1 + $0xb8] sm:$0xff]
        %v278 = vld [vmem:[%s1 + $0xc0] sm:$0xff]
        %v279 = vld [vmem:[%s1 + $0xc8] sm:$0xff]
        %v280 = vld [vmem:[%s1 + $0xd0] sm:$0xff]
        %v281 = vld [vmem:[%s1 + $0xd8] sm:$0xff]
        %v282 = vld [vmem:[%s1 + $0xe0] sm:$0xff]
        %v283 = vld [vmem:[%s1 + $0xe8] sm:$0xff]
        %v284 = vld [vmem:[%s1 + $0xf0] sm:$0xff]
        %v285 = vld [vmem:[%s1 + $0xf8] sm:$0xff]
        %v286 = vld [vmem:[%s1 + $0x100] sm:$0xff]
        %v287 = vld [vmem:[%s1 + $0x108] sm:$0xff]
        %v288 = vld [vmem:[%s1 + $0x110] sm:$0xff]
        %v289 = vld [vmem:[%s1 + $0x118] sm:$0xff]
        %v290 = vld [vmem:[%s1 + $0x120] sm:$0xff]
        %v291 = vld [vmem:[%s1 + $0x128] sm:$0xff]
        %v292 = vld [vmem:[%s1 + $0x130] sm:$0xff]
        %v293 = vld [vmem:[%s1 + $0x138] sm:$0xff]
        %v334 = vunpack.c.l.b16 %v254
        %v335 = vunpack.c.h.b16 %v254
        %v336 = vunpack.c.l.b16 %v255
        %v337 = vunpack.c.h.b16 %v255
        %v338 = vunpack.c.l.b16 %v256
        %v339 = vunpack.c.h.b16 %v256
        %v340 = vunpack.c.l.b16 %v257
        %v341 = vunpack.c.h.b16 %v257
        %v342 = vunpack.c.l.b16 %v258
        %v343 = vunpack.c.h.b16 %v258
        %v344 = vunpack.c.l.b16 %v259
        %v345 = vunpack.c.h.b16 %v259
        %v346 = vunpack.c.l.b16 %v260
        %v347 = vunpack.c.h.b16 %v260
        %v348 = vunpack.c.l.b16 %v261
        %v349 = vunpack.c.h.b16 %v261
        %v350 = vunpack.c.l.b16 %v262
        %v351 = vunpack.c.h.b16 %v262
        %v352 = vunpack.c.l.b16 %v263
        %v353 = vunpack.c.h.b16 %v263
        %v354 = vunpack.c.l.b16 %v264
        %v355 = vunpack.c.h.b16 %v264
        %v356 = vunpack.c.l.b16 %v265
        %v357 = vunpack.c.h.b16 %v265
        %v358 = vunpack.c.l.b16 %v266
        %v359 = vunpack.c.h.b16 %v266
        %v360 = vunpack.c.l.b16 %v267
        %v361 = vunpack.c.h.b16 %v267
        %v362 = vunpack.c.l.b16 %v268
        %v363 = vunpack.c.h.b16 %v268
        %v364 = vunpack.c.l.b16 %v269
        %v365 = vunpack.c.h.b16 %v269
        %v366 = vunpack.c.l.b16 %v270
        %v367 = vunpack.c.h.b16 %v270
        %v368 = vunpack.c.l.b16 %v271
        %v369 = vunpack.c.h.b16 %v271
        %v370 = vunpack.c.l.b16 %v272
        %v371 = vunpack.c.h.b16 %v272
        %v372 = vunpack.c.l.b16 %v273
        %v373 = vunpack.c.h.b16 %v273
        %v374 = vunpack.c.l.b16 %v274
        %v375 = vunpack.c.h.b16 %v274
        %v376 = vunpack.c.l.b16 %v275
        %v377 = vunpack.c.h.b16 %v275
        %v378 = vunpack.c.l.b16 %v276
        %v379 = vunpack.c.h.b16 %v276
        %v380 = vunpack.c.l.b16 %v277
        %v381 = vunpack.c.h.b16 %v277
        %v382 = vunpack.c.l.b16 %v278
        %v383 = vunpack.c.h.b16 %v278
        %v384 = vunpack.c.l.b16 %v279
        %v385 = vunpack.c.h.b16 %v279
        %v386 = vunpack.c.l.b16 %v280
        %v387 = vunpack.c.h.b16 %v280
        %v388 = vunpack.c.l.b16 %v281
        %v389 = vunpack.c.h.b16 %v281
        %v390 = vunpack.c.l.b16 %v282
        %v391 = vunpack.c.h.b16 %v282
        %v392 = vunpack.c.l.b16 %v283
        %v393 = vunpack.c.h.b16 %v283
        %v394 = vunpack.c.l.b16 %v284
        %v395 = vunpack.c.h.b16 %v284
        %v396 = vunpack.c.l.b16 %v285
        %v397 = vunpack.c.h.b16 %v285
        %v398 = vunpack.c.l.b16 %v286
        %v399 = vunpack.c.h.b16 %v286
        %v400 = vunpack.c.l.b16 %v287
        %v401 = vunpack.c.h.b16 %v287
        %v402 = vunpack.c.l.b16 %v288
        %v403 = vunpack.c.h.b16 %v288
        %v404 = vunpack.c.l.b16 %v289
        %v405 = vunpack.c.h.b16 %v289
        %v406 = vunpack.c.l.b16 %v290
        %v407 = vunpack.c.h.b16 %v290
        %v408 = vunpack.c.l.b16 %v291
        %v409 = vunpack.c.h.b16 %v291
        %v410 = vunpack.c.l.b16 %v292
        %v411 = vunpack.c.h.b16 %v292
        %v412 = vunpack.c.l.b16 %v293
        %v413 = vunpack.c.h.b16 %v293
        %v414 = vpack.c.b16 %v336, %v334
        %v415 = vpack.c.b16 %v337, %v335
        %v416 = vpack.c.b16 %v340, %v338
        %v417 = vpack.c.b16 %v341, %v339
        %v418 = vpack.c.b16 %v344, %v342
        %v419 = vpack.c.b16 %v345, %v343
        %v420 = vpack.c.b16 %v348, %v346
        %v421 = vpack.c.b16 %v349, %v347
        %v422 = vpack.c.b16 %v352, %v350
        %v423 = vpack.c.b16 %v353, %v351
        %v424 = vpack.c.b16 %v356, %v354
        %v425 = vpack.c.b16 %v357, %v355
        %v426 = vpack.c.b16 %v360, %v358
        %v427 = vpack.c.b16 %v361, %v359
        %v428 = vpack.c.b16 %v364, %v362
        %v429 = vpack.c.b16 %v365, %v363
        %v430 = vpack.c.b16 %v368, %v366
        %v431 = vpack.c.b16 %v369, %v367
        %v432 = vpack.c.b16 %v372, %v370
        %v433 = vpack.c.b16 %v373, %v371
        %v434 = vpack.c.b16 %v376, %v374
        %v435 = vpack.c.b16 %v377, %v375
        %v436 = vpack.c.b16 %v380, %v378
        %v437 = vpack.c.b16 %v381, %v379
        %v438 = vpack.c.b16 %v384, %v382
        %v439 = vpack.c.b16 %v385, %v383
        %v440 = vpack.c.b16 %v388, %v386
        %v441 = vpack.c.b16 %v389, %v387
        %v442 = vpack.c.b16 %v392, %v390
        %v443 = vpack.c.b16 %v393, %v391
        %v444 = vpack.c.b16 %v396, %v394
        %v445 = vpack.c.b16 %v397, %v395
        %v446 = vpack.c.b16 %v400, %v398
        %v447 = vpack.c.b16 %v401, %v399
        %v448 = vpack.c.b16 %v404, %v402
        %v449 = vpack.c.b16 %v405, %v403
        %v450 = vpack.c.b16 %v408, %v406
        %v451 = vpack.c.b16 %v409, %v407
        %v452 = vpack.c.b16 %v412, %v410
        %v453 = vpack.c.b16 %v413, %v411
        %v498 = vunpack.c.l.b16 %v230
        %v499 = vunpack.c.l.b16 %v231
        %v500 = vunpack.c.l.b16 %v232
        %v501 = vunpack.c.l.b16 %v233
        %v502 = vunpack.c.l.b16 %v234
        %v503 = vunpack.c.l.b16 %v235
        %v504 = vunpack.c.l.b16 %v236
        %v505 = vunpack.c.l.b16 %v237
        %v506 = vunpack.c.l.b16 %v238
        %v507 = vunpack.c.l.b16 %v239
        %v508 = vunpack.c.l.b16 %v240
        %v509 = vunpack.c.l.b16 %v241
        %v510 = vunpack.c.l.b16 %v242
        %v511 = vunpack.c.l.b16 %v243
        %v512 = vunpack.c.l.b16 %v244
        %v513 = vunpack.c.l.b16 %v245
        %v514 = vunpack.c.l.b16 %v246
        %v515 = vunpack.c.l.b16 %v247
        %v516 = vunpack.c.l.b16 %v248
        %v517 = vunpack.c.l.b16 %v249
        %v518 = vunpack.c.l.b16 %v250
        %v519 = vunpack.c.l.b16 %v251
        %v520 = vunpack.c.l.b16 %v252
        %v521 = vunpack.c.l.b16 %v253
        %v522 = vpack.c.b16 %v499, %v498
        %v523 = vpack.c.b16 %v501, %v500
        %v524 = vpack.c.b16 %v503, %v502
        %v525 = vpack.c.b16 %v505, %v504
        %v526 = vpack.c.b16 %v507, %v506
        %v527 = vpack.c.b16 %v509, %v508
        %v528 = vpack.c.b16 %v511, %v510
        %v529 = vpack.c.b16 %v513, %v512
        %v530 = vpack.c.b16 %v515, %v514
        %v531 = vpack.c.b16 %v517, %v516
        %v532 = vpack.c.b16 %v519, %v518
        %v533 = vpack.c.b16 %v521, %v520
        %vm546 = vcmask 523264
        %v548 = vsel %vm546, %v415, 0
        %v551 = vsel %vm546, %v417, 0
        %v554 = vsel %vm546, %v419, 0
        %v557 = vsel %vm546, %v421, 0
        %v560 = vsel %vm546, %v423, 0
        %v563 = vsel %vm546, %v425, 0
        %v566 = vsel %vm546, %v427, 0
        %v569 = vsel %vm546, %v429, 0
        %v572 = vsel %vm546, %v431, 0
        %v575 = vsel %vm546, %v433, 0
        %v578 = vsel %vm546, %v435, 0
        %v581 = vsel %vm546, %v437, 0
        %v584 = vsel %vm546, %v439, 0
        %v587 = vsel %vm546, %v441, 0
        %v590 = vsel %vm546, %v443, 0
        %v593 = vsel %vm546, %v445, 0
        %v596 = vsel %vm546, %v447, 0
        %v599 = vsel %vm546, %v449, 0
        %v602 = vsel %vm546, %v451, 0
        %v605 = vsel %vm546, %v453, 0
        %607 = vmatprep.subr.bf16.mxu0 0
        %608 = vmatpush1.bf16.msra.mxu0 %v529
        %609 = vmatprep.subr.bf16.mxu0 0
        %610 = vmatpush1.bf16.msra.mxu0 %v528
        %611 = vmatprep.subr.bf16.mxu0 0
        %612 = vmatpush1.bf16.msra.mxu0 %v527
        %613 = vmatprep.subr.bf16.mxu0 0
        %614 = vmatpush1.bf16.msra.mxu0 %v526
        %615 = vmatprep.subr.bf16.mxu0 0
        %616 = vmatpush1.bf16.msra.mxu0 %v525
        %617 = vmatprep.subr.bf16.mxu0 0
        %618 = vmatpush1.bf16.msra.mxu0 %v524
        %619 = vmatprep.subr.bf16.mxu0 0
        %620 = vmatpush1.bf16.msra.mxu0 %v523
        %621 = vmatprep.subr.bf16.mxu0 0
        %622 = vmatpush1.bf16.msra.mxu0 %v522
        %623 = vmatprep.subr.bf16.mxu0 0
        %624 = vmatpush2.bf16.msra.mxu0 0
        %625 = vmatprep.subr.bf16.mxu0 0
        %626 = vmatpush2.bf16.msra.mxu0 0
        %627 = vmatprep.subr.bf16.mxu0 0
        %628 = vmatpush2.bf16.msra.mxu0 0
        %629 = vmatprep.subr.bf16.mxu0 0
        %630 = vmatpush2.bf16.msra.mxu0 0
        %631 = vmatprep.subr.bf16.mxu0 0
        %632 = vmatpush2.bf16.msra.mxu0 %v533
        %633 = vmatprep.subr.bf16.mxu0 0
        %634 = vmatpush2.bf16.msra.mxu0 %v532
        %635 = vmatprep.subr.bf16.mxu0 0
        %636 = vmatpush2.bf16.msra.mxu0 %v531
        %637 = vmatprep.subr.bf16.mxu0 0
        %638 = vmatpush2.bf16.msra.mxu0 %v530
        %639 = vmatprep.mubr.bf16.mxu0 %v548
        %640 = vmatmul.mubr.bf16.gmra.mxu0 %v414
        %v641 = vpop.f32.mrf.mxu0
        %v642 = vadd.f32 0.0, %v641
        %v643 = vpop.f32.mrf.mxu0
        %v644 = vpop.f32.mrf.mxu0
        %v645 = vadd.f32 0.0, %v644
        %v646 = vpop.f32.mrf.mxu0
        %647 = vmatprep.mubr.bf16.mxu0 %v551
        %648 = vmatmul.mubr.bf16.gmra.mxu0 %v416
        %v649 = vpop.f32.mrf.mxu0
        %v650 = vadd.f32 0.0, %v649
        %v651 = vpop.f32.mrf.mxu0
        %v652 = vpop.f32.mrf.mxu0
        %v653 = vadd.f32 0.0, %v652
        %v654 = vpop.f32.mrf.mxu0
        %655 = vmatprep.mubr.bf16.mxu0 %v554
        %656 = vmatmul.mubr.bf16.gmra.mxu0 %v418
        %v657 = vpop.f32.mrf.mxu0
        %v658 = vadd.f32 0.0, %v657
        %v659 = vpop.f32.mrf.mxu0
        %v660 = vpop.f32.mrf.mxu0
        %v661 = vadd.f32 0.0, %v660
        %v662 = vpop.f32.mrf.mxu0
        %663 = vmatprep.mubr.bf16.mxu0 %v557
        %664 = vmatmul.mubr.bf16.gmra.mxu0 %v420
        %v665 = vpop.f32.mrf.mxu0
        %v666 = vadd.f32 0.0, %v665
        %v667 = vpop.f32.mrf.mxu0
        %v668 = vpop.f32.mrf.mxu0
        %v669 = vadd.f32 0.0, %v668
        %v670 = vpop.f32.mrf.mxu0
        %671 = vmatprep.mubr.bf16.mxu0 %v560
        %672 = vmatmul.mubr.bf16.gmra.mxu0 %v422
        %v673 = vpop.f32.mrf.mxu0
        %v674 = vadd.f32 0.0, %v673
        %v675 = vpop.f32.mrf.mxu0
        %v676 = vpop.f32.mrf.mxu0
        %v677 = vadd.f32 0.0, %v676
        %v678 = vpop.f32.mrf.mxu0
        %679 = vmatprep.mubr.bf16.mxu0 %v563
        %680 = vmatmul.mubr.bf16.gmra.mxu0 %v424
        %v681 = vpop.f32.mrf.mxu0
        %v682 = vadd.f32 0.0, %v681
        %v683 = vpop.f32.mrf.mxu0
        %v684 = vpop.f32.mrf.mxu0
        %v685 = vadd.f32 0.0, %v684
        %v686 = vpop.f32.mrf.mxu0
        %687 = vmatprep.mubr.bf16.mxu0 %v566
        %688 = vmatmul.mubr.bf16.gmra.mxu0 %v426
        %v689 = vpop.f32.mrf.mxu0
        %v690 = vadd.f32 0.0, %v689
        %v691 = vpop.f32.mrf.mxu0
        %v692 = vpop.f32.mrf.mxu0
        %v693 = vadd.f32 0.0, %v692
        %v694 = vpop.f32.mrf.mxu0
        %695 = vmatprep.mubr.bf16.mxu0 %v569
        %696 = vmatmul.mubr.bf16.gmra.mxu0 %v428
        %v697 = vpop.f32.mrf.mxu0
        %v698 = vadd.f32 0.0, %v697
        %v699 = vpop.f32.mrf.mxu0
        %v700 = vpop.f32.mrf.mxu0
        %v701 = vadd.f32 0.0, %v700
        %v702 = vpop.f32.mrf.mxu0
        %703 = vmatprep.mubr.bf16.mxu0 %v572
        %704 = vmatmul.mubr.bf16.gmra.mxu0 %v430
        %v705 = vpop.f32.mrf.mxu0
        %v706 = vadd.f32 0.0, %v705
        %v707 = vpop.f32.mrf.mxu0
        %v708 = vpop.f32.mrf.mxu0
        %v709 = vadd.f32 0.0, %v708
        %v710 = vpop.f32.mrf.mxu0
        %711 = vmatprep.mubr.bf16.mxu0 %v575
        %712 = vmatmul.mubr.bf16.gmra.mxu0 %v432
        %v713 = vpop.f32.mrf.mxu0
        %v714 = vadd.f32 0.0, %v713
        %v715 = vpop.f32.mrf.mxu0
        %v716 = vpop.f32.mrf.mxu0
        %v717 = vadd.f32 0.0, %v716
        %v718 = vpop.f32.mrf.mxu0
        %719 = vmatprep.mubr.bf16.mxu0 %v578
        %720 = vmatmul.mubr.bf16.gmra.mxu0 %v434
        %v721 = vpop.f32.mrf.mxu0
        %v722 = vadd.f32 0.0, %v721
        %v723 = vpop.f32.mrf.mxu0
        %v724 = vpop.f32.mrf.mxu0
        %v725 = vadd.f32 0.0, %v724
        %v726 = vpop.f32.mrf.mxu0
        %727 = vmatprep.mubr.bf16.mxu0 %v581
        %728 = vmatmul.mubr.bf16.gmra.mxu0 %v436
        %v729 = vpop.f32.mrf.mxu0
        %v730 = vadd.f32 0.0, %v729
        %v731 = vpop.f32.mrf.mxu0
        %v732 = vpop.f32.mrf.mxu0
        %v733 = vadd.f32 0.0, %v732
        %v734 = vpop.f32.mrf.mxu0
        %735 = vmatprep.mubr.bf16.mxu0 %v584
        %736 = vmatmul.mubr.bf16.gmra.mxu0 %v438
        %v737 = vpop.f32.mrf.mxu0
        %v738 = vadd.f32 0.0, %v737
        %v739 = vpop.f32.mrf.mxu0
        %v740 = vpop.f32.mrf.mxu0
        %v741 = vadd.f32 0.0, %v740
        %v742 = vpop.f32.mrf.mxu0
        %743 = vmatprep.mubr.bf16.mxu0 %v587
        %744 = vmatmul.mubr.bf16.gmra.mxu0 %v440
        %v745 = vpop.f32.mrf.mxu0
        %v746 = vadd.f32 0.0, %v745
        %v747 = vpop.f32.mrf.mxu0
        %v748 = vpop.f32.mrf.mxu0
        %v749 = vadd.f32 0.0, %v748
        %v750 = vpop.f32.mrf.mxu0
        %751 = vmatprep.mubr.bf16.mxu0 %v590
        %752 = vmatmul.mubr.bf16.gmra.mxu0 %v442
        %v753 = vpop.f32.mrf.mxu0
        %v754 = vadd.f32 0.0, %v753
        %v755 = vpop.f32.mrf.mxu0
        %v756 = vpop.f32.mrf.mxu0
        %v757 = vadd.f32 0.0, %v756
        %v758 = vpop.f32.mrf.mxu0
        %759 = vmatprep.mubr.bf16.mxu0 %v593
        %760 = vmatmul.mubr.bf16.gmra.mxu0 %v444
        %v761 = vpop.f32.mrf.mxu0
        %v762 = vadd.f32 0.0, %v761
        %v763 = vpop.f32.mrf.mxu0
        %v764 = vpop.f32.mrf.mxu0
        %v765 = vadd.f32 0.0, %v764
        %v766 = vpop.f32.mrf.mxu0
        %767 = vmatprep.mubr.bf16.mxu0 %v596
        %768 = vmatmul.mubr.bf16.gmra.mxu0 %v446
        %v769 = vpop.f32.mrf.mxu0
        %v770 = vadd.f32 0.0, %v769
        %v771 = vpop.f32.mrf.mxu0
        %v772 = vpop.f32.mrf.mxu0
        %v773 = vadd.f32 0.0, %v772
        %v774 = vpop.f32.mrf.mxu0
        %775 = vmatprep.mubr.bf16.mxu0 %v599
        %776 = vmatmul.mubr.bf16.gmra.mxu0 %v448
        %v777 = vpop.f32.mrf.mxu0
        %v778 = vadd.f32 0.0, %v777
        %v779 = vpop.f32.mrf.mxu0
        %v780 = vpop.f32.mrf.mxu0
        %v781 = vadd.f32 0.0, %v780
        %v782 = vpop.f32.mrf.mxu0
        %783 = vmatprep.mubr.bf16.mxu0 %v602
        %784 = vmatmul.mubr.bf16.gmra.mxu0 %v450
        %v785 = vpop.f32.mrf.mxu0
        %v786 = vadd.f32 0.0, %v785
        %v787 = vpop.f32.mrf.mxu0
        %v788 = vpop.f32.mrf.mxu0
        %v789 = vadd.f32 0.0, %v788
        %v790 = vpop.f32.mrf.mxu0
        %791 = vmatprep.mubr.bf16.mxu0 %v605
        %792 = vmatmul.mubr.bf16.gmra.mxu0 %v452
        %v793 = vpop.f32.mrf.mxu0
        %v794 = vadd.f32 0.0, %v793
        %v795 = vpop.f32.mrf.mxu0
        %v796 = vpop.f32.mrf.mxu0
        %v797 = vadd.f32 0.0, %v796
        %v798 = vpop.f32.mrf.mxu0
        %799 = vdwg.mxu0
        %v800 = vpack.c.bf16 %v645, %v642
        %v801 = vpack.c.bf16 %v653, %v650
        %v802 = vpack.c.bf16 %v661, %v658
        %v803 = vpack.c.bf16 %v669, %v666
        %v804 = vpack.c.bf16 %v677, %v674
        %v805 = vpack.c.bf16 %v685, %v682
        %v806 = vpack.c.bf16 %v693, %v690
        %v807 = vpack.c.bf16 %v701, %v698
        %v808 = vpack.c.bf16 %v709, %v706
        %v809 = vpack.c.bf16 %v717, %v714
        %v810 = vpack.c.bf16 %v725, %v722
        %v811 = vpack.c.bf16 %v733, %v730
        %v812 = vpack.c.bf16 %v741, %v738
        %v813 = vpack.c.bf16 %v749, %v746
        %v814 = vpack.c.bf16 %v757, %v754
        %v815 = vpack.c.bf16 %v765, %v762
        %v816 = vpack.c.bf16 %v773, %v770
        %v817 = vpack.c.bf16 %v781, %v778
        %v818 = vpack.c.bf16 %v789, %v786
        %v819 = vpack.c.bf16 %v797, %v794
        %v820 = vld [vmem:[#allocation2] sm:$0xff]
        %v821 = vld [vmem:[#allocation2 + $0x8] sm:$0xff]
        %v822 = vld [vmem:[#allocation2 + $0x10] sm:$0xff]
        %v823 = vld [vmem:[#allocation2 + $0x18] sm:$0xff]
        %v824 = vld [vmem:[#allocation2 + $0x20] sm:$0xff]
        %v825 = vld [vmem:[#allocation2 + $0x28] sm:$0xff]
        %v826 = vld [vmem:[#allocation2 + $0x30] sm:$0xff]
        %v827 = vld [vmem:[#allocation2 + $0x38] sm:$0xff]
        %v828 = vld [vmem:[#allocation2 + $0x40] sm:$0xff]
        %v829 = vld [vmem:[#allocation2 + $0x48] sm:$0xff]
        %v830 = vld [vmem:[#allocation2 + $0x50] sm:$0xff]
        %v831 = vld [vmem:[#allocation2 + $0x58] sm:$0xff]
        %v832 = vld [vmem:[#allocation2 + $0x60] sm:$0xff]
        %v833 = vld [vmem:[#allocation2 + $0x68] sm:$0xff]
        %v834 = vld [vmem:[#allocation2 + $0x70] sm:$0xff]
        %v835 = vld [vmem:[#allocation2 + $0x78] sm:$0xff]
        %v836 = vld [vmem:[#allocation2 + $0x80] sm:$0xff]
        %v837 = vld [vmem:[#allocation2 + $0x88] sm:$0xff]
        %v838 = vld [vmem:[#allocation2 + $0x90] sm:$0xff]
        %v839 = vld [vmem:[#allocation2 + $0x98] sm:$0xff]
        %v840 = vld [vmem:[#allocation2 + $0xa0] sm:$0xff]
        %v841 = vld [vmem:[#allocation2 + $0xa8] sm:$0xff]
        %v842 = vld [vmem:[#allocation2 + $0xb0] sm:$0xff]
        %v843 = vld [vmem:[#allocation2 + $0xb8] sm:$0xff]
        %v844 = vld [vmem:[#allocation2 + $0xc0] sm:$0xff]
        %v845 = vld [vmem:[#allocation2 + $0xc8] sm:$0xff]
        %v846 = vld [vmem:[#allocation2 + $0xd0] sm:$0xff]
        %v847 = vld [vmem:[#allocation2 + $0xd8] sm:$0xff]
        %v848 = vld [vmem:[#allocation2 + $0xe0] sm:$0xff]
        %v849 = vld [vmem:[#allocation2 + $0xe8] sm:$0xff]
        %v850 = vld [vmem:[#allocation2 + $0xf0] sm:$0xff]
        %v851 = vld [vmem:[#allocation2 + $0xf8] sm:$0xff]
        %v868 = vunpack.c.l.b16 %v836
        %v869 = vunpack.c.h.b16 %v836
        %v870 = vunpack.c.l.b16 %v837
        %v871 = vunpack.c.h.b16 %v837
        %v872 = vunpack.c.l.b16 %v838
        %v873 = vunpack.c.h.b16 %v838
        %v874 = vunpack.c.l.b16 %v839
        %v875 = vunpack.c.h.b16 %v839
        %v876 = vunpack.c.l.b16 %v840
        %v877 = vunpack.c.h.b16 %v840
        %v878 = vunpack.c.l.b16 %v841
        %v879 = vunpack.c.h.b16 %v841
        %v880 = vunpack.c.l.b16 %v842
        %v881 = vunpack.c.h.b16 %v842
        %v882 = vunpack.c.l.b16 %v843
        %v883 = vunpack.c.h.b16 %v843
        %v884 = vunpack.c.l.b16 %v844
        %v885 = vunpack.c.h.b16 %v844
        %v886 = vunpack.c.l.b16 %v845
        %v887 = vunpack.c.h.b16 %v845
        %v888 = vunpack.c.l.b16 %v846
        %v889 = vunpack.c.h.b16 %v846
        %v890 = vunpack.c.l.b16 %v847
        %v891 = vunpack.c.h.b16 %v847
        %v892 = vunpack.c.l.b16 %v848
        %v893 = vunpack.c.h.b16 %v848
        %v894 = vunpack.c.l.b16 %v849
        %v895 = vunpack.c.h.b16 %v849
        %v896 = vunpack.c.l.b16 %v850
        %v897 = vunpack.c.h.b16 %v850
        %v898 = vunpack.c.l.b16 %v851
        %v899 = vunpack.c.h.b16 %v851
        %v900 = vpack.c.b16 %v870, %v868
        %v901 = vpack.c.b16 %v871, %v869
        %v902 = vpack.c.b16 %v874, %v872
        %v903 = vpack.c.b16 %v875, %v873
        %v904 = vpack.c.b16 %v878, %v876
        %v905 = vpack.c.b16 %v879, %v877
        %v906 = vpack.c.b16 %v882, %v880
        %v907 = vpack.c.b16 %v883, %v881
        %v908 = vpack.c.b16 %v886, %v884
        %v909 = vpack.c.b16 %v887, %v885
        %v910 = vpack.c.b16 %v890, %v888
        %v911 = vpack.c.b16 %v891, %v889
        %v912 = vpack.c.b16 %v894, %v892
        %v913 = vpack.c.b16 %v895, %v893
        %v914 = vpack.c.b16 %v898, %v896
        %v915 = vpack.c.b16 %v899, %v897
        %932 = vmatprep.subr.bf16.mxu0 %v915
        %933 = vmatpush1.bf16.msra.mxu0 %v914
        %934 = vmatprep.subr.bf16.mxu0 %v913
        %935 = vmatpush1.bf16.msra.mxu0 %v912
        %936 = vmatprep.subr.bf16.mxu0 %v911
        %937 = vmatpush1.bf16.msra.mxu0 %v910
        %938 = vmatprep.subr.bf16.mxu0 %v909
        %939 = vmatpush1.bf16.msra.mxu0 %v908
        %940 = vmatprep.subr.bf16.mxu0 %v907
        %941 = vmatpush1.bf16.msra.mxu0 %v906
        %942 = vmatprep.subr.bf16.mxu0 %v905
        %943 = vmatpush1.bf16.msra.mxu0 %v904
        %944 = vmatprep.subr.bf16.mxu0 %v903
        %945 = vmatpush1.bf16.msra.mxu0 %v902
        %946 = vmatprep.subr.bf16.mxu0 %v901
        %947 = vmatpush1.bf16.msra.mxu0 %v900
        %948 = vmatprep.subr.bf16.mxu0 0
        %949 = vmatpush2.bf16.msra.mxu0 0
        %950 = vmatprep.subr.bf16.mxu0 0
        %951 = vmatpush2.bf16.msra.mxu0 0
        %952 = vmatprep.subr.bf16.mxu0 0
        %953 = vmatpush2.bf16.msra.mxu0 0
        %954 = vmatprep.subr.bf16.mxu0 0
        %955 = vmatpush2.bf16.msra.mxu0 0
        %956 = vmatprep.subr.bf16.mxu0 0
        %957 = vmatpush2.bf16.msra.mxu0 0
        %958 = vmatprep.subr.bf16.mxu0 0
        %959 = vmatpush2.bf16.msra.mxu0 0
        %960 = vmatprep.subr.bf16.mxu0 0
        %961 = vmatpush2.bf16.msra.mxu0 0
        %962 = vmatprep.subr.bf16.mxu0 0
        %963 = vmatpush2.bf16.msra.mxu0 0
        %964 = vmatprep.mubr.bf16.mxu0 0
        %965 = vmatmul.mubr.bf16.gmra.mxu0 %v804
        %v966 = vpop.f32.mrf.mxu0
        %v967 = vadd.f32 0.0, %v966
        %v968 = vpop.f32.mrf.mxu0
        %v969 = vadd.f32 0.0, %v968
        %v970 = vpop.f32.mrf.mxu0
        %v971 = vadd.f32 0.0, %v970
        %v972 = vpop.f32.mrf.mxu0
        %v973 = vadd.f32 0.0, %v972
        %974 = vmatprep.mubr.bf16.mxu0 0
        %975 = vmatmul.mubr.bf16.gmra.mxu0 %v805
        %v976 = vpop.f32.mrf.mxu0
        %v977 = vadd.f32 0.0, %v976
        %v978 = vpop.f32.mrf.mxu0
        %v979 = vadd.f32 0.0, %v978
        %v980 = vpop.f32.mrf.mxu0
        %v981 = vadd.f32 0.0, %v980
        %v982 = vpop.f32.mrf.mxu0
        %v983 = vadd.f32 0.0, %v982
        %984 = vmatprep.mubr.bf16.mxu0 0
        %985 = vmatmul.mubr.bf16.gmra.mxu0 %v806
        %v986 = vpop.f32.mrf.mxu0
        %v987 = vadd.f32 0.0, %v986
        %v988 = vpop.f32.mrf.mxu0
        %v989 = vadd.f32 0.0, %v988
        %v990 = vpop.f32.mrf.mxu0
        %v991 = vadd.f32 0.0, %v990
        %v992 = vpop.f32.mrf.mxu0
        %v993 = vadd.f32 0.0, %v992
        %994 = vmatprep.mubr.bf16.mxu0 0
        %995 = vmatmul.mubr.bf16.gmra.mxu0 %v807
        %v996 = vpop.f32.mrf.mxu0
        %v997 = vadd.f32 0.0, %v996
        %v998 = vpop.f32.mrf.mxu0
        %v999 = vadd.f32 0.0, %v998
        %v1000 = vpop.f32.mrf.mxu0
        %v1001 = vadd.f32 0.0, %v1000
        %v1002 = vpop.f32.mrf.mxu0
        %v1003 = vadd.f32 0.0, %v1002
        %1004 = vdwg.mxu0
        %v1021 = vunpack.c.l.b16 %v820
        %v1022 = vunpack.c.h.b16 %v820
        %v1023 = vunpack.c.l.b16 %v821
        %v1024 = vunpack.c.h.b16 %v821
        %v1025 = vunpack.c.l.b16 %v822
        %v1026 = vunpack.c.h.b16 %v822
        %v1027 = vunpack.c.l.b16 %v823
        %v1028 = vunpack.c.h.b16 %v823
        %v1029 = vunpack.c.l.b16 %v824
        %v1030 = vunpack.c.h.b16 %v824
        %v1031 = vunpack.c.l.b16 %v825
        %v1032 = vunpack.c.h.b16 %v825
        %v1033 = vunpack.c.l.b16 %v826
        %v1034 = vunpack.c.h.b16 %v826
        %v1035 = vunpack.c.l.b16 %v827
        %v1036 = vunpack.c.h.b16 %v827
        %v1037 = vunpack.c.l.b16 %v828
        %v1038 = vunpack.c.h.b16 %v828
        %v1039 = vunpack.c.l.b16 %v829
        %v1040 = vunpack.c.h.b16 %v829
        %v1041 = vunpack.c.l.b16 %v830
        %v1042 = vunpack.c.h.b16 %v830
        %v1043 = vunpack.c.l.b16 %v831
        %v1044 = vunpack.c.h.b16 %v831
        %v1045 = vunpack.c.l.b16 %v832
        %v1046 = vunpack.c.h.b16 %v832
        %v1047 = vunpack.c.l.b16 %v833
        %v1048 = vunpack.c.h.b16 %v833
        %v1049 = vunpack.c.l.b16 %v834
        %v1050 = vunpack.c.h.b16 %v834
        %v1051 = vunpack.c.l.b16 %v835
        %v1052 = vunpack.c.h.b16 %v835
        %v1053 = vpack.c.b16 %v1023, %v1021
        %v1054 = vpack.c.b16 %v1024, %v1022
        %v1055 = vpack.c.b16 %v1027, %v1025
        %v1056 = vpack.c.b16 %v1028, %v1026
        %v1057 = vpack.c.b16 %v1031, %v1029
        %v1058 = vpack.c.b16 %v1032, %v1030
        %v1059 = vpack.c.b16 %v1035, %v1033
        %v1060 = vpack.c.b16 %v1036, %v1034
        %v1061 = vpack.c.b16 %v1039, %v1037
        %v1062 = vpack.c.b16 %v1040, %v1038
        %v1063 = vpack.c.b16 %v1043, %v1041
        %v1064 = vpack.c.b16 %v1044, %v1042
        %v1065 = vpack.c.b16 %v1047, %v1045
        %v1066 = vpack.c.b16 %v1048, %v1046
        %v1067 = vpack.c.b16 %v1051, %v1049
        %v1068 = vpack.c.b16 %v1052, %v1050
        %1085 = vmatprep.subr.bf16.mxu0 %v1068
        %1086 = vmatpush1.bf16.msra.mxu0 %v1067
        %1087 = vmatprep.subr.bf16.mxu0 %v1066
        %1088 = vmatpush1.bf16.msra.mxu0 %v1065
        %1089 = vmatprep.subr.bf16.mxu0 %v1064
        %1090 = vmatpush1.bf16.msra.mxu0 %v1063
        %1091 = vmatprep.subr.bf16.mxu0 %v1062
        %1092 = vmatpush1.bf16.msra.mxu0 %v1061
        %1093 = vmatprep.subr.bf16.mxu0 %v1060
        %1094 = vmatpush1.bf16.msra.mxu0 %v1059
        %1095 = vmatprep.subr.bf16.mxu0 %v1058
        %1096 = vmatpush1.bf16.msra.mxu0 %v1057
        %1097 = vmatprep.subr.bf16.mxu0 %v1056
        %1098 = vmatpush1.bf16.msra.mxu0 %v1055
        %1099 = vmatprep.subr.bf16.mxu0 %v1054
        %1100 = vmatpush1.bf16.msra.mxu0 %v1053
        %1101 = vmatprep.subr.bf16.mxu0 0
        %1102 = vmatpush2.bf16.msra.mxu0 0
        %1103 = vmatprep.subr.bf16.mxu0 0
        %1104 = vmatpush2.bf16.msra.mxu0 0
        %1105 = vmatprep.subr.bf16.mxu0 0
        %1106 = vmatpush2.bf16.msra.mxu0 0
        %1107 = vmatprep.subr.bf16.mxu0 0
        %1108 = vmatpush2.bf16.msra.mxu0 0
        %1109 = vmatprep.subr.bf16.mxu0 0
        %1110 = vmatpush2.bf16.msra.mxu0 0
        %1111 = vmatprep.subr.bf16.mxu0 0
        %1112 = vmatpush2.bf16.msra.mxu0 0
        %1113 = vmatprep.subr.bf16.mxu0 0
        %1114 = vmatpush2.bf16.msra.mxu0 0
        %1115 = vmatprep.subr.bf16.mxu0 0
        %1116 = vmatpush2.bf16.msra.mxu0 0
        %1117 = vmatprep.mubr.bf16.mxu0 0
        %1118 = vmatmul.mubr.bf16.gmra.mxu0 %v800
        %v1119 = vpop.f32.mrf.mxu0
        %v1120 = vadd.f32 %v967, %v1119
        %v1121 = vpop.f32.mrf.mxu0
        %v1122 = vadd.f32 %v969, %v1121
        %v1123 = vpop.f32.mrf.mxu0
        %v1124 = vadd.f32 %v971, %v1123
        %v1125 = vpop.f32.mrf.mxu0
        %v1126 = vadd.f32 %v973, %v1125
        %1127 = vmatprep.mubr.bf16.mxu0 0
        %1128 = vmatmul.mubr.bf16.gmra.mxu0 %v801
        %v1129 = vpop.f32.mrf.mxu0
        %v1130 = vadd.f32 %v977, %v1129
        %v1131 = vpop.f32.mrf.mxu0
        %v1132 = vadd.f32 %v979, %v1131
        %v1133 = vpop.f32.mrf.mxu0
        %v1134 = vadd.f32 %v981, %v1133
        %v1135 = vpop.f32.mrf.mxu0
        %v1136 = vadd.f32 %v983, %v1135
        %1137 = vmatprep.mubr.bf16.mxu0 0
        %1138 = vmatmul.mubr.bf16.gmra.mxu0 %v802
        %v1139 = vpop.f32.mrf.mxu0
        %v1140 = vadd.f32 %v987, %v1139
        %v1141 = vpop.f32.mrf.mxu0
        %v1142 = vadd.f32 %v989, %v1141
        %v1143 = vpop.f32.mrf.mxu0
        %v1144 = vadd.f32 %v991, %v1143
        %v1145 = vpop.f32.mrf.mxu0
        %v1146 = vadd.f32 %v993, %v1145
        %1147 = vmatprep.mubr.bf16.mxu0 0
        %1148 = vmatmul.mubr.bf16.gmra.mxu0 %v803
        %v1149 = vpop.f32.mrf.mxu0
        %v1150 = vadd.f32 %v997, %v1149
        %v1151 = vpop.f32.mrf.mxu0
        %v1152 = vadd.f32 %v999, %v1151
        %v1153 = vpop.f32.mrf.mxu0
        %v1154 = vadd.f32 %v1001, %v1153
        %v1155 = vpop.f32.mrf.mxu0
        %v1156 = vadd.f32 %v1003, %v1155
        %1157 = vdwg.mxu0
        %v1158 = vld [vmem:[#allocation2 + $0x100] sm:$0xff]
        %v1159 = vld [vmem:[#allocation2 + $0x108] sm:$0xff]
        %v1160 = vld [vmem:[#allocation2 + $0x110] sm:$0xff]
        %v1161 = vld [vmem:[#allocation2 + $0x118] sm:$0xff]
        %v1162 = vld [vmem:[#allocation2 + $0x120] sm:$0xff]
        %v1163 = vld [vmem:[#allocation2 + $0x128] sm:$0xff]
        %v1164 = vld [vmem:[#allocation2 + $0x130] sm:$0xff]
        %v1165 = vld [vmem:[#allocation2 + $0x138] sm:$0xff]
        %v1166 = vld [vmem:[#allocation2 + $0x140] sm:$0xff]
        %v1167 = vld [vmem:[#allocation2 + $0x148] sm:$0xff]
        %v1168 = vld [vmem:[#allocation2 + $0x150] sm:$0xff]
        %v1169 = vld [vmem:[#allocation2 + $0x158] sm:$0xff]
        %v1170 = vld [vmem:[#allocation2 + $0x160] sm:$0xff]
        %v1171 = vld [vmem:[#allocation2 + $0x168] sm:$0xff]
        %v1172 = vld [vmem:[#allocation2 + $0x170] sm:$0xff]
        %v1173 = vld [vmem:[#allocation2 + $0x178] sm:$0xff]
        %v1190 = vunpack.c.l.b16 %v1158
        %v1191 = vunpack.c.h.b16 %v1158
        %v1192 = vunpack.c.l.b16 %v1159
        %v1193 = vunpack.c.h.b16 %v1159
        %v1194 = vunpack.c.l.b16 %v1160
        %v1195 = vunpack.c.h.b16 %v1160
        %v1196 = vunpack.c.l.b16 %v1161
        %v1197 = vunpack.c.h.b16 %v1161
        %v1198 = vunpack.c.l.b16 %v1162
        %v1199 = vunpack.c.h.b16 %v1162
        %v1200 = vunpack.c.l.b16 %v1163
        %v1201 = vunpack.c.h.b16 %v1163
        %v1202 = vunpack.c.l.b16 %v1164
        %v1203 = vunpack.c.h.b16 %v1164
        %v1204 = vunpack.c.l.b16 %v1165
        %v1205 = vunpack.c.h.b16 %v1165
        %v1206 = vunpack.c.l.b16 %v1166
        %v1207 = vunpack.c.h.b16 %v1166
        %v1208 = vunpack.c.l.b16 %v1167
        %v1209 = vunpack.c.h.b16 %v1167
        %v1210 = vunpack.c.l.b16 %v1168
        %v1211 = vunpack.c.h.b16 %v1168
        %v1212 = vunpack.c.l.b16 %v1169
        %v1213 = vunpack.c.h.b16 %v1169
        %v1214 = vunpack.c.l.b16 %v1170
        %v1215 = vunpack.c.h.b16 %v1170
        %v1216 = vunpack.c.l.b16 %v1171
        %v1217 = vunpack.c.h.b16 %v1171
        %v1218 = vunpack.c.l.b16 %v1172
        %v1219 = vunpack.c.h.b16 %v1172
        %v1220 = vunpack.c.l.b16 %v1173
        %v1221 = vunpack.c.h.b16 %v1173
        %v1222 = vpack.c.b16 %v1192, %v1190
        %v1223 = vpack.c.b16 %v1193, %v1191
        %v1224 = vpack.c.b16 %v1196, %v1194
        %v1225 = vpack.c.b16 %v1197, %v1195
        %v1226 = vpack.c.b16 %v1200, %v1198
        %v1227 = vpack.c.b16 %v1201, %v1199
        %v1228 = vpack.c.b16 %v1204, %v1202
        %v1229 = vpack.c.b16 %v1205, %v1203
        %v1230 = vpack.c.b16 %v1208, %v1206
        %v1231 = vpack.c.b16 %v1209, %v1207
        %v1232 = vpack.c.b16 %v1212, %v1210
        %v1233 = vpack.c.b16 %v1213, %v1211
        %v1234 = vpack.c.b16 %v1216, %v1214
        %v1235 = vpack.c.b16 %v1217, %v1215
        %v1236 = vpack.c.b16 %v1220, %v1218
        %v1237 = vpack.c.b16 %v1221, %v1219
        %1254 = vmatprep.subr.bf16.mxu0 %v1237
        %1255 = vmatpush1.bf16.msra.mxu0 %v1236
        %1256 = vmatprep.subr.bf16.mxu0 %v1235
        %1257 = vmatpush1.bf16.msra.mxu0 %v1234
        %1258 = vmatprep.subr.bf16.mxu0 %v1233
        %1259 = vmatpush1.bf16.msra.mxu0 %v1232
        %1260 = vmatprep.subr.bf16.mxu0 %v1231
        %1261 = vmatpush1.bf16.msra.mxu0 %v1230
        %1262 = vmatprep.subr.bf16.mxu0 %v1229
        %1263 = vmatpush1.bf16.msra.mxu0 %v1228
        %1264 = vmatprep.subr.bf16.mxu0 %v1227
        %1265 = vmatpush1.bf16.msra.mxu0 %v1226
        %1266 = vmatprep.subr.bf16.mxu0 %v1225
        %1267 = vmatpush1.bf16.msra.mxu0 %v1224
        %1268 = vmatprep.subr.bf16.mxu0 %v1223
        %1269 = vmatpush1.bf16.msra.mxu0 %v1222
        %1270 = vmatprep.subr.bf16.mxu0 0
        %1271 = vmatpush2.bf16.msra.mxu0 0
        %1272 = vmatprep.subr.bf16.mxu0 0
        %1273 = vmatpush2.bf16.msra.mxu0 0
        %1274 = vmatprep.subr.bf16.mxu0 0
        %1275 = vmatpush2.bf16.msra.mxu0 0
        %1276 = vmatprep.subr.bf16.mxu0 0
        %1277 = vmatpush2.bf16.msra.mxu0 0
        %1278 = vmatprep.subr.bf16.mxu0 0
        %1279 = vmatpush2.bf16.msra.mxu0 0
        %1280 = vmatprep.subr.bf16.mxu0 0
        %1281 = vmatpush2.bf16.msra.mxu0 0
        %1282 = vmatprep.subr.bf16.mxu0 0
        %1283 = vmatpush2.bf16.msra.mxu0 0
        %1284 = vmatprep.subr.bf16.mxu0 0
        %1285 = vmatpush2.bf16.msra.mxu0 0
        %1286 = vmatprep.mubr.bf16.mxu0 0
        %1287 = vmatmul.mubr.bf16.gmra.mxu0 %v808
        %v1288 = vpop.f32.mrf.mxu0
        %v1289 = vadd.f32 0.0, %v1288
        %v1290 = vpop.f32.mrf.mxu0
        %v1291 = vadd.f32 0.0, %v1290
        %v1292 = vpop.f32.mrf.mxu0
        %v1293 = vadd.f32 0.0, %v1292
        %v1294 = vpop.f32.mrf.mxu0
        %v1295 = vadd.f32 0.0, %v1294
        %1296 = vmatprep.mubr.bf16.mxu0 0
        %1297 = vmatmul.mubr.bf16.gmra.mxu0 %v809
        %v1298 = vpop.f32.mrf.mxu0
        %v1299 = vadd.f32 0.0, %v1298
        %v1300 = vpop.f32.mrf.mxu0
        %v1301 = vadd.f32 0.0, %v1300
        %v1302 = vpop.f32.mrf.mxu0
        %v1303 = vadd.f32 0.0, %v1302
        %v1304 = vpop.f32.mrf.mxu0
        %v1305 = vadd.f32 0.0, %v1304
        %1306 = vmatprep.mubr.bf16.mxu0 0
        %1307 = vmatmul.mubr.bf16.gmra.mxu0 %v810
        %v1308 = vpop.f32.mrf.mxu0
        %v1309 = vadd.f32 0.0, %v1308
        %v1310 = vpop.f32.mrf.mxu0
        %v1311 = vadd.f32 0.0, %v1310
        %v1312 = vpop.f32.mrf.mxu0
        %v1313 = vadd.f32 0.0, %v1312
        %v1314 = vpop.f32.mrf.mxu0
        %v1315 = vadd.f32 0.0, %v1314
        %1316 = vmatprep.mubr.bf16.mxu0 0
        %1317 = vmatmul.mubr.bf16.gmra.mxu0 %v811
        %v1318 = vpop.f32.mrf.mxu0
        %v1319 = vadd.f32 0.0, %v1318
        %v1320 = vpop.f32.mrf.mxu0
        %v1321 = vadd.f32 0.0, %v1320
        %v1322 = vpop.f32.mrf.mxu0
        %v1323 = vadd.f32 0.0, %v1322
        %v1324 = vpop.f32.mrf.mxu0
        %v1325 = vadd.f32 0.0, %v1324
        %1326 = vdwg.mxu0
        %v1327 = vadd.f32 %v1120, %v1289
        %v1328 = vadd.f32 %v1122, %v1291
        %v1329 = vadd.f32 %v1124, %v1293
        %v1330 = vadd.f32 %v1126, %v1295
        %v1331 = vadd.f32 %v1130, %v1299
        %v1332 = vadd.f32 %v1132, %v1301
        %v1333 = vadd.f32 %v1134, %v1303
        %v1334 = vadd.f32 %v1136, %v1305
        %v1335 = vadd.f32 %v1140, %v1309
        %v1336 = vadd.f32 %v1142, %v1311
        %v1337 = vadd.f32 %v1144, %v1313
        %v1338 = vadd.f32 %v1146, %v1315
        %v1339 = vadd.f32 %v1150, %v1319
        %v1340 = vadd.f32 %v1152, %v1321
        %v1341 = vadd.f32 %v1154, %v1323
        %v1342 = vadd.f32 %v1156, %v1325
        %v1343 = vld [vmem:[#allocation2 + $0x180] sm:$0xff]
        %v1344 = vld [vmem:[#allocation2 + $0x188] sm:$0xff]
        %v1345 = vld [vmem:[#allocation2 + $0x190] sm:$0xff]
        %v1346 = vld [vmem:[#allocation2 + $0x198] sm:$0xff]
        %v1347 = vld [vmem:[#allocation2 + $0x1a0] sm:$0xff]
        %v1348 = vld [vmem:[#allocation2 + $0x1a8] sm:$0xff]
        %v1349 = vld [vmem:[#allocation2 + $0x1b0] sm:$0xff]
        %v1350 = vld [vmem:[#allocation2 + $0x1b8] sm:$0xff]
        %v1351 = vld [vmem:[#allocation2 + $0x1c0] sm:$0xff]
        %v1352 = vld [vmem:[#allocation2 + $0x1c8] sm:$0xff]
        %v1353 = vld [vmem:[#allocation2 + $0x1d0] sm:$0xff]
        %v1354 = vld [vmem:[#allocation2 + $0x1d8] sm:$0xff]
        %v1355 = vld [vmem:[#allocation2 + $0x1e0] sm:$0xff]
        %v1356 = vld [vmem:[#allocation2 + $0x1e8] sm:$0xff]
        %v1357 = vld [vmem:[#allocation2 + $0x1f0] sm:$0xff]
        %v1358 = vld [vmem:[#allocation2 + $0x1f8] sm:$0xff]
        %v1375 = vunpack.c.l.b16 %v1343
        %v1376 = vunpack.c.h.b16 %v1343
        %v1377 = vunpack.c.l.b16 %v1344
        %v1378 = vunpack.c.h.b16 %v1344
        %v1379 = vunpack.c.l.b16 %v1345
        %v1380 = vunpack.c.h.b16 %v1345
        %v1381 = vunpack.c.l.b16 %v1346
        %v1382 = vunpack.c.h.b16 %v1346
        %v1383 = vunpack.c.l.b16 %v1347
        %v1384 = vunpack.c.h.b16 %v1347
        %v1385 = vunpack.c.l.b16 %v1348
        %v1386 = vunpack.c.h.b16 %v1348
        %v1387 = vunpack.c.l.b16 %v1349
        %v1388 = vunpack.c.h.b16 %v1349
        %v1389 = vunpack.c.l.b16 %v1350
        %v1390 = vunpack.c.h.b16 %v1350
        %v1391 = vunpack.c.l.b16 %v1351
        %v1392 = vunpack.c.h.b16 %v1351
        %v1393 = vunpack.c.l.b16 %v1352
        %v1394 = vunpack.c.h.b16 %v1352
        %v1395 = vunpack.c.l.b16 %v1353
        %v1396 = vunpack.c.h.b16 %v1353
        %v1397 = vunpack.c.l.b16 %v1354
        %v1398 = vunpack.c.h.b16 %v1354
        %v1399 = vunpack.c.l.b16 %v1355
        %v1400 = vunpack.c.h.b16 %v1355
        %v1401 = vunpack.c.l.b16 %v1356
        %v1402 = vunpack.c.h.b16 %v1356
        %v1403 = vunpack.c.l.b16 %v1357
        %v1404 = vunpack.c.h.b16 %v1357
        %v1405 = vunpack.c.l.b16 %v1358
        %v1406 = vunpack.c.h.b16 %v1358
        %v1407 = vpack.c.b16 %v1377, %v1375
        %v1408 = vpack.c.b16 %v1378, %v1376
        %v1409 = vpack.c.b16 %v1381, %v1379
        %v1410 = vpack.c.b16 %v1382, %v1380
        %v1411 = vpack.c.b16 %v1385, %v1383
        %v1412 = vpack.c.b16 %v1386, %v1384
        %v1413 = vpack.c.b16 %v1389, %v1387
        %v1414 = vpack.c.b16 %v1390, %v1388
        %v1415 = vpack.c.b16 %v1393, %v1391
        %v1416 = vpack.c.b16 %v1394, %v1392
        %v1417 = vpack.c.b16 %v1397, %v1395
        %v1418 = vpack.c.b16 %v1398, %v1396
        %v1419 = vpack.c.b16 %v1401, %v1399
        %v1420 = vpack.c.b16 %v1402, %v1400
        %v1421 = vpack.c.b16 %v1405, %v1403
        %v1422 = vpack.c.b16 %v1406, %v1404
        %1439 = vmatprep.subr.bf16.mxu0 %v1422
        %1440 = vmatpush1.bf16.msra.mxu0 %v1421
        %1441 = vmatprep.subr.bf16.mxu0 %v1420
        %1442 = vmatpush1.bf16.msra.mxu0 %v1419
        %1443 = vmatprep.subr.bf16.mxu0 %v1418
        %1444 = vmatpush1.bf16.msra.mxu0 %v1417
        %1445 = vmatprep.subr.bf16.mxu0 %v1416
        %1446 = vmatpush1.bf16.msra.mxu0 %v1415
        %1447 = vmatprep.subr.bf16.mxu0 %v1414
        %1448 = vmatpush1.bf16.msra.mxu0 %v1413
        %1449 = vmatprep.subr.bf16.mxu0 %v1412
        %1450 = vmatpush1.bf16.msra.mxu0 %v1411
        %1451 = vmatprep.subr.bf16.mxu0 %v1410
        %1452 = vmatpush1.bf16.msra.mxu0 %v1409
        %1453 = vmatprep.subr.bf16.mxu0 %v1408
        %1454 = vmatpush1.bf16.msra.mxu0 %v1407
        %1455 = vmatprep.subr.bf16.mxu0 0
        %1456 = vmatpush2.bf16.msra.mxu0 0
        %1457 = vmatprep.subr.bf16.mxu0 0
        %1458 = vmatpush2.bf16.msra.mxu0 0
        %1459 = vmatprep.subr.bf16.mxu0 0
        %1460 = vmatpush2.bf16.msra.mxu0 0
        %1461 = vmatprep.subr.bf16.mxu0 0
        %1462 = vmatpush2.bf16.msra.mxu0 0
        %1463 = vmatprep.subr.bf16.mxu0 0
        %1464 = vmatpush2.bf16.msra.mxu0 0
        %1465 = vmatprep.subr.bf16.mxu0 0
        %1466 = vmatpush2.bf16.msra.mxu0 0
        %1467 = vmatprep.subr.bf16.mxu0 0
        %1468 = vmatpush2.bf16.msra.mxu0 0
        %1469 = vmatprep.subr.bf16.mxu0 0
        %1470 = vmatpush2.bf16.msra.mxu0 0
        %1471 = vmatprep.mubr.bf16.mxu0 0
        %1472 = vmatmul.mubr.bf16.gmra.mxu0 %v812
        %v1473 = vpop.f32.mrf.mxu0
        %v1474 = vadd.f32 0.0, %v1473
        %v1475 = vpop.f32.mrf.mxu0
        %v1476 = vadd.f32 0.0, %v1475
        %v1477 = vpop.f32.mrf.mxu0
        %v1478 = vadd.f32 0.0, %v1477
        %v1479 = vpop.f32.mrf.mxu0
        %v1480 = vadd.f32 0.0, %v1479
        %1481 = vmatprep.mubr.bf16.mxu0 0
        %1482 = vmatmul.mubr.bf16.gmra.mxu0 %v813
        %v1483 = vpop.f32.mrf.mxu0
        %v1484 = vadd.f32 0.0, %v1483
        %v1485 = vpop.f32.mrf.mxu0
        %v1486 = vadd.f32 0.0, %v1485
        %v1487 = vpop.f32.mrf.mxu0
        %v1488 = vadd.f32 0.0, %v1487
        %v1489 = vpop.f32.mrf.mxu0
        %v1490 = vadd.f32 0.0, %v1489
        %1491 = vmatprep.mubr.bf16.mxu0 0
        %1492 = vmatmul.mubr.bf16.gmra.mxu0 %v814
        %v1493 = vpop.f32.mrf.mxu0
        %v1494 = vadd.f32 0.0, %v1493
        %v1495 = vpop.f32.mrf.mxu0
        %v1496 = vadd.f32 0.0, %v1495
        %v1497 = vpop.f32.mrf.mxu0
        %v1498 = vadd.f32 0.0, %v1497
        %v1499 = vpop.f32.mrf.mxu0
        %v1500 = vadd.f32 0.0, %v1499
        %1501 = vmatprep.mubr.bf16.mxu0 0
        %1502 = vmatmul.mubr.bf16.gmra.mxu0 %v815
        %v1503 = vpop.f32.mrf.mxu0
        %v1504 = vadd.f32 0.0, %v1503
        %v1505 = vpop.f32.mrf.mxu0
        %v1506 = vadd.f32 0.0, %v1505
        %v1507 = vpop.f32.mrf.mxu0
        %v1508 = vadd.f32 0.0, %v1507
        %v1509 = vpop.f32.mrf.mxu0
        %v1510 = vadd.f32 0.0, %v1509
        %1511 = vdwg.mxu0
        %v1512 = vadd.f32 %v1327, %v1474
        %v1513 = vadd.f32 %v1328, %v1476
        %v1514 = vadd.f32 %v1329, %v1478
        %v1515 = vadd.f32 %v1330, %v1480
        %v1516 = vadd.f32 %v1331, %v1484
        %v1517 = vadd.f32 %v1332, %v1486
        %v1518 = vadd.f32 %v1333, %v1488
        %v1519 = vadd.f32 %v1334, %v1490
        %v1520 = vadd.f32 %v1335, %v1494
        %v1521 = vadd.f32 %v1336, %v1496
        %v1522 = vadd.f32 %v1337, %v1498
        %v1523 = vadd.f32 %v1338, %v1500
        %v1524 = vadd.f32 %v1339, %v1504
        %v1525 = vadd.f32 %v1340, %v1506
        %v1526 = vadd.f32 %v1341, %v1508
        %v1527 = vadd.f32 %v1342, %v1510
        %v1528 = vld [vmem:[#allocation2 + $0x200] sm:$0xff]
        %v1529 = vld [vmem:[#allocation2 + $0x208] sm:$0xff]
        %v1530 = vld [vmem:[#allocation2 + $0x210] sm:$0xff]
        %v1531 = vld [vmem:[#allocation2 + $0x218] sm:$0xff]
        %v1532 = vld [vmem:[#allocation2 + $0x220] sm:$0xff]
        %v1533 = vld [vmem:[#allocation2 + $0x228] sm:$0xff]
        %v1534 = vld [vmem:[#allocation2 + $0x230] sm:$0xff]
        %v1535 = vld [vmem:[#allocation2 + $0x238] sm:$0xff]
        %v1536 = vld [vmem:[#allocation2 + $0x240] sm:$0xff]
        %v1537 = vld [vmem:[#allocation2 + $0x248] sm:$0xff]
        %v1538 = vld [vmem:[#allocation2 + $0x250] sm:$0xff]
        %v1539 = vld [vmem:[#allocation2 + $0x258] sm:$0xff]
        %v1540 = vld [vmem:[#allocation2 + $0x260] sm:$0xff]
        %v1541 = vld [vmem:[#allocation2 + $0x268] sm:$0xff]
        %v1542 = vld [vmem:[#allocation2 + $0x270] sm:$0xff]
        %v1543 = vld [vmem:[#allocation2 + $0x278] sm:$0xff]
        %v1560 = vunpack.c.l.b16 %v1528
        %v1561 = vunpack.c.h.b16 %v1528
        %v1562 = vunpack.c.l.b16 %v1529
        %v1563 = vunpack.c.h.b16 %v1529
        %v1564 = vunpack.c.l.b16 %v1530
        %v1565 = vunpack.c.h.b16 %v1530
        %v1566 = vunpack.c.l.b16 %v1531
        %v1567 = vunpack.c.h.b16 %v1531
        %v1568 = vunpack.c.l.b16 %v1532
        %v1569 = vunpack.c.h.b16 %v1532
        %v1570 = vunpack.c.l.b16 %v1533
        %v1571 = vunpack.c.h.b16 %v1533
        %v1572 = vunpack.c.l.b16 %v1534
        %v1573 = vunpack.c.h.b16 %v1534
        %v1574 = vunpack.c.l.b16 %v1535
        %v1575 = vunpack.c.h.b16 %v1535
        %v1576 = vunpack.c.l.b16 %v1536
        %v1577 = vunpack.c.h.b16 %v1536
        %v1578 = vunpack.c.l.b16 %v1537
        %v1579 = vunpack.c.h.b16 %v1537
        %v1580 = vunpack.c.l.b16 %v1538
        %v1581 = vunpack.c.h.b16 %v1538
        %v1582 = vunpack.c.l.b16 %v1539
        %v1583 = vunpack.c.h.b16 %v1539
        %v1584 = vunpack.c.l.b16 %v1540
        %v1585 = vunpack.c.h.b16 %v1540
        %v1586 = vunpack.c.l.b16 %v1541
        %v1587 = vunpack.c.h.b16 %v1541
        %v1588 = vunpack.c.l.b16 %v1542
        %v1589 = vunpack.c.h.b16 %v1542
        %v1590 = vunpack.c.l.b16 %v1543
        %v1591 = vunpack.c.h.b16 %v1543
        %v1592 = vpack.c.b16 %v1562, %v1560
        %v1593 = vpack.c.b16 %v1563, %v1561
        %v1594 = vpack.c.b16 %v1566, %v1564
        %v1595 = vpack.c.b16 %v1567, %v1565
        %v1596 = vpack.c.b16 %v1570, %v1568
        %v1597 = vpack.c.b16 %v1571, %v1569
        %v1598 = vpack.c.b16 %v1574, %v1572
        %v1599 = vpack.c.b16 %v1575, %v1573
        %v1600 = vpack.c.b16 %v1578, %v1576
        %v1601 = vpack.c.b16 %v1579, %v1577
        %v1602 = vpack.c.b16 %v1582, %v1580
        %v1603 = vpack.c.b16 %v1583, %v1581
        %v1604 = vpack.c.b16 %v1586, %v1584
        %v1605 = vpack.c.b16 %v1587, %v1585
        %v1606 = vpack.c.b16 %v1590, %v1588
        %v1607 = vpack.c.b16 %v1591, %v1589
        %1624 = vmatprep.subr.bf16.mxu0 %v1607
        %1625 = vmatpush1.bf16.msra.mxu0 %v1606
        %1626 = vmatprep.subr.bf16.mxu0 %v1605
        %1627 = vmatpush1.bf16.msra.mxu0 %v1604
        %1628 = vmatprep.subr.bf16.mxu0 %v1603
        %1629 = vmatpush1.bf16.msra.mxu0 %v1602
        %1630 = vmatprep.subr.bf16.mxu0 %v1601
        %1631 = vmatpush1.bf16.msra.mxu0 %v1600
        %1632 = vmatprep.subr.bf16.mxu0 %v1599
        %1633 = vmatpush1.bf16.msra.mxu0 %v1598
        %1634 = vmatprep.subr.bf16.mxu0 %v1597
        %1635 = vmatpush1.bf16.msra.mxu0 %v1596
        %1636 = vmatprep.subr.bf16.mxu0 %v1595
        %1637 = vmatpush1.bf16.msra.mxu0 %v1594
        %1638 = vmatprep.subr.bf16.mxu0 %v1593
        %1639 = vmatpush1.bf16.msra.mxu0 %v1592
        %1640 = vmatprep.subr.bf16.mxu0 0
        %1641 = vmatpush2.bf16.msra.mxu0 0
        %1642 = vmatprep.subr.bf16.mxu0 0
        %1643 = vmatpush2.bf16.msra.mxu0 0
        %1644 = vmatprep.subr.bf16.mxu0 0
        %1645 = vmatpush2.bf16.msra.mxu0 0
        %1646 = vmatprep.subr.bf16.mxu0 0
        %1647 = vmatpush2.bf16.msra.mxu0 0
        %1648 = vmatprep.subr.bf16.mxu0 0
        %1649 = vmatpush2.bf16.msra.mxu0 0
        %1650 = vmatprep.subr.bf16.mxu0 0
        %1651 = vmatpush2.bf16.msra.mxu0 0
        %1652 = vmatprep.subr.bf16.mxu0 0
        %1653 = vmatpush2.bf16.msra.mxu0 0
        %1654 = vmatprep.subr.bf16.mxu0 0
        %1655 = vmatpush2.bf16.msra.mxu0 0
        %1656 = vmatprep.mubr.bf16.mxu0 0
        %1657 = vmatmul.mubr.bf16.gmra.mxu0 %v816
        %v1658 = vpop.f32.mrf.mxu0
        %v1659 = vadd.f32 0.0, %v1658
        %v1660 = vpop.f32.mrf.mxu0
        %v1661 = vadd.f32 0.0, %v1660
        %v1662 = vpop.f32.mrf.mxu0
        %v1663 = vadd.f32 0.0, %v1662
        %v1664 = vpop.f32.mrf.mxu0
        %v1665 = vadd.f32 0.0, %v1664
        %1666 = vmatprep.mubr.bf16.mxu0 0
        %1667 = vmatmul.mubr.bf16.gmra.mxu0 %v817
        %v1668 = vpop.f32.mrf.mxu0
        %v1669 = vadd.f32 0.0, %v1668
        %v1670 = vpop.f32.mrf.mxu0
        %v1671 = vadd.f32 0.0, %v1670
        %v1672 = vpop.f32.mrf.mxu0
        %v1673 = vadd.f32 0.0, %v1672
        %v1674 = vpop.f32.mrf.mxu0
        %v1675 = vadd.f32 0.0, %v1674
        %1676 = vmatprep.mubr.bf16.mxu0 0
        %1677 = vmatmul.mubr.bf16.gmra.mxu0 %v818
        %v1678 = vpop.f32.mrf.mxu0
        %v1679 = vadd.f32 0.0, %v1678
        %v1680 = vpop.f32.mrf.mxu0
        %v1681 = vadd.f32 0.0, %v1680
        %v1682 = vpop.f32.mrf.mxu0
        %v1683 = vadd.f32 0.0, %v1682
        %v1684 = vpop.f32.mrf.mxu0
        %v1685 = vadd.f32 0.0, %v1684
        %1686 = vmatprep.mubr.bf16.mxu0 0
        %1687 = vmatmul.mubr.bf16.gmra.mxu0 %v819
        %v1688 = vpop.f32.mrf.mxu0
        %v1689 = vadd.f32 0.0, %v1688
        %v1690 = vpop.f32.mrf.mxu0
        %v1691 = vadd.f32 0.0, %v1690
        %v1692 = vpop.f32.mrf.mxu0
        %v1693 = vadd.f32 0.0, %v1692
        %v1694 = vpop.f32.mrf.mxu0
        %v1695 = vadd.f32 0.0, %v1694
        %1696 = vdwg.mxu0
        %v1697 = vadd.f32 %v1512, %v1659
        %v1698 = vadd.f32 %v1513, %v1661
        %v1699 = vadd.f32 %v1514, %v1663
        %v1700 = vadd.f32 %v1515, %v1665
        %v1701 = vadd.f32 %v1516, %v1669
        %v1702 = vadd.f32 %v1517, %v1671
        %v1703 = vadd.f32 %v1518, %v1673
        %v1704 = vadd.f32 %v1519, %v1675
        %v1705 = vadd.f32 %v1520, %v1679
        %v1706 = vadd.f32 %v1521, %v1681
        %v1707 = vadd.f32 %v1522, %v1683
        %v1708 = vadd.f32 %v1523, %v1685
        %v1709 = vadd.f32 %v1524, %v1689
        %v1710 = vadd.f32 %v1525, %v1691
        %v1711 = vadd.f32 %v1526, %v1693
        %v1712 = vadd.f32 %v1527, %v1695
        %v1713 = vld [vmem:[#allocation4] ss:$8 sm:$0x3]
        %v1715 = vlaneseq
        %v1716 = vshrl.u32 %v1715, 7
        %v1717 = vsub.s32 0, %v1716
        %v1718 = vrot.slane %v1713, %v1717
        %v1719 = vlaneseq
        %v1720 = vshrl.u32 %v1719, 7
        %v1721 = vsub.s32 1, %v1720
        %v1722 = vrot.slane %v1713, %v1721
        %v1725 = vadd.f32 %v1697, %v1718
        %v1726 = vadd.f32 %v1698, %v1722
        %v1727 = vadd.f32 %v1699, %v1718
        %v1728 = vadd.f32 %v1700, %v1722
        %v1729 = vadd.f32 %v1701, %v1718
        %v1730 = vadd.f32 %v1702, %v1722
        %v1731 = vadd.f32 %v1703, %v1718
        %v1732 = vadd.f32 %v1704, %v1722
        %v1733 = vadd.f32 %v1705, %v1718
        %v1734 = vadd.f32 %v1706, %v1722
        %v1735 = vadd.f32 %v1707, %v1718
        %v1736 = vadd.f32 %v1708, %v1722
        %v1737 = vadd.f32 %v1709, %v1718
        %v1738 = vadd.f32 %v1710, %v1722
        %v1739 = vadd.f32 %v1711, %v1718
        %v1740 = vadd.f32 %v1712, %v1722
        %v1741 = vmax.f32 %v1725, 0.0
        %v1742 = vmax.f32 %v1726, 0.0
        %v1743 = vmax.f32 %v1727, 0.0
        %v1744 = vmax.f32 %v1728, 0.0
        %v1745 = vmax.f32 %v1729, 0.0
        %v1746 = vmax.f32 %v1730, 0.0
        %v1747 = vmax.f32 %v1731, 0.0
        %v1748 = vmax.f32 %v1732, 0.0
        %v1749 = vmax.f32 %v1733, 0.0
        %v1750 = vmax.f32 %v1734, 0.0
        %v1751 = vmax.f32 %v1735, 0.0
        %v1752 = vmax.f32 %v1736, 0.0
        %v1753 = vmax.f32 %v1737, 0.0
        %v1754 = vmax.f32 %v1738, 0.0
        %v1755 = vmax.f32 %v1739, 0.0
        %v1756 = vmax.f32 %v1740, 0.0
        %v1757 = vpack.c.bf16 %v1743, %v1741
        %v1758 = vpack.c.bf16 %v1744, %v1742
        %v1759 = vpack.c.bf16 %v1747, %v1745
        %v1760 = vpack.c.bf16 %v1748, %v1746
        %v1761 = vpack.c.bf16 %v1751, %v1749
        %v1762 = vpack.c.bf16 %v1752, %v1750
        %v1763 = vpack.c.bf16 %v1755, %v1753
        %v1764 = vpack.c.bf16 %v1756, %v1754
        %v1765 = vld [vmem:[%s1 + $0x140] sm:$0xf]
        %v1766 = vld [vmem:[%s1 + $0x148] sm:$0xf]
        %v1767 = vld [vmem:[%s1 + $0x150] sm:$0xf]
        %v1768 = vld [vmem:[%s1 + $0x158] sm:$0xf]
        %v1769 = vld [vmem:[%s1 + $0x160] sm:$0xf]
        %v1770 = vld [vmem:[%s1 + $0x168] sm:$0xf]
        %v1771 = vld [vmem:[%s1 + $0x170] sm:$0xf]
        %v1772 = vld [vmem:[%s1 + $0x178] sm:$0xf]
        %v1773 = vld [vmem:[%s1 + $0x180] sm:$0xf]
        %v1774 = vld [vmem:[%s1 + $0x188] sm:$0xf]
        %v1775 = vld [vmem:[%s1 + $0x190] sm:$0xf]
        %v1776 = vld [vmem:[%s1 + $0x198] sm:$0xf]
        %v1789 = vunpack.c.l.b16 %v1765
        %v1790 = vunpack.c.l.b16 %v1766
        %v1791 = vunpack.c.l.b16 %v1767
        %v1792 = vunpack.c.l.b16 %v1768
        %v1793 = vunpack.c.l.b16 %v1769
        %v1794 = vunpack.c.l.b16 %v1770
        %v1795 = vunpack.c.l.b16 %v1771
        %v1796 = vunpack.c.l.b16 %v1772
        %v1797 = vunpack.c.l.b16 %v1773
        %v1798 = vunpack.c.l.b16 %v1774
        %v1799 = vunpack.c.l.b16 %v1775
        %v1800 = vunpack.c.l.b16 %v1776
        %v1801 = vpack.c.b16 %v1790, %v1789
        %v1802 = vpack.c.b16 %v1792, %v1791
        %v1803 = vpack.c.b16 %v1794, %v1793
        %v1804 = vpack.c.b16 %v1796, %v1795
        %v1805 = vpack.c.b16 %v1798, %v1797
        %v1806 = vpack.c.b16 %v1800, %v1799
        %v1808 = vsel %vm546, %v1801, 0
        %v1811 = vsel %vm546, %v1802, 0
        %v1814 = vsel %vm546, %v1803, 0
        %v1817 = vsel %vm546, %v1804, 0
        %v1820 = vsel %vm546, %v1805, 0
        %v1823 = vsel %vm546, %v1806, 0
        %1825 = vmatprep.subr.bf16.mxu0 0
        %1826 = vmatpush1.bf16.msra.mxu0 0
        %1827 = vmatprep.subr.bf16.mxu0 0
        %1828 = vmatpush1.bf16.msra.mxu0 0
        %1829 = vmatprep.subr.bf16.mxu0 0
        %1830 = vmatpush1.bf16.msra.mxu0 0
        %1831 = vmatprep.subr.bf16.mxu0 0
        %1832 = vmatpush1.bf16.msra.mxu0 0
        %1833 = vmatprep.subr.bf16.mxu0 %v1764
        %1834 = vmatpush1.bf16.msra.mxu0 %v1763
        %1835 = vmatprep.subr.bf16.mxu0 %v1762
        %1836 = vmatpush1.bf16.msra.mxu0 %v1761
        %1837 = vmatprep.subr.bf16.mxu0 %v1760
        %1838 = vmatpush1.bf16.msra.mxu0 %v1759
        %1839 = vmatprep.subr.bf16.mxu0 %v1758
        %1840 = vmatpush1.bf16.msra.mxu0 %v1757
        %1841 = vmatprep.subr.bf16.mxu0 0
        %1842 = vmatpush2.bf16.msra.mxu0 0
        %1843 = vmatprep.subr.bf16.mxu0 0
        %1844 = vmatpush2.bf16.msra.mxu0 0
        %1845 = vmatprep.subr.bf16.mxu0 0
        %1846 = vmatpush2.bf16.msra.mxu0 0
        %1847 = vmatprep.subr.bf16.mxu0 0
        %1848 = vmatpush2.bf16.msra.mxu0 0
        %1849 = vmatprep.subr.bf16.mxu0 0
        %1850 = vmatpush2.bf16.msra.mxu0 0
        %1851 = vmatprep.subr.bf16.mxu0 0
        %1852 = vmatpush2.bf16.msra.mxu0 0
        %1853 = vmatprep.subr.bf16.mxu0 0
        %1854 = vmatpush2.bf16.msra.mxu0 0
        %1855 = vmatprep.subr.bf16.mxu0 0
        %1856 = vmatpush2.bf16.msra.mxu0 0
        %1857 = vmatprep.mubr.bf16.mxu0 0
        %1858 = vmatmul.mubr.bf16.gmra.mxu0 %v1808
        %v1859 = vpop.f32.mrf.mxu0
        %v1860 = vadd.f32 0.0, %v1859
        %v1861 = vpop.f32.mrf.mxu0
        %v1862 = vadd.f32 0.0, %v1861
        %v1863 = vpop.f32.mrf.mxu0
        %v1864 = vadd.f32 0.0, %v1863
        %v1865 = vpop.f32.mrf.mxu0
        %v1866 = vadd.f32 0.0, %v1865
        %1867 = vmatprep.mubr.bf16.mxu0 0
        %1868 = vmatmul.mubr.bf16.gmra.mxu0 %v1811
        %v1869 = vpop.f32.mrf.mxu0
        %v1870 = vadd.f32 0.0, %v1869
        %v1871 = vpop.f32.mrf.mxu0
        %v1872 = vadd.f32 0.0, %v1871
        %v1873 = vpop.f32.mrf.mxu0
        %v1874 = vadd.f32 0.0, %v1873
        %v1875 = vpop.f32.mrf.mxu0
        %v1876 = vadd.f32 0.0, %v1875
        %1877 = vmatprep.mubr.bf16.mxu0 0
        %1878 = vmatmul.mubr.bf16.gmra.mxu0 %v1814
        %v1879 = vpop.f32.mrf.mxu0
        %v1880 = vadd.f32 0.0, %v1879
        %v1881 = vpop.f32.mrf.mxu0
        %v1882 = vadd.f32 0.0, %v1881
        %v1883 = vpop.f32.mrf.mxu0
        %v1884 = vadd.f32 0.0, %v1883
        %v1885 = vpop.f32.mrf.mxu0
        %v1886 = vadd.f32 0.0, %v1885
        %1887 = vmatprep.mubr.bf16.mxu0 0
        %1888 = vmatmul.mubr.bf16.gmra.mxu0 %v1817
        %v1889 = vpop.f32.mrf.mxu0
        %v1890 = vadd.f32 0.0, %v1889
        %v1891 = vpop.f32.mrf.mxu0
        %v1892 = vadd.f32 0.0, %v1891
        %v1893 = vpop.f32.mrf.mxu0
        %v1894 = vadd.f32 0.0, %v1893
        %v1895 = vpop.f32.mrf.mxu0
        %v1896 = vadd.f32 0.0, %v1895
        %1897 = vmatprep.mubr.bf16.mxu0 0
        %1898 = vmatmul.mubr.bf16.gmra.mxu0 %v1820
        %v1899 = vpop.f32.mrf.mxu0
        %v1900 = vadd.f32 0.0, %v1899
        %v1901 = vpop.f32.mrf.mxu0
        %v1902 = vadd.f32 0.0, %v1901
        %v1903 = vpop.f32.mrf.mxu0
        %v1904 = vadd.f32 0.0, %v1903
        %v1905 = vpop.f32.mrf.mxu0
        %v1906 = vadd.f32 0.0, %v1905
        %1907 = vmatprep.mubr.bf16.mxu0 0
        %1908 = vmatmul.mubr.bf16.gmra.mxu0 %v1823
        %v1909 = vpop.f32.mrf.mxu0
        %v1910 = vadd.f32 0.0, %v1909
        %v1911 = vpop.f32.mrf.mxu0
        %v1912 = vadd.f32 0.0, %v1911
        %v1913 = vpop.f32.mrf.mxu0
        %v1914 = vadd.f32 0.0, %v1913
        %v1915 = vpop.f32.mrf.mxu0
        %v1916 = vadd.f32 0.0, %v1915
        %1917 = vdwg.mxu0
        %v1918 = vpack.c.bf16 %v1864, %v1860
        %v1919 = vpack.c.bf16 %v1866, %v1862
        %v1920 = vpack.c.bf16 %v1874, %v1870
        %v1921 = vpack.c.bf16 %v1876, %v1872
        %v1922 = vpack.c.bf16 %v1884, %v1880
        %v1923 = vpack.c.bf16 %v1886, %v1882
        %v1924 = vpack.c.bf16 %v1894, %v1890
        %v1925 = vpack.c.bf16 %v1896, %v1892
        %v1926 = vpack.c.bf16 %v1904, %v1900
        %v1927 = vpack.c.bf16 %v1906, %v1902
        %v1928 = vpack.c.bf16 %v1914, %v1910
        %v1929 = vpack.c.bf16 %v1916, %v1912
        %v1930 = vld [vmem:[#allocation2 + $0x280] sm:$0xf]
        %v1931 = vld [vmem:[#allocation2 + $0x288] sm:$0xf]
        %v1932 = vld [vmem:[#allocation2 + $0x290] sm:$0xf]
        %v1933 = vld [vmem:[#allocation2 + $0x298] sm:$0xf]
        %v1934 = vld [vmem:[#allocation2 + $0x2a0] sm:$0xf]
        %v1935 = vld [vmem:[#allocation2 + $0x2a8] sm:$0xf]
        %v1936 = vld [vmem:[#allocation2 + $0x2b0] sm:$0xf]
        %v1937 = vld [vmem:[#allocation2 + $0x2b8] sm:$0xf]
        %v1938 = vld [vmem:[#allocation2 + $0x2c0] sm:$0xf]
        %v1939 = vld [vmem:[#allocation2 + $0x2c8] sm:$0xf]
        %v1940 = vld [vmem:[#allocation2 + $0x2d0] sm:$0xf]
        %v1941 = vld [vmem:[#allocation2 + $0x2d8] sm:$0xf]
        %v1942 = vld [vmem:[#allocation2 + $0x2e0] sm:$0xf]
        %v1943 = vld [vmem:[#allocation2 + $0x2e8] sm:$0xf]
        %v1944 = vld [vmem:[#allocation2 + $0x2f0] sm:$0xf]
        %v1945 = vld [vmem:[#allocation2 + $0x2f8] sm:$0xf]
        %v1946 = vld [vmem:[#allocation2 + $0x300] sm:$0xf]
        %v1947 = vld [vmem:[#allocation2 + $0x308] sm:$0xf]
        %v1948 = vld [vmem:[#allocation2 + $0x310] sm:$0xf]
        %v1949 = vld [vmem:[#allocation2 + $0x318] sm:$0xf]
        %v1950 = vld [vmem:[#allocation2 + $0x320] sm:$0xf]
        %v1951 = vld [vmem:[#allocation2 + $0x328] sm:$0xf]
        %v1952 = vld [vmem:[#allocation2 + $0x330] sm:$0xf]
        %v1953 = vld [vmem:[#allocation2 + $0x338] sm:$0xf]
        %v1954 = vld [vmem:[#allocation2 + $0x340] sm:$0xf]
        %v1955 = vld [vmem:[#allocation2 + $0x348] sm:$0xf]
        %v1956 = vld [vmem:[#allocation2 + $0x350] sm:$0xf]
        %v1957 = vld [vmem:[#allocation2 + $0x358] sm:$0xf]
        %v1958 = vld [vmem:[#allocation2 + $0x360] sm:$0xf]
        %v1959 = vld [vmem:[#allocation2 + $0x368] sm:$0xf]
        %v1960 = vld [vmem:[#allocation2 + $0x370] sm:$0xf]
        %v1961 = vld [vmem:[#allocation2 + $0x378] sm:$0xf]
        %v1962 = vld [vmem:[#allocation2 + $0x380] sm:$0xf]
        %v1963 = vld [vmem:[#allocation2 + $0x388] sm:$0xf]
        %v1964 = vld [vmem:[#allocation2 + $0x390] sm:$0xf]
        %v1965 = vld [vmem:[#allocation2 + $0x398] sm:$0xf]
        %v1966 = vld [vmem:[#allocation2 + $0x3a0] sm:$0xf]
        %v1967 = vld [vmem:[#allocation2 + $0x3a8] sm:$0xf]
        %v1968 = vld [vmem:[#allocation2 + $0x3b0] sm:$0xf]
        %v1969 = vld [vmem:[#allocation2 + $0x3b8] sm:$0xf]
        %v1970 = vld [vmem:[#allocation2 + $0x3c0] sm:$0xf]
        %v1971 = vld [vmem:[#allocation2 + $0x3c8] sm:$0xf]
        %v1972 = vld [vmem:[#allocation2 + $0x3d0] sm:$0xf]
        %v1973 = vld [vmem:[#allocation2 + $0x3d8] sm:$0xf]
        %v1974 = vld [vmem:[#allocation2 + $0x3e0] sm:$0xf]
        %v1975 = vld [vmem:[#allocation2 + $0x3e8] sm:$0xf]
        %v1976 = vld [vmem:[#allocation2 + $0x3f0] sm:$0xf]
        %v1977 = vld [vmem:[#allocation2 + $0x3f8] sm:$0xf]
        %v1978 = vld [vmem:[#allocation2 + $0x400] sm:$0xf]
        %v1979 = vld [vmem:[#allocation2 + $0x408] sm:$0xf]
        %v1980 = vld [vmem:[#allocation2 + $0x410] sm:$0xf]
        %v1981 = vld [vmem:[#allocation2 + $0x418] sm:$0xf]
        %v1982 = vld [vmem:[#allocation2 + $0x420] sm:$0xf]
        %v1983 = vld [vmem:[#allocation2 + $0x428] sm:$0xf]
        %v1984 = vld [vmem:[#allocation2 + $0x430] sm:$0xf]
        %v1985 = vld [vmem:[#allocation2 + $0x438] sm:$0xf]
        %v1986 = vld [vmem:[#allocation2 + $0x440] sm:$0xf]
        %v1987 = vld [vmem:[#allocation2 + $0x448] sm:$0xf]
        %v1988 = vld [vmem:[#allocation2 + $0x450] sm:$0xf]
        %v1989 = vld [vmem:[#allocation2 + $0x458] sm:$0xf]
        %v1990 = vld [vmem:[#allocation2 + $0x460] sm:$0xf]
        %v1991 = vld [vmem:[#allocation2 + $0x468] sm:$0xf]
        %v1992 = vld [vmem:[#allocation2 + $0x470] sm:$0xf]
        %v1993 = vld [vmem:[#allocation2 + $0x478] sm:$0xf]
        %v2026 = vunpack.c.l.b16 %v1962
        %v2027 = vunpack.c.l.b16 %v1963
        %v2028 = vunpack.c.l.b16 %v1964
        %v2029 = vunpack.c.l.b16 %v1965
        %v2030 = vunpack.c.l.b16 %v1966
        %v2031 = vunpack.c.l.b16 %v1967
        %v2032 = vunpack.c.l.b16 %v1968
        %v2033 = vunpack.c.l.b16 %v1969
        %v2034 = vunpack.c.l.b16 %v1970
        %v2035 = vunpack.c.l.b16 %v1971
        %v2036 = vunpack.c.l.b16 %v1972
        %v2037 = vunpack.c.l.b16 %v1973
        %v2038 = vunpack.c.l.b16 %v1974
        %v2039 = vunpack.c.l.b16 %v1975
        %v2040 = vunpack.c.l.b16 %v1976
        %v2041 = vunpack.c.l.b16 %v1977
        %v2042 = vunpack.c.l.b16 %v1978
        %v2043 = vunpack.c.l.b16 %v1979
        %v2044 = vunpack.c.l.b16 %v1980
        %v2045 = vunpack.c.l.b16 %v1981
        %v2046 = vunpack.c.l.b16 %v1982
        %v2047 = vunpack.c.l.b16 %v1983
        %v2048 = vunpack.c.l.b16 %v1984
        %v2049 = vunpack.c.l.b16 %v1985
        %v2050 = vunpack.c.l.b16 %v1986
        %v2051 = vunpack.c.l.b16 %v1987
        %v2052 = vunpack.c.l.b16 %v1988
        %v2053 = vunpack.c.l.b16 %v1989
        %v2054 = vunpack.c.l.b16 %v1990
        %v2055 = vunpack.c.l.b16 %v1991
        %v2056 = vunpack.c.l.b16 %v1992
        %v2057 = vunpack.c.l.b16 %v1993
        %v2058 = vpack.c.b16 %v2027, %v2026
        %v2059 = vpack.c.b16 %v2029, %v2028
        %v2060 = vpack.c.b16 %v2031, %v2030
        %v2061 = vpack.c.b16 %v2033, %v2032
        %v2062 = vpack.c.b16 %v2035, %v2034
        %v2063 = vpack.c.b16 %v2037, %v2036
        %v2064 = vpack.c.b16 %v2039, %v2038
        %v2065 = vpack.c.b16 %v2041, %v2040
        %v2066 = vpack.c.b16 %v2043, %v2042
        %v2067 = vpack.c.b16 %v2045, %v2044
        %v2068 = vpack.c.b16 %v2047, %v2046
        %v2069 = vpack.c.b16 %v2049, %v2048
        %v2070 = vpack.c.b16 %v2051, %v2050
        %v2071 = vpack.c.b16 %v2053, %v2052
        %v2072 = vpack.c.b16 %v2055, %v2054
        %v2073 = vpack.c.b16 %v2057, %v2056
        %2090 = vmatprep.subr.bf16.mxu0 0
        %2091 = vmatpush1.bf16.msra.mxu0 %v2065
        %2092 = vmatprep.subr.bf16.mxu0 0
        %2093 = vmatpush1.bf16.msra.mxu0 %v2064
        %2094 = vmatprep.subr.bf16.mxu0 0
        %2095 = vmatpush1.bf16.msra.mxu0 %v2063
        %2096 = vmatprep.subr.bf16.mxu0 0
        %2097 = vmatpush1.bf16.msra.mxu0 %v2062
        %2098 = vmatprep.subr.bf16.mxu0 0
        %2099 = vmatpush1.bf16.msra.mxu0 %v2061
        %2100 = vmatprep.subr.bf16.mxu0 0
        %2101 = vmatpush1.bf16.msra.mxu0 %v2060
        %2102 = vmatprep.subr.bf16.mxu0 0
        %2103 = vmatpush1.bf16.msra.mxu0 %v2059
        %2104 = vmatprep.subr.bf16.mxu0 0
        %2105 = vmatpush1.bf16.msra.mxu0 %v2058
        %2106 = vmatprep.subr.bf16.mxu0 0
        %2107 = vmatpush2.bf16.msra.mxu0 %v2073
        %2108 = vmatprep.subr.bf16.mxu0 0
        %2109 = vmatpush2.bf16.msra.mxu0 %v2072
        %2110 = vmatprep.subr.bf16.mxu0 0
        %2111 = vmatpush2.bf16.msra.mxu0 %v2071
        %2112 = vmatprep.subr.bf16.mxu0 0
        %2113 = vmatpush2.bf16.msra.mxu0 %v2070
        %2114 = vmatprep.subr.bf16.mxu0 0
        %2115 = vmatpush2.bf16.msra.mxu0 %v2069
        %2116 = vmatprep.subr.bf16.mxu0 0
        %2117 = vmatpush2.bf16.msra.mxu0 %v2068
        %2118 = vmatprep.subr.bf16.mxu0 0
        %2119 = vmatpush2.bf16.msra.mxu0 %v2067
        %2120 = vmatprep.subr.bf16.mxu0 0
        %2121 = vmatpush2.bf16.msra.mxu0 %v2066
        %2122 = vmatprep.mubr.bf16.mxu0 %v1923
        %2123 = vmatmul.mubr.bf16.gmra.mxu0 %v1922
        %v2124 = vpop.f32.mrf.mxu0
        %v2125 = vadd.f32 0.0, %v2124
        %v2126 = vpop.f32.mrf.mxu0
        %v2127 = vpop.f32.mrf.mxu0
        %v2128 = vadd.f32 0.0, %v2127
        %v2129 = vpop.f32.mrf.mxu0
        %2130 = vmatprep.mubr.bf16.mxu0 %v1925
        %2131 = vmatmul.mubr.bf16.gmra.mxu0 %v1924
        %v2132 = vpop.f32.mrf.mxu0
        %v2133 = vadd.f32 0.0, %v2132
        %v2134 = vpop.f32.mrf.mxu0
        %v2135 = vpop.f32.mrf.mxu0
        %v2136 = vadd.f32 0.0, %v2135
        %v2137 = vpop.f32.mrf.mxu0
        %2138 = vdwg.mxu0
        %v2171 = vunpack.c.l.b16 %v1930
        %v2172 = vunpack.c.l.b16 %v1931
        %v2173 = vunpack.c.l.b16 %v1932
        %v2174 = vunpack.c.l.b16 %v1933
        %v2175 = vunpack.c.l.b16 %v1934
        %v2176 = vunpack.c.l.b16 %v1935
        %v2177 = vunpack.c.l.b16 %v1936
        %v2178 = vunpack.c.l.b16 %v1937
        %v2179 = vunpack.c.l.b16 %v1938
        %v2180 = vunpack.c.l.b16 %v1939
        %v2181 = vunpack.c.l.b16 %v1940
        %v2182 = vunpack.c.l.b16 %v1941
        %v2183 = vunpack.c.l.b16 %v1942
        %v2184 = vunpack.c.l.b16 %v1943
        %v2185 = vunpack.c.l.b16 %v1944
        %v2186 = vunpack.c.l.b16 %v1945
        %v2187 = vunpack.c.l.b16 %v1946
        %v2188 = vunpack.c.l.b16 %v1947
        %v2189 = vunpack.c.l.b16 %v1948
        %v2190 = vunpack.c.l.b16 %v1949
        %v2191 = vunpack.c.l.b16 %v1950
        %v2192 = vunpack.c.l.b16 %v1951
        %v2193 = vunpack.c.l.b16 %v1952
        %v2194 = vunpack.c.l.b16 %v1953
        %v2195 = vunpack.c.l.b16 %v1954
        %v2196 = vunpack.c.l.b16 %v1955
        %v2197 = vunpack.c.l.b16 %v1956
        %v2198 = vunpack.c.l.b16 %v1957
        %v2199 = vunpack.c.l.b16 %v1958
        %v2200 = vunpack.c.l.b16 %v1959
        %v2201 = vunpack.c.l.b16 %v1960
        %v2202 = vunpack.c.l.b16 %v1961
        %v2203 = vpack.c.b16 %v2172, %v2171
        %v2204 = vpack.c.b16 %v2174, %v2173
        %v2205 = vpack.c.b16 %v2176, %v2175
        %v2206 = vpack.c.b16 %v2178, %v2177
        %v2207 = vpack.c.b16 %v2180, %v2179
        %v2208 = vpack.c.b16 %v2182, %v2181
        %v2209 = vpack.c.b16 %v2184, %v2183
        %v2210 = vpack.c.b16 %v2186, %v2185
        %v2211 = vpack.c.b16 %v2188, %v2187
        %v2212 = vpack.c.b16 %v2190, %v2189
        %v2213 = vpack.c.b16 %v2192, %v2191
        %v2214 = vpack.c.b16 %v2194, %v2193
        %v2215 = vpack.c.b16 %v2196, %v2195
        %v2216 = vpack.c.b16 %v2198, %v2197
        %v2217 = vpack.c.b16 %v2200, %v2199
        %v2218 = vpack.c.b16 %v2202, %v2201
        %2235 = vmatprep.subr.bf16.mxu0 0
        %2236 = vmatpush1.bf16.msra.mxu0 %v2210
        %2237 = vmatprep.subr.bf16.mxu0 0
        %2238 = vmatpush1.bf16.msra.mxu0 %v2209
        %2239 = vmatprep.subr.bf16.mxu0 0
        %2240 = vmatpush1.bf16.msra.mxu0 %v2208
        %2241 = vmatprep.subr.bf16.mxu0 0
        %2242 = vmatpush1.bf16.msra.mxu0 %v2207
        %2243 = vmatprep.subr.bf16.mxu0 0
        %2244 = vmatpush1.bf16.msra.mxu0 %v2206
        %2245 = vmatprep.subr.bf16.mxu0 0
        %2246 = vmatpush1.bf16.msra.mxu0 %v2205
        %2247 = vmatprep.subr.bf16.mxu0 0
        %2248 = vmatpush1.bf16.msra.mxu0 %v2204
        %2249 = vmatprep.subr.bf16.mxu0 0
        %2250 = vmatpush1.bf16.msra.mxu0 %v2203
        %2251 = vmatprep.subr.bf16.mxu0 0
        %2252 = vmatpush2.bf16.msra.mxu0 %v2218
        %2253 = vmatprep.subr.bf16.mxu0 0
        %2254 = vmatpush2.bf16.msra.mxu0 %v2217
        %2255 = vmatprep.subr.bf16.mxu0 0
        %2256 = vmatpush2.bf16.msra.mxu0 %v2216
        %2257 = vmatprep.subr.bf16.mxu0 0
        %2258 = vmatpush2.bf16.msra.mxu0 %v2215
        %2259 = vmatprep.subr.bf16.mxu0 0
        %2260 = vmatpush2.bf16.msra.mxu0 %v2214
        %2261 = vmatprep.subr.bf16.mxu0 0
        %2262 = vmatpush2.bf16.msra.mxu0 %v2213
        %2263 = vmatprep.subr.bf16.mxu0 0
        %2264 = vmatpush2.bf16.msra.mxu0 %v2212
        %2265 = vmatprep.subr.bf16.mxu0 0
        %2266 = vmatpush2.bf16.msra.mxu0 %v2211
        %2267 = vmatprep.mubr.bf16.mxu0 %v1919
        %2268 = vmatmul.mubr.bf16.gmra.mxu0 %v1918
        %v2269 = vpop.f32.mrf.mxu0
        %v2270 = vadd.f32 %v2125, %v2269
        %v2271 = vpop.f32.mrf.mxu0
        %v2272 = vpop.f32.mrf.mxu0
        %v2273 = vadd.f32 %v2128, %v2272
        %v2274 = vpop.f32.mrf.mxu0
        %2275 = vmatprep.mubr.bf16.mxu0 %v1921
        %2276 = vmatmul.mubr.bf16.gmra.mxu0 %v1920
        %v2277 = vpop.f32.mrf.mxu0
        %v2278 = vadd.f32 %v2133, %v2277
        %v2279 = vpop.f32.mrf.mxu0
        %v2280 = vpop.f32.mrf.mxu0
        %v2281 = vadd.f32 %v2136, %v2280
        %v2282 = vpop.f32.mrf.mxu0
        %2283 = vdwg.mxu0
        %v2284 = vld [vmem:[#allocation2 + $0x480] sm:$0xf]
        %v2285 = vld [vmem:[#allocation2 + $0x488] sm:$0xf]
        %v2286 = vld [vmem:[#allocation2 + $0x490] sm:$0xf]
        %v2287 = vld [vmem:[#allocation2 + $0x498] sm:$0xf]
        %v2288 = vld [vmem:[#allocation2 + $0x4a0] sm:$0xf]
        %v2289 = vld [vmem:[#allocation2 + $0x4a8] sm:$0xf]
        %v2290 = vld [vmem:[#allocation2 + $0x4b0] sm:$0xf]
        %v2291 = vld [vmem:[#allocation2 + $0x4b8] sm:$0xf]
        %v2292 = vld [vmem:[#allocation2 + $0x4c0] sm:$0xf]
        %v2293 = vld [vmem:[#allocation2 + $0x4c8] sm:$0xf]
        %v2294 = vld [vmem:[#allocation2 + $0x4d0] sm:$0xf]
        %v2295 = vld [vmem:[#allocation2 + $0x4d8] sm:$0xf]
        %v2296 = vld [vmem:[#allocation2 + $0x4e0] sm:$0xf]
        %v2297 = vld [vmem:[#allocation2 + $0x4e8] sm:$0xf]
        %v2298 = vld [vmem:[#allocation2 + $0x4f0] sm:$0xf]
        %v2299 = vld [vmem:[#allocation2 + $0x4f8] sm:$0xf]
        %v2300 = vld [vmem:[#allocation2 + $0x500] sm:$0xf]
        %v2301 = vld [vmem:[#allocation2 + $0x508] sm:$0xf]
        %v2302 = vld [vmem:[#allocation2 + $0x510] sm:$0xf]
        %v2303 = vld [vmem:[#allocation2 + $0x518] sm:$0xf]
        %v2304 = vld [vmem:[#allocation2 + $0x520] sm:$0xf]
        %v2305 = vld [vmem:[#allocation2 + $0x528] sm:$0xf]
        %v2306 = vld [vmem:[#allocation2 + $0x530] sm:$0xf]
        %v2307 = vld [vmem:[#allocation2 + $0x538] sm:$0xf]
        %v2308 = vld [vmem:[#allocation2 + $0x540] sm:$0xf]
        %v2309 = vld [vmem:[#allocation2 + $0x548] sm:$0xf]
        %v2310 = vld [vmem:[#allocation2 + $0x550] sm:$0xf]
        %v2311 = vld [vmem:[#allocation2 + $0x558] sm:$0xf]
        %v2312 = vld [vmem:[#allocation2 + $0x560] sm:$0xf]
        %v2313 = vld [vmem:[#allocation2 + $0x568] sm:$0xf]
        %v2314 = vld [vmem:[#allocation2 + $0x570] sm:$0xf]
        %v2315 = vld [vmem:[#allocation2 + $0x578] sm:$0xf]
        %v2348 = vunpack.c.l.b16 %v2284
        %v2349 = vunpack.c.l.b16 %v2285
        %v2350 = vunpack.c.l.b16 %v2286
        %v2351 = vunpack.c.l.b16 %v2287
        %v2352 = vunpack.c.l.b16 %v2288
        %v2353 = vunpack.c.l.b16 %v2289
        %v2354 = vunpack.c.l.b16 %v2290
        %v2355 = vunpack.c.l.b16 %v2291
        %v2356 = vunpack.c.l.b16 %v2292
        %v2357 = vunpack.c.l.b16 %v2293
        %v2358 = vunpack.c.l.b16 %v2294
        %v2359 = vunpack.c.l.b16 %v2295
        %v2360 = vunpack.c.l.b16 %v2296
        %v2361 = vunpack.c.l.b16 %v2297
        %v2362 = vunpack.c.l.b16 %v2298
        %v2363 = vunpack.c.l.b16 %v2299
        %v2364 = vunpack.c.l.b16 %v2300
        %v2365 = vunpack.c.l.b16 %v2301
        %v2366 = vunpack.c.l.b16 %v2302
        %v2367 = vunpack.c.l.b16 %v2303
        %v2368 = vunpack.c.l.b16 %v2304
        %v2369 = vunpack.c.l.b16 %v2305
        %v2370 = vunpack.c.l.b16 %v2306
        %v2371 = vunpack.c.l.b16 %v2307
        %v2372 = vunpack.c.l.b16 %v2308
        %v2373 = vunpack.c.l.b16 %v2309
        %v2374 = vunpack.c.l.b16 %v2310
        %v2375 = vunpack.c.l.b16 %v2311
        %v2376 = vunpack.c.l.b16 %v2312
        %v2377 = vunpack.c.l.b16 %v2313
        %v2378 = vunpack.c.l.b16 %v2314
        %v2379 = vunpack.c.l.b16 %v2315
        %v2380 = vpack.c.b16 %v2349, %v2348
        %v2381 = vpack.c.b16 %v2351, %v2350
        %v2382 = vpack.c.b16 %v2353, %v2352
        %v2383 = vpack.c.b16 %v2355, %v2354
        %v2384 = vpack.c.b16 %v2357, %v2356
        %v2385 = vpack.c.b16 %v2359, %v2358
        %v2386 = vpack.c.b16 %v2361, %v2360
        %v2387 = vpack.c.b16 %v2363, %v2362
        %v2388 = vpack.c.b16 %v2365, %v2364
        %v2389 = vpack.c.b16 %v2367, %v2366
        %v2390 = vpack.c.b16 %v2369, %v2368
        %v2391 = vpack.c.b16 %v2371, %v2370
        %v2392 = vpack.c.b16 %v2373, %v2372
        %v2393 = vpack.c.b16 %v2375, %v2374
        %v2394 = vpack.c.b16 %v2377, %v2376
        %v2395 = vpack.c.b16 %v2379, %v2378
        %2412 = vmatprep.subr.bf16.mxu0 0
        %2413 = vmatpush1.bf16.msra.mxu0 %v2387
        %2414 = vmatprep.subr.bf16.mxu0 0
        %2415 = vmatpush1.bf16.msra.mxu0 %v2386
        %2416 = vmatprep.subr.bf16.mxu0 0
        %2417 = vmatpush1.bf16.msra.mxu0 %v2385
        %2418 = vmatprep.subr.bf16.mxu0 0
        %2419 = vmatpush1.bf16.msra.mxu0 %v2384
        %2420 = vmatprep.subr.bf16.mxu0 0
        %2421 = vmatpush1.bf16.msra.mxu0 %v2383
        %2422 = vmatprep.subr.bf16.mxu0 0
        %2423 = vmatpush1.bf16.msra.mxu0 %v2382
        %2424 = vmatprep.subr.bf16.mxu0 0
        %2425 = vmatpush1.bf16.msra.mxu0 %v2381
        %2426 = vmatprep.subr.bf16.mxu0 0
        %2427 = vmatpush1.bf16.msra.mxu0 %v2380
        %2428 = vmatprep.subr.bf16.mxu0 0
        %2429 = vmatpush2.bf16.msra.mxu0 %v2395
        %2430 = vmatprep.subr.bf16.mxu0 0
        %2431 = vmatpush2.bf16.msra.mxu0 %v2394
        %2432 = vmatprep.subr.bf16.mxu0 0
        %2433 = vmatpush2.bf16.msra.mxu0 %v2393
        %2434 = vmatprep.subr.bf16.mxu0 0
        %2435 = vmatpush2.bf16.msra.mxu0 %v2392
        %2436 = vmatprep.subr.bf16.mxu0 0
        %2437 = vmatpush2.bf16.msra.mxu0 %v2391
        %2438 = vmatprep.subr.bf16.mxu0 0
        %2439 = vmatpush2.bf16.msra.mxu0 %v2390
        %2440 = vmatprep.subr.bf16.mxu0 0
        %2441 = vmatpush2.bf16.msra.mxu0 %v2389
        %2442 = vmatprep.subr.bf16.mxu0 0
        %2443 = vmatpush2.bf16.msra.mxu0 %v2388
        %2444 = vmatprep.mubr.bf16.mxu0 %v1927
        %2445 = vmatmul.mubr.bf16.gmra.mxu0 %v1926
        %v2446 = vpop.f32.mrf.mxu0
        %v2447 = vadd.f32 0.0, %v2446
        %v2448 = vpop.f32.mrf.mxu0
        %v2449 = vpop.f32.mrf.mxu0
        %v2450 = vadd.f32 0.0, %v2449
        %v2451 = vpop.f32.mrf.mxu0
        %2452 = vmatprep.mubr.bf16.mxu0 %v1929
        %2453 = vmatmul.mubr.bf16.gmra.mxu0 %v1928
        %v2454 = vpop.f32.mrf.mxu0
        %v2455 = vadd.f32 0.0, %v2454
        %v2456 = vpop.f32.mrf.mxu0
        %v2457 = vpop.f32.mrf.mxu0
        %v2458 = vadd.f32 0.0, %v2457
        %v2459 = vpop.f32.mrf.mxu0
        %2460 = vdwg.mxu0
        %v2461 = vadd.f32 %v2270, %v2447
        %v2462 = vadd.f32 %v2273, %v2450
        %v2463 = vadd.f32 %v2278, %v2455
        %v2464 = vadd.f32 %v2281, %v2458
        %v2465 = vld [vmem:[#allocation4 + $0x1] ss:$0 sm:$0xff]
        %v2466 = vadd.f32 %v2461, %v2465
        %v2467 = vadd.f32 %v2462, %v2465
        %v2468 = vadd.f32 %v2463, %v2465
        %v2469 = vadd.f32 %v2464, %v2465
        %v2470 = vmax.f32 %v2466, 0.0
        %v2471 = vmax.f32 %v2467, 0.0
        %v2472 = vmax.f32 %v2468, 0.0
        %v2473 = vmax.f32 %v2469, 0.0
        %v2474 = vpack.c.bf16 %v2471, %v2470
        %v2475 = vpack.c.bf16 %v2473, %v2472
        %v2476 = vld [vmem:[%s1 + $0x1a0] sm:$0xf]
        %v2477 = vld [vmem:[%s1 + $0x1a8] sm:$0xf]
        %v2478 = vld [vmem:[%s1 + $0x1b0] sm:$0xf]
        %v2479 = vld [vmem:[%s1 + $0x1b8] sm:$0xf]
        %v2480 = vld [vmem:[%s1 + $0x1c0] sm:$0xf]
        %v2481 = vld [vmem:[%s1 + $0x1c8] sm:$0xf]
        %v2482 = vld [vmem:[%s1 + $0x1d0] sm:$0xf]
        %v2483 = vld [vmem:[%s1 + $0x1d8] sm:$0xf]
        %v2484 = vld [vmem:[%s1 + $0x1e0] sm:$0xf]
        %v2485 = vld [vmem:[%s1 + $0x1e8] sm:$0xf]
        %v2486 = vld [vmem:[%s1 + $0x1f0] sm:$0xf]
        %v2487 = vld [vmem:[%s1 + $0x1f8] sm:$0xf]
        %v2500 = vunpack.c.l.b16 %v2476
        %v2501 = vunpack.c.l.b16 %v2477
        %v2502 = vunpack.c.l.b16 %v2478
        %v2503 = vunpack.c.l.b16 %v2479
        %v2504 = vunpack.c.l.b16 %v2480
        %v2505 = vunpack.c.l.b16 %v2481
        %v2506 = vunpack.c.l.b16 %v2482
        %v2507 = vunpack.c.l.b16 %v2483
        %v2508 = vunpack.c.l.b16 %v2484
        %v2509 = vunpack.c.l.b16 %v2485
        %v2510 = vunpack.c.l.b16 %v2486
        %v2511 = vunpack.c.l.b16 %v2487
        %v2512 = vpack.c.b16 %v2501, %v2500
        %v2513 = vpack.c.b16 %v2503, %v2502
        %v2514 = vpack.c.b16 %v2505, %v2504
        %v2515 = vpack.c.b16 %v2507, %v2506
        %v2516 = vpack.c.b16 %v2509, %v2508
        %v2517 = vpack.c.b16 %v2511, %v2510
        %vm2518 = vcmask 261120
        %v2520 = vsel %vm2518, %v2512, 0
        %v2523 = vsel %vm2518, %v2513, 0
        %v2526 = vsel %vm2518, %v2514, 0
        %v2529 = vsel %vm2518, %v2515, 0
        %v2532 = vsel %vm2518, %v2516, 0
        %v2535 = vsel %vm2518, %v2517, 0
        %2537 = vmatprep.subr.bf16.mxu0 0
        %2538 = vmatpush1.bf16.msra.mxu0 0
        %2539 = vmatprep.subr.bf16.mxu0 0
        %2540 = vmatpush1.bf16.msra.mxu0 0
        %2541 = vmatprep.subr.bf16.mxu0 0
        %2542 = vmatpush1.bf16.msra.mxu0 0
        %2543 = vmatprep.subr.bf16.mxu0 0
        %2544 = vmatpush1.bf16.msra.mxu0 0
        %2545 = vmatprep.subr.bf16.mxu0 0
        %2546 = vmatpush1.bf16.msra.mxu0 0
        %2547 = vmatprep.subr.bf16.mxu0 0
        %2548 = vmatpush1.bf16.msra.mxu0 0
        %2549 = vmatprep.subr.bf16.mxu0 0
        %2550 = vmatpush1.bf16.msra.mxu0 %v2475
        %2551 = vmatprep.subr.bf16.mxu0 0
        %2552 = vmatpush1.bf16.msra.mxu0 %v2474
        %2553 = vmatprep.subr.bf16.mxu0 0
        %2554 = vmatpush2.bf16.msra.mxu0 0
        %2555 = vmatprep.subr.bf16.mxu0 0
        %2556 = vmatpush2.bf16.msra.mxu0 0
        %2557 = vmatprep.subr.bf16.mxu0 0
        %2558 = vmatpush2.bf16.msra.mxu0 0
        %2559 = vmatprep.subr.bf16.mxu0 0
        %2560 = vmatpush2.bf16.msra.mxu0 0
        %2561 = vmatprep.subr.bf16.mxu0 0
        %2562 = vmatpush2.bf16.msra.mxu0 0
        %2563 = vmatprep.subr.bf16.mxu0 0
        %2564 = vmatpush2.bf16.msra.mxu0 0
        %2565 = vmatprep.subr.bf16.mxu0 0
        %2566 = vmatpush2.bf16.msra.mxu0 0
        %2567 = vmatprep.subr.bf16.mxu0 0
        %2568 = vmatpush2.bf16.msra.mxu0 0
        %2569 = vmatprep.mubr.bf16.mxu0 0
        %2570 = vmatmul.mubr.bf16.gmra.mxu0 %v2520
        %v2571 = vpop.f32.mrf.mxu0
        %v2572 = vadd.f32 0.0, %v2571
        %v2573 = vpop.f32.mrf.mxu0
        %v2574 = vpop.f32.mrf.mxu0
        %v2575 = vadd.f32 0.0, %v2574
        %v2576 = vpop.f32.mrf.mxu0
        %2577 = vmatprep.mubr.bf16.mxu0 0
        %2578 = vmatmul.mubr.bf16.gmra.mxu0 %v2523
        %v2579 = vpop.f32.mrf.mxu0
        %v2580 = vadd.f32 0.0, %v2579
        %v2581 = vpop.f32.mrf.mxu0
        %v2582 = vpop.f32.mrf.mxu0
        %v2583 = vadd.f32 0.0, %v2582
        %v2584 = vpop.f32.mrf.mxu0
        %2585 = vmatprep.mubr.bf16.mxu0 0
        %2586 = vmatmul.mubr.bf16.gmra.mxu0 %v2526
        %v2587 = vpop.f32.mrf.mxu0
        %v2588 = vadd.f32 0.0, %v2587
        %v2589 = vpop.f32.mrf.mxu0
        %v2590 = vpop.f32.mrf.mxu0
        %v2591 = vadd.f32 0.0, %v2590
        %v2592 = vpop.f32.mrf.mxu0
        %2593 = vmatprep.mubr.bf16.mxu0 0
        %2594 = vmatmul.mubr.bf16.gmra.mxu0 %v2529
        %v2595 = vpop.f32.mrf.mxu0
        %v2596 = vadd.f32 0.0, %v2595
        %v2597 = vpop.f32.mrf.mxu0
        %v2598 = vpop.f32.mrf.mxu0
        %v2599 = vadd.f32 0.0, %v2598
        %v2600 = vpop.f32.mrf.mxu0
        %2601 = vmatprep.mubr.bf16.mxu0 0
        %2602 = vmatmul.mubr.bf16.gmra.mxu0 %v2532
        %v2603 = vpop.f32.mrf.mxu0
        %v2604 = vadd.f32 0.0, %v2603
        %v2605 = vpop.f32.mrf.mxu0
        %v2606 = vpop.f32.mrf.mxu0
        %v2607 = vadd.f32 0.0, %v2606
        %v2608 = vpop.f32.mrf.mxu0
        %2609 = vmatprep.mubr.bf16.mxu0 0
        %2610 = vmatmul.mubr.bf16.gmra.mxu0 %v2535
        %v2611 = vpop.f32.mrf.mxu0
        %v2612 = vadd.f32 0.0, %v2611
        %v2613 = vpop.f32.mrf.mxu0
        %v2614 = vpop.f32.mrf.mxu0
        %v2615 = vadd.f32 0.0, %v2614
        %v2616 = vpop.f32.mrf.mxu0
        %2617 = vdwg.mxu0
        %v2618 = vpack.c.bf16 %v2575, %v2572
        %v2619 = vpack.c.bf16 %v2583, %v2580
        %v2620 = vpack.c.bf16 %v2591, %v2588
        %v2621 = vpack.c.bf16 %v2599, %v2596
        %v2622 = vpack.c.bf16 %v2607, %v2604
        %v2623 = vpack.c.bf16 %v2615, %v2612
        %v2624 = vld [vmem:[#allocation2 + $0x580] sm:$0xf]
        %v2625 = vld [vmem:[#allocation2 + $0x588] sm:$0xf]
        %v2626 = vld [vmem:[#allocation2 + $0x590] sm:$0xf]
        %v2627 = vld [vmem:[#allocation2 + $0x598] sm:$0xf]
        %v2628 = vld [vmem:[#allocation2 + $0x5a0] sm:$0xf]
        %v2629 = vld [vmem:[#allocation2 + $0x5a8] sm:$0xf]
        %v2630 = vld [vmem:[#allocation2 + $0x5b0] sm:$0xf]
        %v2631 = vld [vmem:[#allocation2 + $0x5b8] sm:$0xf]
        %v2632 = vld [vmem:[#allocation2 + $0x5c0] sm:$0xf]
        %v2633 = vld [vmem:[#allocation2 + $0x5c8] sm:$0xf]
        %v2634 = vld [vmem:[#allocation2 + $0x5d0] sm:$0xf]
        %v2635 = vld [vmem:[#allocation2 + $0x5d8] sm:$0xf]
        %v2636 = vld [vmem:[#allocation2 + $0x5e0] sm:$0xf]
        %v2637 = vld [vmem:[#allocation2 + $0x5e8] sm:$0xf]
        %v2638 = vld [vmem:[#allocation2 + $0x5f0] sm:$0xf]
        %v2639 = vld [vmem:[#allocation2 + $0x5f8] sm:$0xf]
        %v2640 = vld [vmem:[#allocation2 + $0x600] sm:$0xf]
        %v2641 = vld [vmem:[#allocation2 + $0x608] sm:$0xf]
        %v2642 = vld [vmem:[#allocation2 + $0x610] sm:$0xf]
        %v2643 = vld [vmem:[#allocation2 + $0x618] sm:$0xf]
        %v2644 = vld [vmem:[#allocation2 + $0x620] sm:$0xf]
        %v2645 = vld [vmem:[#allocation2 + $0x628] sm:$0xf]
        %v2646 = vld [vmem:[#allocation2 + $0x630] sm:$0xf]
        %v2647 = vld [vmem:[#allocation2 + $0x638] sm:$0xf]
        %v2648 = vld [vmem:[#allocation2 + $0x640] sm:$0xf]
        %v2649 = vld [vmem:[#allocation2 + $0x648] sm:$0xf]
        %v2650 = vld [vmem:[#allocation2 + $0x650] sm:$0xf]
        %v2651 = vld [vmem:[#allocation2 + $0x658] sm:$0xf]
        %v2652 = vld [vmem:[#allocation2 + $0x660] sm:$0xf]
        %v2653 = vld [vmem:[#allocation2 + $0x668] sm:$0xf]
        %v2654 = vld [vmem:[#allocation2 + $0x670] sm:$0xf]
        %v2655 = vld [vmem:[#allocation2 + $0x678] sm:$0xf]
        %v2672 = vunpack.c.l.b16 %v2640
        %v2673 = vunpack.c.l.b16 %v2641
        %v2674 = vunpack.c.l.b16 %v2642
        %v2675 = vunpack.c.l.b16 %v2643
        %v2676 = vunpack.c.l.b16 %v2644
        %v2677 = vunpack.c.l.b16 %v2645
        %v2678 = vunpack.c.l.b16 %v2646
        %v2679 = vunpack.c.l.b16 %v2647
        %v2680 = vunpack.c.l.b16 %v2648
        %v2681 = vunpack.c.l.b16 %v2649
        %v2682 = vunpack.c.l.b16 %v2650
        %v2683 = vunpack.c.l.b16 %v2651
        %v2684 = vunpack.c.l.b16 %v2652
        %v2685 = vunpack.c.l.b16 %v2653
        %v2686 = vunpack.c.l.b16 %v2654
        %v2687 = vunpack.c.l.b16 %v2655
        %v2688 = vpack.c.b16 %v2673, %v2672
        %v2689 = vpack.c.b16 %v2675, %v2674
        %v2690 = vpack.c.b16 %v2677, %v2676
        %v2691 = vpack.c.b16 %v2679, %v2678
        %v2692 = vpack.c.b16 %v2681, %v2680
        %v2693 = vpack.c.b16 %v2683, %v2682
        %v2694 = vpack.c.b16 %v2685, %v2684
        %v2695 = vpack.c.b16 %v2687, %v2686
        %2704 = vmatprep.subr.bf16.mxu0 0
        %2705 = vmatpush1.bf16.msra.mxu0 %v2695
        %2706 = vmatprep.subr.bf16.mxu0 0
        %2707 = vmatpush1.bf16.msra.mxu0 %v2694
        %2708 = vmatprep.subr.bf16.mxu0 0
        %2709 = vmatpush1.bf16.msra.mxu0 %v2693
        %2710 = vmatprep.subr.bf16.mxu0 0
        %2711 = vmatpush1.bf16.msra.mxu0 %v2692
        %2712 = vmatprep.subr.bf16.mxu0 0
        %2713 = vmatpush1.bf16.msra.mxu0 %v2691
        %2714 = vmatprep.subr.bf16.mxu0 0
        %2715 = vmatpush1.bf16.msra.mxu0 %v2690
        %2716 = vmatprep.subr.bf16.mxu0 0
        %2717 = vmatpush1.bf16.msra.mxu0 %v2689
        %2718 = vmatprep.subr.bf16.mxu0 0
        %2719 = vmatpush1.bf16.msra.mxu0 %v2688
        %2720 = vmatprep.subr.bf16.mxu0 0
        %2721 = vmatpush2.bf16.msra.mxu0 0
        %2722 = vmatprep.subr.bf16.mxu0 0
        %2723 = vmatpush2.bf16.msra.mxu0 0
        %2724 = vmatprep.subr.bf16.mxu0 0
        %2725 = vmatpush2.bf16.msra.mxu0 0
        %2726 = vmatprep.subr.bf16.mxu0 0
        %2727 = vmatpush2.bf16.msra.mxu0 0
        %2728 = vmatprep.subr.bf16.mxu0 0
        %2729 = vmatpush2.bf16.msra.mxu0 0
        %2730 = vmatprep.subr.bf16.mxu0 0
        %2731 = vmatpush2.bf16.msra.mxu0 0
        %2732 = vmatprep.subr.bf16.mxu0 0
        %2733 = vmatpush2.bf16.msra.mxu0 0
        %2734 = vmatprep.subr.bf16.mxu0 0
        %2735 = vmatpush2.bf16.msra.mxu0 0
        %2736 = vmatprep.mubr.bf16.mxu0 0
        %2737 = vmatmul.mubr.bf16.gmra.mxu0 %v2620
        %v2738 = vpop.f32.mrf.mxu0
        %v2739 = vadd.f32 0.0, %v2738
        %v2740 = vpop.f32.mrf.mxu0
        %v2741 = vpop.f32.mrf.mxu0
        %v2742 = vadd.f32 0.0, %v2741
        %v2743 = vpop.f32.mrf.mxu0
        %2744 = vmatprep.mubr.bf16.mxu0 0
        %2745 = vmatmul.mubr.bf16.gmra.mxu0 %v2621
        %v2746 = vpop.f32.mrf.mxu0
        %v2747 = vadd.f32 0.0, %v2746
        %v2748 = vpop.f32.mrf.mxu0
        %v2749 = vpop.f32.mrf.mxu0
        %v2750 = vadd.f32 0.0, %v2749
        %v2751 = vpop.f32.mrf.mxu0
        %2752 = vdwg.mxu0
        %v2769 = vunpack.c.l.b16 %v2624
        %v2770 = vunpack.c.l.b16 %v2625
        %v2771 = vunpack.c.l.b16 %v2626
        %v2772 = vunpack.c.l.b16 %v2627
        %v2773 = vunpack.c.l.b16 %v2628
        %v2774 = vunpack.c.l.b16 %v2629
        %v2775 = vunpack.c.l.b16 %v2630
        %v2776 = vunpack.c.l.b16 %v2631
        %v2777 = vunpack.c.l.b16 %v2632
        %v2778 = vunpack.c.l.b16 %v2633
        %v2779 = vunpack.c.l.b16 %v2634
        %v2780 = vunpack.c.l.b16 %v2635
        %v2781 = vunpack.c.l.b16 %v2636
        %v2782 = vunpack.c.l.b16 %v2637
        %v2783 = vunpack.c.l.b16 %v2638
        %v2784 = vunpack.c.l.b16 %v2639
        %v2785 = vpack.c.b16 %v2770, %v2769
        %v2786 = vpack.c.b16 %v2772, %v2771
        %v2787 = vpack.c.b16 %v2774, %v2773
        %v2788 = vpack.c.b16 %v2776, %v2775
        %v2789 = vpack.c.b16 %v2778, %v2777
        %v2790 = vpack.c.b16 %v2780, %v2779
        %v2791 = vpack.c.b16 %v2782, %v2781
        %v2792 = vpack.c.b16 %v2784, %v2783
        %2801 = vmatprep.subr.bf16.mxu0 0
        %2802 = vmatpush1.bf16.msra.mxu0 %v2792
        %2803 = vmatprep.subr.bf16.mxu0 0
        %2804 = vmatpush1.bf16.msra.mxu0 %v2791
        %2805 = vmatprep.subr.bf16.mxu0 0
        %2806 = vmatpush1.bf16.msra.mxu0 %v2790
        %2807 = vmatprep.subr.bf16.mxu0 0
        %2808 = vmatpush1.bf16.msra.mxu0 %v2789
        %2809 = vmatprep.subr.bf16.mxu0 0
        %2810 = vmatpush1.bf16.msra.mxu0 %v2788
        %2811 = vmatprep.subr.bf16.mxu0 0
        %2812 = vmatpush1.bf16.msra.mxu0 %v2787
        %2813 = vmatprep.subr.bf16.mxu0 0
        %2814 = vmatpush1.bf16.msra.mxu0 %v2786
        %2815 = vmatprep.subr.bf16.mxu0 0
        %2816 = vmatpush1.bf16.msra.mxu0 %v2785
        %2817 = vmatprep.subr.bf16.mxu0 0
        %2818 = vmatpush2.bf16.msra.mxu0 0
        %2819 = vmatprep.subr.bf16.mxu0 0
        %2820 = vmatpush2.bf16.msra.mxu0 0
        %2821 = vmatprep.subr.bf16.mxu0 0
        %2822 = vmatpush2.bf16.msra.mxu0 0
        %2823 = vmatprep.subr.bf16.mxu0 0
        %2824 = vmatpush2.bf16.msra.mxu0 0
        %2825 = vmatprep.subr.bf16.mxu0 0
        %2826 = vmatpush2.bf16.msra.mxu0 0
        %2827 = vmatprep.subr.bf16.mxu0 0
        %2828 = vmatpush2.bf16.msra.mxu0 0
        %2829 = vmatprep.subr.bf16.mxu0 0
        %2830 = vmatpush2.bf16.msra.mxu0 0
        %2831 = vmatprep.subr.bf16.mxu0 0
        %2832 = vmatpush2.bf16.msra.mxu0 0
        %2833 = vmatprep.mubr.bf16.mxu0 0
        %2834 = vmatmul.mubr.bf16.gmra.mxu0 %v2618
        %v2835 = vpop.f32.mrf.mxu0
        %v2836 = vadd.f32 %v2739, %v2835
        %v2837 = vpop.f32.mrf.mxu0
        %v2838 = vpop.f32.mrf.mxu0
        %v2839 = vadd.f32 %v2742, %v2838
        %v2840 = vpop.f32.mrf.mxu0
        %2841 = vmatprep.mubr.bf16.mxu0 0
        %2842 = vmatmul.mubr.bf16.gmra.mxu0 %v2619
        %v2843 = vpop.f32.mrf.mxu0
        %v2844 = vadd.f32 %v2747, %v2843
        %v2845 = vpop.f32.mrf.mxu0
        %v2846 = vpop.f32.mrf.mxu0
        %v2847 = vadd.f32 %v2750, %v2846
        %v2848 = vpop.f32.mrf.mxu0
        %2849 = vdwg.mxu0
        %v2850 = vld [vmem:[#allocation2 + $0x680] sm:$0xf]
        %v2851 = vld [vmem:[#allocation2 + $0x688] sm:$0xf]
        %v2852 = vld [vmem:[#allocation2 + $0x690] sm:$0xf]
        %v2853 = vld [vmem:[#allocation2 + $0x698] sm:$0xf]
        %v2854 = vld [vmem:[#allocation2 + $0x6a0] sm:$0xf]
        %v2855 = vld [vmem:[#allocation2 + $0x6a8] sm:$0xf]
        %v2856 = vld [vmem:[#allocation2 + $0x6b0] sm:$0xf]
        %v2857 = vld [vmem:[#allocation2 + $0x6b8] sm:$0xf]
        %v2858 = vld [vmem:[#allocation2 + $0x6c0] sm:$0xf]
        %v2859 = vld [vmem:[#allocation2 + $0x6c8] sm:$0xf]
        %v2860 = vld [vmem:[#allocation2 + $0x6d0] sm:$0xf]
        %v2861 = vld [vmem:[#allocation2 + $0x6d8] sm:$0xf]
        %v2862 = vld [vmem:[#allocation2 + $0x6e0] sm:$0xf]
        %v2863 = vld [vmem:[#allocation2 + $0x6e8] sm:$0xf]
        %v2864 = vld [vmem:[#allocation2 + $0x6f0] sm:$0xf]
        %v2865 = vld [vmem:[#allocation2 + $0x6f8] sm:$0xf]
        %v2882 = vunpack.c.l.b16 %v2850
        %v2883 = vunpack.c.l.b16 %v2851
        %v2884 = vunpack.c.l.b16 %v2852
        %v2885 = vunpack.c.l.b16 %v2853
        %v2886 = vunpack.c.l.b16 %v2854
        %v2887 = vunpack.c.l.b16 %v2855
        %v2888 = vunpack.c.l.b16 %v2856
        %v2889 = vunpack.c.l.b16 %v2857
        %v2890 = vunpack.c.l.b16 %v2858
        %v2891 = vunpack.c.l.b16 %v2859
        %v2892 = vunpack.c.l.b16 %v2860
        %v2893 = vunpack.c.l.b16 %v2861
        %v2894 = vunpack.c.l.b16 %v2862
        %v2895 = vunpack.c.l.b16 %v2863
        %v2896 = vunpack.c.l.b16 %v2864
        %v2897 = vunpack.c.l.b16 %v2865
        %v2898 = vpack.c.b16 %v2883, %v2882
        %v2899 = vpack.c.b16 %v2885, %v2884
        %v2900 = vpack.c.b16 %v2887, %v2886
        %v2901 = vpack.c.b16 %v2889, %v2888
        %v2902 = vpack.c.b16 %v2891, %v2890
        %v2903 = vpack.c.b16 %v2893, %v2892
        %v2904 = vpack.c.b16 %v2895, %v2894
        %v2905 = vpack.c.b16 %v2897, %v2896
        %2914 = vmatprep.subr.bf16.mxu0 0
        %2915 = vmatpush1.bf16.msra.mxu0 %v2905
        %2916 = vmatprep.subr.bf16.mxu0 0
        %2917 = vmatpush1.bf16.msra.mxu0 %v2904
        %2918 = vmatprep.subr.bf16.mxu0 0
        %2919 = vmatpush1.bf16.msra.mxu0 %v2903
        %2920 = vmatprep.subr.bf16.mxu0 0
        %2921 = vmatpush1.bf16.msra.mxu0 %v2902
        %2922 = vmatprep.subr.bf16.mxu0 0
        %2923 = vmatpush1.bf16.msra.mxu0 %v2901
        %2924 = vmatprep.subr.bf16.mxu0 0
        %2925 = vmatpush1.bf16.msra.mxu0 %v2900
        %2926 = vmatprep.subr.bf16.mxu0 0
        %2927 = vmatpush1.bf16.msra.mxu0 %v2899
        %2928 = vmatprep.subr.bf16.mxu0 0
        %2929 = vmatpush1.bf16.msra.mxu0 %v2898
        %2930 = vmatprep.subr.bf16.mxu0 0
        %2931 = vmatpush2.bf16.msra.mxu0 0
        %2932 = vmatprep.subr.bf16.mxu0 0
        %2933 = vmatpush2.bf16.msra.mxu0 0
        %2934 = vmatprep.subr.bf16.mxu0 0
        %2935 = vmatpush2.bf16.msra.mxu0 0
        %2936 = vmatprep.subr.bf16.mxu0 0
        %2937 = vmatpush2.bf16.msra.mxu0 0
        %2938 = vmatprep.subr.bf16.mxu0 0
        %2939 = vmatpush2.bf16.msra.mxu0 0
        %2940 = vmatprep.subr.bf16.mxu0 0
        %2941 = vmatpush2.bf16.msra.mxu0 0
        %2942 = vmatprep.subr.bf16.mxu0 0
        %2943 = vmatpush2.bf16.msra.mxu0 0
        %2944 = vmatprep.subr.bf16.mxu0 0
        %2945 = vmatpush2.bf16.msra.mxu0 0
        %2946 = vmatprep.mubr.bf16.mxu0 0
        %2947 = vmatmul.mubr.bf16.gmra.mxu0 %v2622
        %v2948 = vpop.f32.mrf.mxu0
        %v2949 = vadd.f32 0.0, %v2948
        %v2950 = vpop.f32.mrf.mxu0
        %v2951 = vpop.f32.mrf.mxu0
        %v2952 = vadd.f32 0.0, %v2951
        %v2953 = vpop.f32.mrf.mxu0
        %2954 = vmatprep.mubr.bf16.mxu0 0
        %2955 = vmatmul.mubr.bf16.gmra.mxu0 %v2623
        %v2956 = vpop.f32.mrf.mxu0
        %v2957 = vadd.f32 0.0, %v2956
        %v2958 = vpop.f32.mrf.mxu0
        %v2959 = vpop.f32.mrf.mxu0
        %v2960 = vadd.f32 0.0, %v2959
        %v2961 = vpop.f32.mrf.mxu0
        %2962 = vdwg.mxu0
        %v2963 = vadd.f32 %v2836, %v2949
        %v2964 = vadd.f32 %v2839, %v2952
        %v2965 = vadd.f32 %v2844, %v2957
        %v2966 = vadd.f32 %v2847, %v2960
        %v2967 = vld [vmem:[#allocation4 + $0x2] ss:$0 sm:$0xff]
        %v2968 = vadd.f32 %v2963, %v2967
        %v2969 = vadd.f32 %v2964, %v2967
        %v2970 = vadd.f32 %v2965, %v2967
        %v2971 = vadd.f32 %v2966, %v2967
        %v2972 = vld [vmem:[%s1 + $0x200] sm:$0xf]
        %v2973 = vld [vmem:[%s1 + $0x208] sm:$0xf]
        %v2974 = vld [vmem:[%s1 + $0x210] sm:$0xf]
        %v2975 = vld [vmem:[%s1 + $0x218] sm:$0xf]
        %v2976 = vld [vmem:[%s1 + $0x220] sm:$0xf]
        %v2977 = vld [vmem:[%s1 + $0x228] sm:$0xf]
        %v2984 = vunpack.c.l.b16 %v2972
        %v2985 = vunpack.c.l.b16 %v2973
        %v2986 = vunpack.c.l.b16 %v2974
        %v2987 = vunpack.c.l.b16 %v2975
        %v2988 = vunpack.c.l.b16 %v2976
        %v2989 = vunpack.c.l.b16 %v2977
        %v2990 = vpack.c.b16 %v2985, %v2984
        %v2991 = vpack.c.b16 %v2987, %v2986
        %v2992 = vpack.c.b16 %v2989, %v2988
        %v2994 = vsel %vm2518, %v2990, 0
        %v2997 = vsel %vm2518, %v2991, 0
        %v3000 = vsel %vm2518, %v2992, 0
        %3002 = vmatprep.subr.bf16.mxu0 0
        %3003 = vmatpush1.bf16.msra.mxu0 0
        %3004 = vmatprep.subr.bf16.mxu0 0
        %3005 = vmatpush1.bf16.msra.mxu0 0
        %3006 = vmatprep.subr.bf16.mxu0 0
        %3007 = vmatpush1.bf16.msra.mxu0 0
        %3008 = vmatprep.subr.bf16.mxu0 0
        %3009 = vmatpush1.bf16.msra.mxu0 0
        %3010 = vmatprep.subr.bf16.mxu0 0
        %3011 = vmatpush1.bf16.msra.mxu0 0
        %3012 = vmatprep.subr.bf16.mxu0 0
        %3013 = vmatpush1.bf16.msra.mxu0 0
        %3014 = vmatprep.subr.bf16.mxu0 0
        %3015 = vmatpush1.bf16.msra.mxu0 %v2475
        %3016 = vmatprep.subr.bf16.mxu0 0
        %3017 = vmatpush1.bf16.msra.mxu0 %v2474
        %3018 = vmatprep.subr.bf16.mxu0 0
        %3019 = vmatpush2.bf16.msra.mxu0 0
        %3020 = vmatprep.subr.bf16.mxu0 0
        %3021 = vmatpush2.bf16.msra.mxu0 0
        %3022 = vmatprep.subr.bf16.mxu0 0
        %3023 = vmatpush2.bf16.msra.mxu0 0
        %3024 = vmatprep.subr.bf16.mxu0 0
        %3025 = vmatpush2.bf16.msra.mxu0 0
        %3026 = vmatprep.subr.bf16.mxu0 0
        %3027 = vmatpush2.bf16.msra.mxu0 0
        %3028 = vmatprep.subr.bf16.mxu0 0
        %3029 = vmatpush2.bf16.msra.mxu0 0
        %3030 = vmatprep.subr.bf16.mxu0 0
        %3031 = vmatpush2.bf16.msra.mxu0 0
        %3032 = vmatprep.subr.bf16.mxu0 0
        %3033 = vmatpush2.bf16.msra.mxu0 0
        %3034 = vmatprep.mubr.bf16.mxu0 0
        %3035 = vmatmul.mubr.bf16.gmra.mxu0 %v2994
        %v3036 = vpop.f32.mrf.mxu0
        %v3037 = vadd.f32 0.0, %v3036
        %v3038 = vpop.f32.mrf.mxu0
        %v3039 = vpop.f32.mrf.mxu0
        %v3040 = vadd.f32 0.0, %v3039
        %v3041 = vpop.f32.mrf.mxu0
        %3042 = vmatprep.mubr.bf16.mxu0 0
        %3043 = vmatmul.mubr.bf16.gmra.mxu0 %v2997
        %v3044 = vpop.f32.mrf.mxu0
        %v3045 = vadd.f32 0.0, %v3044
        %v3046 = vpop.f32.mrf.mxu0
        %v3047 = vpop.f32.mrf.mxu0
        %v3048 = vadd.f32 0.0, %v3047
        %v3049 = vpop.f32.mrf.mxu0
        %3050 = vmatprep.mubr.bf16.mxu0 0
        %3051 = vmatmul.mubr.bf16.gmra.mxu0 %v3000
        %v3052 = vpop.f32.mrf.mxu0
        %v3053 = vadd.f32 0.0, %v3052
        %v3054 = vpop.f32.mrf.mxu0
        %v3055 = vpop.f32.mrf.mxu0
        %v3056 = vadd.f32 0.0, %v3055
        %v3057 = vpop.f32.mrf.mxu0
        %3058 = vdwg.mxu0
        %v3059 = vpack.c.bf16 %v3040, %v3037
        %v3060 = vpack.c.bf16 %v3048, %v3045
        %v3061 = vpack.c.bf16 %v3056, %v3053
        %v3062 = vld [vmem:[#allocation2 + $0x700] sm:$0xf]
        %v3063 = vld [vmem:[#allocation2 + $0x708] sm:$0xf]
        %v3064 = vld [vmem:[#allocation2 + $0x710] sm:$0xf]
        %v3065 = vld [vmem:[#allocation2 + $0x718] sm:$0xf]
        %v3066 = vld [vmem:[#allocation2 + $0x720] sm:$0xf]
        %v3067 = vld [vmem:[#allocation2 + $0x728] sm:$0xf]
        %v3068 = vld [vmem:[#allocation2 + $0x730] sm:$0xf]
        %v3069 = vld [vmem:[#allocation2 + $0x738] sm:$0xf]
        %v3070 = vld [vmem:[#allocation2 + $0x740] sm:$0xf]
        %v3071 = vld [vmem:[#allocation2 + $0x748] sm:$0xf]
        %v3072 = vld [vmem:[#allocation2 + $0x750] sm:$0xf]
        %v3073 = vld [vmem:[#allocation2 + $0x758] sm:$0xf]
        %v3074 = vld [vmem:[#allocation2 + $0x760] sm:$0xf]
        %v3075 = vld [vmem:[#allocation2 + $0x768] sm:$0xf]
        %v3076 = vld [vmem:[#allocation2 + $0x770] sm:$0xf]
        %v3077 = vld [vmem:[#allocation2 + $0x778] sm:$0xf]
        %v3078 = vld [vmem:[#allocation2 + $0x780] sm:$0xf]
        %v3079 = vld [vmem:[#allocation2 + $0x788] sm:$0xf]
        %v3080 = vld [vmem:[#allocation2 + $0x790] sm:$0xf]
        %v3081 = vld [vmem:[#allocation2 + $0x798] sm:$0xf]
        %v3082 = vld [vmem:[#allocation2 + $0x7a0] sm:$0xf]
        %v3083 = vld [vmem:[#allocation2 + $0x7a8] sm:$0xf]
        %v3084 = vld [vmem:[#allocation2 + $0x7b0] sm:$0xf]
        %v3085 = vld [vmem:[#allocation2 + $0x7b8] sm:$0xf]
        %v3086 = vld [vmem:[#allocation2 + $0x7c0] sm:$0xf]
        %v3087 = vld [vmem:[#allocation2 + $0x7c8] sm:$0xf]
        %v3088 = vld [vmem:[#allocation2 + $0x7d0] sm:$0xf]
        %v3089 = vld [vmem:[#allocation2 + $0x7d8] sm:$0xf]
        %v3090 = vld [vmem:[#allocation2 + $0x7e0] sm:$0xf]
        %v3091 = vld [vmem:[#allocation2 + $0x7e8] sm:$0xf]
        %v3092 = vld [vmem:[#allocation2 + $0x7f0] sm:$0xf]
        %v3093 = vld [vmem:[#allocation2 + $0x7f8] sm:$0xf]
        %v3110 = vunpack.c.l.b16 %v3078
        %v3111 = vunpack.c.l.b16 %v3079
        %v3112 = vunpack.c.l.b16 %v3080
        %v3113 = vunpack.c.l.b16 %v3081
        %v3114 = vunpack.c.l.b16 %v3082
        %v3115 = vunpack.c.l.b16 %v3083
        %v3116 = vunpack.c.l.b16 %v3084
        %v3117 = vunpack.c.l.b16 %v3085
        %v3118 = vunpack.c.l.b16 %v3086
        %v3119 = vunpack.c.l.b16 %v3087
        %v3120 = vunpack.c.l.b16 %v3088
        %v3121 = vunpack.c.l.b16 %v3089
        %v3122 = vunpack.c.l.b16 %v3090
        %v3123 = vunpack.c.l.b16 %v3091
        %v3124 = vunpack.c.l.b16 %v3092
        %v3125 = vunpack.c.l.b16 %v3093
        %v3126 = vpack.c.b16 %v3111, %v3110
        %v3127 = vpack.c.b16 %v3113, %v3112
        %v3128 = vpack.c.b16 %v3115, %v3114
        %v3129 = vpack.c.b16 %v3117, %v3116
        %v3130 = vpack.c.b16 %v3119, %v3118
        %v3131 = vpack.c.b16 %v3121, %v3120
        %v3132 = vpack.c.b16 %v3123, %v3122
        %v3133 = vpack.c.b16 %v3125, %v3124
        %3142 = vmatprep.subr.bf16.mxu0 0
        %3143 = vmatpush1.bf16.msra.mxu0 %v3133
        %3144 = vmatprep.subr.bf16.mxu0 0
        %3145 = vmatpush1.bf16.msra.mxu0 %v3132
        %3146 = vmatprep.subr.bf16.mxu0 0
        %3147 = vmatpush1.bf16.msra.mxu0 %v3131
        %3148 = vmatprep.subr.bf16.mxu0 0
        %3149 = vmatpush1.bf16.msra.mxu0 %v3130
        %3150 = vmatprep.subr.bf16.mxu0 0
        %3151 = vmatpush1.bf16.msra.mxu0 %v3129
        %3152 = vmatprep.subr.bf16.mxu0 0
        %3153 = vmatpush1.bf16.msra.mxu0 %v3128
        %3154 = vmatprep.subr.bf16.mxu0 0
        %3155 = vmatpush1.bf16.msra.mxu0 %v3127
        %3156 = vmatprep.subr.bf16.mxu0 0
        %3157 = vmatpush1.bf16.msra.mxu0 %v3126
        %3158 = vmatprep.subr.bf16.mxu0 0
        %3159 = vmatpush2.bf16.msra.mxu0 0
        %3160 = vmatprep.subr.bf16.mxu0 0
        %3161 = vmatpush2.bf16.msra.mxu0 0
        %3162 = vmatprep.subr.bf16.mxu0 0
        %3163 = vmatpush2.bf16.msra.mxu0 0
        %3164 = vmatprep.subr.bf16.mxu0 0
        %3165 = vmatpush2.bf16.msra.mxu0 0
        %3166 = vmatprep.subr.bf16.mxu0 0
        %3167 = vmatpush2.bf16.msra.mxu0 0
        %3168 = vmatprep.subr.bf16.mxu0 0
        %3169 = vmatpush2.bf16.msra.mxu0 0
        %3170 = vmatprep.subr.bf16.mxu0 0
        %3171 = vmatpush2.bf16.msra.mxu0 0
        %3172 = vmatprep.subr.bf16.mxu0 0
        %3173 = vmatpush2.bf16.msra.mxu0 0
        %3174 = vmatprep.mubr.bf16.mxu0 0
        %3175 = vmatmul.mubr.bf16.gmra.mxu0 %v3060
        %v3176 = vpop.f32.mrf.mxu0
        %v3177 = vadd.f32 0.0, %v3176
        %v3178 = vpop.f32.mrf.mxu0
        %v3179 = vpop.f32.mrf.mxu0
        %v3180 = vadd.f32 0.0, %v3179
        %v3181 = vpop.f32.mrf.mxu0
        %3182 = vdwg.mxu0
        %v3199 = vunpack.c.l.b16 %v3062
        %v3200 = vunpack.c.l.b16 %v3063
        %v3201 = vunpack.c.l.b16 %v3064
        %v3202 = vunpack.c.l.b16 %v3065
        %v3203 = vunpack.c.l.b16 %v3066
        %v3204 = vunpack.c.l.b16 %v3067
        %v3205 = vunpack.c.l.b16 %v3068
        %v3206 = vunpack.c.l.b16 %v3069
        %v3207 = vunpack.c.l.b16 %v3070
        %v3208 = vunpack.c.l.b16 %v3071
        %v3209 = vunpack.c.l.b16 %v3072
        %v3210 = vunpack.c.l.b16 %v3073
        %v3211 = vunpack.c.l.b16 %v3074
        %v3212 = vunpack.c.l.b16 %v3075
        %v3213 = vunpack.c.l.b16 %v3076
        %v3214 = vunpack.c.l.b16 %v3077
        %v3215 = vpack.c.b16 %v3200, %v3199
        %v3216 = vpack.c.b16 %v3202, %v3201
        %v3217 = vpack.c.b16 %v3204, %v3203
        %v3218 = vpack.c.b16 %v3206, %v3205
        %v3219 = vpack.c.b16 %v3208, %v3207
        %v3220 = vpack.c.b16 %v3210, %v3209
        %v3221 = vpack.c.b16 %v3212, %v3211
        %v3222 = vpack.c.b16 %v3214, %v3213
        %3231 = vmatprep.subr.bf16.mxu0 0
        %3232 = vmatpush1.bf16.msra.mxu0 %v3222
        %3233 = vmatprep.subr.bf16.mxu0 0
        %3234 = vmatpush1.bf16.msra.mxu0 %v3221
        %3235 = vmatprep.subr.bf16.mxu0 0
        %3236 = vmatpush1.bf16.msra.mxu0 %v3220
        %3237 = vmatprep.subr.bf16.mxu0 0
        %3238 = vmatpush1.bf16.msra.mxu0 %v3219
        %3239 = vmatprep.subr.bf16.mxu0 0
        %3240 = vmatpush1.bf16.msra.mxu0 %v3218
        %3241 = vmatprep.subr.bf16.mxu0 0
        %3242 = vmatpush1.bf16.msra.mxu0 %v3217
        %3243 = vmatprep.subr.bf16.mxu0 0
        %3244 = vmatpush1.bf16.msra.mxu0 %v3216
        %3245 = vmatprep.subr.bf16.mxu0 0
        %3246 = vmatpush1.bf16.msra.mxu0 %v3215
        %3247 = vmatprep.subr.bf16.mxu0 0
        %3248 = vmatpush2.bf16.msra.mxu0 0
        %3249 = vmatprep.subr.bf16.mxu0 0
        %3250 = vmatpush2.bf16.msra.mxu0 0
        %3251 = vmatprep.subr.bf16.mxu0 0
        %3252 = vmatpush2.bf16.msra.mxu0 0
        %3253 = vmatprep.subr.bf16.mxu0 0
        %3254 = vmatpush2.bf16.msra.mxu0 0
        %3255 = vmatprep.subr.bf16.mxu0 0
        %3256 = vmatpush2.bf16.msra.mxu0 0
        %3257 = vmatprep.subr.bf16.mxu0 0
        %3258 = vmatpush2.bf16.msra.mxu0 0
        %3259 = vmatprep.subr.bf16.mxu0 0
        %3260 = vmatpush2.bf16.msra.mxu0 0
        %3261 = vmatprep.subr.bf16.mxu0 0
        %3262 = vmatpush2.bf16.msra.mxu0 0
        %3263 = vmatprep.mubr.bf16.mxu0 0
        %3264 = vmatmul.mubr.bf16.gmra.mxu0 %v3059
        %v3265 = vpop.f32.mrf.mxu0
        %v3266 = vadd.f32 %v3177, %v3265
        %v3267 = vpop.f32.mrf.mxu0
        %v3268 = vpop.f32.mrf.mxu0
        %v3269 = vadd.f32 %v3180, %v3268
        %v3270 = vpop.f32.mrf.mxu0
        %3271 = vdwg.mxu0
        %v3272 = vld [vmem:[#allocation2 + $0x800] sm:$0xf]
        %v3273 = vld [vmem:[#allocation2 + $0x808] sm:$0xf]
        %v3274 = vld [vmem:[#allocation2 + $0x810] sm:$0xf]
        %v3275 = vld [vmem:[#allocation2 + $0x818] sm:$0xf]
        %v3276 = vld [vmem:[#allocation2 + $0x820] sm:$0xf]
        %v3277 = vld [vmem:[#allocation2 + $0x828] sm:$0xf]
        %v3278 = vld [vmem:[#allocation2 + $0x830] sm:$0xf]
        %v3279 = vld [vmem:[#allocation2 + $0x838] sm:$0xf]
        %v3280 = vld [vmem:[#allocation2 + $0x840] sm:$0xf]
        %v3281 = vld [vmem:[#allocation2 + $0x848] sm:$0xf]
        %v3282 = vld [vmem:[#allocation2 + $0x850] sm:$0xf]
        %v3283 = vld [vmem:[#allocation2 + $0x858] sm:$0xf]
        %v3284 = vld [vmem:[#allocation2 + $0x860] sm:$0xf]
        %v3285 = vld [vmem:[#allocation2 + $0x868] sm:$0xf]
        %v3286 = vld [vmem:[#allocation2 + $0x870] sm:$0xf]
        %v3287 = vld [vmem:[#allocation2 + $0x878] sm:$0xf]
        %v3304 = vunpack.c.l.b16 %v3272
        %v3305 = vunpack.c.l.b16 %v3273
        %v3306 = vunpack.c.l.b16 %v3274
        %v3307 = vunpack.c.l.b16 %v3275
        %v3308 = vunpack.c.l.b16 %v3276
        %v3309 = vunpack.c.l.b16 %v3277
        %v3310 = vunpack.c.l.b16 %v3278
        %v3311 = vunpack.c.l.b16 %v3279
        %v3312 = vunpack.c.l.b16 %v3280
        %v3313 = vunpack.c.l.b16 %v3281
        %v3314 = vunpack.c.l.b16 %v3282
        %v3315 = vunpack.c.l.b16 %v3283
        %v3316 = vunpack.c.l.b16 %v3284
        %v3317 = vunpack.c.l.b16 %v3285
        %v3318 = vunpack.c.l.b16 %v3286
        %v3319 = vunpack.c.l.b16 %v3287
        %v3320 = vpack.c.b16 %v3305, %v3304
        %v3321 = vpack.c.b16 %v3307, %v3306
        %v3322 = vpack.c.b16 %v3309, %v3308
        %v3323 = vpack.c.b16 %v3311, %v3310
        %v3324 = vpack.c.b16 %v3313, %v3312
        %v3325 = vpack.c.b16 %v3315, %v3314
        %v3326 = vpack.c.b16 %v3317, %v3316
        %v3327 = vpack.c.b16 %v3319, %v3318
        %3336 = vmatprep.subr.bf16.mxu0 0
        %3337 = vmatpush1.bf16.msra.mxu0 %v3327
        %3338 = vmatprep.subr.bf16.mxu0 0
        %3339 = vmatpush1.bf16.msra.mxu0 %v3326
        %3340 = vmatprep.subr.bf16.mxu0 0
        %3341 = vmatpush1.bf16.msra.mxu0 %v3325
        %3342 = vmatprep.subr.bf16.mxu0 0
        %3343 = vmatpush1.bf16.msra.mxu0 %v3324
        %3344 = vmatprep.subr.bf16.mxu0 0
        %3345 = vmatpush1.bf16.msra.mxu0 %v3323
        %3346 = vmatprep.subr.bf16.mxu0 0
        %3347 = vmatpush1.bf16.msra.mxu0 %v3322
        %3348 = vmatprep.subr.bf16.mxu0 0
        %3349 = vmatpush1.bf16.msra.mxu0 %v3321
        %3350 = vmatprep.subr.bf16.mxu0 0
        %3351 = vmatpush1.bf16.msra.mxu0 %v3320
        %3352 = vmatprep.subr.bf16.mxu0 0
        %3353 = vmatpush2.bf16.msra.mxu0 0
        %3354 = vmatprep.subr.bf16.mxu0 0
        %3355 = vmatpush2.bf16.msra.mxu0 0
        %3356 = vmatprep.subr.bf16.mxu0 0
        %3357 = vmatpush2.bf16.msra.mxu0 0
        %3358 = vmatprep.subr.bf16.mxu0 0
        %3359 = vmatpush2.bf16.msra.mxu0 0
        %3360 = vmatprep.subr.bf16.mxu0 0
        %3361 = vmatpush2.bf16.msra.mxu0 0
        %3362 = vmatprep.subr.bf16.mxu0 0
        %3363 = vmatpush2.bf16.msra.mxu0 0
        %3364 = vmatprep.subr.bf16.mxu0 0
        %3365 = vmatpush2.bf16.msra.mxu0 0
        %3366 = vmatprep.subr.bf16.mxu0 0
        %3367 = vmatpush2.bf16.msra.mxu0 0
        %3368 = vmatprep.mubr.bf16.mxu0 0
        %3369 = vmatmul.mubr.bf16.gmra.mxu0 %v3061
        %v3370 = vpop.f32.mrf.mxu0
        %v3371 = vadd.f32 0.0, %v3370
        %v3372 = vpop.f32.mrf.mxu0
        %v3373 = vpop.f32.mrf.mxu0
        %v3374 = vadd.f32 0.0, %v3373
        %v3375 = vpop.f32.mrf.mxu0
        %3376 = vdwg.mxu0
        %v3377 = vadd.f32 %v3266, %v3371
        %v3378 = vadd.f32 %v3269, %v3374
        %v3379 = vld [vmem:[#allocation4 + $0x3] ss:$0 sm:$0xff]
        %v3380 = vadd.f32 %v3377, %v3379
        %v3381 = vadd.f32 %v3378, %v3379
        %v3382 = vpack.c.bf16 %v3381, %v3380
        %v3383 = vld [vmem:[%s1 + $0x230] sm:$0xf]
        %v3384 = vld [vmem:[%s1 + $0x238] sm:$0xf]
        %v3385 = vld [vmem:[%s1 + $0x240] sm:$0xf]
        %v3386 = vld [vmem:[%s1 + $0x248] sm:$0xf]
        %v3387 = vld [vmem:[%s1 + $0x250] sm:$0xf]
        %v3388 = vld [vmem:[%s1 + $0x258] sm:$0xf]
        %v3389 = vld [vmem:[%s1 + $0x260] sm:$0xf]
        %v3390 = vld [vmem:[%s1 + $0x268] sm:$0xf]
        %v3391 = vld [vmem:[%s1 + $0x270] sm:$0xf]
        %v3392 = vld [vmem:[%s1 + $0x278] sm:$0xf]
        %v3393 = vld [vmem:[%s1 + $0x280] sm:$0xf]
        %v3394 = vld [vmem:[%s1 + $0x288] sm:$0xf]
        %v3407 = vunpack.c.l.b16 %v3383
        %v3408 = vunpack.c.l.b16 %v3384
        %v3409 = vunpack.c.l.b16 %v3385
        %v3410 = vunpack.c.l.b16 %v3386
        %v3411 = vunpack.c.l.b16 %v3387
        %v3412 = vunpack.c.l.b16 %v3388
        %v3413 = vunpack.c.l.b16 %v3389
        %v3414 = vunpack.c.l.b16 %v3390
        %v3415 = vunpack.c.l.b16 %v3391
        %v3416 = vunpack.c.l.b16 %v3392
        %v3417 = vunpack.c.l.b16 %v3393
        %v3418 = vunpack.c.l.b16 %v3394
        %v3419 = vpack.c.b16 %v3408, %v3407
        %v3420 = vpack.c.b16 %v3410, %v3409
        %v3421 = vpack.c.b16 %v3412, %v3411
        %v3422 = vpack.c.b16 %v3414, %v3413
        %v3423 = vpack.c.b16 %v3416, %v3415
        %v3424 = vpack.c.b16 %v3418, %v3417
        %vm3425 = vcmask 130048
        %v3427 = vsel %vm3425, %v3419, 0
        %v3430 = vsel %vm3425, %v3420, 0
        %v3433 = vsel %vm3425, %v3421, 0
        %v3436 = vsel %vm3425, %v3422, 0
        %v3439 = vsel %vm3425, %v3423, 0
        %v3442 = vsel %vm3425, %v3424, 0
        %3444 = vmatprep.subr.bf16.mxu0 0
        %3445 = vmatpush1.bf16.msra.mxu0 0
        %3446 = vmatprep.subr.bf16.mxu0 0
        %3447 = vmatpush1.bf16.msra.mxu0 0
        %3448 = vmatprep.subr.bf16.mxu0 0
        %3449 = vmatpush1.bf16.msra.mxu0 0
        %3450 = vmatprep.subr.bf16.mxu0 0
        %3451 = vmatpush1.bf16.msra.mxu0 0
        %3452 = vmatprep.subr.bf16.mxu0 0
        %3453 = vmatpush1.bf16.msra.mxu0 0
        %3454 = vmatprep.subr.bf16.mxu0 0
        %3455 = vmatpush1.bf16.msra.mxu0 0
        %3456 = vmatprep.subr.bf16.mxu0 0
        %3457 = vmatpush1.bf16.msra.mxu0 0
        %3458 = vmatprep.subr.bf16.mxu0 0
        %3459 = vmatpush1.bf16.msra.mxu0 %v3382
        %3460 = vmatprep.subr.bf16.mxu0 0
        %3461 = vmatpush2.bf16.msra.mxu0 0
        %3462 = vmatprep.subr.bf16.mxu0 0
        %3463 = vmatpush2.bf16.msra.mxu0 0
        %3464 = vmatprep.subr.bf16.mxu0 0
        %3465 = vmatpush2.bf16.msra.mxu0 0
        %3466 = vmatprep.subr.bf16.mxu0 0
        %3467 = vmatpush2.bf16.msra.mxu0 0
        %3468 = vmatprep.subr.bf16.mxu0 0
        %3469 = vmatpush2.bf16.msra.mxu0 0
        %3470 = vmatprep.subr.bf16.mxu0 0
        %3471 = vmatpush2.bf16.msra.mxu0 0
        %3472 = vmatprep.subr.bf16.mxu0 0
        %3473 = vmatpush2.bf16.msra.mxu0 0
        %3474 = vmatprep.subr.bf16.mxu0 0
        %3475 = vmatpush2.bf16.msra.mxu0 0
        %3476 = vmatprep.mubr.bf16.mxu0 0
        %3477 = vmatmul.mubr.bf16.gmra.mxu0 %v3427
        %v3478 = vpop.f32.mrf.mxu0
        %v3479 = vadd.f32 0.0, %v3478
        %v3480 = vpop.f32.mrf.mxu0
        %v3481 = vpop.f32.mrf.mxu0
        %v3482 = vadd.f32 0.0, %v3481
        %v3483 = vpop.f32.mrf.mxu0
        %3484 = vmatprep.mubr.bf16.mxu0 0
        %3485 = vmatmul.mubr.bf16.gmra.mxu0 %v3430
        %v3486 = vpop.f32.mrf.mxu0
        %v3487 = vadd.f32 0.0, %v3486
        %v3488 = vpop.f32.mrf.mxu0
        %v3489 = vpop.f32.mrf.mxu0
        %v3490 = vadd.f32 0.0, %v3489
        %v3491 = vpop.f32.mrf.mxu0
        %3492 = vmatprep.mubr.bf16.mxu0 0
        %3493 = vmatmul.mubr.bf16.gmra.mxu0 %v3433
        %v3494 = vpop.f32.mrf.mxu0
        %v3495 = vadd.f32 0.0, %v3494
        %v3496 = vpop.f32.mrf.mxu0
        %v3497 = vpop.f32.mrf.mxu0
        %v3498 = vadd.f32 0.0, %v3497
        %v3499 = vpop.f32.mrf.mxu0
        %3500 = vmatprep.mubr.bf16.mxu0 0
        %3501 = vmatmul.mubr.bf16.gmra.mxu0 %v3436
        %v3502 = vpop.f32.mrf.mxu0
        %v3503 = vadd.f32 0.0, %v3502
        %v3504 = vpop.f32.mrf.mxu0
        %v3505 = vpop.f32.mrf.mxu0
        %v3506 = vadd.f32 0.0, %v3505
        %v3507 = vpop.f32.mrf.mxu0
        %3508 = vmatprep.mubr.bf16.mxu0 0
        %3509 = vmatmul.mubr.bf16.gmra.mxu0 %v3439
        %v3510 = vpop.f32.mrf.mxu0
        %v3511 = vadd.f32 0.0, %v3510
        %v3512 = vpop.f32.mrf.mxu0
        %v3513 = vpop.f32.mrf.mxu0
        %v3514 = vadd.f32 0.0, %v3513
        %v3515 = vpop.f32.mrf.mxu0
        %3516 = vmatprep.mubr.bf16.mxu0 0
        %3517 = vmatmul.mubr.bf16.gmra.mxu0 %v3442
        %v3518 = vpop.f32.mrf.mxu0
        %v3519 = vadd.f32 0.0, %v3518
        %v3520 = vpop.f32.mrf.mxu0
        %v3521 = vpop.f32.mrf.mxu0
        %v3522 = vadd.f32 0.0, %v3521
        %v3523 = vpop.f32.mrf.mxu0
        %3524 = vdwg.mxu0
        %v3525 = vpack.c.bf16 %v3482, %v3479
        %v3526 = vpack.c.bf16 %v3490, %v3487
        %v3527 = vpack.c.bf16 %v3498, %v3495
        %v3528 = vpack.c.bf16 %v3506, %v3503
        %v3529 = vpack.c.bf16 %v3514, %v3511
        %v3530 = vpack.c.bf16 %v3522, %v3519
        %v3531 = vld [vmem:[#allocation2 + $0x880] sm:$0xf]
        %v3532 = vld [vmem:[#allocation2 + $0x888] sm:$0xf]
        %v3533 = vld [vmem:[#allocation2 + $0x890] sm:$0xf]
        %v3534 = vld [vmem:[#allocation2 + $0x898] sm:$0xf]
        %v3535 = vld [vmem:[#allocation2 + $0x8a0] sm:$0xf]
        %v3536 = vld [vmem:[#allocation2 + $0x8a8] sm:$0xf]
        %v3537 = vld [vmem:[#allocation2 + $0x8b0] sm:$0xf]
        %v3538 = vld [vmem:[#allocation2 + $0x8b8] sm:$0xf]
        %v3539 = vld [vmem:[#allocation2 + $0x8c0] sm:$0xf]
        %v3540 = vld [vmem:[#allocation2 + $0x8c8] sm:$0xf]
        %v3541 = vld [vmem:[#allocation2 + $0x8d0] sm:$0xf]
        %v3542 = vld [vmem:[#allocation2 + $0x8d8] sm:$0xf]
        %v3543 = vld [vmem:[#allocation2 + $0x8e0] sm:$0xf]
        %v3544 = vld [vmem:[#allocation2 + $0x8e8] sm:$0xf]
        %v3545 = vld [vmem:[#allocation2 + $0x8f0] sm:$0xf]
        %v3546 = vld [vmem:[#allocation2 + $0x8f8] sm:$0xf]
        %v3547 = vld [vmem:[#allocation2 + $0x900] sm:$0xf]
        %v3548 = vld [vmem:[#allocation2 + $0x908] sm:$0xf]
        %v3549 = vld [vmem:[#allocation2 + $0x910] sm:$0xf]
        %v3550 = vld [vmem:[#allocation2 + $0x918] sm:$0xf]
        %v3551 = vld [vmem:[#allocation2 + $0x920] sm:$0xf]
        %v3552 = vld [vmem:[#allocation2 + $0x928] sm:$0xf]
        %v3553 = vld [vmem:[#allocation2 + $0x930] sm:$0xf]
        %v3554 = vld [vmem:[#allocation2 + $0x938] sm:$0xf]
        %v3555 = vld [vmem:[#allocation2 + $0x940] sm:$0xf]
        %v3556 = vld [vmem:[#allocation2 + $0x948] sm:$0xf]
        %v3557 = vld [vmem:[#allocation2 + $0x950] sm:$0xf]
        %v3558 = vld [vmem:[#allocation2 + $0x958] sm:$0xf]
        %v3559 = vld [vmem:[#allocation2 + $0x960] sm:$0xf]
        %v3560 = vld [vmem:[#allocation2 + $0x968] sm:$0xf]
        %v3561 = vld [vmem:[#allocation2 + $0x970] sm:$0xf]
        %v3562 = vld [vmem:[#allocation2 + $0x978] sm:$0xf]
        %v3579 = vunpack.c.l.b16 %v3547
        %v3580 = vunpack.c.l.b16 %v3548
        %v3581 = vunpack.c.l.b16 %v3549
        %v3582 = vunpack.c.l.b16 %v3550
        %v3583 = vunpack.c.l.b16 %v3551
        %v3584 = vunpack.c.l.b16 %v3552
        %v3585 = vunpack.c.l.b16 %v3553
        %v3586 = vunpack.c.l.b16 %v3554
        %v3587 = vunpack.c.l.b16 %v3555
        %v3588 = vunpack.c.l.b16 %v3556
        %v3589 = vunpack.c.l.b16 %v3557
        %v3590 = vunpack.c.l.b16 %v3558
        %v3591 = vunpack.c.l.b16 %v3559
        %v3592 = vunpack.c.l.b16 %v3560
        %v3593 = vunpack.c.l.b16 %v3561
        %v3594 = vunpack.c.l.b16 %v3562
        %v3595 = vpack.c.b16 %v3580, %v3579
        %v3596 = vpack.c.b16 %v3582, %v3581
        %v3597 = vpack.c.b16 %v3584, %v3583
        %v3598 = vpack.c.b16 %v3586, %v3585
        %v3599 = vpack.c.b16 %v3588, %v3587
        %v3600 = vpack.c.b16 %v3590, %v3589
        %v3601 = vpack.c.b16 %v3592, %v3591
        %v3602 = vpack.c.b16 %v3594, %v3593
        %3611 = vmatprep.subr.bf16.mxu0 0
        %3612 = vmatpush1.bf16.msra.mxu0 %v3602
        %3613 = vmatprep.subr.bf16.mxu0 0
        %3614 = vmatpush1.bf16.msra.mxu0 %v3601
        %3615 = vmatprep.subr.bf16.mxu0 0
        %3616 = vmatpush1.bf16.msra.mxu0 %v3600
        %3617 = vmatprep.subr.bf16.mxu0 0
        %3618 = vmatpush1.bf16.msra.mxu0 %v3599
        %3619 = vmatprep.subr.bf16.mxu0 0
        %3620 = vmatpush1.bf16.msra.mxu0 %v3598
        %3621 = vmatprep.subr.bf16.mxu0 0
        %3622 = vmatpush1.bf16.msra.mxu0 %v3597
        %3623 = vmatprep.subr.bf16.mxu0 0
        %3624 = vmatpush1.bf16.msra.mxu0 %v3596
        %3625 = vmatprep.subr.bf16.mxu0 0
        %3626 = vmatpush1.bf16.msra.mxu0 %v3595
        %3627 = vmatprep.subr.bf16.mxu0 0
        %3628 = vmatpush2.bf16.msra.mxu0 0
        %3629 = vmatprep.subr.bf16.mxu0 0
        %3630 = vmatpush2.bf16.msra.mxu0 0
        %3631 = vmatprep.subr.bf16.mxu0 0
        %3632 = vmatpush2.bf16.msra.mxu0 0
        %3633 = vmatprep.subr.bf16.mxu0 0
        %3634 = vmatpush2.bf16.msra.mxu0 0
        %3635 = vmatprep.subr.bf16.mxu0 0
        %3636 = vmatpush2.bf16.msra.mxu0 0
        %3637 = vmatprep.subr.bf16.mxu0 0
        %3638 = vmatpush2.bf16.msra.mxu0 0
        %3639 = vmatprep.subr.bf16.mxu0 0
        %3640 = vmatpush2.bf16.msra.mxu0 0
        %3641 = vmatprep.subr.bf16.mxu0 0
        %3642 = vmatpush2.bf16.msra.mxu0 0
        %3643 = vmatprep.mubr.bf16.mxu0 0
        %3644 = vmatmul.mubr.bf16.gmra.mxu0 %v3527
        %v3645 = vpop.f32.mrf.mxu0
        %v3646 = vadd.f32 0.0, %v3645
        %v3647 = vpop.f32.mrf.mxu0
        %v3648 = vpop.f32.mrf.mxu0
        %v3649 = vadd.f32 0.0, %v3648
        %v3650 = vpop.f32.mrf.mxu0
        %3651 = vmatprep.mubr.bf16.mxu0 0
        %3652 = vmatmul.mubr.bf16.gmra.mxu0 %v3528
        %v3653 = vpop.f32.mrf.mxu0
        %v3654 = vadd.f32 0.0, %v3653
        %v3655 = vpop.f32.mrf.mxu0
        %v3656 = vpop.f32.mrf.mxu0
        %v3657 = vadd.f32 0.0, %v3656
        %v3658 = vpop.f32.mrf.mxu0
        %3659 = vdwg.mxu0
        %v3676 = vunpack.c.l.b16 %v3531
        %v3677 = vunpack.c.l.b16 %v3532
        %v3678 = vunpack.c.l.b16 %v3533
        %v3679 = vunpack.c.l.b16 %v3534
        %v3680 = vunpack.c.l.b16 %v3535
        %v3681 = vunpack.c.l.b16 %v3536
        %v3682 = vunpack.c.l.b16 %v3537
        %v3683 = vunpack.c.l.b16 %v3538
        %v3684 = vunpack.c.l.b16 %v3539
        %v3685 = vunpack.c.l.b16 %v3540
        %v3686 = vunpack.c.l.b16 %v3541
        %v3687 = vunpack.c.l.b16 %v3542
        %v3688 = vunpack.c.l.b16 %v3543
        %v3689 = vunpack.c.l.b16 %v3544
        %v3690 = vunpack.c.l.b16 %v3545
        %v3691 = vunpack.c.l.b16 %v3546
        %v3692 = vpack.c.b16 %v3677, %v3676
        %v3693 = vpack.c.b16 %v3679, %v3678
        %v3694 = vpack.c.b16 %v3681, %v3680
        %v3695 = vpack.c.b16 %v3683, %v3682
        %v3696 = vpack.c.b16 %v3685, %v3684
        %v3697 = vpack.c.b16 %v3687, %v3686
        %v3698 = vpack.c.b16 %v3689, %v3688
        %v3699 = vpack.c.b16 %v3691, %v3690
        %3708 = vmatprep.subr.bf16.mxu0 0
        %3709 = vmatpush1.bf16.msra.mxu0 %v3699
        %3710 = vmatprep.subr.bf16.mxu0 0
        %3711 = vmatpush1.bf16.msra.mxu0 %v3698
        %3712 = vmatprep.subr.bf16.mxu0 0
        %3713 = vmatpush1.bf16.msra.mxu0 %v3697
        %3714 = vmatprep.subr.bf16.mxu0 0
        %3715 = vmatpush1.bf16.msra.mxu0 %v3696
        %3716 = vmatprep.subr.bf16.mxu0 0
        %3717 = vmatpush1.bf16.msra.mxu0 %v3695
        %3718 = vmatprep.subr.bf16.mxu0 0
        %3719 = vmatpush1.bf16.msra.mxu0 %v3694
        %3720 = vmatprep.subr.bf16.mxu0 0
        %3721 = vmatpush1.bf16.msra.mxu0 %v3693
        %3722 = vmatprep.subr.bf16.mxu0 0
        %3723 = vmatpush1.bf16.msra.mxu0 %v3692
        %3724 = vmatprep.subr.bf16.mxu0 0
        %3725 = vmatpush2.bf16.msra.mxu0 0
        %3726 = vmatprep.subr.bf16.mxu0 0
        %3727 = vmatpush2.bf16.msra.mxu0 0
        %3728 = vmatprep.subr.bf16.mxu0 0
        %3729 = vmatpush2.bf16.msra.mxu0 0
        %3730 = vmatprep.subr.bf16.mxu0 0
        %3731 = vmatpush2.bf16.msra.mxu0 0
        %3732 = vmatprep.subr.bf16.mxu0 0
        %3733 = vmatpush2.bf16.msra.mxu0 0
        %3734 = vmatprep.subr.bf16.mxu0 0
        %3735 = vmatpush2.bf16.msra.mxu0 0
        %3736 = vmatprep.subr.bf16.mxu0 0
        %3737 = vmatpush2.bf16.msra.mxu0 0
        %3738 = vmatprep.subr.bf16.mxu0 0
        %3739 = vmatpush2.bf16.msra.mxu0 0
        %3740 = vmatprep.mubr.bf16.mxu0 0
        %3741 = vmatmul.mubr.bf16.gmra.mxu0 %v3525
        %v3742 = vpop.f32.mrf.mxu0
        %v3743 = vadd.f32 %v3646, %v3742
        %v3744 = vpop.f32.mrf.mxu0
        %v3745 = vpop.f32.mrf.mxu0
        %v3746 = vadd.f32 %v3649, %v3745
        %v3747 = vpop.f32.mrf.mxu0
        %3748 = vmatprep.mubr.bf16.mxu0 0
        %3749 = vmatmul.mubr.bf16.gmra.mxu0 %v3526
        %v3750 = vpop.f32.mrf.mxu0
        %v3751 = vadd.f32 %v3654, %v3750
        %v3752 = vpop.f32.mrf.mxu0
        %v3753 = vpop.f32.mrf.mxu0
        %v3754 = vadd.f32 %v3657, %v3753
        %v3755 = vpop.f32.mrf.mxu0
        %3756 = vdwg.mxu0
        %v3757 = vld [vmem:[#allocation2 + $0x980] sm:$0xf]
        %v3758 = vld [vmem:[#allocation2 + $0x988] sm:$0xf]
        %v3759 = vld [vmem:[#allocation2 + $0x990] sm:$0xf]
        %v3760 = vld [vmem:[#allocation2 + $0x998] sm:$0xf]
        %v3761 = vld [vmem:[#allocation2 + $0x9a0] sm:$0xf]
        %v3762 = vld [vmem:[#allocation2 + $0x9a8] sm:$0xf]
        %v3763 = vld [vmem:[#allocation2 + $0x9b0] sm:$0xf]
        %v3764 = vld [vmem:[#allocation2 + $0x9b8] sm:$0xf]
        %v3765 = vld [vmem:[#allocation2 + $0x9c0] sm:$0xf]
        %v3766 = vld [vmem:[#allocation2 + $0x9c8] sm:$0xf]
        %v3767 = vld [vmem:[#allocation2 + $0x9d0] sm:$0xf]
        %v3768 = vld [vmem:[#allocation2 + $0x9d8] sm:$0xf]
        %v3769 = vld [vmem:[#allocation2 + $0x9e0] sm:$0xf]
        %v3770 = vld [vmem:[#allocation2 + $0x9e8] sm:$0xf]
        %v3771 = vld [vmem:[#allocation2 + $0x9f0] sm:$0xf]
        %v3772 = vld [vmem:[#allocation2 + $0x9f8] sm:$0xf]
        %v3789 = vunpack.c.l.b16 %v3757
        %v3790 = vunpack.c.l.b16 %v3758
        %v3791 = vunpack.c.l.b16 %v3759
        %v3792 = vunpack.c.l.b16 %v3760
        %v3793 = vunpack.c.l.b16 %v3761
        %v3794 = vunpack.c.l.b16 %v3762
        %v3795 = vunpack.c.l.b16 %v3763
        %v3796 = vunpack.c.l.b16 %v3764
        %v3797 = vunpack.c.l.b16 %v3765
        %v3798 = vunpack.c.l.b16 %v3766
        %v3799 = vunpack.c.l.b16 %v3767
        %v3800 = vunpack.c.l.b16 %v3768
        %v3801 = vunpack.c.l.b16 %v3769
        %v3802 = vunpack.c.l.b16 %v3770
        %v3803 = vunpack.c.l.b16 %v3771
        %v3804 = vunpack.c.l.b16 %v3772
        %v3805 = vpack.c.b16 %v3790, %v3789
        %v3806 = vpack.c.b16 %v3792, %v3791
        %v3807 = vpack.c.b16 %v3794, %v3793
        %v3808 = vpack.c.b16 %v3796, %v3795
        %v3809 = vpack.c.b16 %v3798, %v3797
        %v3810 = vpack.c.b16 %v3800, %v3799
        %v3811 = vpack.c.b16 %v3802, %v3801
        %v3812 = vpack.c.b16 %v3804, %v3803
        %3821 = vmatprep.subr.bf16.mxu0 0
        %3822 = vmatpush1.bf16.msra.mxu0 %v3812
        %3823 = vmatprep.subr.bf16.mxu0 0
        %3824 = vmatpush1.bf16.msra.mxu0 %v3811
        %3825 = vmatprep.subr.bf16.mxu0 0
        %3826 = vmatpush1.bf16.msra.mxu0 %v3810
        %3827 = vmatprep.subr.bf16.mxu0 0
        %3828 = vmatpush1.bf16.msra.mxu0 %v3809
        %3829 = vmatprep.subr.bf16.mxu0 0
        %3830 = vmatpush1.bf16.msra.mxu0 %v3808
        %3831 = vmatprep.subr.bf16.mxu0 0
        %3832 = vmatpush1.bf16.msra.mxu0 %v3807
        %3833 = vmatprep.subr.bf16.mxu0 0
        %3834 = vmatpush1.bf16.msra.mxu0 %v3806
        %3835 = vmatprep.subr.bf16.mxu0 0
        %3836 = vmatpush1.bf16.msra.mxu0 %v3805
        %3837 = vmatprep.subr.bf16.mxu0 0
        %3838 = vmatpush2.bf16.msra.mxu0 0
        %3839 = vmatprep.subr.bf16.mxu0 0
        %3840 = vmatpush2.bf16.msra.mxu0 0
        %3841 = vmatprep.subr.bf16.mxu0 0
        %3842 = vmatpush2.bf16.msra.mxu0 0
        %3843 = vmatprep.subr.bf16.mxu0 0
        %3844 = vmatpush2.bf16.msra.mxu0 0
        %3845 = vmatprep.subr.bf16.mxu0 0
        %3846 = vmatpush2.bf16.msra.mxu0 0
        %3847 = vmatprep.subr.bf16.mxu0 0
        %3848 = vmatpush2.bf16.msra.mxu0 0
        %3849 = vmatprep.subr.bf16.mxu0 0
        %3850 = vmatpush2.bf16.msra.mxu0 0
        %3851 = vmatprep.subr.bf16.mxu0 0
        %3852 = vmatpush2.bf16.msra.mxu0 0
        %3853 = vmatprep.mubr.bf16.mxu0 0
        %3854 = vmatmul.mubr.bf16.gmra.mxu0 %v3529
        %v3855 = vpop.f32.mrf.mxu0
        %v3856 = vadd.f32 0.0, %v3855
        %v3857 = vpop.f32.mrf.mxu0
        %v3858 = vpop.f32.mrf.mxu0
        %v3859 = vadd.f32 0.0, %v3858
        %v3860 = vpop.f32.mrf.mxu0
        %3861 = vmatprep.mubr.bf16.mxu0 0
        %3862 = vmatmul.mubr.bf16.gmra.mxu0 %v3530
        %v3863 = vpop.f32.mrf.mxu0
        %v3864 = vadd.f32 0.0, %v3863
        %v3865 = vpop.f32.mrf.mxu0
        %v3866 = vpop.f32.mrf.mxu0
        %v3867 = vadd.f32 0.0, %v3866
        %v3868 = vpop.f32.mrf.mxu0
        %3869 = vdwg.mxu0
        %v3870 = vadd.f32 %v3743, %v3856
        %v3871 = vadd.f32 %v3746, %v3859
        %v3872 = vadd.f32 %v3751, %v3864
        %v3873 = vadd.f32 %v3754, %v3867
        %v3874 = vld [vmem:[#allocation4 + $0x4] ss:$0 sm:$0xff]
        %v3875 = vadd.f32 %v3870, %v3874
        %v3876 = vadd.f32 %v3871, %v3874
        %v3877 = vadd.f32 %v3872, %v3874
        %v3878 = vadd.f32 %v3873, %v3874
        %v3879 = vmax.f32 %v3875, 0.0
        %v3880 = vmax.f32 %v3876, 0.0
        %v3881 = vmax.f32 %v3877, 0.0
        %v3882 = vmax.f32 %v3878, 0.0
        %v3883 = vpack.c.bf16 %v2969, %v2968
        %v3884 = vpack.c.bf16 %v2971, %v2970
        %v3885 = vpack.c.bf16 %v3880, %v3879
        %v3886 = vpack.c.bf16 %v3882, %v3881
        %v3887 = vld [vmem:[%s1 + $0x290] sm:$0xf]
        %v3888 = vld [vmem:[%s1 + $0x298] sm:$0xf]
        %v3889 = vld [vmem:[%s1 + $0x2a0] sm:$0xf]
        %v3890 = vld [vmem:[%s1 + $0x2a8] sm:$0xf]
        %v3891 = vld [vmem:[%s1 + $0x2b0] sm:$0xf]
        %v3892 = vld [vmem:[%s1 + $0x2b8] sm:$0xf]
        %v3893 = vld [vmem:[%s1 + $0x2c0] sm:$0xf]
        %v3894 = vld [vmem:[%s1 + $0x2c8] sm:$0xf]
        %v3895 = vld [vmem:[%s1 + $0x2d0] sm:$0xf]
        %v3896 = vld [vmem:[%s1 + $0x2d8] sm:$0xf]
        %v3897 = vld [vmem:[%s1 + $0x2e0] sm:$0xf]
        %v3898 = vld [vmem:[%s1 + $0x2e8] sm:$0xf]
        %v3899 = vld [vmem:[%s1 + $0x2f0] sm:$0xf]
        %v3900 = vld [vmem:[%s1 + $0x2f8] sm:$0xf]
        %v3901 = vld [vmem:[%s1 + $0x300] sm:$0xf]
        %v3902 = vld [vmem:[%s1 + $0x308] sm:$0xf]
        %v3903 = vld [vmem:[%s1 + $0x310] sm:$0xf]
        %v3904 = vld [vmem:[%s1 + $0x318] sm:$0xf]
        %v3905 = vld [vmem:[%s1 + $0x320] sm:$0xf]
        %v3906 = vld [vmem:[%s1 + $0x328] sm:$0xf]
        %v3907 = vld [vmem:[%s1 + $0x330] sm:$0xf]
        %v3908 = vld [vmem:[%s1 + $0x338] sm:$0xf]
        %v3909 = vld [vmem:[%s1 + $0x340] sm:$0xf]
        %v3910 = vld [vmem:[%s1 + $0x348] sm:$0xf]
        %v3911 = vld [vmem:[%s1 + $0x350] sm:$0xf]
        %v3912 = vld [vmem:[%s1 + $0x358] sm:$0xf]
        %v3913 = vld [vmem:[%s1 + $0x360] sm:$0xf]
        %v3914 = vld [vmem:[%s1 + $0x368] sm:$0xf]
        %v3915 = vld [vmem:[%s1 + $0x370] sm:$0xf]
        %v3916 = vld [vmem:[%s1 + $0x378] sm:$0xf]
        %v3917 = vld [vmem:[%s1 + $0x380] sm:$0xf]
        %v3918 = vld [vmem:[%s1 + $0x388] sm:$0xf]
        %v3919 = vld [vmem:[%s1 + $0x390] sm:$0xf]
        %v3920 = vld [vmem:[%s1 + $0x398] sm:$0xf]
        %v3921 = vld [vmem:[%s1 + $0x3a0] sm:$0xf]
        %v3922 = vld [vmem:[%s1 + $0x3a8] sm:$0xf]
        %v3923 = vld [vmem:[%s1 + $0x3b0] sm:$0xf]
        %v3924 = vld [vmem:[%s1 + $0x3b8] sm:$0xf]
        %v3925 = vld [vmem:[%s1 + $0x3c0] sm:$0xf]
        %v3926 = vld [vmem:[%s1 + $0x3c8] sm:$0xf]
        %v3927 = vld [vmem:[%s1 + $0x3d0] sm:$0xf]
        %v3928 = vld [vmem:[%s1 + $0x3d8] sm:$0xf]
        %v3929 = vld [vmem:[%s1 + $0x3e0] sm:$0xf]
        %v3930 = vld [vmem:[%s1 + $0x3e8] sm:$0xf]
        %v3931 = vld [vmem:[%s1 + $0x3f0] sm:$0xf]
        %v3977 = vunpack.c.l.b16 %v3887
        %v3978 = vunpack.c.l.b16 %v3888
        %v3979 = vunpack.c.l.b16 %v3889
        %v3980 = vunpack.c.l.b16 %v3890
        %v3981 = vunpack.c.l.b16 %v3891
        %v3982 = vunpack.c.l.b16 %v3892
        %v3983 = vunpack.c.l.b16 %v3893
        %v3984 = vunpack.c.l.b16 %v3894
        %v3985 = vunpack.c.l.b16 %v3895
        %v3986 = vunpack.c.l.b16 %v3896
        %v3987 = vunpack.c.l.b16 %v3897
        %v3988 = vunpack.c.l.b16 %v3898
        %v3989 = vunpack.c.l.b16 %v3899
        %v3990 = vunpack.c.l.b16 %v3900
        %v3991 = vunpack.c.l.b16 %v3901
        %v3992 = vunpack.c.l.b16 %v3902
        %v3993 = vunpack.c.l.b16 %v3903
        %v3994 = vunpack.c.l.b16 %v3904
        %v3995 = vunpack.c.l.b16 %v3905
        %v3996 = vunpack.c.l.b16 %v3906
        %v3997 = vunpack.c.l.b16 %v3907
        %v3998 = vunpack.c.l.b16 %v3908
        %v3999 = vunpack.c.l.b16 %v3909
        %v4000 = vunpack.c.l.b16 %v3910
        %v4001 = vunpack.c.l.b16 %v3911
        %v4002 = vunpack.c.l.b16 %v3912
        %v4003 = vunpack.c.l.b16 %v3913
        %v4004 = vunpack.c.l.b16 %v3914
        %v4005 = vunpack.c.l.b16 %v3915
        %v4006 = vunpack.c.l.b16 %v3916
        %v4007 = vunpack.c.l.b16 %v3917
        %v4008 = vunpack.c.l.b16 %v3918
        %v4009 = vunpack.c.l.b16 %v3919
        %v4010 = vunpack.c.l.b16 %v3920
        %v4011 = vunpack.c.l.b16 %v3921
        %v4012 = vunpack.c.l.b16 %v3922
        %v4013 = vunpack.c.l.b16 %v3923
        %v4014 = vunpack.c.l.b16 %v3924
        %v4015 = vunpack.c.l.b16 %v3925
        %v4016 = vunpack.c.l.b16 %v3926
        %v4017 = vunpack.c.l.b16 %v3927
        %v4018 = vunpack.c.l.b16 %v3928
        %v4019 = vunpack.c.l.b16 %v3929
        %v4020 = vunpack.c.l.b16 %v3930
        %v4021 = vunpack.c.l.b16 %v3931
        %v4022 = vpack.c.b16 %v3978, %v3977
        %v4023 = vpack.c.b16 %v3980, %v3979
        %v4024 = vpack.c.b16 %v3982, %v3981
        %v4025 = vpack.c.b16 %v3984, %v3983
        %v4026 = vpack.c.b16 %v3986, %v3985
        %v4027 = vpack.c.b16 %v3988, %v3987
        %v4028 = vpack.c.b16 %v3990, %v3989
        %v4029 = vpack.c.b16 %v3992, %v3991
        %v4030 = vpack.c.b16 %v3994, %v3993
        %v4031 = vpack.c.b16 %v3996, %v3995
        %v4032 = vpack.c.b16 %v3998, %v3997
        %v4033 = vpack.c.b16 %v4000, %v3999
        %v4034 = vpack.c.b16 %v4002, %v4001
        %v4035 = vpack.c.b16 %v4004, %v4003
        %v4036 = vpack.c.b16 %v4006, %v4005
        %v4037 = vpack.c.b16 %v4008, %v4007
        %v4038 = vpack.c.b16 %v4010, %v4009
        %v4039 = vpack.c.b16 %v4012, %v4011
        %v4040 = vpack.c.b16 %v4014, %v4013
        %v4041 = vpack.c.b16 %v4016, %v4015
        %v4042 = vpack.c.b16 %v4018, %v4017
        %v4043 = vpack.c.b16 %v4020, %v4019
        %v4044 = vpack.c.b16 %v4021, %v4021
        %v4046 = vsel %vm2518, %v4022, 0
        %v4049 = vsel %vm2518, %v4023, 0
        %v4052 = vsel %vm2518, %v4024, 0
        %v4055 = vsel %vm2518, %v4025, 0
        %v4058 = vsel %vm2518, %v4026, 0
        %v4061 = vsel %vm2518, %v4027, 0
        %v4064 = vsel %vm2518, %v4028, 0
        %v4067 = vsel %vm2518, %v4029, 0
        %v4070 = vsel %vm2518, %v4030, 0
        %v4073 = vsel %vm2518, %v4031, 0
        %v4076 = vsel %vm2518, %v4032, 0
        %v4079 = vsel %vm2518, %v4033, 0
        %v4082 = vsel %vm2518, %v4034, 0
        %v4085 = vsel %vm2518, %v4035, 0
        %v4088 = vsel %vm2518, %v4036, 0
        %v4091 = vsel %vm2518, %v4037, 0
        %v4094 = vsel %vm2518, %v4038, 0
        %v4097 = vsel %vm2518, %v4039, 0
        %v4100 = vsel %vm2518, %v4040, 0
        %v4103 = vsel %vm2518, %v4041, 0
        %v4106 = vsel %vm2518, %v4042, 0
        %v4109 = vsel %vm2518, %v4043, 0
        %v4112 = vsel %vm2518, %v4044, 0
        %4114 = vmatprep.subr.bf16.mxu0 0
        %4115 = vmatpush1.bf16.msra.mxu0 0
        %4116 = vmatprep.subr.bf16.mxu0 0
        %4117 = vmatpush1.bf16.msra.mxu0 0
        %4118 = vmatprep.subr.bf16.mxu0 0
        %4119 = vmatpush1.bf16.msra.mxu0 0
        %4120 = vmatprep.subr.bf16.mxu0 0
        %4121 = vmatpush1.bf16.msra.mxu0 0
        %4122 = vmatprep.subr.bf16.mxu0 0
        %4123 = vmatpush1.bf16.msra.mxu0 0
        %4124 = vmatprep.subr.bf16.mxu0 0
        %4125 = vmatpush1.bf16.msra.mxu0 0
        %4126 = vmatprep.subr.bf16.mxu0 %v3886
        %4127 = vmatpush1.bf16.msra.mxu0 %v3884
        %4128 = vmatprep.subr.bf16.mxu0 %v3885
        %4129 = vmatpush1.bf16.msra.mxu0 %v3883
        %4130 = vmatprep.subr.bf16.mxu0 0
        %4131 = vmatpush2.bf16.msra.mxu0 0
        %4132 = vmatprep.subr.bf16.mxu0 0
        %4133 = vmatpush2.bf16.msra.mxu0 0
        %4134 = vmatprep.subr.bf16.mxu0 0
        %4135 = vmatpush2.bf16.msra.mxu0 0
        %4136 = vmatprep.subr.bf16.mxu0 0
        %4137 = vmatpush2.bf16.msra.mxu0 0
        %4138 = vmatprep.subr.bf16.mxu0 0
        %4139 = vmatpush2.bf16.msra.mxu0 0
        %4140 = vmatprep.subr.bf16.mxu0 0
        %4141 = vmatpush2.bf16.msra.mxu0 0
        %4142 = vmatprep.subr.bf16.mxu0 0
        %4143 = vmatpush2.bf16.msra.mxu0 0
        %4144 = vmatprep.subr.bf16.mxu0 0
        %4145 = vmatpush2.bf16.msra.mxu0 0
        %4146 = vmatprep.mubr.bf16.mxu0 0
        %4147 = vmatmul.mubr.bf16.gmra.mxu0 %v4046
        %v4148 = vpop.f32.mrf.mxu0
        %v4149 = vadd.f32 0.0, %v4148
        %v4150 = vpop.f32.mrf.mxu0
        %v4151 = vadd.f32 0.0, %v4150
        %v4152 = vpop.f32.mrf.mxu0
        %v4153 = vadd.f32 0.0, %v4152
        %v4154 = vpop.f32.mrf.mxu0
        %v4155 = vadd.f32 0.0, %v4154
        %4156 = vmatprep.mubr.bf16.mxu0 0
        %4157 = vmatmul.mubr.bf16.gmra.mxu0 %v4049
        %v4158 = vpop.f32.mrf.mxu0
        %v4159 = vadd.f32 0.0, %v4158
        %v4160 = vpop.f32.mrf.mxu0
        %v4161 = vadd.f32 0.0, %v4160
        %v4162 = vpop.f32.mrf.mxu0
        %v4163 = vadd.f32 0.0, %v4162
        %v4164 = vpop.f32.mrf.mxu0
        %v4165 = vadd.f32 0.0, %v4164
        %4166 = vmatprep.mubr.bf16.mxu0 0
        %4167 = vmatmul.mubr.bf16.gmra.mxu0 %v4052
        %v4168 = vpop.f32.mrf.mxu0
        %v4169 = vadd.f32 0.0, %v4168
        %v4170 = vpop.f32.mrf.mxu0
        %v4171 = vadd.f32 0.0, %v4170
        %v4172 = vpop.f32.mrf.mxu0
        %v4173 = vadd.f32 0.0, %v4172
        %v4174 = vpop.f32.mrf.mxu0
        %v4175 = vadd.f32 0.0, %v4174
        %4176 = vmatprep.mubr.bf16.mxu0 0
        %4177 = vmatmul.mubr.bf16.gmra.mxu0 %v4055
        %v4178 = vpop.f32.mrf.mxu0
        %v4179 = vadd.f32 0.0, %v4178
        %v4180 = vpop.f32.mrf.mxu0
        %v4181 = vadd.f32 0.0, %v4180
        %v4182 = vpop.f32.mrf.mxu0
        %v4183 = vadd.f32 0.0, %v4182
        %v4184 = vpop.f32.mrf.mxu0
        %v4185 = vadd.f32 0.0, %v4184
        %4186 = vmatprep.mubr.bf16.mxu0 0
        %4187 = vmatmul.mubr.bf16.gmra.mxu0 %v4058
        %v4188 = vpop.f32.mrf.mxu0
        %v4189 = vadd.f32 0.0, %v4188
        %v4190 = vpop.f32.mrf.mxu0
        %v4191 = vadd.f32 0.0, %v4190
        %v4192 = vpop.f32.mrf.mxu0
        %v4193 = vadd.f32 0.0, %v4192
        %v4194 = vpop.f32.mrf.mxu0
        %v4195 = vadd.f32 0.0, %v4194
        %4196 = vmatprep.mubr.bf16.mxu0 0
        %4197 = vmatmul.mubr.bf16.gmra.mxu0 %v4061
        %v4198 = vpop.f32.mrf.mxu0
        %v4199 = vadd.f32 0.0, %v4198
        %v4200 = vpop.f32.mrf.mxu0
        %v4201 = vadd.f32 0.0, %v4200
        %v4202 = vpop.f32.mrf.mxu0
        %v4203 = vadd.f32 0.0, %v4202
        %v4204 = vpop.f32.mrf.mxu0
        %v4205 = vadd.f32 0.0, %v4204
        %4206 = vmatprep.mubr.bf16.mxu0 0
        %4207 = vmatmul.mubr.bf16.gmra.mxu0 %v4064
        %v4208 = vpop.f32.mrf.mxu0
        %v4209 = vadd.f32 0.0, %v4208
        %v4210 = vpop.f32.mrf.mxu0
        %v4211 = vadd.f32 0.0, %v4210
        %v4212 = vpop.f32.mrf.mxu0
        %v4213 = vadd.f32 0.0, %v4212
        %v4214 = vpop.f32.mrf.mxu0
        %v4215 = vadd.f32 0.0, %v4214
        %4216 = vmatprep.mubr.bf16.mxu0 0
        %4217 = vmatmul.mubr.bf16.gmra.mxu0 %v4067
        %v4218 = vpop.f32.mrf.mxu0
        %v4219 = vadd.f32 0.0, %v4218
        %v4220 = vpop.f32.mrf.mxu0
        %v4221 = vadd.f32 0.0, %v4220
        %v4222 = vpop.f32.mrf.mxu0
        %v4223 = vadd.f32 0.0, %v4222
        %v4224 = vpop.f32.mrf.mxu0
        %v4225 = vadd.f32 0.0, %v4224
        %4226 = vmatprep.mubr.bf16.mxu0 0
        %4227 = vmatmul.mubr.bf16.gmra.mxu0 %v4070
        %v4228 = vpop.f32.mrf.mxu0
        %v4229 = vadd.f32 0.0, %v4228
        %v4230 = vpop.f32.mrf.mxu0
        %v4231 = vadd.f32 0.0, %v4230
        %v4232 = vpop.f32.mrf.mxu0
        %v4233 = vadd.f32 0.0, %v4232
        %v4234 = vpop.f32.mrf.mxu0
        %v4235 = vadd.f32 0.0, %v4234
        %4236 = vmatprep.mubr.bf16.mxu0 0
        %4237 = vmatmul.mubr.bf16.gmra.mxu0 %v4073
        %v4238 = vpop.f32.mrf.mxu0
        %v4239 = vadd.f32 0.0, %v4238
        %v4240 = vpop.f32.mrf.mxu0
        %v4241 = vadd.f32 0.0, %v4240
        %v4242 = vpop.f32.mrf.mxu0
        %v4243 = vadd.f32 0.0, %v4242
        %v4244 = vpop.f32.mrf.mxu0
        %v4245 = vadd.f32 0.0, %v4244
        %4246 = vmatprep.mubr.bf16.mxu0 0
        %4247 = vmatmul.mubr.bf16.gmra.mxu0 %v4076
        %v4248 = vpop.f32.mrf.mxu0
        %v4249 = vadd.f32 0.0, %v4248
        %v4250 = vpop.f32.mrf.mxu0
        %v4251 = vadd.f32 0.0, %v4250
        %v4252 = vpop.f32.mrf.mxu0
        %v4253 = vadd.f32 0.0, %v4252
        %v4254 = vpop.f32.mrf.mxu0
        %v4255 = vadd.f32 0.0, %v4254
        %4256 = vmatprep.mubr.bf16.mxu0 0
        %4257 = vmatmul.mubr.bf16.gmra.mxu0 %v4079
        %v4258 = vpop.f32.mrf.mxu0
        %v4259 = vadd.f32 0.0, %v4258
        %v4260 = vpop.f32.mrf.mxu0
        %v4261 = vadd.f32 0.0, %v4260
        %v4262 = vpop.f32.mrf.mxu0
        %v4263 = vadd.f32 0.0, %v4262
        %v4264 = vpop.f32.mrf.mxu0
        %v4265 = vadd.f32 0.0, %v4264
        %4266 = vmatprep.mubr.bf16.mxu0 0
        %4267 = vmatmul.mubr.bf16.gmra.mxu0 %v4082
        %v4268 = vpop.f32.mrf.mxu0
        %v4269 = vadd.f32 0.0, %v4268
        %v4270 = vpop.f32.mrf.mxu0
        %v4271 = vadd.f32 0.0, %v4270
        %v4272 = vpop.f32.mrf.mxu0
        %v4273 = vadd.f32 0.0, %v4272
        %v4274 = vpop.f32.mrf.mxu0
        %v4275 = vadd.f32 0.0, %v4274
        %4276 = vmatprep.mubr.bf16.mxu0 0
        %4277 = vmatmul.mubr.bf16.gmra.mxu0 %v4085
        %v4278 = vpop.f32.mrf.mxu0
        %v4279 = vadd.f32 0.0, %v4278
        %v4280 = vpop.f32.mrf.mxu0
        %v4281 = vadd.f32 0.0, %v4280
        %v4282 = vpop.f32.mrf.mxu0
        %v4283 = vadd.f32 0.0, %v4282
        %v4284 = vpop.f32.mrf.mxu0
        %v4285 = vadd.f32 0.0, %v4284
        %4286 = vmatprep.mubr.bf16.mxu0 0
        %4287 = vmatmul.mubr.bf16.gmra.mxu0 %v4088
        %v4288 = vpop.f32.mrf.mxu0
        %v4289 = vadd.f32 0.0, %v4288
        %v4290 = vpop.f32.mrf.mxu0
        %v4291 = vadd.f32 0.0, %v4290
        %v4292 = vpop.f32.mrf.mxu0
        %v4293 = vadd.f32 0.0, %v4292
        %v4294 = vpop.f32.mrf.mxu0
        %v4295 = vadd.f32 0.0, %v4294
        %4296 = vmatprep.mubr.bf16.mxu0 0
        %4297 = vmatmul.mubr.bf16.gmra.mxu0 %v4091
        %v4298 = vpop.f32.mrf.mxu0
        %v4299 = vadd.f32 0.0, %v4298
        %v4300 = vpop.f32.mrf.mxu0
        %v4301 = vadd.f32 0.0, %v4300
        %v4302 = vpop.f32.mrf.mxu0
        %v4303 = vadd.f32 0.0, %v4302
        %v4304 = vpop.f32.mrf.mxu0
        %v4305 = vadd.f32 0.0, %v4304
        %4306 = vmatprep.mubr.bf16.mxu0 0
        %4307 = vmatmul.mubr.bf16.gmra.mxu0 %v4094
        %v4308 = vpop.f32.mrf.mxu0
        %v4309 = vadd.f32 0.0, %v4308
        %v4310 = vpop.f32.mrf.mxu0
        %v4311 = vadd.f32 0.0, %v4310
        %v4312 = vpop.f32.mrf.mxu0
        %v4313 = vadd.f32 0.0, %v4312
        %v4314 = vpop.f32.mrf.mxu0
        %v4315 = vadd.f32 0.0, %v4314
        %4316 = vmatprep.mubr.bf16.mxu0 0
        %4317 = vmatmul.mubr.bf16.gmra.mxu0 %v4097
        %v4318 = vpop.f32.mrf.mxu0
        %v4319 = vadd.f32 0.0, %v4318
        %v4320 = vpop.f32.mrf.mxu0
        %v4321 = vadd.f32 0.0, %v4320
        %v4322 = vpop.f32.mrf.mxu0
        %v4323 = vadd.f32 0.0, %v4322
        %v4324 = vpop.f32.mrf.mxu0
        %v4325 = vadd.f32 0.0, %v4324
        %4326 = vmatprep.mubr.bf16.mxu0 0
        %4327 = vmatmul.mubr.bf16.gmra.mxu0 %v4100
        %v4328 = vpop.f32.mrf.mxu0
        %v4329 = vadd.f32 0.0, %v4328
        %v4330 = vpop.f32.mrf.mxu0
        %v4331 = vadd.f32 0.0, %v4330
        %v4332 = vpop.f32.mrf.mxu0
        %v4333 = vadd.f32 0.0, %v4332
        %v4334 = vpop.f32.mrf.mxu0
        %v4335 = vadd.f32 0.0, %v4334
        %4336 = vmatprep.mubr.bf16.mxu0 0
        %4337 = vmatmul.mubr.bf16.gmra.mxu0 %v4103
        %v4338 = vpop.f32.mrf.mxu0
        %v4339 = vadd.f32 0.0, %v4338
        %v4340 = vpop.f32.mrf.mxu0
        %v4341 = vadd.f32 0.0, %v4340
        %v4342 = vpop.f32.mrf.mxu0
        %v4343 = vadd.f32 0.0, %v4342
        %v4344 = vpop.f32.mrf.mxu0
        %v4345 = vadd.f32 0.0, %v4344
        %4346 = vmatprep.mubr.bf16.mxu0 0
        %4347 = vmatmul.mubr.bf16.gmra.mxu0 %v4106
        %v4348 = vpop.f32.mrf.mxu0
        %v4349 = vadd.f32 0.0, %v4348
        %v4350 = vpop.f32.mrf.mxu0
        %v4351 = vadd.f32 0.0, %v4350
        %v4352 = vpop.f32.mrf.mxu0
        %v4353 = vadd.f32 0.0, %v4352
        %v4354 = vpop.f32.mrf.mxu0
        %v4355 = vadd.f32 0.0, %v4354
        %4356 = vmatprep.mubr.bf16.mxu0 0
        %4357 = vmatmul.mubr.bf16.gmra.mxu0 %v4109
        %v4358 = vpop.f32.mrf.mxu0
        %v4359 = vadd.f32 0.0, %v4358
        %v4360 = vpop.f32.mrf.mxu0
        %v4361 = vadd.f32 0.0, %v4360
        %v4362 = vpop.f32.mrf.mxu0
        %v4363 = vadd.f32 0.0, %v4362
        %v4364 = vpop.f32.mrf.mxu0
        %v4365 = vadd.f32 0.0, %v4364
        %4366 = vmatprep.mubr.bf16.mxu0 0
        %4367 = vmatmul.mubr.bf16.gmra.mxu0 %v4112
        %v4368 = vpop.f32.mrf.mxu0
        %v4369 = vadd.f32 0.0, %v4368
        %v4370 = vpop.f32.mrf.mxu0
        %v4371 = vadd.f32 0.0, %v4370
        %v4372 = vpop.f32.mrf.mxu0
        %v4373 = vpop.f32.mrf.mxu0
        %4374 = vdwg.mxu0
        %v4375 = vpack.c.bf16 %v4153, %v4149
        %v4376 = vpack.c.bf16 %v4155, %v4151
        %v4377 = vpack.c.bf16 %v4163, %v4159
        %v4378 = vpack.c.bf16 %v4165, %v4161
        %v4379 = vpack.c.bf16 %v4173, %v4169
        %v4380 = vpack.c.bf16 %v4175, %v4171
        %v4381 = vpack.c.bf16 %v4183, %v4179
        %v4382 = vpack.c.bf16 %v4185, %v4181
        %v4383 = vpack.c.bf16 %v4193, %v4189
        %v4384 = vpack.c.bf16 %v4195, %v4191
        %v4385 = vpack.c.bf16 %v4203, %v4199
        %v4386 = vpack.c.bf16 %v4205, %v4201
        %v4387 = vpack.c.bf16 %v4213, %v4209
        %v4388 = vpack.c.bf16 %v4215, %v4211
        %v4389 = vpack.c.bf16 %v4223, %v4219
        %v4390 = vpack.c.bf16 %v4225, %v4221
        %v4391 = vpack.c.bf16 %v4233, %v4229
        %v4392 = vpack.c.bf16 %v4235, %v4231
        %v4393 = vpack.c.bf16 %v4243, %v4239
        %v4394 = vpack.c.bf16 %v4245, %v4241
        %v4395 = vpack.c.bf16 %v4253, %v4249
        %v4396 = vpack.c.bf16 %v4255, %v4251
        %v4397 = vpack.c.bf16 %v4263, %v4259
        %v4398 = vpack.c.bf16 %v4265, %v4261
        %v4399 = vpack.c.bf16 %v4273, %v4269
        %v4400 = vpack.c.bf16 %v4275, %v4271
        %v4401 = vpack.c.bf16 %v4283, %v4279
        %v4402 = vpack.c.bf16 %v4285, %v4281
        %v4403 = vpack.c.bf16 %v4293, %v4289
        %v4404 = vpack.c.bf16 %v4295, %v4291
        %v4405 = vpack.c.bf16 %v4303, %v4299
        %v4406 = vpack.c.bf16 %v4305, %v4301
        %v4407 = vpack.c.bf16 %v4313, %v4309
        %v4408 = vpack.c.bf16 %v4315, %v4311
        %v4409 = vpack.c.bf16 %v4323, %v4319
        %v4410 = vpack.c.bf16 %v4325, %v4321
        %v4411 = vpack.c.bf16 %v4333, %v4329
        %v4412 = vpack.c.bf16 %v4335, %v4331
        %v4413 = vpack.c.bf16 %v4343, %v4339
        %v4414 = vpack.c.bf16 %v4345, %v4341
        %v4415 = vpack.c.bf16 %v4353, %v4349
        %v4416 = vpack.c.bf16 %v4355, %v4351
        %v4417 = vpack.c.bf16 %v4363, %v4359
        %v4418 = vpack.c.bf16 %v4365, %v4361
        %v4419 = vpack.c.bf16 %v4369, %v4369
        %v4420 = vpack.c.bf16 %v4371, %v4371
        %v4421 = vld [vmem:[#allocation2 + $0xa00] sm:$0xf]
        %v4422 = vld [vmem:[#allocation2 + $0xa08] sm:$0xf]
        %v4423 = vld [vmem:[#allocation2 + $0xa10] sm:$0xf]
        %v4424 = vld [vmem:[#allocation2 + $0xa18] sm:$0xf]
        %v4425 = vld [vmem:[#allocation2 + $0xa20] sm:$0xf]
        %v4426 = vld [vmem:[#allocation2 + $0xa28] sm:$0xf]
        %v4427 = vld [vmem:[#allocation2 + $0xa30] sm:$0xf]
        %v4428 = vld [vmem:[#allocation2 + $0xa38] sm:$0xf]
        %v4429 = vld [vmem:[#allocation2 + $0xa40] sm:$0xf]
        %v4430 = vld [vmem:[#allocation2 + $0xa48] sm:$0xf]
        %v4431 = vld [vmem:[#allocation2 + $0xa50] sm:$0xf]
        %v4432 = vld [vmem:[#allocation2 + $0xa58] sm:$0xf]
        %v4433 = vld [vmem:[#allocation2 + $0xa60] sm:$0xf]
        %v4434 = vld [vmem:[#allocation2 + $0xa68] sm:$0xf]
        %v4435 = vld [vmem:[#allocation2 + $0xa70] sm:$0xf]
        %v4436 = vld [vmem:[#allocation2 + $0xa78] sm:$0xf]
        %v4437 = vld [vmem:[#allocation2 + $0xa80] sm:$0xf]
        %v4438 = vld [vmem:[#allocation2 + $0xa88] sm:$0xf]
        %v4439 = vld [vmem:[#allocation2 + $0xa90] sm:$0xf]
        %v4440 = vld [vmem:[#allocation2 + $0xa98] sm:$0xf]
        %v4441 = vld [vmem:[#allocation2 + $0xaa0] sm:$0xf]
        %v4442 = vld [vmem:[#allocation2 + $0xaa8] sm:$0xf]
        %v4443 = vld [vmem:[#allocation2 + $0xab0] sm:$0xf]
        %v4444 = vld [vmem:[#allocation2 + $0xab8] sm:$0xf]
        %v4445 = vld [vmem:[#allocation2 + $0xac0] sm:$0xf]
        %v4446 = vld [vmem:[#allocation2 + $0xac8] sm:$0xf]
        %v4447 = vld [vmem:[#allocation2 + $0xad0] sm:$0xf]
        %v4448 = vld [vmem:[#allocation2 + $0xad8] sm:$0xf]
        %v4449 = vld [vmem:[#allocation2 + $0xae0] sm:$0xf]
        %v4450 = vld [vmem:[#allocation2 + $0xae8] sm:$0xf]
        %v4451 = vld [vmem:[#allocation2 + $0xaf0] sm:$0xf]
        %v4452 = vld [vmem:[#allocation2 + $0xaf8] sm:$0xf]
        %v4453 = vld [vmem:[#allocation2 + $0xb00] sm:$0xf]
        %v4454 = vld [vmem:[#allocation2 + $0xb08] sm:$0xf]
        %v4455 = vld [vmem:[#allocation2 + $0xb10] sm:$0xf]
        %v4456 = vld [vmem:[#allocation2 + $0xb18] sm:$0xf]
        %v4457 = vld [vmem:[#allocation2 + $0xb20] sm:$0xf]
        %v4458 = vld [vmem:[#allocation2 + $0xb28] sm:$0xf]
        %v4459 = vld [vmem:[#allocation2 + $0xb30] sm:$0xf]
        %v4460 = vld [vmem:[#allocation2 + $0xb38] sm:$0xf]
        %v4461 = vld [vmem:[#allocation2 + $0xb40] sm:$0xf]
        %v4462 = vld [vmem:[#allocation2 + $0xb48] sm:$0xf]
        %v4463 = vld [vmem:[#allocation2 + $0xb50] sm:$0xf]
        %v4464 = vld [vmem:[#allocation2 + $0xb58] sm:$0xf]
        %v4465 = vld [vmem:[#allocation2 + $0xb60] sm:$0xf]
        %v4466 = vld [vmem:[#allocation2 + $0xb68] sm:$0xf]
        %v4467 = vld [vmem:[#allocation2 + $0xb70] sm:$0xf]
        %v4468 = vld [vmem:[#allocation2 + $0xb78] sm:$0xf]
        %v4469 = vld [vmem:[#allocation2 + $0xb80] sm:$0xf]
        %v4470 = vld [vmem:[#allocation2 + $0xb88] sm:$0xf]
        %v4471 = vld [vmem:[#allocation2 + $0xb90] sm:$0xf]
        %v4472 = vld [vmem:[#allocation2 + $0xb98] sm:$0xf]
        %v4473 = vld [vmem:[#allocation2 + $0xba0] sm:$0xf]
        %v4474 = vld [vmem:[#allocation2 + $0xba8] sm:$0xf]
        %v4475 = vld [vmem:[#allocation2 + $0xbb0] sm:$0xf]
        %v4476 = vld [vmem:[#allocation2 + $0xbb8] sm:$0xf]
        %v4477 = vld [vmem:[#allocation2 + $0xbc0] sm:$0xf]
        %v4478 = vld [vmem:[#allocation2 + $0xbc8] sm:$0xf]
        %v4479 = vld [vmem:[#allocation2 + $0xbd0] sm:$0xf]
        %v4480 = vld [vmem:[#allocation2 + $0xbd8] sm:$0xf]
        %v4481 = vld [vmem:[#allocation2 + $0xbe0] sm:$0xf]
        %v4482 = vld [vmem:[#allocation2 + $0xbe8] sm:$0xf]
        %v4483 = vld [vmem:[#allocation2 + $0xbf0] sm:$0xf]
        %v4484 = vld [vmem:[#allocation2 + $0xbf8] sm:$0xf]
        %vm4495 = vcmask 1043456
        %v4496 = vrot.slane %v4383, 4
        %v4497 = vrot.slane %v4385, 4
        %v4498 = vsel %vm4495, %v4496, %v4497
        %v4499 = vrot.slane %v4384, 4
        %v4500 = vrot.slane %v4386, 4
        %v4501 = vsel %vm4495, %v4499, %v4500
        %v4502 = vrot.slane %v4387, 4
        %v4503 = vsel %vm4495, %v4497, %v4502
        %v4504 = vrot.slane %v4388, 4
        %v4505 = vsel %vm4495, %v4500, %v4504
        %v4506 = vrot.slane %v4389, 4
        %v4507 = vsel %vm4495, %v4502, %v4506
        %v4508 = vrot.slane %v4390, 4
        %v4509 = vsel %vm4495, %v4504, %v4508
        %v4510 = vrot.slane %v4391, 4
        %v4511 = vsel %vm4495, %v4506, %v4510
        %v4512 = vrot.slane %v4392, 4
        %v4513 = vsel %vm4495, %v4508, %v4512
        %v4556 = vunpack.c.l.b16 %v4453
        %v4557 = vunpack.c.l.b16 %v4454
        %v4558 = vunpack.c.l.b16 %v4455
        %v4559 = vunpack.c.l.b16 %v4456
        %v4560 = vunpack.c.l.b16 %v4457
        %v4561 = vunpack.c.l.b16 %v4458
        %v4562 = vunpack.c.l.b16 %v4459
        %v4563 = vunpack.c.l.b16 %v4460
        %v4564 = vunpack.c.l.b16 %v4461
        %v4565 = vunpack.c.l.b16 %v4462
        %v4566 = vunpack.c.l.b16 %v4463
        %v4567 = vunpack.c.l.b16 %v4464
        %v4568 = vunpack.c.l.b16 %v4465
        %v4569 = vunpack.c.l.b16 %v4466
        %v4570 = vunpack.c.l.b16 %v4467
        %v4571 = vunpack.c.l.b16 %v4468
        %v4572 = vunpack.c.l.b16 %v4469
        %v4573 = vunpack.c.l.b16 %v4470
        %v4574 = vunpack.c.l.b16 %v4471
        %v4575 = vunpack.c.l.b16 %v4472
        %v4576 = vunpack.c.l.b16 %v4473
        %v4577 = vunpack.c.l.b16 %v4474
        %v4578 = vunpack.c.l.b16 %v4475
        %v4579 = vunpack.c.l.b16 %v4476
        %v4580 = vunpack.c.l.b16 %v4477
        %v4581 = vunpack.c.l.b16 %v4478
        %v4582 = vunpack.c.l.b16 %v4479
        %v4583 = vunpack.c.l.b16 %v4480
        %v4584 = vunpack.c.l.b16 %v4481
        %v4585 = vunpack.c.l.b16 %v4482
        %v4586 = vunpack.c.l.b16 %v4483
        %v4587 = vunpack.c.l.b16 %v4484
        %v4588 = vpack.c.b16 %v4557, %v4556
        %v4589 = vpack.c.b16 %v4559, %v4558
        %v4590 = vpack.c.b16 %v4561, %v4560
        %v4591 = vpack.c.b16 %v4563, %v4562
        %v4592 = vpack.c.b16 %v4565, %v4564
        %v4593 = vpack.c.b16 %v4567, %v4566
        %v4594 = vpack.c.b16 %v4569, %v4568
        %v4595 = vpack.c.b16 %v4571, %v4570
        %v4596 = vpack.c.b16 %v4573, %v4572
        %v4597 = vpack.c.b16 %v4575, %v4574
        %v4598 = vpack.c.b16 %v4577, %v4576
        %v4599 = vpack.c.b16 %v4579, %v4578
        %v4600 = vpack.c.b16 %v4581, %v4580
        %v4601 = vpack.c.b16 %v4583, %v4582
        %v4602 = vpack.c.b16 %v4585, %v4584
        %v4603 = vpack.c.b16 %v4587, %v4586
        %4620 = vmatprep.subr.bf16.mxu0 0
        %4621 = vmatpush1.bf16.msra.mxu0 %v4595
        %4622 = vmatprep.subr.bf16.mxu0 0
        %4623 = vmatpush1.bf16.msra.mxu0 %v4594
        %4624 = vmatprep.subr.bf16.mxu0 0
        %4625 = vmatpush1.bf16.msra.mxu0 %v4593
        %4626 = vmatprep.subr.bf16.mxu0 0
        %4627 = vmatpush1.bf16.msra.mxu0 %v4592
        %4628 = vmatprep.subr.bf16.mxu0 0
        %4629 = vmatpush1.bf16.msra.mxu0 %v4591
        %4630 = vmatprep.subr.bf16.mxu0 0
        %4631 = vmatpush1.bf16.msra.mxu0 %v4590
        %4632 = vmatprep.subr.bf16.mxu0 0
        %4633 = vmatpush1.bf16.msra.mxu0 %v4589
        %4634 = vmatprep.subr.bf16.mxu0 0
        %4635 = vmatpush1.bf16.msra.mxu0 %v4588
        %4636 = vmatprep.subr.bf16.mxu0 0
        %4637 = vmatpush2.bf16.msra.mxu0 %v4603
        %4638 = vmatprep.subr.bf16.mxu0 0
        %4639 = vmatpush2.bf16.msra.mxu0 %v4602
        %4640 = vmatprep.subr.bf16.mxu0 0
        %4641 = vmatpush2.bf16.msra.mxu0 %v4601
        %4642 = vmatprep.subr.bf16.mxu0 0
        %4643 = vmatpush2.bf16.msra.mxu0 %v4600
        %4644 = vmatprep.subr.bf16.mxu0 0
        %4645 = vmatpush2.bf16.msra.mxu0 %v4599
        %4646 = vmatprep.subr.bf16.mxu0 0
        %4647 = vmatpush2.bf16.msra.mxu0 %v4598
        %4648 = vmatprep.subr.bf16.mxu0 0
        %4649 = vmatpush2.bf16.msra.mxu0 %v4597
        %4650 = vmatprep.subr.bf16.mxu0 0
        %4651 = vmatpush2.bf16.msra.mxu0 %v4596
        %4652 = vmatprep.mubr.bf16.mxu0 %v4501
        %4653 = vmatmul.mubr.bf16.gmra.mxu0 %v4498
        %v4654 = vpop.f32.mrf.mxu0
        %v4655 = vadd.f32 0.0, %v4654
        %v4656 = vpop.f32.mrf.mxu0
        %v4657 = vpop.f32.mrf.mxu0
        %v4658 = vadd.f32 0.0, %v4657
        %v4659 = vpop.f32.mrf.mxu0
        %4660 = vmatprep.mubr.bf16.mxu0 %v4505
        %4661 = vmatmul.mubr.bf16.gmra.mxu0 %v4503
        %v4662 = vpop.f32.mrf.mxu0
        %v4663 = vadd.f32 0.0, %v4662
        %v4664 = vpop.f32.mrf.mxu0
        %v4665 = vpop.f32.mrf.mxu0
        %v4666 = vadd.f32 0.0, %v4665
        %v4667 = vpop.f32.mrf.mxu0
        %4668 = vmatprep.mubr.bf16.mxu0 %v4509
        %4669 = vmatmul.mubr.bf16.gmra.mxu0 %v4507
        %v4670 = vpop.f32.mrf.mxu0
        %v4671 = vadd.f32 0.0, %v4670
        %v4672 = vpop.f32.mrf.mxu0
        %v4673 = vpop.f32.mrf.mxu0
        %v4674 = vadd.f32 0.0, %v4673
        %v4675 = vpop.f32.mrf.mxu0
        %4676 = vmatprep.mubr.bf16.mxu0 %v4513
        %4677 = vmatmul.mubr.bf16.gmra.mxu0 %v4511
        %v4678 = vpop.f32.mrf.mxu0
        %v4679 = vadd.f32 0.0, %v4678
        %v4680 = vpop.f32.mrf.mxu0
        %v4681 = vpop.f32.mrf.mxu0
        %v4682 = vadd.f32 0.0, %v4681
        %v4683 = vpop.f32.mrf.mxu0
        %4684 = vmatprep.mubr.bf16.mxu0 %v4512
        %4685 = vmatmul.mubr.bf16.gmra.mxu0 %v4510
        %v4686 = vpop.f32.mrf.mxu0
        %v4687 = vadd.f32 0.0, %v4686
        %v4688 = vpop.f32.mrf.mxu0
        %v4689 = vpop.f32.mrf.mxu0
        %v4690 = vpop.f32.mrf.mxu0
        %4691 = vdwg.mxu0
        %v4724 = vunpack.c.l.b16 %v4421
        %v4725 = vunpack.c.l.b16 %v4422
        %v4726 = vunpack.c.l.b16 %v4423
        %v4727 = vunpack.c.l.b16 %v4424
        %v4728 = vunpack.c.l.b16 %v4425
        %v4729 = vunpack.c.l.b16 %v4426
        %v4730 = vunpack.c.l.b16 %v4427
        %v4731 = vunpack.c.l.b16 %v4428
        %v4732 = vunpack.c.l.b16 %v4429
        %v4733 = vunpack.c.l.b16 %v4430
        %v4734 = vunpack.c.l.b16 %v4431
        %v4735 = vunpack.c.l.b16 %v4432
        %v4736 = vunpack.c.l.b16 %v4433
        %v4737 = vunpack.c.l.b16 %v4434
        %v4738 = vunpack.c.l.b16 %v4435
        %v4739 = vunpack.c.l.b16 %v4436
        %v4740 = vunpack.c.l.b16 %v4437
        %v4741 = vunpack.c.l.b16 %v4438
        %v4742 = vunpack.c.l.b16 %v4439
        %v4743 = vunpack.c.l.b16 %v4440
        %v4744 = vunpack.c.l.b16 %v4441
        %v4745 = vunpack.c.l.b16 %v4442
        %v4746 = vunpack.c.l.b16 %v4443
        %v4747 = vunpack.c.l.b16 %v4444
        %v4748 = vunpack.c.l.b16 %v4445
        %v4749 = vunpack.c.l.b16 %v4446
        %v4750 = vunpack.c.l.b16 %v4447
        %v4751 = vunpack.c.l.b16 %v4448
        %v4752 = vunpack.c.l.b16 %v4449
        %v4753 = vunpack.c.l.b16 %v4450
        %v4754 = vunpack.c.l.b16 %v4451
        %v4755 = vunpack.c.l.b16 %v4452
        %v4756 = vpack.c.b16 %v4725, %v4724
        %v4757 = vpack.c.b16 %v4727, %v4726
        %v4758 = vpack.c.b16 %v4729, %v4728
        %v4759 = vpack.c.b16 %v4731, %v4730
        %v4760 = vpack.c.b16 %v4733, %v4732
        %v4761 = vpack.c.b16 %v4735, %v4734
        %v4762 = vpack.c.b16 %v4737, %v4736
        %v4763 = vpack.c.b16 %v4739, %v4738
        %v4764 = vpack.c.b16 %v4741, %v4740
        %v4765 = vpack.c.b16 %v4743, %v4742
        %v4766 = vpack.c.b16 %v4745, %v4744
        %v4767 = vpack.c.b16 %v4747, %v4746
        %v4768 = vpack.c.b16 %v4749, %v4748
        %v4769 = vpack.c.b16 %v4751, %v4750
        %v4770 = vpack.c.b16 %v4753, %v4752
        %v4771 = vpack.c.b16 %v4755, %v4754
        %4788 = vmatprep.subr.bf16.mxu0 0
        %4789 = vmatpush1.bf16.msra.mxu0 %v4763
        %4790 = vmatprep.subr.bf16.mxu0 0
        %4791 = vmatpush1.bf16.msra.mxu0 %v4762
        %4792 = vmatprep.subr.bf16.mxu0 0
        %4793 = vmatpush1.bf16.msra.mxu0 %v4761
        %4794 = vmatprep.subr.bf16.mxu0 0
        %4795 = vmatpush1.bf16.msra.mxu0 %v4760
        %4796 = vmatprep.subr.bf16.mxu0 0
        %4797 = vmatpush1.bf16.msra.mxu0 %v4759
        %4798 = vmatprep.subr.bf16.mxu0 0
        %4799 = vmatpush1.bf16.msra.mxu0 %v4758
        %4800 = vmatprep.subr.bf16.mxu0 0
        %4801 = vmatpush1.bf16.msra.mxu0 %v4757
        %4802 = vmatprep.subr.bf16.mxu0 0
        %4803 = vmatpush1.bf16.msra.mxu0 %v4756
        %4804 = vmatprep.subr.bf16.mxu0 0
        %4805 = vmatpush2.bf16.msra.mxu0 %v4771
        %4806 = vmatprep.subr.bf16.mxu0 0
        %4807 = vmatpush2.bf16.msra.mxu0 %v4770
        %4808 = vmatprep.subr.bf16.mxu0 0
        %4809 = vmatpush2.bf16.msra.mxu0 %v4769
        %4810 = vmatprep.subr.bf16.mxu0 0
        %4811 = vmatpush2.bf16.msra.mxu0 %v4768
        %4812 = vmatprep.subr.bf16.mxu0 0
        %4813 = vmatpush2.bf16.msra.mxu0 %v4767
        %4814 = vmatprep.subr.bf16.mxu0 0
        %4815 = vmatpush2.bf16.msra.mxu0 %v4766
        %4816 = vmatprep.subr.bf16.mxu0 0
        %4817 = vmatpush2.bf16.msra.mxu0 %v4765
        %4818 = vmatprep.subr.bf16.mxu0 0
        %4819 = vmatpush2.bf16.msra.mxu0 %v4764
        %4820 = vmatprep.mubr.bf16.mxu0 %v4376
        %4821 = vmatmul.mubr.bf16.gmra.mxu0 %v4375
        %v4822 = vpop.f32.mrf.mxu0
        %v4823 = vadd.f32 %v4655, %v4822
        %v4824 = vpop.f32.mrf.mxu0
        %v4825 = vpop.f32.mrf.mxu0
        %v4826 = vadd.f32 %v4658, %v4825
        %v4827 = vpop.f32.mrf.mxu0
        %4828 = vmatprep.mubr.bf16.mxu0 %v4378
        %4829 = vmatmul.mubr.bf16.gmra.mxu0 %v4377
        %v4830 = vpop.f32.mrf.mxu0
        %v4831 = vadd.f32 %v4663, %v4830
        %v4832 = vpop.f32.mrf.mxu0
        %v4833 = vpop.f32.mrf.mxu0
        %v4834 = vadd.f32 %v4666, %v4833
        %v4835 = vpop.f32.mrf.mxu0
        %4836 = vmatprep.mubr.bf16.mxu0 %v4380
        %4837 = vmatmul.mubr.bf16.gmra.mxu0 %v4379
        %v4838 = vpop.f32.mrf.mxu0
        %v4839 = vadd.f32 %v4671, %v4838
        %v4840 = vpop.f32.mrf.mxu0
        %v4841 = vpop.f32.mrf.mxu0
        %v4842 = vadd.f32 %v4674, %v4841
        %v4843 = vpop.f32.mrf.mxu0
        %4844 = vmatprep.mubr.bf16.mxu0 %v4382
        %4845 = vmatmul.mubr.bf16.gmra.mxu0 %v4381
        %v4846 = vpop.f32.mrf.mxu0
        %v4847 = vadd.f32 %v4679, %v4846
        %v4848 = vpop.f32.mrf.mxu0
        %v4849 = vpop.f32.mrf.mxu0
        %v4850 = vadd.f32 %v4682, %v4849
        %v4851 = vpop.f32.mrf.mxu0
        %4852 = vmatprep.mubr.bf16.mxu0 %v4384
        %4853 = vmatmul.mubr.bf16.gmra.mxu0 %v4383
        %v4854 = vpop.f32.mrf.mxu0
        %v4855 = vadd.f32 %v4687, %v4854
        %v4856 = vpop.f32.mrf.mxu0
        %v4857 = vpop.f32.mrf.mxu0
        %v4858 = vpop.f32.mrf.mxu0
        %4859 = vdwg.mxu0
        %v4860 = vld [vmem:[#allocation2 + $0xc00] sm:$0xf]
        %v4861 = vld [vmem:[#allocation2 + $0xc08] sm:$0xf]
        %v4862 = vld [vmem:[#allocation2 + $0xc10] sm:$0xf]
        %v4863 = vld [vmem:[#allocation2 + $0xc18] sm:$0xf]
        %v4864 = vld [vmem:[#allocation2 + $0xc20] sm:$0xf]
        %v4865 = vld [vmem:[#allocation2 + $0xc28] sm:$0xf]
        %v4866 = vld [vmem:[#allocation2 + $0xc30] sm:$0xf]
        %v4867 = vld [vmem:[#allocation2 + $0xc38] sm:$0xf]
        %v4868 = vld [vmem:[#allocation2 + $0xc40] sm:$0xf]
        %v4869 = vld [vmem:[#allocation2 + $0xc48] sm:$0xf]
        %v4870 = vld [vmem:[#allocation2 + $0xc50] sm:$0xf]
        %v4871 = vld [vmem:[#allocation2 + $0xc58] sm:$0xf]
        %v4872 = vld [vmem:[#allocation2 + $0xc60] sm:$0xf]
        %v4873 = vld [vmem:[#allocation2 + $0xc68] sm:$0xf]
        %v4874 = vld [vmem:[#allocation2 + $0xc70] sm:$0xf]
        %v4875 = vld [vmem:[#allocation2 + $0xc78] sm:$0xf]
        %v4876 = vld [vmem:[#allocation2 + $0xc80] sm:$0xf]
        %v4877 = vld [vmem:[#allocation2 + $0xc88] sm:$0xf]
        %v4878 = vld [vmem:[#allocation2 + $0xc90] sm:$0xf]
        %v4879 = vld [vmem:[#allocation2 + $0xc98] sm:$0xf]
        %v4880 = vld [vmem:[#allocation2 + $0xca0] sm:$0xf]
        %v4881 = vld [vmem:[#allocation2 + $0xca8] sm:$0xf]
        %v4882 = vld [vmem:[#allocation2 + $0xcb0] sm:$0xf]
        %v4883 = vld [vmem:[#allocation2 + $0xcb8] sm:$0xf]
        %v4884 = vld [vmem:[#allocation2 + $0xcc0] sm:$0xf]
        %v4885 = vld [vmem:[#allocation2 + $0xcc8] sm:$0xf]
        %v4886 = vld [vmem:[#allocation2 + $0xcd0] sm:$0xf]
        %v4887 = vld [vmem:[#allocation2 + $0xcd8] sm:$0xf]
        %v4888 = vld [vmem:[#allocation2 + $0xce0] sm:$0xf]
        %v4889 = vld [vmem:[#allocation2 + $0xce8] sm:$0xf]
        %v4890 = vld [vmem:[#allocation2 + $0xcf0] sm:$0xf]
        %v4891 = vld [vmem:[#allocation2 + $0xcf8] sm:$0xf]
        %v4924 = vunpack.c.l.b16 %v4860
        %v4925 = vunpack.c.l.b16 %v4861
        %v4926 = vunpack.c.l.b16 %v4862
        %v4927 = vunpack.c.l.b16 %v4863
        %v4928 = vunpack.c.l.b16 %v4864
        %v4929 = vunpack.c.l.b16 %v4865
        %v4930 = vunpack.c.l.b16 %v4866
        %v4931 = vunpack.c.l.b16 %v4867
        %v4932 = vunpack.c.l.b16 %v4868
        %v4933 = vunpack.c.l.b16 %v4869
        %v4934 = vunpack.c.l.b16 %v4870
        %v4935 = vunpack.c.l.b16 %v4871
        %v4936 = vunpack.c.l.b16 %v4872
        %v4937 = vunpack.c.l.b16 %v4873
        %v4938 = vunpack.c.l.b16 %v4874
        %v4939 = vunpack.c.l.b16 %v4875
        %v4940 = vunpack.c.l.b16 %v4876
        %v4941 = vunpack.c.l.b16 %v4877
        %v4942 = vunpack.c.l.b16 %v4878
        %v4943 = vunpack.c.l.b16 %v4879
        %v4944 = vunpack.c.l.b16 %v4880
        %v4945 = vunpack.c.l.b16 %v4881
        %v4946 = vunpack.c.l.b16 %v4882
        %v4947 = vunpack.c.l.b16 %v4883
        %v4948 = vunpack.c.l.b16 %v4884
        %v4949 = vunpack.c.l.b16 %v4885
        %v4950 = vunpack.c.l.b16 %v4886
        %v4951 = vunpack.c.l.b16 %v4887
        %v4952 = vunpack.c.l.b16 %v4888
        %v4953 = vunpack.c.l.b16 %v4889
        %v4954 = vunpack.c.l.b16 %v4890
        %v4955 = vunpack.c.l.b16 %v4891
        %v4956 = vpack.c.b16 %v4925, %v4924
        %v4957 = vpack.c.b16 %v4927, %v4926
        %v4958 = vpack.c.b16 %v4929, %v4928
        %v4959 = vpack.c.b16 %v4931, %v4930
        %v4960 = vpack.c.b16 %v4933, %v4932
        %v4961 = vpack.c.b16 %v4935, %v4934
        %v4962 = vpack.c.b16 %v4937, %v4936
        %v4963 = vpack.c.b16 %v4939, %v4938
        %v4964 = vpack.c.b16 %v4941, %v4940
        %v4965 = vpack.c.b16 %v4943, %v4942
        %v4966 = vpack.c.b16 %v4945, %v4944
        %v4967 = vpack.c.b16 %v4947, %v4946
        %v4968 = vpack.c.b16 %v4949, %v4948
        %v4969 = vpack.c.b16 %v4951, %v4950
        %v4970 = vpack.c.b16 %v4953, %v4952
        %v4971 = vpack.c.b16 %v4955, %v4954
        %4988 = vmatprep.subr.bf16.mxu0 0
        %4989 = vmatpush1.bf16.msra.mxu0 %v4963
        %4990 = vmatprep.subr.bf16.mxu0 0
        %4991 = vmatpush1.bf16.msra.mxu0 %v4962
        %4992 = vmatprep.subr.bf16.mxu0 0
        %4993 = vmatpush1.bf16.msra.mxu0 %v4961
        %4994 = vmatprep.subr.bf16.mxu0 0
        %4995 = vmatpush1.bf16.msra.mxu0 %v4960
        %4996 = vmatprep.subr.bf16.mxu0 0
        %4997 = vmatpush1.bf16.msra.mxu0 %v4959
        %4998 = vmatprep.subr.bf16.mxu0 0
        %4999 = vmatpush1.bf16.msra.mxu0 %v4958
        %5000 = vmatprep.subr.bf16.mxu0 0
        %5001 = vmatpush1.bf16.msra.mxu0 %v4957
        %5002 = vmatprep.subr.bf16.mxu0 0
        %5003 = vmatpush1.bf16.msra.mxu0 %v4956
        %5004 = vmatprep.subr.bf16.mxu0 0
        %5005 = vmatpush2.bf16.msra.mxu0 %v4971
        %5006 = vmatprep.subr.bf16.mxu0 0
        %5007 = vmatpush2.bf16.msra.mxu0 %v4970
        %5008 = vmatprep.subr.bf16.mxu0 0
        %5009 = vmatpush2.bf16.msra.mxu0 %v4969
        %5010 = vmatprep.subr.bf16.mxu0 0
        %5011 = vmatpush2.bf16.msra.mxu0 %v4968
        %5012 = vmatprep.subr.bf16.mxu0 0
        %5013 = vmatpush2.bf16.msra.mxu0 %v4967
        %5014 = vmatprep.subr.bf16.mxu0 0
        %5015 = vmatpush2.bf16.msra.mxu0 %v4966
        %5016 = vmatprep.subr.bf16.mxu0 0
        %5017 = vmatpush2.bf16.msra.mxu0 %v4965
        %5018 = vmatprep.subr.bf16.mxu0 0
        %5019 = vmatpush2.bf16.msra.mxu0 %v4964
        %5020 = vmatprep.mubr.bf16.mxu0 %v4394
        %5021 = vmatmul.mubr.bf16.gmra.mxu0 %v4393
        %v5022 = vpop.f32.mrf.mxu0
        %v5023 = vadd.f32 0.0, %v5022
        %v5024 = vpop.f32.mrf.mxu0
        %v5025 = vpop.f32.mrf.mxu0
        %v5026 = vadd.f32 0.0, %v5025
        %v5027 = vpop.f32.mrf.mxu0
        %5028 = vmatprep.mubr.bf16.mxu0 %v4396
        %5029 = vmatmul.mubr.bf16.gmra.mxu0 %v4395
        %v5030 = vpop.f32.mrf.mxu0
        %v5031 = vadd.f32 0.0, %v5030
        %v5032 = vpop.f32.mrf.mxu0
        %v5033 = vpop.f32.mrf.mxu0
        %v5034 = vadd.f32 0.0, %v5033
        %v5035 = vpop.f32.mrf.mxu0
        %5036 = vmatprep.mubr.bf16.mxu0 %v4398
        %5037 = vmatmul.mubr.bf16.gmra.mxu0 %v4397
        %v5038 = vpop.f32.mrf.mxu0
        %v5039 = vadd.f32 0.0, %v5038
        %v5040 = vpop.f32.mrf.mxu0
        %v5041 = vpop.f32.mrf.mxu0
        %v5042 = vadd.f32 0.0, %v5041
        %v5043 = vpop.f32.mrf.mxu0
        %5044 = vmatprep.mubr.bf16.mxu0 %v4400
        %5045 = vmatmul.mubr.bf16.gmra.mxu0 %v4399
        %v5046 = vpop.f32.mrf.mxu0
        %v5047 = vadd.f32 0.0, %v5046
        %v5048 = vpop.f32.mrf.mxu0
        %v5049 = vpop.f32.mrf.mxu0
        %v5050 = vadd.f32 0.0, %v5049
        %v5051 = vpop.f32.mrf.mxu0
        %5052 = vmatprep.mubr.bf16.mxu0 %v4402
        %5053 = vmatmul.mubr.bf16.gmra.mxu0 %v4401
        %v5054 = vpop.f32.mrf.mxu0
        %v5055 = vadd.f32 0.0, %v5054
        %v5056 = vpop.f32.mrf.mxu0
        %v5057 = vpop.f32.mrf.mxu0
        %v5058 = vpop.f32.mrf.mxu0
        %5059 = vdwg.mxu0
        %v5060 = vadd.f32 %v4823, %v5023
        %v5061 = vadd.f32 %v4826, %v5026
        %v5062 = vadd.f32 %v4831, %v5031
        %v5063 = vadd.f32 %v4834, %v5034
        %v5064 = vadd.f32 %v4839, %v5039
        %v5065 = vadd.f32 %v4842, %v5042
        %v5066 = vadd.f32 %v4847, %v5047
        %v5067 = vadd.f32 %v4850, %v5050
        %v5068 = vadd.f32 %v4855, %v5055
        %v5069 = vld [vmem:[#allocation2 + $0xd00] sm:$0xf]
        %v5070 = vld [vmem:[#allocation2 + $0xd08] sm:$0xf]
        %v5071 = vld [vmem:[#allocation2 + $0xd10] sm:$0xf]
        %v5072 = vld [vmem:[#allocation2 + $0xd18] sm:$0xf]
        %v5073 = vld [vmem:[#allocation2 + $0xd20] sm:$0xf]
        %v5074 = vld [vmem:[#allocation2 + $0xd28] sm:$0xf]
        %v5075 = vld [vmem:[#allocation2 + $0xd30] sm:$0xf]
        %v5076 = vld [vmem:[#allocation2 + $0xd38] sm:$0xf]
        %v5077 = vld [vmem:[#allocation2 + $0xd40] sm:$0xf]
        %v5078 = vld [vmem:[#allocation2 + $0xd48] sm:$0xf]
        %v5079 = vld [vmem:[#allocation2 + $0xd50] sm:$0xf]
        %v5080 = vld [vmem:[#allocation2 + $0xd58] sm:$0xf]
        %v5081 = vld [vmem:[#allocation2 + $0xd60] sm:$0xf]
        %v5082 = vld [vmem:[#allocation2 + $0xd68] sm:$0xf]
        %v5083 = vld [vmem:[#allocation2 + $0xd70] sm:$0xf]
        %v5084 = vld [vmem:[#allocation2 + $0xd78] sm:$0xf]
        %v5085 = vld [vmem:[#allocation2 + $0xd80] sm:$0xf]
        %v5086 = vld [vmem:[#allocation2 + $0xd88] sm:$0xf]
        %v5087 = vld [vmem:[#allocation2 + $0xd90] sm:$0xf]
        %v5088 = vld [vmem:[#allocation2 + $0xd98] sm:$0xf]
        %v5089 = vld [vmem:[#allocation2 + $0xda0] sm:$0xf]
        %v5090 = vld [vmem:[#allocation2 + $0xda8] sm:$0xf]
        %v5091 = vld [vmem:[#allocation2 + $0xdb0] sm:$0xf]
        %v5092 = vld [vmem:[#allocation2 + $0xdb8] sm:$0xf]
        %v5093 = vld [vmem:[#allocation2 + $0xdc0] sm:$0xf]
        %v5094 = vld [vmem:[#allocation2 + $0xdc8] sm:$0xf]
        %v5095 = vld [vmem:[#allocation2 + $0xdd0] sm:$0xf]
        %v5096 = vld [vmem:[#allocation2 + $0xdd8] sm:$0xf]
        %v5097 = vld [vmem:[#allocation2 + $0xde0] sm:$0xf]
        %v5098 = vld [vmem:[#allocation2 + $0xde8] sm:$0xf]
        %v5099 = vld [vmem:[#allocation2 + $0xdf0] sm:$0xf]
        %v5100 = vld [vmem:[#allocation2 + $0xdf8] sm:$0xf]
        %v5111 = vrot.slane %v4401, 4
        %v5112 = vrot.slane %v4403, 4
        %v5113 = vsel %vm4495, %v5111, %v5112
        %v5114 = vrot.slane %v4402, 4
        %v5115 = vrot.slane %v4404, 4
        %v5116 = vsel %vm4495, %v5114, %v5115
        %v5117 = vrot.slane %v4405, 4
        %v5118 = vsel %vm4495, %v5112, %v5117
        %v5119 = vrot.slane %v4406, 4
        %v5120 = vsel %vm4495, %v5115, %v5119
        %v5121 = vrot.slane %v4407, 4
        %v5122 = vsel %vm4495, %v5117, %v5121
        %v5123 = vrot.slane %v4408, 4
        %v5124 = vsel %vm4495, %v5119, %v5123
        %v5125 = vrot.slane %v4409, 4
        %v5126 = vsel %vm4495, %v5121, %v5125
        %v5127 = vrot.slane %v4410, 4
        %v5128 = vsel %vm4495, %v5123, %v5127
        %v5171 = vunpack.c.l.b16 %v5069
        %v5172 = vunpack.c.l.b16 %v5070
        %v5173 = vunpack.c.l.b16 %v5071
        %v5174 = vunpack.c.l.b16 %v5072
        %v5175 = vunpack.c.l.b16 %v5073
        %v5176 = vunpack.c.l.b16 %v5074
        %v5177 = vunpack.c.l.b16 %v5075
        %v5178 = vunpack.c.l.b16 %v5076
        %v5179 = vunpack.c.l.b16 %v5077
        %v5180 = vunpack.c.l.b16 %v5078
        %v5181 = vunpack.c.l.b16 %v5079
        %v5182 = vunpack.c.l.b16 %v5080
        %v5183 = vunpack.c.l.b16 %v5081
        %v5184 = vunpack.c.l.b16 %v5082
        %v5185 = vunpack.c.l.b16 %v5083
        %v5186 = vunpack.c.l.b16 %v5084
        %v5187 = vunpack.c.l.b16 %v5085
        %v5188 = vunpack.c.l.b16 %v5086
        %v5189 = vunpack.c.l.b16 %v5087
        %v5190 = vunpack.c.l.b16 %v5088
        %v5191 = vunpack.c.l.b16 %v5089
        %v5192 = vunpack.c.l.b16 %v5090
        %v5193 = vunpack.c.l.b16 %v5091
        %v5194 = vunpack.c.l.b16 %v5092
        %v5195 = vunpack.c.l.b16 %v5093
        %v5196 = vunpack.c.l.b16 %v5094
        %v5197 = vunpack.c.l.b16 %v5095
        %v5198 = vunpack.c.l.b16 %v5096
        %v5199 = vunpack.c.l.b16 %v5097
        %v5200 = vunpack.c.l.b16 %v5098
        %v5201 = vunpack.c.l.b16 %v5099
        %v5202 = vunpack.c.l.b16 %v5100
        %v5203 = vpack.c.b16 %v5172, %v5171
        %v5204 = vpack.c.b16 %v5174, %v5173
        %v5205 = vpack.c.b16 %v5176, %v5175
        %v5206 = vpack.c.b16 %v5178, %v5177
        %v5207 = vpack.c.b16 %v5180, %v5179
        %v5208 = vpack.c.b16 %v5182, %v5181
        %v5209 = vpack.c.b16 %v5184, %v5183
        %v5210 = vpack.c.b16 %v5186, %v5185
        %v5211 = vpack.c.b16 %v5188, %v5187
        %v5212 = vpack.c.b16 %v5190, %v5189
        %v5213 = vpack.c.b16 %v5192, %v5191
        %v5214 = vpack.c.b16 %v5194, %v5193
        %v5215 = vpack.c.b16 %v5196, %v5195
        %v5216 = vpack.c.b16 %v5198, %v5197
        %v5217 = vpack.c.b16 %v5200, %v5199
        %v5218 = vpack.c.b16 %v5202, %v5201
        %5235 = vmatprep.subr.bf16.mxu0 0
        %5236 = vmatpush1.bf16.msra.mxu0 %v5210
        %5237 = vmatprep.subr.bf16.mxu0 0
        %5238 = vmatpush1.bf16.msra.mxu0 %v5209
        %5239 = vmatprep.subr.bf16.mxu0 0
        %5240 = vmatpush1.bf16.msra.mxu0 %v5208
        %5241 = vmatprep.subr.bf16.mxu0 0
        %5242 = vmatpush1.bf16.msra.mxu0 %v5207
        %5243 = vmatprep.subr.bf16.mxu0 0
        %5244 = vmatpush1.bf16.msra.mxu0 %v5206
        %5245 = vmatprep.subr.bf16.mxu0 0
        %5246 = vmatpush1.bf16.msra.mxu0 %v5205
        %5247 = vmatprep.subr.bf16.mxu0 0
        %5248 = vmatpush1.bf16.msra.mxu0 %v5204
        %5249 = vmatprep.subr.bf16.mxu0 0
        %5250 = vmatpush1.bf16.msra.mxu0 %v5203
        %5251 = vmatprep.subr.bf16.mxu0 0
        %5252 = vmatpush2.bf16.msra.mxu0 %v5218
        %5253 = vmatprep.subr.bf16.mxu0 0
        %5254 = vmatpush2.bf16.msra.mxu0 %v5217
        %5255 = vmatprep.subr.bf16.mxu0 0
        %5256 = vmatpush2.bf16.msra.mxu0 %v5216
        %5257 = vmatprep.subr.bf16.mxu0 0
        %5258 = vmatpush2.bf16.msra.mxu0 %v5215
        %5259 = vmatprep.subr.bf16.mxu0 0
        %5260 = vmatpush2.bf16.msra.mxu0 %v5214
        %5261 = vmatprep.subr.bf16.mxu0 0
        %5262 = vmatpush2.bf16.msra.mxu0 %v5213
        %5263 = vmatprep.subr.bf16.mxu0 0
        %5264 = vmatpush2.bf16.msra.mxu0 %v5212
        %5265 = vmatprep.subr.bf16.mxu0 0
        %5266 = vmatpush2.bf16.msra.mxu0 %v5211
        %5267 = vmatprep.mubr.bf16.mxu0 %v5116
        %5268 = vmatmul.mubr.bf16.gmra.mxu0 %v5113
        %v5269 = vpop.f32.mrf.mxu0
        %v5270 = vadd.f32 0.0, %v5269
        %v5271 = vpop.f32.mrf.mxu0
        %v5272 = vpop.f32.mrf.mxu0
        %v5273 = vadd.f32 0.0, %v5272
        %v5274 = vpop.f32.mrf.mxu0
        %5275 = vmatprep.mubr.bf16.mxu0 %v5120
        %5276 = vmatmul.mubr.bf16.gmra.mxu0 %v5118
        %v5277 = vpop.f32.mrf.mxu0
        %v5278 = vadd.f32 0.0, %v5277
        %v5279 = vpop.f32.mrf.mxu0
        %v5280 = vpop.f32.mrf.mxu0
        %v5281 = vadd.f32 0.0, %v5280
        %v5282 = vpop.f32.mrf.mxu0
        %5283 = vmatprep.mubr.bf16.mxu0 %v5124
        %5284 = vmatmul.mubr.bf16.gmra.mxu0 %v5122
        %v5285 = vpop.f32.mrf.mxu0
        %v5286 = vadd.f32 0.0, %v5285
        %v5287 = vpop.f32.mrf.mxu0
        %v5288 = vpop.f32.mrf.mxu0
        %v5289 = vadd.f32 0.0, %v5288
        %v5290 = vpop.f32.mrf.mxu0
        %5291 = vmatprep.mubr.bf16.mxu0 %v5128
        %5292 = vmatmul.mubr.bf16.gmra.mxu0 %v5126
        %v5293 = vpop.f32.mrf.mxu0
        %v5294 = vadd.f32 0.0, %v5293
        %v5295 = vpop.f32.mrf.mxu0
        %v5296 = vpop.f32.mrf.mxu0
        %v5297 = vadd.f32 0.0, %v5296
        %v5298 = vpop.f32.mrf.mxu0
        %5299 = vmatprep.mubr.bf16.mxu0 %v5127
        %5300 = vmatmul.mubr.bf16.gmra.mxu0 %v5125
        %v5301 = vpop.f32.mrf.mxu0
        %v5302 = vadd.f32 0.0, %v5301
        %v5303 = vpop.f32.mrf.mxu0
        %v5304 = vpop.f32.mrf.mxu0
        %v5305 = vpop.f32.mrf.mxu0
        %5306 = vdwg.mxu0
        %v5307 = vadd.f32 %v5060, %v5270
        %v5308 = vadd.f32 %v5061, %v5273
        %v5309 = vadd.f32 %v5062, %v5278
        %v5310 = vadd.f32 %v5063, %v5281
        %v5311 = vadd.f32 %v5064, %v5286
        %v5312 = vadd.f32 %v5065, %v5289
        %v5313 = vadd.f32 %v5066, %v5294
        %v5314 = vadd.f32 %v5067, %v5297
        %v5315 = vadd.f32 %v5068, %v5302
        %v5316 = vld [vmem:[#allocation2 + $0xe00] sm:$0xf]
        %v5317 = vld [vmem:[#allocation2 + $0xe08] sm:$0xf]
        %v5318 = vld [vmem:[#allocation2 + $0xe10] sm:$0xf]
        %v5319 = vld [vmem:[#allocation2 + $0xe18] sm:$0xf]
        %v5320 = vld [vmem:[#allocation2 + $0xe20] sm:$0xf]
        %v5321 = vld [vmem:[#allocation2 + $0xe28] sm:$0xf]
        %v5322 = vld [vmem:[#allocation2 + $0xe30] sm:$0xf]
        %v5323 = vld [vmem:[#allocation2 + $0xe38] sm:$0xf]
        %v5324 = vld [vmem:[#allocation2 + $0xe40] sm:$0xf]
        %v5325 = vld [vmem:[#allocation2 + $0xe48] sm:$0xf]
        %v5326 = vld [vmem:[#allocation2 + $0xe50] sm:$0xf]
        %v5327 = vld [vmem:[#allocation2 + $0xe58] sm:$0xf]
        %v5328 = vld [vmem:[#allocation2 + $0xe60] sm:$0xf]
        %v5329 = vld [vmem:[#allocation2 + $0xe68] sm:$0xf]
        %v5330 = vld [vmem:[#allocation2 + $0xe70] sm:$0xf]
        %v5331 = vld [vmem:[#allocation2 + $0xe78] sm:$0xf]
        %v5332 = vld [vmem:[#allocation2 + $0xe80] sm:$0xf]
        %v5333 = vld [vmem:[#allocation2 + $0xe88] sm:$0xf]
        %v5334 = vld [vmem:[#allocation2 + $0xe90] sm:$0xf]
        %v5335 = vld [vmem:[#allocation2 + $0xe98] sm:$0xf]
        %v5336 = vld [vmem:[#allocation2 + $0xea0] sm:$0xf]
        %v5337 = vld [vmem:[#allocation2 + $0xea8] sm:$0xf]
        %v5338 = vld [vmem:[#allocation2 + $0xeb0] sm:$0xf]
        %v5339 = vld [vmem:[#allocation2 + $0xeb8] sm:$0xf]
        %v5340 = vld [vmem:[#allocation2 + $0xec0] sm:$0xf]
        %v5341 = vld [vmem:[#allocation2 + $0xec8] sm:$0xf]
        %v5342 = vld [vmem:[#allocation2 + $0xed0] sm:$0xf]
        %v5343 = vld [vmem:[#allocation2 + $0xed8] sm:$0xf]
        %v5344 = vld [vmem:[#allocation2 + $0xee0] sm:$0xf]
        %v5345 = vld [vmem:[#allocation2 + $0xee8] sm:$0xf]
        %v5346 = vld [vmem:[#allocation2 + $0xef0] sm:$0xf]
        %v5347 = vld [vmem:[#allocation2 + $0xef8] sm:$0xf]
        %v5380 = vunpack.c.l.b16 %v5316
        %v5381 = vunpack.c.l.b16 %v5317
        %v5382 = vunpack.c.l.b16 %v5318
        %v5383 = vunpack.c.l.b16 %v5319
        %v5384 = vunpack.c.l.b16 %v5320
        %v5385 = vunpack.c.l.b16 %v5321
        %v5386 = vunpack.c.l.b16 %v5322
        %v5387 = vunpack.c.l.b16 %v5323
        %v5388 = vunpack.c.l.b16 %v5324
        %v5389 = vunpack.c.l.b16 %v5325
        %v5390 = vunpack.c.l.b16 %v5326
        %v5391 = vunpack.c.l.b16 %v5327
        %v5392 = vunpack.c.l.b16 %v5328
        %v5393 = vunpack.c.l.b16 %v5329
        %v5394 = vunpack.c.l.b16 %v5330
        %v5395 = vunpack.c.l.b16 %v5331
        %v5396 = vunpack.c.l.b16 %v5332
        %v5397 = vunpack.c.l.b16 %v5333
        %v5398 = vunpack.c.l.b16 %v5334
        %v5399 = vunpack.c.l.b16 %v5335
        %v5400 = vunpack.c.l.b16 %v5336
        %v5401 = vunpack.c.l.b16 %v5337
        %v5402 = vunpack.c.l.b16 %v5338
        %v5403 = vunpack.c.l.b16 %v5339
        %v5404 = vunpack.c.l.b16 %v5340
        %v5405 = vunpack.c.l.b16 %v5341
        %v5406 = vunpack.c.l.b16 %v5342
        %v5407 = vunpack.c.l.b16 %v5343
        %v5408 = vunpack.c.l.b16 %v5344
        %v5409 = vunpack.c.l.b16 %v5345
        %v5410 = vunpack.c.l.b16 %v5346
        %v5411 = vunpack.c.l.b16 %v5347
        %v5412 = vpack.c.b16 %v5381, %v5380
        %v5413 = vpack.c.b16 %v5383, %v5382
        %v5414 = vpack.c.b16 %v5385, %v5384
        %v5415 = vpack.c.b16 %v5387, %v5386
        %v5416 = vpack.c.b16 %v5389, %v5388
        %v5417 = vpack.c.b16 %v5391, %v5390
        %v5418 = vpack.c.b16 %v5393, %v5392
        %v5419 = vpack.c.b16 %v5395, %v5394
        %v5420 = vpack.c.b16 %v5397, %v5396
        %v5421 = vpack.c.b16 %v5399, %v5398
        %v5422 = vpack.c.b16 %v5401, %v5400
        %v5423 = vpack.c.b16 %v5403, %v5402
        %v5424 = vpack.c.b16 %v5405, %v5404
        %v5425 = vpack.c.b16 %v5407, %v5406
        %v5426 = vpack.c.b16 %v5409, %v5408
        %v5427 = vpack.c.b16 %v5411, %v5410
        %5444 = vmatprep.subr.bf16.mxu0 0
        %5445 = vmatpush1.bf16.msra.mxu0 %v5419
        %5446 = vmatprep.subr.bf16.mxu0 0
        %5447 = vmatpush1.bf16.msra.mxu0 %v5418
        %5448 = vmatprep.subr.bf16.mxu0 0
        %5449 = vmatpush1.bf16.msra.mxu0 %v5417
        %5450 = vmatprep.subr.bf16.mxu0 0
        %5451 = vmatpush1.bf16.msra.mxu0 %v5416
        %5452 = vmatprep.subr.bf16.mxu0 0
        %5453 = vmatpush1.bf16.msra.mxu0 %v5415
        %5454 = vmatprep.subr.bf16.mxu0 0
        %5455 = vmatpush1.bf16.msra.mxu0 %v5414
        %5456 = vmatprep.subr.bf16.mxu0 0
        %5457 = vmatpush1.bf16.msra.mxu0 %v5413
        %5458 = vmatprep.subr.bf16.mxu0 0
        %5459 = vmatpush1.bf16.msra.mxu0 %v5412
        %5460 = vmatprep.subr.bf16.mxu0 0
        %5461 = vmatpush2.bf16.msra.mxu0 %v5427
        %5462 = vmatprep.subr.bf16.mxu0 0
        %5463 = vmatpush2.bf16.msra.mxu0 %v5426
        %5464 = vmatprep.subr.bf16.mxu0 0
        %5465 = vmatpush2.bf16.msra.mxu0 %v5425
        %5466 = vmatprep.subr.bf16.mxu0 0
        %5467 = vmatpush2.bf16.msra.mxu0 %v5424
        %5468 = vmatprep.subr.bf16.mxu0 0
        %5469 = vmatpush2.bf16.msra.mxu0 %v5423
        %5470 = vmatprep.subr.bf16.mxu0 0
        %5471 = vmatpush2.bf16.msra.mxu0 %v5422
        %5472 = vmatprep.subr.bf16.mxu0 0
        %5473 = vmatpush2.bf16.msra.mxu0 %v5421
        %5474 = vmatprep.subr.bf16.mxu0 0
        %5475 = vmatpush2.bf16.msra.mxu0 %v5420
        %5476 = vmatprep.mubr.bf16.mxu0 %v4412
        %5477 = vmatmul.mubr.bf16.gmra.mxu0 %v4411
        %v5478 = vpop.f32.mrf.mxu0
        %v5479 = vadd.f32 0.0, %v5478
        %v5480 = vpop.f32.mrf.mxu0
        %v5481 = vpop.f32.mrf.mxu0
        %v5482 = vadd.f32 0.0, %v5481
        %v5483 = vpop.f32.mrf.mxu0
        %5484 = vmatprep.mubr.bf16.mxu0 %v4414
        %5485 = vmatmul.mubr.bf16.gmra.mxu0 %v4413
        %v5486 = vpop.f32.mrf.mxu0
        %v5487 = vadd.f32 0.0, %v5486
        %v5488 = vpop.f32.mrf.mxu0
        %v5489 = vpop.f32.mrf.mxu0
        %v5490 = vadd.f32 0.0, %v5489
        %v5491 = vpop.f32.mrf.mxu0
        %5492 = vmatprep.mubr.bf16.mxu0 %v4416
        %5493 = vmatmul.mubr.bf16.gmra.mxu0 %v4415
        %v5494 = vpop.f32.mrf.mxu0
        %v5495 = vadd.f32 0.0, %v5494
        %v5496 = vpop.f32.mrf.mxu0
        %v5497 = vpop.f32.mrf.mxu0
        %v5498 = vadd.f32 0.0, %v5497
        %v5499 = vpop.f32.mrf.mxu0
        %5500 = vmatprep.mubr.bf16.mxu0 %v4418
        %5501 = vmatmul.mubr.bf16.gmra.mxu0 %v4417
        %v5502 = vpop.f32.mrf.mxu0
        %v5503 = vadd.f32 0.0, %v5502
        %v5504 = vpop.f32.mrf.mxu0
        %v5505 = vpop.f32.mrf.mxu0
        %v5506 = vadd.f32 0.0, %v5505
        %v5507 = vpop.f32.mrf.mxu0
        %5508 = vmatprep.mubr.bf16.mxu0 %v4420
        %5509 = vmatmul.mubr.bf16.gmra.mxu0 %v4419
        %v5510 = vpop.f32.mrf.mxu0
        %v5511 = vadd.f32 0.0, %v5510
        %v5512 = vpop.f32.mrf.mxu0
        %v5513 = vpop.f32.mrf.mxu0
        %v5514 = vpop.f32.mrf.mxu0
        %5515 = vdwg.mxu0
        %v5516 = vadd.f32 %v5307, %v5479
        %v5517 = vadd.f32 %v5308, %v5482
        %v5518 = vadd.f32 %v5309, %v5487
        %v5519 = vadd.f32 %v5310, %v5490
        %v5520 = vadd.f32 %v5311, %v5495
        %v5521 = vadd.f32 %v5312, %v5498
        %v5522 = vadd.f32 %v5313, %v5503
        %v5523 = vadd.f32 %v5314, %v5506
        %v5524 = vadd.f32 %v5315, %v5511
        %v5525 = vld [vmem:[#allocation4 + $0x5] ss:$0 sm:$0xff]
        %v5526 = vadd.f32 %v5516, %v5525
        %v5527 = vadd.f32 %v5517, %v5525
        %v5528 = vadd.f32 %v5518, %v5525
        %v5529 = vadd.f32 %v5519, %v5525
        %v5530 = vadd.f32 %v5520, %v5525
        %v5531 = vadd.f32 %v5521, %v5525
        %v5532 = vadd.f32 %v5522, %v5525
        %v5533 = vadd.f32 %v5523, %v5525
        %v5534 = vadd.f32 %v5524, %v5525
        %v5535 = vmax.f32 %v5526, 0.0
        %v5536 = vmax.f32 %v5527, 0.0
        %v5537 = vmax.f32 %v5528, 0.0
        %v5538 = vmax.f32 %v5529, 0.0
        %v5539 = vmax.f32 %v5530, 0.0
        %v5540 = vmax.f32 %v5531, 0.0
        %v5541 = vmax.f32 %v5532, 0.0
        %v5542 = vmax.f32 %v5533, 0.0
        %v5543 = vmax.f32 %v5534, 0.0
        %v5544 = vpack.c.bf16 %v5536, %v5535
        %v5545 = vpack.c.bf16 %v5538, %v5537
        %v5546 = vpack.c.bf16 %v5540, %v5539
        %v5547 = vpack.c.bf16 %v5542, %v5541
        %v5548 = vpack.c.bf16 %v5543, %v5543
        %v5549 = vld [vmem:[%s1 + $0x3f8] sm:$0xf]
        %v5550 = vld [vmem:[%s1 + $0x400] sm:$0xf]
        %v5551 = vld [vmem:[%s1 + $0x408] sm:$0xf]
        %v5552 = vld [vmem:[%s1 + $0x410] sm:$0xf]
        %v5553 = vld [vmem:[%s1 + $0x418] sm:$0xf]
        %v5554 = vld [vmem:[%s1 + $0x420] sm:$0xf]
        %v5555 = vld [vmem:[%s1 + $0x428] sm:$0xf]
        %v5556 = vld [vmem:[%s1 + $0x430] sm:$0xf]
        %v5557 = vld [vmem:[%s1 + $0x438] sm:$0xf]
        %v5558 = vld [vmem:[%s1 + $0x440] sm:$0xf]
        %v5559 = vld [vmem:[%s1 + $0x448] sm:$0xf]
        %v5560 = vld [vmem:[%s1 + $0x450] sm:$0xf]
        %v5561 = vld [vmem:[%s1 + $0x458] sm:$0xf]
        %v5562 = vld [vmem:[%s1 + $0x460] sm:$0xf]
        %v5563 = vld [vmem:[%s1 + $0x468] sm:$0xf]
        %v5564 = vld [vmem:[%s1 + $0x470] sm:$0xf]
        %v5565 = vld [vmem:[%s1 + $0x478] sm:$0xf]
        %v5566 = vld [vmem:[%s1 + $0x480] sm:$0xf]
        %v5567 = vld [vmem:[%s1 + $0x488] sm:$0xf]
        %v5568 = vld [vmem:[%s1 + $0x490] sm:$0xf]
        %v5569 = vld [vmem:[%s1 + $0x498] sm:$0xf]
        %v5570 = vld [vmem:[%s1 + $0x4a0] sm:$0xf]
        %v5571 = vld [vmem:[%s1 + $0x4a8] sm:$0xf]
        %v5572 = vld [vmem:[%s1 + $0x4b0] sm:$0xf]
        %v5573 = vld [vmem:[%s1 + $0x4b8] sm:$0xf]
        %v5574 = vld [vmem:[%s1 + $0x4c0] sm:$0xf]
        %v5575 = vld [vmem:[%s1 + $0x4c8] sm:$0xf]
        %v5576 = vld [vmem:[%s1 + $0x4d0] sm:$0xf]
        %v5577 = vld [vmem:[%s1 + $0x4d8] sm:$0xf]
        %v5578 = vld [vmem:[%s1 + $0x4e0] sm:$0xf]
        %v5579 = vld [vmem:[%s1 + $0x4e8] sm:$0xf]
        %v5580 = vld [vmem:[%s1 + $0x4f0] sm:$0xf]
        %v5581 = vld [vmem:[%s1 + $0x4f8] sm:$0xf]
        %v5582 = vld [vmem:[%s1 + $0x500] sm:$0xf]
        %v5583 = vld [vmem:[%s1 + $0x508] sm:$0xf]
        %v5584 = vld [vmem:[%s1 + $0x510] sm:$0xf]
        %v5585 = vld [vmem:[%s1 + $0x518] sm:$0xf]
        %v5586 = vld [vmem:[%s1 + $0x520] sm:$0xf]
        %v5587 = vld [vmem:[%s1 + $0x528] sm:$0xf]
        %v5588 = vld [vmem:[%s1 + $0x530] sm:$0xf]
        %v5589 = vld [vmem:[%s1 + $0x538] sm:$0xf]
        %v5590 = vld [vmem:[%s1 + $0x540] sm:$0xf]
        %v5591 = vld [vmem:[%s1 + $0x548] sm:$0xf]
        %v5592 = vld [vmem:[%s1 + $0x550] sm:$0xf]
        %v5593 = vld [vmem:[%s1 + $0x558] sm:$0xf]
        %v5594 = vld [vmem:[%s1 + $0x560] sm:$0xf]
        %v5595 = vld [vmem:[%s1 + $0x568] sm:$0xf]
        %v5596 = vld [vmem:[%s1 + $0x570] sm:$0xf]
        %v5597 = vld [vmem:[%s1 + $0x578] sm:$0xf]
        %v5598 = vld [vmem:[%s1 + $0x580] sm:$0xf]
        %v5599 = vld [vmem:[%s1 + $0x588] sm:$0xf]
        %v5600 = vld [vmem:[%s1 + $0x590] sm:$0xf]
        %v5601 = vld [vmem:[%s1 + $0x598] sm:$0xf]
        %v5602 = vld [vmem:[%s1 + $0x5a0] sm:$0xf]
        %v5603 = vld [vmem:[%s1 + $0x5a8] sm:$0xf]
        %v5604 = vld [vmem:[%s1 + $0x5b0] sm:$0xf]
        %v5605 = vld [vmem:[%s1 + $0x5b8] sm:$0xf]
        %v5606 = vld [vmem:[%s1 + $0x5c0] sm:$0xf]
        %v5607 = vld [vmem:[%s1 + $0x5c8] sm:$0xf]
        %v5608 = vld [vmem:[%s1 + $0x5d0] sm:$0xf]
        %v5609 = vld [vmem:[%s1 + $0x5d8] sm:$0xf]
        %v5610 = vld [vmem:[%s1 + $0x5e0] sm:$0xf]
        %v5611 = vld [vmem:[%s1 + $0x5e8] sm:$0xf]
        %v5612 = vld [vmem:[%s1 + $0x5f0] sm:$0xf]
        %v5613 = vld [vmem:[%s1 + $0x5f8] sm:$0xf]
        %v5614 = vld [vmem:[%s1 + $0x600] sm:$0xf]
        %v5615 = vld [vmem:[%s1 + $0x608] sm:$0xf]
        %v5616 = vld [vmem:[%s1 + $0x610] sm:$0xf]
        %v5617 = vld [vmem:[%s1 + $0x618] sm:$0xf]
        %v5618 = vld [vmem:[%s1 + $0x620] sm:$0xf]
        %v5619 = vld [vmem:[%s1 + $0x628] sm:$0xf]
        %v5620 = vld [vmem:[%s1 + $0x630] sm:$0xf]
        %v5621 = vld [vmem:[%s1 + $0x638] sm:$0xf]
        %v5622 = vld [vmem:[%s1 + $0x640] sm:$0xf]
        %v5623 = vld [vmem:[%s1 + $0x648] sm:$0xf]
        %v5624 = vld [vmem:[%s1 + $0x650] sm:$0xf]
        %v5625 = vld [vmem:[%s1 + $0x658] sm:$0xf]
        %v5626 = vld [vmem:[%s1 + $0x660] sm:$0xf]
        %v5627 = vld [vmem:[%s1 + $0x668] sm:$0xf]
        %v5628 = vld [vmem:[%s1 + $0x670] sm:$0xf]
        %v5629 = vld [vmem:[%s1 + $0x678] sm:$0xf]
        %v5630 = vld [vmem:[%s1 + $0x680] sm:$0xf]
        %v5631 = vld [vmem:[%s1 + $0x688] sm:$0xf]
        %v5632 = vld [vmem:[%s1 + $0x690] sm:$0xf]
        %v5633 = vld [vmem:[%s1 + $0x698] sm:$0xf]
        %v5634 = vld [vmem:[%s1 + $0x6a0] sm:$0xf]
        %v5635 = vld [vmem:[%s1 + $0x6a8] sm:$0xf]
        %v5636 = vld [vmem:[%s1 + $0x6b0] sm:$0xf]
        %v5637 = vld [vmem:[%s1 + $0x6b8] sm:$0xf]
        %v5638 = vld [vmem:[%s1 + $0x6c0] sm:$0xf]
        %v5639 = vld [vmem:[%s1 + $0x6c8] sm:$0xf]
        %v5640 = vld [vmem:[%s1 + $0x6d0] sm:$0xf]
        %v5641 = vld [vmem:[%s1 + $0x6d8] sm:$0xf]
        %v5642 = vld [vmem:[%s1 + $0x6e0] sm:$0xf]
        %v5643 = vld [vmem:[%s1 + $0x6e8] sm:$0xf]
        %v5644 = vld [vmem:[%s1 + $0x6f0] sm:$0xf]
        %v5645 = vld [vmem:[%s1 + $0x6f8] sm:$0xf]
        %v5646 = vld [vmem:[%s1 + $0x700] sm:$0xf]
        %v5647 = vld [vmem:[%s1 + $0x708] sm:$0xf]
        %v5648 = vld [vmem:[%s1 + $0x710] sm:$0xf]
        %v5649 = vld [vmem:[%s1 + $0x718] sm:$0xf]
        %v5650 = vld [vmem:[%s1 + $0x720] sm:$0xf]
        %v5651 = vld [vmem:[%s1 + $0x728] sm:$0xf]
        %v5652 = vld [vmem:[%s1 + $0x730] sm:$0xf]
        %v5653 = vld [vmem:[%s1 + $0x738] sm:$0xf]
        %v5654 = vld [vmem:[%s1 + $0x740] sm:$0xf]
        %v5655 = vld [vmem:[%s1 + $0x748] sm:$0xf]
        %v5656 = vld [vmem:[%s1 + $0x750] sm:$0xf]
        %v5657 = vld [vmem:[%s1 + $0x758] sm:$0xf]
        %v5658 = vld [vmem:[%s1 + $0x760] sm:$0xf]
        %v5659 = vld [vmem:[%s1 + $0x768] sm:$0xf]
        %v5660 = vld [vmem:[%s1 + $0x770] sm:$0xf]
        %v5661 = vld [vmem:[%s1 + $0x778] sm:$0xf]
        %v5662 = vld [vmem:[%s1 + $0x780] sm:$0xf]
        %v5663 = vld [vmem:[%s1 + $0x788] sm:$0xf]
        %v5664 = vld [vmem:[%s1 + $0x790] sm:$0xf]
        %v5665 = vld [vmem:[%s1 + $0x798] sm:$0xf]
        %v5666 = vld [vmem:[%s1 + $0x7a0] sm:$0xf]
        %v5667 = vld [vmem:[%s1 + $0x7a8] sm:$0xf]
        %v5668 = vld [vmem:[%s1 + $0x7b0] sm:$0xf]
        %v5669 = vld [vmem:[%s1 + $0x7b8] sm:$0xf]
        %v5670 = vld [vmem:[%s1 + $0x7c0] sm:$0xf]
        %v5671 = vld [vmem:[%s1 + $0x7c8] sm:$0xf]
        %v5672 = vld [vmem:[%s1 + $0x7d0] sm:$0xf]
        %v5673 = vld [vmem:[%s1 + $0x7d8] sm:$0xf]
        %v5799 = vunpack.c.l.b16 %v5549
        %v5800 = vunpack.c.l.b16 %v5550
        %v5801 = vunpack.c.l.b16 %v5551
        %v5802 = vunpack.c.l.b16 %v5552
        %v5803 = vunpack.c.l.b16 %v5553
        %v5804 = vunpack.c.l.b16 %v5554
        %v5805 = vunpack.c.l.b16 %v5555
        %v5806 = vunpack.c.l.b16 %v5556
        %v5807 = vunpack.c.l.b16 %v5557
        %v5808 = vunpack.c.l.b16 %v5558
        %v5809 = vunpack.c.l.b16 %v5559
        %v5810 = vunpack.c.l.b16 %v5560
        %v5811 = vunpack.c.l.b16 %v5561
        %v5812 = vunpack.c.l.b16 %v5562
        %v5813 = vunpack.c.l.b16 %v5563
        %v5814 = vunpack.c.l.b16 %v5564
        %v5815 = vunpack.c.l.b16 %v5565
        %v5816 = vunpack.c.l.b16 %v5566
        %v5817 = vunpack.c.l.b16 %v5567
        %v5818 = vunpack.c.l.b16 %v5568
        %v5819 = vunpack.c.l.b16 %v5569
        %v5820 = vunpack.c.l.b16 %v5570
        %v5821 = vunpack.c.l.b16 %v5571
        %v5822 = vunpack.c.l.b16 %v5572
        %v5823 = vunpack.c.l.b16 %v5573
        %v5824 = vunpack.c.l.b16 %v5574
        %v5825 = vunpack.c.l.b16 %v5575
        %v5826 = vunpack.c.l.b16 %v5576
        %v5827 = vunpack.c.l.b16 %v5577
        %v5828 = vunpack.c.l.b16 %v5578
        %v5829 = vunpack.c.l.b16 %v5579
        %v5830 = vunpack.c.l.b16 %v5580
        %v5831 = vunpack.c.l.b16 %v5581
        %v5832 = vunpack.c.l.b16 %v5582
        %v5833 = vunpack.c.l.b16 %v5583
        %v5834 = vunpack.c.l.b16 %v5584
        %v5835 = vunpack.c.l.b16 %v5585
        %v5836 = vunpack.c.l.b16 %v5586
        %v5837 = vunpack.c.l.b16 %v5587
        %v5838 = vunpack.c.l.b16 %v5588
        %v5839 = vunpack.c.l.b16 %v5589
        %v5840 = vunpack.c.l.b16 %v5590
        %v5841 = vunpack.c.l.b16 %v5591
        %v5842 = vunpack.c.l.b16 %v5592
        %v5843 = vunpack.c.l.b16 %v5593
        %v5844 = vunpack.c.l.b16 %v5594
        %v5845 = vunpack.c.l.b16 %v5595
        %v5846 = vunpack.c.l.b16 %v5596
        %v5847 = vunpack.c.l.b16 %v5597
        %v5848 = vunpack.c.l.b16 %v5598
        %v5849 = vunpack.c.l.b16 %v5599
        %v5850 = vunpack.c.l.b16 %v5600
        %v5851 = vunpack.c.l.b16 %v5601
        %v5852 = vunpack.c.l.b16 %v5602
        %v5853 = vunpack.c.l.b16 %v5603
        %v5854 = vunpack.c.l.b16 %v5604
        %v5855 = vunpack.c.l.b16 %v5605
        %v5856 = vunpack.c.l.b16 %v5606
        %v5857 = vunpack.c.l.b16 %v5607
        %v5858 = vunpack.c.l.b16 %v5608
        %v5859 = vunpack.c.l.b16 %v5609
        %v5860 = vunpack.c.l.b16 %v5610
        %v5861 = vunpack.c.l.b16 %v5611
        %v5862 = vunpack.c.l.b16 %v5612
        %v5863 = vunpack.c.l.b16 %v5613
        %v5864 = vunpack.c.l.b16 %v5614
        %v5865 = vunpack.c.l.b16 %v5615
        %v5866 = vunpack.c.l.b16 %v5616
        %v5867 = vunpack.c.l.b16 %v5617
        %v5868 = vunpack.c.l.b16 %v5618
        %v5869 = vunpack.c.l.b16 %v5619
        %v5870 = vunpack.c.l.b16 %v5620
        %v5871 = vunpack.c.l.b16 %v5621
        %v5872 = vunpack.c.l.b16 %v5622
        %v5873 = vunpack.c.l.b16 %v5623
        %v5874 = vunpack.c.l.b16 %v5624
        %v5875 = vunpack.c.l.b16 %v5625
        %v5876 = vunpack.c.l.b16 %v5626
        %v5877 = vunpack.c.l.b16 %v5627
        %v5878 = vunpack.c.l.b16 %v5628
        %v5879 = vunpack.c.l.b16 %v5629
        %v5880 = vunpack.c.l.b16 %v5630
        %v5881 = vunpack.c.l.b16 %v5631
        %v5882 = vunpack.c.l.b16 %v5632
        %v5883 = vunpack.c.l.b16 %v5633
        %v5884 = vunpack.c.l.b16 %v5634
        %v5885 = vunpack.c.l.b16 %v5635
        %v5886 = vunpack.c.l.b16 %v5636
        %v5887 = vunpack.c.l.b16 %v5637
        %v5888 = vunpack.c.l.b16 %v5638
        %v5889 = vunpack.c.l.b16 %v5639
        %v5890 = vunpack.c.l.b16 %v5640
        %v5891 = vunpack.c.l.b16 %v5641
        %v5892 = vunpack.c.l.b16 %v5642
        %v5893 = vunpack.c.l.b16 %v5643
        %v5894 = vunpack.c.l.b16 %v5644
        %v5895 = vunpack.c.l.b16 %v5645
        %v5896 = vunpack.c.l.b16 %v5646
        %v5897 = vunpack.c.l.b16 %v5647
        %v5898 = vunpack.c.l.b16 %v5648
        %v5899 = vunpack.c.l.b16 %v5649
        %v5900 = vunpack.c.l.b16 %v5650
        %v5901 = vunpack.c.l.b16 %v5651
        %v5902 = vunpack.c.l.b16 %v5652
        %v5903 = vunpack.c.l.b16 %v5653
        %v5904 = vunpack.c.l.b16 %v5654
        %v5905 = vunpack.c.l.b16 %v5655
        %v5906 = vunpack.c.l.b16 %v5656
        %v5907 = vunpack.c.l.b16 %v5657
        %v5908 = vunpack.c.l.b16 %v5658
        %v5909 = vunpack.c.l.b16 %v5659
        %v5910 = vunpack.c.l.b16 %v5660
        %v5911 = vunpack.c.l.b16 %v5661
        %v5912 = vunpack.c.l.b16 %v5662
        %v5913 = vunpack.c.l.b16 %v5663
        %v5914 = vunpack.c.l.b16 %v5664
        %v5915 = vunpack.c.l.b16 %v5665
        %v5916 = vunpack.c.l.b16 %v5666
        %v5917 = vunpack.c.l.b16 %v5667
        %v5918 = vunpack.c.l.b16 %v5668
        %v5919 = vunpack.c.l.b16 %v5669
        %v5920 = vunpack.c.l.b16 %v5670
        %v5921 = vunpack.c.l.b16 %v5671
        %v5922 = vunpack.c.l.b16 %v5672
        %v5923 = vunpack.c.l.b16 %v5673
        %v5924 = vpack.c.b16 %v5800, %v5799
        %v5925 = vpack.c.b16 %v5802, %v5801
        %v5926 = vpack.c.b16 %v5804, %v5803
        %v5927 = vpack.c.b16 %v5806, %v5805
        %v5928 = vpack.c.b16 %v5808, %v5807
        %v5929 = vpack.c.b16 %v5810, %v5809
        %v5930 = vpack.c.b16 %v5812, %v5811
        %v5931 = vpack.c.b16 %v5814, %v5813
        %v5932 = vpack.c.b16 %v5816, %v5815
        %v5933 = vpack.c.b16 %v5818, %v5817
        %v5934 = vpack.c.b16 %v5820, %v5819
        %v5935 = vpack.c.b16 %v5822, %v5821
        %v5936 = vpack.c.b16 %v5824, %v5823
        %v5937 = vpack.c.b16 %v5826, %v5825
        %v5938 = vpack.c.b16 %v5828, %v5827
        %v5939 = vpack.c.b16 %v5830, %v5829
        %v5940 = vpack.c.b16 %v5832, %v5831
        %v5941 = vpack.c.b16 %v5834, %v5833
        %v5942 = vpack.c.b16 %v5836, %v5835
        %v5943 = vpack.c.b16 %v5838, %v5837
        %v5944 = vpack.c.b16 %v5840, %v5839
        %v5945 = vpack.c.b16 %v5842, %v5841
        %v5946 = vpack.c.b16 %v5844, %v5843
        %v5947 = vpack.c.b16 %v5846, %v5845
        %v5948 = vpack.c.b16 %v5848, %v5847
        %v5949 = vpack.c.b16 %v5850, %v5849
        %v5950 = vpack.c.b16 %v5852, %v5851
        %v5951 = vpack.c.b16 %v5854, %v5853
        %v5952 = vpack.c.b16 %v5856, %v5855
        %v5953 = vpack.c.b16 %v5858, %v5857
        %v5954 = vpack.c.b16 %v5860, %v5859
        %v5955 = vpack.c.b16 %v5862, %v5861
        %v5956 = vpack.c.b16 %v5864, %v5863
        %v5957 = vpack.c.b16 %v5866, %v5865
        %v5958 = vpack.c.b16 %v5868, %v5867
        %v5959 = vpack.c.b16 %v5870, %v5869
        %v5960 = vpack.c.b16 %v5872, %v5871
        %v5961 = vpack.c.b16 %v5874, %v5873
        %v5962 = vpack.c.b16 %v5876, %v5875
        %v5963 = vpack.c.b16 %v5878, %v5877
        %v5964 = vpack.c.b16 %v5880, %v5879
        %v5965 = vpack.c.b16 %v5882, %v5881
        %v5966 = vpack.c.b16 %v5884, %v5883
        %v5967 = vpack.c.b16 %v5886, %v5885
        %v5968 = vpack.c.b16 %v5888, %v5887
        %v5969 = vpack.c.b16 %v5890, %v5889
        %v5970 = vpack.c.b16 %v5892, %v5891
        %v5971 = vpack.c.b16 %v5894, %v5893
        %v5972 = vpack.c.b16 %v5896, %v5895
        %v5973 = vpack.c.b16 %v5898, %v5897
        %v5974 = vpack.c.b16 %v5900, %v5899
        %v5975 = vpack.c.b16 %v5902, %v5901
        %v5976 = vpack.c.b16 %v5904, %v5903
        %v5977 = vpack.c.b16 %v5906, %v5905
        %v5978 = vpack.c.b16 %v5908, %v5907
        %v5979 = vpack.c.b16 %v5910, %v5909
        %v5980 = vpack.c.b16 %v5912, %v5911
        %v5981 = vpack.c.b16 %v5914, %v5913
        %v5982 = vpack.c.b16 %v5916, %v5915
        %v5983 = vpack.c.b16 %v5918, %v5917
        %v5984 = vpack.c.b16 %v5920, %v5919
        %v5985 = vpack.c.b16 %v5922, %v5921
        %v5986 = vpack.c.b16 %v5923, %v5923
        %vm5987 = vcmask 588800
        %v5989 = vsel %vm5987, %v5924, 0
        %v5992 = vsel %vm5987, %v5925, 0
        %v5995 = vsel %vm5987, %v5926, 0
        %v5998 = vsel %vm5987, %v5927, 0
        %v6001 = vsel %vm5987, %v5928, 0
        %v6004 = vsel %vm5987, %v5929, 0
        %v6007 = vsel %vm5987, %v5930, 0
        %v6010 = vsel %vm5987, %v5931, 0
        %v6013 = vsel %vm5987, %v5932, 0
        %v6016 = vsel %vm5987, %v5933, 0
        %v6019 = vsel %vm5987, %v5934, 0
        %v6022 = vsel %vm5987, %v5935, 0
        %v6025 = vsel %vm5987, %v5936, 0
        %v6028 = vsel %vm5987, %v5937, 0
        %v6031 = vsel %vm5987, %v5938, 0
        %v6034 = vsel %vm5987, %v5939, 0
        %v6037 = vsel %vm5987, %v5940, 0
        %v6040 = vsel %vm5987, %v5941, 0
        %v6043 = vsel %vm5987, %v5942, 0
        %v6046 = vsel %vm5987, %v5943, 0
        %v6049 = vsel %vm5987, %v5944, 0
        %v6052 = vsel %vm5987, %v5945, 0
        %v6055 = vsel %vm5987, %v5946, 0
        %v6058 = vsel %vm5987, %v5947, 0
        %v6061 = vsel %vm5987, %v5948, 0
        %v6064 = vsel %vm5987, %v5949, 0
        %v6067 = vsel %vm5987, %v5950, 0
        %v6070 = vsel %vm5987, %v5951, 0
        %v6073 = vsel %vm5987, %v5952, 0
        %v6076 = vsel %vm5987, %v5953, 0
        %v6079 = vsel %vm5987, %v5954, 0
        %v6082 = vsel %vm5987, %v5955, 0
        %v6085 = vsel %vm5987, %v5956, 0
        %v6088 = vsel %vm5987, %v5957, 0
        %v6091 = vsel %vm5987, %v5958, 0
        %v6094 = vsel %vm5987, %v5959, 0
        %v6097 = vsel %vm5987, %v5960, 0
        %v6100 = vsel %vm5987, %v5961, 0
        %v6103 = vsel %vm5987, %v5962, 0
        %v6106 = vsel %vm5987, %v5963, 0
        %v6109 = vsel %vm5987, %v5964, 0
        %v6112 = vsel %vm5987, %v5965, 0
        %v6115 = vsel %vm5987, %v5966, 0
        %v6118 = vsel %vm5987, %v5967, 0
        %v6121 = vsel %vm5987, %v5968, 0
        %v6124 = vsel %vm5987, %v5969, 0
        %v6127 = vsel %vm5987, %v5970, 0
        %v6130 = vsel %vm5987, %v5971, 0
        %v6133 = vsel %vm5987, %v5972, 0
        %v6136 = vsel %vm5987, %v5973, 0
        %v6139 = vsel %vm5987, %v5974, 0
        %v6142 = vsel %vm5987, %v5975, 0
        %v6145 = vsel %vm5987, %v5976, 0
        %v6148 = vsel %vm5987, %v5977, 0
        %v6151 = vsel %vm5987, %v5978, 0
        %v6154 = vsel %vm5987, %v5979, 0
        %v6157 = vsel %vm5987, %v5980, 0
        %v6160 = vsel %vm5987, %v5981, 0
        %v6163 = vsel %vm5987, %v5982, 0
        %v6166 = vsel %vm5987, %v5983, 0
        %v6169 = vsel %vm5987, %v5984, 0
        %v6172 = vsel %vm5987, %v5985, 0
        %v6175 = vsel %vm5987, %v5986, 0
        %vm6177 = vcmask 1043456
        %v6179 = vsel %vm6177, %v5548, 0
        %6181 = vmatprep.subr.bf16.mxu0 0
        %6182 = vmatpush1.bf16.msra.mxu0 0
        %6183 = vmatprep.subr.bf16.mxu0 0
        %6184 = vmatpush1.bf16.msra.mxu0 0
        %6185 = vmatprep.subr.bf16.mxu0 0
        %6186 = vmatpush1.bf16.msra.mxu0 0
        %6187 = vmatprep.subr.bf16.mxu0 0
        %6188 = vmatpush1.bf16.msra.mxu0 %v6179
        %6189 = vmatprep.subr.bf16.mxu0 0
        %6190 = vmatpush1.bf16.msra.mxu0 %v5547
        %6191 = vmatprep.subr.bf16.mxu0 0
        %6192 = vmatpush1.bf16.msra.mxu0 %v5546
        %6193 = vmatprep.subr.bf16.mxu0 0
        %6194 = vmatpush1.bf16.msra.mxu0 %v5545
        %6195 = vmatprep.subr.bf16.mxu0 0
        %6196 = vmatpush1.bf16.msra.mxu0 %v5544
        %6197 = vmatprep.subr.bf16.mxu0 0
        %6198 = vmatpush2.bf16.msra.mxu0 0
        %6199 = vmatprep.subr.bf16.mxu0 0
        %6200 = vmatpush2.bf16.msra.mxu0 0
        %6201 = vmatprep.subr.bf16.mxu0 0
        %6202 = vmatpush2.bf16.msra.mxu0 0
        %6203 = vmatprep.subr.bf16.mxu0 0
        %6204 = vmatpush2.bf16.msra.mxu0 0
        %6205 = vmatprep.subr.bf16.mxu0 0
        %6206 = vmatpush2.bf16.msra.mxu0 0
        %6207 = vmatprep.subr.bf16.mxu0 0
        %6208 = vmatpush2.bf16.msra.mxu0 0
        %6209 = vmatprep.subr.bf16.mxu0 0
        %6210 = vmatpush2.bf16.msra.mxu0 0
        %6211 = vmatprep.subr.bf16.mxu0 0
        %6212 = vmatpush2.bf16.msra.mxu0 0
        %6213 = vmatprep.mubr.bf16.mxu0 0
        %6214 = vmatmul.mubr.bf16.gmra.mxu0 %v5989
        %v6215 = vpop.f32.mrf.mxu0
        %v6216 = vadd.f32 0.0, %v6215
        %v6217 = vpop.f32.mrf.mxu0
        %v6218 = vpop.f32.mrf.mxu0
        %v6219 = vadd.f32 0.0, %v6218
        %v6220 = vpop.f32.mrf.mxu0
        %6221 = vmatprep.mubr.bf16.mxu0 0
        %6222 = vmatmul.mubr.bf16.gmra.mxu0 %v5992
        %v6223 = vpop.f32.mrf.mxu0
        %v6224 = vadd.f32 0.0, %v6223
        %v6225 = vpop.f32.mrf.mxu0
        %v6226 = vpop.f32.mrf.mxu0
        %v6227 = vadd.f32 0.0, %v6226
        %v6228 = vpop.f32.mrf.mxu0
        %6229 = vmatprep.mubr.bf16.mxu0 0
        %6230 = vmatmul.mubr.bf16.gmra.mxu0 %v5995
        %v6231 = vpop.f32.mrf.mxu0
        %v6232 = vadd.f32 0.0, %v6231
        %v6233 = vpop.f32.mrf.mxu0
        %v6234 = vpop.f32.mrf.mxu0
        %v6235 = vadd.f32 0.0, %v6234
        %v6236 = vpop.f32.mrf.mxu0
        %6237 = vmatprep.mubr.bf16.mxu0 0
        %6238 = vmatmul.mubr.bf16.gmra.mxu0 %v5998
        %v6239 = vpop.f32.mrf.mxu0
        %v6240 = vadd.f32 0.0, %v6239
        %v6241 = vpop.f32.mrf.mxu0
        %v6242 = vpop.f32.mrf.mxu0
        %v6243 = vadd.f32 0.0, %v6242
        %v6244 = vpop.f32.mrf.mxu0
        %6245 = vmatprep.mubr.bf16.mxu0 0
        %6246 = vmatmul.mubr.bf16.gmra.mxu0 %v6001
        %v6247 = vpop.f32.mrf.mxu0
        %v6248 = vadd.f32 0.0, %v6247
        %v6249 = vpop.f32.mrf.mxu0
        %v6250 = vpop.f32.mrf.mxu0
        %v6251 = vadd.f32 0.0, %v6250
        %v6252 = vpop.f32.mrf.mxu0
        %6253 = vmatprep.mubr.bf16.mxu0 0
        %6254 = vmatmul.mubr.bf16.gmra.mxu0 %v6004
        %v6255 = vpop.f32.mrf.mxu0
        %v6256 = vadd.f32 0.0, %v6255
        %v6257 = vpop.f32.mrf.mxu0
        %v6258 = vpop.f32.mrf.mxu0
        %v6259 = vadd.f32 0.0, %v6258
        %v6260 = vpop.f32.mrf.mxu0
        %6261 = vmatprep.mubr.bf16.mxu0 0
        %6262 = vmatmul.mubr.bf16.gmra.mxu0 %v6007
        %v6263 = vpop.f32.mrf.mxu0
        %v6264 = vadd.f32 0.0, %v6263
        %v6265 = vpop.f32.mrf.mxu0
        %v6266 = vpop.f32.mrf.mxu0
        %v6267 = vadd.f32 0.0, %v6266
        %v6268 = vpop.f32.mrf.mxu0
        %6269 = vmatprep.mubr.bf16.mxu0 0
        %6270 = vmatmul.mubr.bf16.gmra.mxu0 %v6010
        %v6271 = vpop.f32.mrf.mxu0
        %v6272 = vadd.f32 0.0, %v6271
        %v6273 = vpop.f32.mrf.mxu0
        %v6274 = vpop.f32.mrf.mxu0
        %v6275 = vadd.f32 0.0, %v6274
        %v6276 = vpop.f32.mrf.mxu0
        %6277 = vmatprep.mubr.bf16.mxu0 0
        %6278 = vmatmul.mubr.bf16.gmra.mxu0 %v6013
        %v6279 = vpop.f32.mrf.mxu0
        %v6280 = vadd.f32 0.0, %v6279
        %v6281 = vpop.f32.mrf.mxu0
        %v6282 = vpop.f32.mrf.mxu0
        %v6283 = vadd.f32 0.0, %v6282
        %v6284 = vpop.f32.mrf.mxu0
        %6285 = vmatprep.mubr.bf16.mxu0 0
        %6286 = vmatmul.mubr.bf16.gmra.mxu0 %v6016
        %v6287 = vpop.f32.mrf.mxu0
        %v6288 = vadd.f32 0.0, %v6287
        %v6289 = vpop.f32.mrf.mxu0
        %v6290 = vpop.f32.mrf.mxu0
        %v6291 = vadd.f32 0.0, %v6290
        %v6292 = vpop.f32.mrf.mxu0
        %6293 = vmatprep.mubr.bf16.mxu0 0
        %6294 = vmatmul.mubr.bf16.gmra.mxu0 %v6019
        %v6295 = vpop.f32.mrf.mxu0
        %v6296 = vadd.f32 0.0, %v6295
        %v6297 = vpop.f32.mrf.mxu0
        %v6298 = vpop.f32.mrf.mxu0
        %v6299 = vadd.f32 0.0, %v6298
        %v6300 = vpop.f32.mrf.mxu0
        %6301 = vmatprep.mubr.bf16.mxu0 0
        %6302 = vmatmul.mubr.bf16.gmra.mxu0 %v6022
        %v6303 = vpop.f32.mrf.mxu0
        %v6304 = vadd.f32 0.0, %v6303
        %v6305 = vpop.f32.mrf.mxu0
        %v6306 = vpop.f32.mrf.mxu0
        %v6307 = vadd.f32 0.0, %v6306
        %v6308 = vpop.f32.mrf.mxu0
        %6309 = vmatprep.mubr.bf16.mxu0 0
        %6310 = vmatmul.mubr.bf16.gmra.mxu0 %v6025
        %v6311 = vpop.f32.mrf.mxu0
        %v6312 = vadd.f32 0.0, %v6311
        %v6313 = vpop.f32.mrf.mxu0
        %v6314 = vpop.f32.mrf.mxu0
        %v6315 = vadd.f32 0.0, %v6314
        %v6316 = vpop.f32.mrf.mxu0
        %6317 = vmatprep.mubr.bf16.mxu0 0
        %6318 = vmatmul.mubr.bf16.gmra.mxu0 %v6028
        %v6319 = vpop.f32.mrf.mxu0
        %v6320 = vadd.f32 0.0, %v6319
        %v6321 = vpop.f32.mrf.mxu0
        %v6322 = vpop.f32.mrf.mxu0
        %v6323 = vadd.f32 0.0, %v6322
        %v6324 = vpop.f32.mrf.mxu0
        %6325 = vmatprep.mubr.bf16.mxu0 0
        %6326 = vmatmul.mubr.bf16.gmra.mxu0 %v6031
        %v6327 = vpop.f32.mrf.mxu0
        %v6328 = vadd.f32 0.0, %v6327
        %v6329 = vpop.f32.mrf.mxu0
        %v6330 = vpop.f32.mrf.mxu0
        %v6331 = vadd.f32 0.0, %v6330
        %v6332 = vpop.f32.mrf.mxu0
        %6333 = vmatprep.mubr.bf16.mxu0 0
        %6334 = vmatmul.mubr.bf16.gmra.mxu0 %v6034
        %v6335 = vpop.f32.mrf.mxu0
        %v6336 = vadd.f32 0.0, %v6335
        %v6337 = vpop.f32.mrf.mxu0
        %v6338 = vpop.f32.mrf.mxu0
        %v6339 = vadd.f32 0.0, %v6338
        %v6340 = vpop.f32.mrf.mxu0
        %6341 = vmatprep.mubr.bf16.mxu0 0
        %6342 = vmatmul.mubr.bf16.gmra.mxu0 %v6037
        %v6343 = vpop.f32.mrf.mxu0
        %v6344 = vadd.f32 0.0, %v6343
        %v6345 = vpop.f32.mrf.mxu0
        %v6346 = vpop.f32.mrf.mxu0
        %v6347 = vadd.f32 0.0, %v6346
        %v6348 = vpop.f32.mrf.mxu0
        %6349 = vmatprep.mubr.bf16.mxu0 0
        %6350 = vmatmul.mubr.bf16.gmra.mxu0 %v6040
        %v6351 = vpop.f32.mrf.mxu0
        %v6352 = vadd.f32 0.0, %v6351
        %v6353 = vpop.f32.mrf.mxu0
        %v6354 = vpop.f32.mrf.mxu0
        %v6355 = vadd.f32 0.0, %v6354
        %v6356 = vpop.f32.mrf.mxu0
        %6357 = vmatprep.mubr.bf16.mxu0 0
        %6358 = vmatmul.mubr.bf16.gmra.mxu0 %v6043
        %v6359 = vpop.f32.mrf.mxu0
        %v6360 = vadd.f32 0.0, %v6359
        %v6361 = vpop.f32.mrf.mxu0
        %v6362 = vpop.f32.mrf.mxu0
        %v6363 = vadd.f32 0.0, %v6362
        %v6364 = vpop.f32.mrf.mxu0
        %6365 = vmatprep.mubr.bf16.mxu0 0
        %6366 = vmatmul.mubr.bf16.gmra.mxu0 %v6046
        %v6367 = vpop.f32.mrf.mxu0
        %v6368 = vadd.f32 0.0, %v6367
        %v6369 = vpop.f32.mrf.mxu0
        %v6370 = vpop.f32.mrf.mxu0
        %v6371 = vadd.f32 0.0, %v6370
        %v6372 = vpop.f32.mrf.mxu0
        %6373 = vmatprep.mubr.bf16.mxu0 0
        %6374 = vmatmul.mubr.bf16.gmra.mxu0 %v6049
        %v6375 = vpop.f32.mrf.mxu0
        %v6376 = vadd.f32 0.0, %v6375
        %v6377 = vpop.f32.mrf.mxu0
        %v6378 = vpop.f32.mrf.mxu0
        %v6379 = vadd.f32 0.0, %v6378
        %v6380 = vpop.f32.mrf.mxu0
        %6381 = vmatprep.mubr.bf16.mxu0 0
        %6382 = vmatmul.mubr.bf16.gmra.mxu0 %v6052
        %v6383 = vpop.f32.mrf.mxu0
        %v6384 = vadd.f32 0.0, %v6383
        %v6385 = vpop.f32.mrf.mxu0
        %v6386 = vpop.f32.mrf.mxu0
        %v6387 = vadd.f32 0.0, %v6386
        %v6388 = vpop.f32.mrf.mxu0
        %6389 = vmatprep.mubr.bf16.mxu0 0
        %6390 = vmatmul.mubr.bf16.gmra.mxu0 %v6055
        %v6391 = vpop.f32.mrf.mxu0
        %v6392 = vadd.f32 0.0, %v6391
        %v6393 = vpop.f32.mrf.mxu0
        %v6394 = vpop.f32.mrf.mxu0
        %v6395 = vadd.f32 0.0, %v6394
        %v6396 = vpop.f32.mrf.mxu0
        %6397 = vmatprep.mubr.bf16.mxu0 0
        %6398 = vmatmul.mubr.bf16.gmra.mxu0 %v6058
        %v6399 = vpop.f32.mrf.mxu0
        %v6400 = vadd.f32 0.0, %v6399
        %v6401 = vpop.f32.mrf.mxu0
        %v6402 = vpop.f32.mrf.mxu0
        %v6403 = vadd.f32 0.0, %v6402
        %v6404 = vpop.f32.mrf.mxu0
        %6405 = vmatprep.mubr.bf16.mxu0 0
        %6406 = vmatmul.mubr.bf16.gmra.mxu0 %v6061
        %v6407 = vpop.f32.mrf.mxu0
        %v6408 = vadd.f32 0.0, %v6407
        %v6409 = vpop.f32.mrf.mxu0
        %v6410 = vpop.f32.mrf.mxu0
        %v6411 = vadd.f32 0.0, %v6410
        %v6412 = vpop.f32.mrf.mxu0
        %6413 = vmatprep.mubr.bf16.mxu0 0
        %6414 = vmatmul.mubr.bf16.gmra.mxu0 %v6064
        %v6415 = vpop.f32.mrf.mxu0
        %v6416 = vadd.f32 0.0, %v6415
        %v6417 = vpop.f32.mrf.mxu0
        %v6418 = vpop.f32.mrf.mxu0
        %v6419 = vadd.f32 0.0, %v6418
        %v6420 = vpop.f32.mrf.mxu0
        %6421 = vmatprep.mubr.bf16.mxu0 0
        %6422 = vmatmul.mubr.bf16.gmra.mxu0 %v6067
        %v6423 = vpop.f32.mrf.mxu0
        %v6424 = vadd.f32 0.0, %v6423
        %v6425 = vpop.f32.mrf.mxu0
        %v6426 = vpop.f32.mrf.mxu0
        %v6427 = vadd.f32 0.0, %v6426
        %v6428 = vpop.f32.mrf.mxu0
        %6429 = vmatprep.mubr.bf16.mxu0 0
        %6430 = vmatmul.mubr.bf16.gmra.mxu0 %v6070
        %v6431 = vpop.f32.mrf.mxu0
        %v6432 = vadd.f32 0.0, %v6431
        %v6433 = vpop.f32.mrf.mxu0
        %v6434 = vpop.f32.mrf.mxu0
        %v6435 = vadd.f32 0.0, %v6434
        %v6436 = vpop.f32.mrf.mxu0
        %6437 = vmatprep.mubr.bf16.mxu0 0
        %6438 = vmatmul.mubr.bf16.gmra.mxu0 %v6073
        %v6439 = vpop.f32.mrf.mxu0
        %v6440 = vadd.f32 0.0, %v6439
        %v6441 = vpop.f32.mrf.mxu0
        %v6442 = vpop.f32.mrf.mxu0
        %v6443 = vadd.f32 0.0, %v6442
        %v6444 = vpop.f32.mrf.mxu0
        %6445 = vmatprep.mubr.bf16.mxu0 0
        %6446 = vmatmul.mubr.bf16.gmra.mxu0 %v6076
        %v6447 = vpop.f32.mrf.mxu0
        %v6448 = vadd.f32 0.0, %v6447
        %v6449 = vpop.f32.mrf.mxu0
        %v6450 = vpop.f32.mrf.mxu0
        %v6451 = vadd.f32 0.0, %v6450
        %v6452 = vpop.f32.mrf.mxu0
        %6453 = vmatprep.mubr.bf16.mxu0 0
        %6454 = vmatmul.mubr.bf16.gmra.mxu0 %v6079
        %v6455 = vpop.f32.mrf.mxu0
        %v6456 = vadd.f32 0.0, %v6455
        %v6457 = vpop.f32.mrf.mxu0
        %v6458 = vpop.f32.mrf.mxu0
        %v6459 = vadd.f32 0.0, %v6458
        %v6460 = vpop.f32.mrf.mxu0
        %6461 = vmatprep.mubr.bf16.mxu0 0
        %6462 = vmatmul.mubr.bf16.gmra.mxu0 %v6082
        %v6463 = vpop.f32.mrf.mxu0
        %v6464 = vadd.f32 0.0, %v6463
        %v6465 = vpop.f32.mrf.mxu0
        %v6466 = vpop.f32.mrf.mxu0
        %v6467 = vadd.f32 0.0, %v6466
        %v6468 = vpop.f32.mrf.mxu0
        %6469 = vmatprep.mubr.bf16.mxu0 0
        %6470 = vmatmul.mubr.bf16.gmra.mxu0 %v6085
        %v6471 = vpop.f32.mrf.mxu0
        %v6472 = vadd.f32 0.0, %v6471
        %v6473 = vpop.f32.mrf.mxu0
        %v6474 = vpop.f32.mrf.mxu0
        %v6475 = vadd.f32 0.0, %v6474
        %v6476 = vpop.f32.mrf.mxu0
        %6477 = vmatprep.mubr.bf16.mxu0 0
        %6478 = vmatmul.mubr.bf16.gmra.mxu0 %v6088
        %v6479 = vpop.f32.mrf.mxu0
        %v6480 = vadd.f32 0.0, %v6479
        %v6481 = vpop.f32.mrf.mxu0
        %v6482 = vpop.f32.mrf.mxu0
        %v6483 = vadd.f32 0.0, %v6482
        %v6484 = vpop.f32.mrf.mxu0
        %6485 = vmatprep.mubr.bf16.mxu0 0
        %6486 = vmatmul.mubr.bf16.gmra.mxu0 %v6091
        %v6487 = vpop.f32.mrf.mxu0
        %v6488 = vadd.f32 0.0, %v6487
        %v6489 = vpop.f32.mrf.mxu0
        %v6490 = vpop.f32.mrf.mxu0
        %v6491 = vadd.f32 0.0, %v6490
        %v6492 = vpop.f32.mrf.mxu0
        %6493 = vmatprep.mubr.bf16.mxu0 0
        %6494 = vmatmul.mubr.bf16.gmra.mxu0 %v6094
        %v6495 = vpop.f32.mrf.mxu0
        %v6496 = vadd.f32 0.0, %v6495
        %v6497 = vpop.f32.mrf.mxu0
        %v6498 = vpop.f32.mrf.mxu0
        %v6499 = vadd.f32 0.0, %v6498
        %v6500 = vpop.f32.mrf.mxu0
        %6501 = vmatprep.mubr.bf16.mxu0 0
        %6502 = vmatmul.mubr.bf16.gmra.mxu0 %v6097
        %v6503 = vpop.f32.mrf.mxu0
        %v6504 = vadd.f32 0.0, %v6503
        %v6505 = vpop.f32.mrf.mxu0
        %v6506 = vpop.f32.mrf.mxu0
        %v6507 = vadd.f32 0.0, %v6506
        %v6508 = vpop.f32.mrf.mxu0
        %6509 = vmatprep.mubr.bf16.mxu0 0
        %6510 = vmatmul.mubr.bf16.gmra.mxu0 %v6100
        %v6511 = vpop.f32.mrf.mxu0
        %v6512 = vadd.f32 0.0, %v6511
        %v6513 = vpop.f32.mrf.mxu0
        %v6514 = vpop.f32.mrf.mxu0
        %v6515 = vadd.f32 0.0, %v6514
        %v6516 = vpop.f32.mrf.mxu0
        %6517 = vmatprep.mubr.bf16.mxu0 0
        %6518 = vmatmul.mubr.bf16.gmra.mxu0 %v6103
        %v6519 = vpop.f32.mrf.mxu0
        %v6520 = vadd.f32 0.0, %v6519
        %v6521 = vpop.f32.mrf.mxu0
        %v6522 = vpop.f32.mrf.mxu0
        %v6523 = vadd.f32 0.0, %v6522
        %v6524 = vpop.f32.mrf.mxu0
        %6525 = vmatprep.mubr.bf16.mxu0 0
        %6526 = vmatmul.mubr.bf16.gmra.mxu0 %v6106
        %v6527 = vpop.f32.mrf.mxu0
        %v6528 = vadd.f32 0.0, %v6527
        %v6529 = vpop.f32.mrf.mxu0
        %v6530 = vpop.f32.mrf.mxu0
        %v6531 = vadd.f32 0.0, %v6530
        %v6532 = vpop.f32.mrf.mxu0
        %6533 = vmatprep.mubr.bf16.mxu0 0
        %6534 = vmatmul.mubr.bf16.gmra.mxu0 %v6109
        %v6535 = vpop.f32.mrf.mxu0
        %v6536 = vadd.f32 0.0, %v6535
        %v6537 = vpop.f32.mrf.mxu0
        %v6538 = vpop.f32.mrf.mxu0
        %v6539 = vadd.f32 0.0, %v6538
        %v6540 = vpop.f32.mrf.mxu0
        %6541 = vmatprep.mubr.bf16.mxu0 0
        %6542 = vmatmul.mubr.bf16.gmra.mxu0 %v6112
        %v6543 = vpop.f32.mrf.mxu0
        %v6544 = vadd.f32 0.0, %v6543
        %v6545 = vpop.f32.mrf.mxu0
        %v6546 = vpop.f32.mrf.mxu0
        %v6547 = vadd.f32 0.0, %v6546
        %v6548 = vpop.f32.mrf.mxu0
        %6549 = vmatprep.mubr.bf16.mxu0 0
        %6550 = vmatmul.mubr.bf16.gmra.mxu0 %v6115
        %v6551 = vpop.f32.mrf.mxu0
        %v6552 = vadd.f32 0.0, %v6551
        %v6553 = vpop.f32.mrf.mxu0
        %v6554 = vpop.f32.mrf.mxu0
        %v6555 = vadd.f32 0.0, %v6554
        %v6556 = vpop.f32.mrf.mxu0
        %6557 = vmatprep.mubr.bf16.mxu0 0
        %6558 = vmatmul.mubr.bf16.gmra.mxu0 %v6118
        %v6559 = vpop.f32.mrf.mxu0
        %v6560 = vadd.f32 0.0, %v6559
        %v6561 = vpop.f32.mrf.mxu0
        %v6562 = vpop.f32.mrf.mxu0
        %v6563 = vadd.f32 0.0, %v6562
        %v6564 = vpop.f32.mrf.mxu0
        %6565 = vmatprep.mubr.bf16.mxu0 0
        %6566 = vmatmul.mubr.bf16.gmra.mxu0 %v6121
        %v6567 = vpop.f32.mrf.mxu0
        %v6568 = vadd.f32 0.0, %v6567
        %v6569 = vpop.f32.mrf.mxu0
        %v6570 = vpop.f32.mrf.mxu0
        %v6571 = vadd.f32 0.0, %v6570
        %v6572 = vpop.f32.mrf.mxu0
        %6573 = vmatprep.mubr.bf16.mxu0 0
        %6574 = vmatmul.mubr.bf16.gmra.mxu0 %v6124
        %v6575 = vpop.f32.mrf.mxu0
        %v6576 = vadd.f32 0.0, %v6575
        %v6577 = vpop.f32.mrf.mxu0
        %v6578 = vpop.f32.mrf.mxu0
        %v6579 = vadd.f32 0.0, %v6578
        %v6580 = vpop.f32.mrf.mxu0
        %6581 = vmatprep.mubr.bf16.mxu0 0
        %6582 = vmatmul.mubr.bf16.gmra.mxu0 %v6127
        %v6583 = vpop.f32.mrf.mxu0
        %v6584 = vadd.f32 0.0, %v6583
        %v6585 = vpop.f32.mrf.mxu0
        %v6586 = vpop.f32.mrf.mxu0
        %v6587 = vadd.f32 0.0, %v6586
        %v6588 = vpop.f32.mrf.mxu0
        %6589 = vmatprep.mubr.bf16.mxu0 0
        %6590 = vmatmul.mubr.bf16.gmra.mxu0 %v6130
        %v6591 = vpop.f32.mrf.mxu0
        %v6592 = vadd.f32 0.0, %v6591
        %v6593 = vpop.f32.mrf.mxu0
        %v6594 = vpop.f32.mrf.mxu0
        %v6595 = vadd.f32 0.0, %v6594
        %v6596 = vpop.f32.mrf.mxu0
        %6597 = vmatprep.mubr.bf16.mxu0 0
        %6598 = vmatmul.mubr.bf16.gmra.mxu0 %v6133
        %v6599 = vpop.f32.mrf.mxu0
        %v6600 = vadd.f32 0.0, %v6599
        %v6601 = vpop.f32.mrf.mxu0
        %v6602 = vpop.f32.mrf.mxu0
        %v6603 = vadd.f32 0.0, %v6602
        %v6604 = vpop.f32.mrf.mxu0
        %6605 = vmatprep.mubr.bf16.mxu0 0
        %6606 = vmatmul.mubr.bf16.gmra.mxu0 %v6136
        %v6607 = vpop.f32.mrf.mxu0
        %v6608 = vadd.f32 0.0, %v6607
        %v6609 = vpop.f32.mrf.mxu0
        %v6610 = vpop.f32.mrf.mxu0
        %v6611 = vadd.f32 0.0, %v6610
        %v6612 = vpop.f32.mrf.mxu0
        %6613 = vmatprep.mubr.bf16.mxu0 0
        %6614 = vmatmul.mubr.bf16.gmra.mxu0 %v6139
        %v6615 = vpop.f32.mrf.mxu0
        %v6616 = vadd.f32 0.0, %v6615
        %v6617 = vpop.f32.mrf.mxu0
        %v6618 = vpop.f32.mrf.mxu0
        %v6619 = vadd.f32 0.0, %v6618
        %v6620 = vpop.f32.mrf.mxu0
        %6621 = vmatprep.mubr.bf16.mxu0 0
        %6622 = vmatmul.mubr.bf16.gmra.mxu0 %v6142
        %v6623 = vpop.f32.mrf.mxu0
        %v6624 = vadd.f32 0.0, %v6623
        %v6625 = vpop.f32.mrf.mxu0
        %v6626 = vpop.f32.mrf.mxu0
        %v6627 = vadd.f32 0.0, %v6626
        %v6628 = vpop.f32.mrf.mxu0
        %6629 = vmatprep.mubr.bf16.mxu0 0
        %6630 = vmatmul.mubr.bf16.gmra.mxu0 %v6145
        %v6631 = vpop.f32.mrf.mxu0
        %v6632 = vadd.f32 0.0, %v6631
        %v6633 = vpop.f32.mrf.mxu0
        %v6634 = vpop.f32.mrf.mxu0
        %v6635 = vadd.f32 0.0, %v6634
        %v6636 = vpop.f32.mrf.mxu0
        %6637 = vmatprep.mubr.bf16.mxu0 0
        %6638 = vmatmul.mubr.bf16.gmra.mxu0 %v6148
        %v6639 = vpop.f32.mrf.mxu0
        %v6640 = vadd.f32 0.0, %v6639
        %v6641 = vpop.f32.mrf.mxu0
        %v6642 = vpop.f32.mrf.mxu0
        %v6643 = vadd.f32 0.0, %v6642
        %v6644 = vpop.f32.mrf.mxu0
        %6645 = vmatprep.mubr.bf16.mxu0 0
        %6646 = vmatmul.mubr.bf16.gmra.mxu0 %v6151
        %v6647 = vpop.f32.mrf.mxu0
        %v6648 = vadd.f32 0.0, %v6647
        %v6649 = vpop.f32.mrf.mxu0
        %v6650 = vpop.f32.mrf.mxu0
        %v6651 = vadd.f32 0.0, %v6650
        %v6652 = vpop.f32.mrf.mxu0
        %6653 = vmatprep.mubr.bf16.mxu0 0
        %6654 = vmatmul.mubr.bf16.gmra.mxu0 %v6154
        %v6655 = vpop.f32.mrf.mxu0
        %v6656 = vadd.f32 0.0, %v6655
        %v6657 = vpop.f32.mrf.mxu0
        %v6658 = vpop.f32.mrf.mxu0
        %v6659 = vadd.f32 0.0, %v6658
        %v6660 = vpop.f32.mrf.mxu0
        %6661 = vmatprep.mubr.bf16.mxu0 0
        %6662 = vmatmul.mubr.bf16.gmra.mxu0 %v6157
        %v6663 = vpop.f32.mrf.mxu0
        %v6664 = vadd.f32 0.0, %v6663
        %v6665 = vpop.f32.mrf.mxu0
        %v6666 = vpop.f32.mrf.mxu0
        %v6667 = vadd.f32 0.0, %v6666
        %v6668 = vpop.f32.mrf.mxu0
        %6669 = vmatprep.mubr.bf16.mxu0 0
        %6670 = vmatmul.mubr.bf16.gmra.mxu0 %v6160
        %v6671 = vpop.f32.mrf.mxu0
        %v6672 = vadd.f32 0.0, %v6671
        %v6673 = vpop.f32.mrf.mxu0
        %v6674 = vpop.f32.mrf.mxu0
        %v6675 = vadd.f32 0.0, %v6674
        %v6676 = vpop.f32.mrf.mxu0
        %6677 = vmatprep.mubr.bf16.mxu0 0
        %6678 = vmatmul.mubr.bf16.gmra.mxu0 %v6163
        %v6679 = vpop.f32.mrf.mxu0
        %v6680 = vadd.f32 0.0, %v6679
        %v6681 = vpop.f32.mrf.mxu0
        %v6682 = vpop.f32.mrf.mxu0
        %v6683 = vadd.f32 0.0, %v6682
        %v6684 = vpop.f32.mrf.mxu0
        %6685 = vmatprep.mubr.bf16.mxu0 0
        %6686 = vmatmul.mubr.bf16.gmra.mxu0 %v6166
        %v6687 = vpop.f32.mrf.mxu0
        %v6688 = vadd.f32 0.0, %v6687
        %v6689 = vpop.f32.mrf.mxu0
        %v6690 = vpop.f32.mrf.mxu0
        %v6691 = vadd.f32 0.0, %v6690
        %v6692 = vpop.f32.mrf.mxu0
        %6693 = vmatprep.mubr.bf16.mxu0 0
        %6694 = vmatmul.mubr.bf16.gmra.mxu0 %v6169
        %v6695 = vpop.f32.mrf.mxu0
        %v6696 = vadd.f32 0.0, %v6695
        %v6697 = vpop.f32.mrf.mxu0
        %v6698 = vpop.f32.mrf.mxu0
        %v6699 = vadd.f32 0.0, %v6698
        %v6700 = vpop.f32.mrf.mxu0
        %6701 = vmatprep.mubr.bf16.mxu0 0
        %6702 = vmatmul.mubr.bf16.gmra.mxu0 %v6172
        %v6703 = vpop.f32.mrf.mxu0
        %v6704 = vadd.f32 0.0, %v6703
        %v6705 = vpop.f32.mrf.mxu0
        %v6706 = vpop.f32.mrf.mxu0
        %v6707 = vadd.f32 0.0, %v6706
        %v6708 = vpop.f32.mrf.mxu0
        %6709 = vmatprep.mubr.bf16.mxu0 0
        %6710 = vmatmul.mubr.bf16.gmra.mxu0 %v6175
        %v6711 = vpop.f32.mrf.mxu0
        %v6712 = vadd.f32 0.0, %v6711
        %v6713 = vpop.f32.mrf.mxu0
        %v6714 = vpop.f32.mrf.mxu0
        %v6715 = vpop.f32.mrf.mxu0
        %6716 = vdwg.mxu0
        %v6717 = vpack.c.bf16 %v6219, %v6216
        %v6718 = vpack.c.bf16 %v6227, %v6224
        %v6719 = vpack.c.bf16 %v6235, %v6232
        %v6720 = vpack.c.bf16 %v6243, %v6240
        %v6721 = vpack.c.bf16 %v6251, %v6248
        %v6722 = vpack.c.bf16 %v6259, %v6256
        %v6723 = vpack.c.bf16 %v6267, %v6264
        %v6724 = vpack.c.bf16 %v6275, %v6272
        %v6725 = vpack.c.bf16 %v6283, %v6280
        %v6726 = vpack.c.bf16 %v6291, %v6288
        %v6727 = vpack.c.bf16 %v6299, %v6296
        %v6728 = vpack.c.bf16 %v6307, %v6304
        %v6729 = vpack.c.bf16 %v6315, %v6312
        %v6730 = vpack.c.bf16 %v6323, %v6320
        %v6731 = vpack.c.bf16 %v6331, %v6328
        %v6732 = vpack.c.bf16 %v6339, %v6336
        %v6733 = vpack.c.bf16 %v6347, %v6344
        %v6734 = vpack.c.bf16 %v6355, %v6352
        %v6735 = vpack.c.bf16 %v6363, %v6360
        %v6736 = vpack.c.bf16 %v6371, %v6368
        %v6737 = vpack.c.bf16 %v6379, %v6376
        %v6738 = vpack.c.bf16 %v6387, %v6384
        %v6739 = vpack.c.bf16 %v6395, %v6392
        %v6740 = vpack.c.bf16 %v6403, %v6400
        %v6741 = vpack.c.bf16 %v6411, %v6408
        %v6742 = vpack.c.bf16 %v6419, %v6416
        %v6743 = vpack.c.bf16 %v6427, %v6424
        %v6744 = vpack.c.bf16 %v6435, %v6432
        %v6745 = vpack.c.bf16 %v6443, %v6440
        %v6746 = vpack.c.bf16 %v6451, %v6448
        %v6747 = vpack.c.bf16 %v6459, %v6456
        %v6748 = vpack.c.bf16 %v6467, %v6464
        %v6749 = vpack.c.bf16 %v6475, %v6472
        %v6750 = vpack.c.bf16 %v6483, %v6480
        %v6751 = vpack.c.bf16 %v6491, %v6488
        %v6752 = vpack.c.bf16 %v6499, %v6496
        %v6753 = vpack.c.bf16 %v6507, %v6504
        %v6754 = vpack.c.bf16 %v6515, %v6512
        %v6755 = vpack.c.bf16 %v6523, %v6520
        %v6756 = vpack.c.bf16 %v6531, %v6528
        %v6757 = vpack.c.bf16 %v6539, %v6536
        %v6758 = vpack.c.bf16 %v6547, %v6544
        %v6759 = vpack.c.bf16 %v6555, %v6552
        %v6760 = vpack.c.bf16 %v6563, %v6560
        %v6761 = vpack.c.bf16 %v6571, %v6568
        %v6762 = vpack.c.bf16 %v6579, %v6576
        %v6763 = vpack.c.bf16 %v6587, %v6584
        %v6764 = vpack.c.bf16 %v6595, %v6592
        %v6765 = vpack.c.bf16 %v6603, %v6600
        %v6766 = vpack.c.bf16 %v6611, %v6608
        %v6767 = vpack.c.bf16 %v6619, %v6616
        %v6768 = vpack.c.bf16 %v6627, %v6624
        %v6769 = vpack.c.bf16 %v6635, %v6632
        %v6770 = vpack.c.bf16 %v6643, %v6640
        %v6771 = vpack.c.bf16 %v6651, %v6648
        %v6772 = vpack.c.bf16 %v6659, %v6656
        %v6773 = vpack.c.bf16 %v6667, %v6664
        %v6774 = vpack.c.bf16 %v6675, %v6672
        %v6775 = vpack.c.bf16 %v6683, %v6680
        %v6776 = vpack.c.bf16 %v6691, %v6688
        %v6777 = vpack.c.bf16 %v6699, %v6696
        %v6778 = vpack.c.bf16 %v6707, %v6704
        %v6779 = vpack.c.bf16 %v6712, %v6712
        %v6780 = vld [vmem:[#allocation2 + $0xf00] sm:$0xf]
        %v6781 = vld [vmem:[#allocation2 + $0xf08] sm:$0xf]
        %v6782 = vld [vmem:[#allocation2 + $0xf10] sm:$0xf]
        %v6783 = vld [vmem:[#allocation2 + $0xf18] sm:$0xf]
        %v6784 = vld [vmem:[#allocation2 + $0xf20] sm:$0xf]
        %v6785 = vld [vmem:[#allocation2 + $0xf28] sm:$0xf]
        %v6786 = vld [vmem:[#allocation2 + $0xf30] sm:$0xf]
        %v6787 = vld [vmem:[#allocation2 + $0xf38] sm:$0xf]
        %v6788 = vld [vmem:[#allocation2 + $0xf40] sm:$0xf]
        %v6789 = vld [vmem:[#allocation2 + $0xf48] sm:$0xf]
        %v6790 = vld [vmem:[#allocation2 + $0xf50] sm:$0xf]
        %v6791 = vld [vmem:[#allocation2 + $0xf58] sm:$0xf]
        %v6792 = vld [vmem:[#allocation2 + $0xf60] sm:$0xf]
        %v6793 = vld [vmem:[#allocation2 + $0xf68] sm:$0xf]
        %v6794 = vld [vmem:[#allocation2 + $0xf70] sm:$0xf]
        %v6795 = vld [vmem:[#allocation2 + $0xf78] sm:$0xf]
        %v6796 = vld [vmem:[#allocation2 + $0xf80] sm:$0xf]
        %v6797 = vld [vmem:[#allocation2 + $0xf88] sm:$0xf]
        %v6798 = vld [vmem:[#allocation2 + $0xf90] sm:$0xf]
        %v6799 = vld [vmem:[#allocation2 + $0xf98] sm:$0xf]
        %v6800 = vld [vmem:[#allocation2 + $0xfa0] sm:$0xf]
        %v6801 = vld [vmem:[#allocation2 + $0xfa8] sm:$0xf]
        %v6802 = vld [vmem:[#allocation2 + $0xfb0] sm:$0xf]
        %v6803 = vld [vmem:[#allocation2 + $0xfb8] sm:$0xf]
        %v6804 = vld [vmem:[#allocation2 + $0xfc0] sm:$0xf]
        %v6805 = vld [vmem:[#allocation2 + $0xfc8] sm:$0xf]
        %v6806 = vld [vmem:[#allocation2 + $0xfd0] sm:$0xf]
        %v6807 = vld [vmem:[#allocation2 + $0xfd8] sm:$0xf]
        %v6808 = vld [vmem:[#allocation2 + $0xfe0] sm:$0xf]
        %v6809 = vld [vmem:[#allocation2 + $0xfe8] sm:$0xf]
        %v6810 = vld [vmem:[#allocation2 + $0xff0] sm:$0xf]
        %v6811 = vld [vmem:[#allocation2 + $0xff8] sm:$0xf]
        %v6825 = vrot.slane %v6729, 4
        %v6826 = vrot.slane %v6730, 4
        %v6827 = vsel %vm4495, %v6825, %v6826
        %v6828 = vrot.slane %v6731, 4
        %v6829 = vsel %vm4495, %v6826, %v6828
        %v6830 = vrot.slane %v6732, 4
        %v6831 = vsel %vm4495, %v6828, %v6830
        %v6832 = vrot.slane %v6733, 4
        %v6833 = vsel %vm4495, %v6830, %v6832
        %v6834 = vrot.slane %v6734, 4
        %v6835 = vsel %vm4495, %v6832, %v6834
        %v6836 = vrot.slane %v6735, 4
        %v6837 = vsel %vm4495, %v6834, %v6836
        %v6838 = vrot.slane %v6736, 4
        %v6839 = vsel %vm4495, %v6836, %v6838
        %v6840 = vrot.slane %v6737, 4
        %v6841 = vsel %vm4495, %v6838, %v6840
        %v6842 = vrot.slane %v6738, 4
        %v6843 = vsel %vm4495, %v6840, %v6842
        %v6844 = vrot.slane %v6739, 4
        %v6845 = vsel %vm4495, %v6842, %v6844
        %v6846 = vrot.slane %v6740, 4
        %v6847 = vsel %vm4495, %v6844, %v6846
        %v6848 = vrot.slane %v6741, 4
        %v6849 = vsel %vm4495, %v6846, %v6848
        %v6879 = vunpack.c.l.b16 %v6796
        %v6880 = vunpack.c.l.b16 %v6797
        %v6881 = vunpack.c.l.b16 %v6798
        %v6882 = vunpack.c.l.b16 %v6799
        %v6883 = vunpack.c.l.b16 %v6800
        %v6884 = vunpack.c.l.b16 %v6801
        %v6885 = vunpack.c.l.b16 %v6802
        %v6886 = vunpack.c.l.b16 %v6803
        %v6887 = vunpack.c.l.b16 %v6804
        %v6888 = vunpack.c.l.b16 %v6805
        %v6889 = vunpack.c.l.b16 %v6806
        %v6890 = vunpack.c.l.b16 %v6807
        %v6891 = vunpack.c.l.b16 %v6808
        %v6892 = vunpack.c.l.b16 %v6809
        %v6893 = vunpack.c.l.b16 %v6810
        %v6894 = vunpack.c.l.b16 %v6811
        %v6895 = vpack.c.b16 %v6880, %v6879
        %v6896 = vpack.c.b16 %v6882, %v6881
        %v6897 = vpack.c.b16 %v6884, %v6883
        %v6898 = vpack.c.b16 %v6886, %v6885
        %v6899 = vpack.c.b16 %v6888, %v6887
        %v6900 = vpack.c.b16 %v6890, %v6889
        %v6901 = vpack.c.b16 %v6892, %v6891
        %v6902 = vpack.c.b16 %v6894, %v6893
        %6911 = vmatprep.subr.bf16.mxu0 0
        %6912 = vmatpush1.bf16.msra.mxu0 %v6902
        %6913 = vmatprep.subr.bf16.mxu0 0
        %6914 = vmatpush1.bf16.msra.mxu0 %v6901
        %6915 = vmatprep.subr.bf16.mxu0 0
        %6916 = vmatpush1.bf16.msra.mxu0 %v6900
        %6917 = vmatprep.subr.bf16.mxu0 0
        %6918 = vmatpush1.bf16.msra.mxu0 %v6899
        %6919 = vmatprep.subr.bf16.mxu0 0
        %6920 = vmatpush1.bf16.msra.mxu0 %v6898
        %6921 = vmatprep.subr.bf16.mxu0 0
        %6922 = vmatpush1.bf16.msra.mxu0 %v6897
        %6923 = vmatprep.subr.bf16.mxu0 0
        %6924 = vmatpush1.bf16.msra.mxu0 %v6896
        %6925 = vmatprep.subr.bf16.mxu0 0
        %6926 = vmatpush1.bf16.msra.mxu0 %v6895
        %6927 = vmatprep.subr.bf16.mxu0 0
        %6928 = vmatpush2.bf16.msra.mxu0 0
        %6929 = vmatprep.subr.bf16.mxu0 0
        %6930 = vmatpush2.bf16.msra.mxu0 0
        %6931 = vmatprep.subr.bf16.mxu0 0
        %6932 = vmatpush2.bf16.msra.mxu0 0
        %6933 = vmatprep.subr.bf16.mxu0 0
        %6934 = vmatpush2.bf16.msra.mxu0 0
        %6935 = vmatprep.subr.bf16.mxu0 0
        %6936 = vmatpush2.bf16.msra.mxu0 0
        %6937 = vmatprep.subr.bf16.mxu0 0
        %6938 = vmatpush2.bf16.msra.mxu0 0
        %6939 = vmatprep.subr.bf16.mxu0 0
        %6940 = vmatpush2.bf16.msra.mxu0 0
        %6941 = vmatprep.subr.bf16.mxu0 0
        %6942 = vmatpush2.bf16.msra.mxu0 0
        %6943 = vmatprep.mubr.bf16.mxu0 0
        %6944 = vmatmul.mubr.bf16.gmra.mxu0 %v6827
        %v6945 = vpop.f32.mrf.mxu0
        %v6946 = vadd.f32 0.0, %v6945
        %v6947 = vpop.f32.mrf.mxu0
        %v6948 = vpop.f32.mrf.mxu0
        %v6949 = vadd.f32 0.0, %v6948
        %v6950 = vpop.f32.mrf.mxu0
        %6951 = vmatprep.mubr.bf16.mxu0 0
        %6952 = vmatmul.mubr.bf16.gmra.mxu0 %v6829
        %v6953 = vpop.f32.mrf.mxu0
        %v6954 = vadd.f32 0.0, %v6953
        %v6955 = vpop.f32.mrf.mxu0
        %v6956 = vpop.f32.mrf.mxu0
        %v6957 = vadd.f32 0.0, %v6956
        %v6958 = vpop.f32.mrf.mxu0
        %6959 = vmatprep.mubr.bf16.mxu0 0
        %6960 = vmatmul.mubr.bf16.gmra.mxu0 %v6831
        %v6961 = vpop.f32.mrf.mxu0
        %v6962 = vadd.f32 0.0, %v6961
        %v6963 = vpop.f32.mrf.mxu0
        %v6964 = vpop.f32.mrf.mxu0
        %v6965 = vadd.f32 0.0, %v6964
        %v6966 = vpop.f32.mrf.mxu0
        %6967 = vmatprep.mubr.bf16.mxu0 0
        %6968 = vmatmul.mubr.bf16.gmra.mxu0 %v6833
        %v6969 = vpop.f32.mrf.mxu0
        %v6970 = vadd.f32 0.0, %v6969
        %v6971 = vpop.f32.mrf.mxu0
        %v6972 = vpop.f32.mrf.mxu0
        %v6973 = vadd.f32 0.0, %v6972
        %v6974 = vpop.f32.mrf.mxu0
        %6975 = vmatprep.mubr.bf16.mxu0 0
        %6976 = vmatmul.mubr.bf16.gmra.mxu0 %v6835
        %v6977 = vpop.f32.mrf.mxu0
        %v6978 = vadd.f32 0.0, %v6977
        %v6979 = vpop.f32.mrf.mxu0
        %v6980 = vpop.f32.mrf.mxu0
        %v6981 = vadd.f32 0.0, %v6980
        %v6982 = vpop.f32.mrf.mxu0
        %6983 = vmatprep.mubr.bf16.mxu0 0
        %6984 = vmatmul.mubr.bf16.gmra.mxu0 %v6837
        %v6985 = vpop.f32.mrf.mxu0
        %v6986 = vadd.f32 0.0, %v6985
        %v6987 = vpop.f32.mrf.mxu0
        %v6988 = vpop.f32.mrf.mxu0
        %v6989 = vadd.f32 0.0, %v6988
        %v6990 = vpop.f32.mrf.mxu0
        %6991 = vmatprep.mubr.bf16.mxu0 0
        %6992 = vmatmul.mubr.bf16.gmra.mxu0 %v6839
        %v6993 = vpop.f32.mrf.mxu0
        %v6994 = vadd.f32 0.0, %v6993
        %v6995 = vpop.f32.mrf.mxu0
        %v6996 = vpop.f32.mrf.mxu0
        %v6997 = vadd.f32 0.0, %v6996
        %v6998 = vpop.f32.mrf.mxu0
        %6999 = vmatprep.mubr.bf16.mxu0 0
        %7000 = vmatmul.mubr.bf16.gmra.mxu0 %v6841
        %v7001 = vpop.f32.mrf.mxu0
        %v7002 = vadd.f32 0.0, %v7001
        %v7003 = vpop.f32.mrf.mxu0
        %v7004 = vpop.f32.mrf.mxu0
        %v7005 = vadd.f32 0.0, %v7004
        %v7006 = vpop.f32.mrf.mxu0
        %7007 = vmatprep.mubr.bf16.mxu0 0
        %7008 = vmatmul.mubr.bf16.gmra.mxu0 %v6843
        %v7009 = vpop.f32.mrf.mxu0
        %v7010 = vadd.f32 0.0, %v7009
        %v7011 = vpop.f32.mrf.mxu0
        %v7012 = vpop.f32.mrf.mxu0
        %v7013 = vadd.f32 0.0, %v7012
        %v7014 = vpop.f32.mrf.mxu0
        %7015 = vmatprep.mubr.bf16.mxu0 0
        %7016 = vmatmul.mubr.bf16.gmra.mxu0 %v6845
        %v7017 = vpop.f32.mrf.mxu0
        %v7018 = vadd.f32 0.0, %v7017
        %v7019 = vpop.f32.mrf.mxu0
        %v7020 = vpop.f32.mrf.mxu0
        %v7021 = vadd.f32 0.0, %v7020
        %v7022 = vpop.f32.mrf.mxu0
        %7023 = vmatprep.mubr.bf16.mxu0 0
        %7024 = vmatmul.mubr.bf16.gmra.mxu0 %v6847
        %v7025 = vpop.f32.mrf.mxu0
        %v7026 = vadd.f32 0.0, %v7025
        %v7027 = vpop.f32.mrf.mxu0
        %v7028 = vpop.f32.mrf.mxu0
        %v7029 = vadd.f32 0.0, %v7028
        %v7030 = vpop.f32.mrf.mxu0
        %7031 = vmatprep.mubr.bf16.mxu0 0
        %7032 = vmatmul.mubr.bf16.gmra.mxu0 %v6849
        %v7033 = vpop.f32.mrf.mxu0
        %v7034 = vadd.f32 0.0, %v7033
        %v7035 = vpop.f32.mrf.mxu0
        %v7036 = vpop.f32.mrf.mxu0
        %v7037 = vadd.f32 0.0, %v7036
        %v7038 = vpop.f32.mrf.mxu0
        %7039 = vmatprep.mubr.bf16.mxu0 0
        %7040 = vmatmul.mubr.bf16.gmra.mxu0 %v6848
        %v7041 = vpop.f32.mrf.mxu0
        %v7042 = vadd.f32 0.0, %v7041
        %v7043 = vpop.f32.mrf.mxu0
        %v7044 = vpop.f32.mrf.mxu0
        %v7045 = vpop.f32.mrf.mxu0
        %7046 = vdwg.mxu0
        %v7063 = vunpack.c.l.b16 %v6780
        %v7064 = vunpack.c.l.b16 %v6781
        %v7065 = vunpack.c.l.b16 %v6782
        %v7066 = vunpack.c.l.b16 %v6783
        %v7067 = vunpack.c.l.b16 %v6784
        %v7068 = vunpack.c.l.b16 %v6785
        %v7069 = vunpack.c.l.b16 %v6786
        %v7070 = vunpack.c.l.b16 %v6787
        %v7071 = vunpack.c.l.b16 %v6788
        %v7072 = vunpack.c.l.b16 %v6789
        %v7073 = vunpack.c.l.b16 %v6790
        %v7074 = vunpack.c.l.b16 %v6791
        %v7075 = vunpack.c.l.b16 %v6792
        %v7076 = vunpack.c.l.b16 %v6793
        %v7077 = vunpack.c.l.b16 %v6794
        %v7078 = vunpack.c.l.b16 %v6795
        %v7079 = vpack.c.b16 %v7064, %v7063
        %v7080 = vpack.c.b16 %v7066, %v7065
        %v7081 = vpack.c.b16 %v7068, %v7067
        %v7082 = vpack.c.b16 %v7070, %v7069
        %v7083 = vpack.c.b16 %v7072, %v7071
        %v7084 = vpack.c.b16 %v7074, %v7073
        %v7085 = vpack.c.b16 %v7076, %v7075
        %v7086 = vpack.c.b16 %v7078, %v7077
        %7095 = vmatprep.subr.bf16.mxu0 0
        %7096 = vmatpush1.bf16.msra.mxu0 %v7086
        %7097 = vmatprep.subr.bf16.mxu0 0
        %7098 = vmatpush1.bf16.msra.mxu0 %v7085
        %7099 = vmatprep.subr.bf16.mxu0 0
        %7100 = vmatpush1.bf16.msra.mxu0 %v7084
        %7101 = vmatprep.subr.bf16.mxu0 0
        %7102 = vmatpush1.bf16.msra.mxu0 %v7083
        %7103 = vmatprep.subr.bf16.mxu0 0
        %7104 = vmatpush1.bf16.msra.mxu0 %v7082
        %7105 = vmatprep.subr.bf16.mxu0 0
        %7106 = vmatpush1.bf16.msra.mxu0 %v7081
        %7107 = vmatprep.subr.bf16.mxu0 0
        %7108 = vmatpush1.bf16.msra.mxu0 %v7080
        %7109 = vmatprep.subr.bf16.mxu0 0
        %7110 = vmatpush1.bf16.msra.mxu0 %v7079
        %7111 = vmatprep.subr.bf16.mxu0 0
        %7112 = vmatpush2.bf16.msra.mxu0 0
        %7113 = vmatprep.subr.bf16.mxu0 0
        %7114 = vmatpush2.bf16.msra.mxu0 0
        %7115 = vmatprep.subr.bf16.mxu0 0
        %7116 = vmatpush2.bf16.msra.mxu0 0
        %7117 = vmatprep.subr.bf16.mxu0 0
        %7118 = vmatpush2.bf16.msra.mxu0 0
        %7119 = vmatprep.subr.bf16.mxu0 0
        %7120 = vmatpush2.bf16.msra.mxu0 0
        %7121 = vmatprep.subr.bf16.mxu0 0
        %7122 = vmatpush2.bf16.msra.mxu0 0
        %7123 = vmatprep.subr.bf16.mxu0 0
        %7124 = vmatpush2.bf16.msra.mxu0 0
        %7125 = vmatprep.subr.bf16.mxu0 0
        %7126 = vmatpush2.bf16.msra.mxu0 0
        %7127 = vmatprep.mubr.bf16.mxu0 0
        %7128 = vmatmul.mubr.bf16.gmra.mxu0 %v6717
        %v7129 = vpop.f32.mrf.mxu0
        %v7130 = vadd.f32 %v6946, %v7129
        %v7131 = vpop.f32.mrf.mxu0
        %v7132 = vpop.f32.mrf.mxu0
        %v7133 = vadd.f32 %v6949, %v7132
        %v7134 = vpop.f32.mrf.mxu0
        %7135 = vmatprep.mubr.bf16.mxu0 0
        %7136 = vmatmul.mubr.bf16.gmra.mxu0 %v6718
        %v7137 = vpop.f32.mrf.mxu0
        %v7138 = vadd.f32 %v6954, %v7137
        %v7139 = vpop.f32.mrf.mxu0
        %v7140 = vpop.f32.mrf.mxu0
        %v7141 = vadd.f32 %v6957, %v7140
        %v7142 = vpop.f32.mrf.mxu0
        %7143 = vmatprep.mubr.bf16.mxu0 0
        %7144 = vmatmul.mubr.bf16.gmra.mxu0 %v6719
        %v7145 = vpop.f32.mrf.mxu0
        %v7146 = vadd.f32 %v6962, %v7145
        %v7147 = vpop.f32.mrf.mxu0
        %v7148 = vpop.f32.mrf.mxu0
        %v7149 = vadd.f32 %v6965, %v7148
        %v7150 = vpop.f32.mrf.mxu0
        %7151 = vmatprep.mubr.bf16.mxu0 0
        %7152 = vmatmul.mubr.bf16.gmra.mxu0 %v6720
        %v7153 = vpop.f32.mrf.mxu0
        %v7154 = vadd.f32 %v6970, %v7153
        %v7155 = vpop.f32.mrf.mxu0
        %v7156 = vpop.f32.mrf.mxu0
        %v7157 = vadd.f32 %v6973, %v7156
        %v7158 = vpop.f32.mrf.mxu0
        %7159 = vmatprep.mubr.bf16.mxu0 0
        %7160 = vmatmul.mubr.bf16.gmra.mxu0 %v6721
        %v7161 = vpop.f32.mrf.mxu0
        %v7162 = vadd.f32 %v6978, %v7161
        %v7163 = vpop.f32.mrf.mxu0
        %v7164 = vpop.f32.mrf.mxu0
        %v7165 = vadd.f32 %v6981, %v7164
        %v7166 = vpop.f32.mrf.mxu0
        %7167 = vmatprep.mubr.bf16.mxu0 0
        %7168 = vmatmul.mubr.bf16.gmra.mxu0 %v6722
        %v7169 = vpop.f32.mrf.mxu0
        %v7170 = vadd.f32 %v6986, %v7169
        %v7171 = vpop.f32.mrf.mxu0
        %v7172 = vpop.f32.mrf.mxu0
        %v7173 = vadd.f32 %v6989, %v7172
        %v7174 = vpop.f32.mrf.mxu0
        %7175 = vmatprep.mubr.bf16.mxu0 0
        %7176 = vmatmul.mubr.bf16.gmra.mxu0 %v6723
        %v7177 = vpop.f32.mrf.mxu0
        %v7178 = vadd.f32 %v6994, %v7177
        %v7179 = vpop.f32.mrf.mxu0
        %v7180 = vpop.f32.mrf.mxu0
        %v7181 = vadd.f32 %v6997, %v7180
        %v7182 = vpop.f32.mrf.mxu0
        %7183 = vmatprep.mubr.bf16.mxu0 0
        %7184 = vmatmul.mubr.bf16.gmra.mxu0 %v6724
        %v7185 = vpop.f32.mrf.mxu0
        %v7186 = vadd.f32 %v7002, %v7185
        %v7187 = vpop.f32.mrf.mxu0
        %v7188 = vpop.f32.mrf.mxu0
        %v7189 = vadd.f32 %v7005, %v7188
        %v7190 = vpop.f32.mrf.mxu0
        %7191 = vmatprep.mubr.bf16.mxu0 0
        %7192 = vmatmul.mubr.bf16.gmra.mxu0 %v6725
        %v7193 = vpop.f32.mrf.mxu0
        %v7194 = vadd.f32 %v7010, %v7193
        %v7195 = vpop.f32.mrf.mxu0
        %v7196 = vpop.f32.mrf.mxu0
        %v7197 = vadd.f32 %v7013, %v7196
        %v7198 = vpop.f32.mrf.mxu0
        %7199 = vmatprep.mubr.bf16.mxu0 0
        %7200 = vmatmul.mubr.bf16.gmra.mxu0 %v6726
        %v7201 = vpop.f32.mrf.mxu0
        %v7202 = vadd.f32 %v7018, %v7201
        %v7203 = vpop.f32.mrf.mxu0
        %v7204 = vpop.f32.mrf.mxu0
        %v7205 = vadd.f32 %v7021, %v7204
        %v7206 = vpop.f32.mrf.mxu0
        %7207 = vmatprep.mubr.bf16.mxu0 0
        %7208 = vmatmul.mubr.bf16.gmra.mxu0 %v6727
        %v7209 = vpop.f32.mrf.mxu0
        %v7210 = vadd.f32 %v7026, %v7209
        %v7211 = vpop.f32.mrf.mxu0
        %v7212 = vpop.f32.mrf.mxu0
        %v7213 = vadd.f32 %v7029, %v7212
        %v7214 = vpop.f32.mrf.mxu0
        %7215 = vmatprep.mubr.bf16.mxu0 0
        %7216 = vmatmul.mubr.bf16.gmra.mxu0 %v6728
        %v7217 = vpop.f32.mrf.mxu0
        %v7218 = vadd.f32 %v7034, %v7217
        %v7219 = vpop.f32.mrf.mxu0
        %v7220 = vpop.f32.mrf.mxu0
        %v7221 = vadd.f32 %v7037, %v7220
        %v7222 = vpop.f32.mrf.mxu0
        %7223 = vmatprep.mubr.bf16.mxu0 0
        %7224 = vmatmul.mubr.bf16.gmra.mxu0 %v6729
        %v7225 = vpop.f32.mrf.mxu0
        %v7226 = vadd.f32 %v7042, %v7225
        %v7227 = vpop.f32.mrf.mxu0
        %v7228 = vpop.f32.mrf.mxu0
        %v7229 = vpop.f32.mrf.mxu0
        %7230 = vdwg.mxu0
        %v7231 = vld [vmem:[#allocation2 + $0x1000] sm:$0xf]
        %v7232 = vld [vmem:[#allocation2 + $0x1008] sm:$0xf]
        %v7233 = vld [vmem:[#allocation2 + $0x1010] sm:$0xf]
        %v7234 = vld [vmem:[#allocation2 + $0x1018] sm:$0xf]
        %v7235 = vld [vmem:[#allocation2 + $0x1020] sm:$0xf]
        %v7236 = vld [vmem:[#allocation2 + $0x1028] sm:$0xf]
        %v7237 = vld [vmem:[#allocation2 + $0x1030] sm:$0xf]
        %v7238 = vld [vmem:[#allocation2 + $0x1038] sm:$0xf]
        %v7239 = vld [vmem:[#allocation2 + $0x1040] sm:$0xf]
        %v7240 = vld [vmem:[#allocation2 + $0x1048] sm:$0xf]
        %v7241 = vld [vmem:[#allocation2 + $0x1050] sm:$0xf]
        %v7242 = vld [vmem:[#allocation2 + $0x1058] sm:$0xf]
        %v7243 = vld [vmem:[#allocation2 + $0x1060] sm:$0xf]
        %v7244 = vld [vmem:[#allocation2 + $0x1068] sm:$0xf]
        %v7245 = vld [vmem:[#allocation2 + $0x1070] sm:$0xf]
        %v7246 = vld [vmem:[#allocation2 + $0x1078] sm:$0xf]
        %v7263 = vunpack.c.l.b16 %v7231
        %v7264 = vunpack.c.l.b16 %v7232
        %v7265 = vunpack.c.l.b16 %v7233
        %v7266 = vunpack.c.l.b16 %v7234
        %v7267 = vunpack.c.l.b16 %v7235
        %v7268 = vunpack.c.l.b16 %v7236
        %v7269 = vunpack.c.l.b16 %v7237
        %v7270 = vunpack.c.l.b16 %v7238
        %v7271 = vunpack.c.l.b16 %v7239
        %v7272 = vunpack.c.l.b16 %v7240
        %v7273 = vunpack.c.l.b16 %v7241
        %v7274 = vunpack.c.l.b16 %v7242
        %v7275 = vunpack.c.l.b16 %v7243
        %v7276 = vunpack.c.l.b16 %v7244
        %v7277 = vunpack.c.l.b16 %v7245
        %v7278 = vunpack.c.l.b16 %v7246
        %v7279 = vpack.c.b16 %v7264, %v7263
        %v7280 = vpack.c.b16 %v7266, %v7265
        %v7281 = vpack.c.b16 %v7268, %v7267
        %v7282 = vpack.c.b16 %v7270, %v7269
        %v7283 = vpack.c.b16 %v7272, %v7271
        %v7284 = vpack.c.b16 %v7274, %v7273
        %v7285 = vpack.c.b16 %v7276, %v7275
        %v7286 = vpack.c.b16 %v7278, %v7277
        %7295 = vmatprep.subr.bf16.mxu0 0
        %7296 = vmatpush1.bf16.msra.mxu0 %v7286
        %7297 = vmatprep.subr.bf16.mxu0 0
        %7298 = vmatpush1.bf16.msra.mxu0 %v7285
        %7299 = vmatprep.subr.bf16.mxu0 0
        %7300 = vmatpush1.bf16.msra.mxu0 %v7284
        %7301 = vmatprep.subr.bf16.mxu0 0
        %7302 = vmatpush1.bf16.msra.mxu0 %v7283
        %7303 = vmatprep.subr.bf16.mxu0 0
        %7304 = vmatpush1.bf16.msra.mxu0 %v7282
        %7305 = vmatprep.subr.bf16.mxu0 0
        %7306 = vmatpush1.bf16.msra.mxu0 %v7281
        %7307 = vmatprep.subr.bf16.mxu0 0
        %7308 = vmatpush1.bf16.msra.mxu0 %v7280
        %7309 = vmatprep.subr.bf16.mxu0 0
        %7310 = vmatpush1.bf16.msra.mxu0 %v7279
        %7311 = vmatprep.subr.bf16.mxu0 0
        %7312 = vmatpush2.bf16.msra.mxu0 0
        %7313 = vmatprep.subr.bf16.mxu0 0
        %7314 = vmatpush2.bf16.msra.mxu0 0
        %7315 = vmatprep.subr.bf16.mxu0 0
        %7316 = vmatpush2.bf16.msra.mxu0 0
        %7317 = vmatprep.subr.bf16.mxu0 0
        %7318 = vmatpush2.bf16.msra.mxu0 0
        %7319 = vmatprep.subr.bf16.mxu0 0
        %7320 = vmatpush2.bf16.msra.mxu0 0
        %7321 = vmatprep.subr.bf16.mxu0 0
        %7322 = vmatpush2.bf16.msra.mxu0 0
        %7323 = vmatprep.subr.bf16.mxu0 0
        %7324 = vmatpush2.bf16.msra.mxu0 0
        %7325 = vmatprep.subr.bf16.mxu0 0
        %7326 = vmatpush2.bf16.msra.mxu0 0
        %7327 = vmatprep.mubr.bf16.mxu0 0
        %7328 = vmatmul.mubr.bf16.gmra.mxu0 %v6742
        %v7329 = vpop.f32.mrf.mxu0
        %v7330 = vadd.f32 0.0, %v7329
        %v7331 = vpop.f32.mrf.mxu0
        %v7332 = vpop.f32.mrf.mxu0
        %v7333 = vadd.f32 0.0, %v7332
        %v7334 = vpop.f32.mrf.mxu0
        %7335 = vmatprep.mubr.bf16.mxu0 0
        %7336 = vmatmul.mubr.bf16.gmra.mxu0 %v6743
        %v7337 = vpop.f32.mrf.mxu0
        %v7338 = vadd.f32 0.0, %v7337
        %v7339 = vpop.f32.mrf.mxu0
        %v7340 = vpop.f32.mrf.mxu0
        %v7341 = vadd.f32 0.0, %v7340
        %v7342 = vpop.f32.mrf.mxu0
        %7343 = vmatprep.mubr.bf16.mxu0 0
        %7344 = vmatmul.mubr.bf16.gmra.mxu0 %v6744
        %v7345 = vpop.f32.mrf.mxu0
        %v7346 = vadd.f32 0.0, %v7345
        %v7347 = vpop.f32.mrf.mxu0
        %v7348 = vpop.f32.mrf.mxu0
        %v7349 = vadd.f32 0.0, %v7348
        %v7350 = vpop.f32.mrf.mxu0
        %7351 = vmatprep.mubr.bf16.mxu0 0
        %7352 = vmatmul.mubr.bf16.gmra.mxu0 %v6745
        %v7353 = vpop.f32.mrf.mxu0
        %v7354 = vadd.f32 0.0, %v7353
        %v7355 = vpop.f32.mrf.mxu0
        %v7356 = vpop.f32.mrf.mxu0
        %v7357 = vadd.f32 0.0, %v7356
        %v7358 = vpop.f32.mrf.mxu0
        %7359 = vmatprep.mubr.bf16.mxu0 0
        %7360 = vmatmul.mubr.bf16.gmra.mxu0 %v6746
        %v7361 = vpop.f32.mrf.mxu0
        %v7362 = vadd.f32 0.0, %v7361
        %v7363 = vpop.f32.mrf.mxu0
        %v7364 = vpop.f32.mrf.mxu0
        %v7365 = vadd.f32 0.0, %v7364
        %v7366 = vpop.f32.mrf.mxu0
        %7367 = vmatprep.mubr.bf16.mxu0 0
        %7368 = vmatmul.mubr.bf16.gmra.mxu0 %v6747
        %v7369 = vpop.f32.mrf.mxu0
        %v7370 = vadd.f32 0.0, %v7369
        %v7371 = vpop.f32.mrf.mxu0
        %v7372 = vpop.f32.mrf.mxu0
        %v7373 = vadd.f32 0.0, %v7372
        %v7374 = vpop.f32.mrf.mxu0
        %7375 = vmatprep.mubr.bf16.mxu0 0
        %7376 = vmatmul.mubr.bf16.gmra.mxu0 %v6748
        %v7377 = vpop.f32.mrf.mxu0
        %v7378 = vadd.f32 0.0, %v7377
        %v7379 = vpop.f32.mrf.mxu0
        %v7380 = vpop.f32.mrf.mxu0
        %v7381 = vadd.f32 0.0, %v7380
        %v7382 = vpop.f32.mrf.mxu0
        %7383 = vmatprep.mubr.bf16.mxu0 0
        %7384 = vmatmul.mubr.bf16.gmra.mxu0 %v6749
        %v7385 = vpop.f32.mrf.mxu0
        %v7386 = vadd.f32 0.0, %v7385
        %v7387 = vpop.f32.mrf.mxu0
        %v7388 = vpop.f32.mrf.mxu0
        %v7389 = vadd.f32 0.0, %v7388
        %v7390 = vpop.f32.mrf.mxu0
        %7391 = vmatprep.mubr.bf16.mxu0 0
        %7392 = vmatmul.mubr.bf16.gmra.mxu0 %v6750
        %v7393 = vpop.f32.mrf.mxu0
        %v7394 = vadd.f32 0.0, %v7393
        %v7395 = vpop.f32.mrf.mxu0
        %v7396 = vpop.f32.mrf.mxu0
        %v7397 = vadd.f32 0.0, %v7396
        %v7398 = vpop.f32.mrf.mxu0
        %7399 = vmatprep.mubr.bf16.mxu0 0
        %7400 = vmatmul.mubr.bf16.gmra.mxu0 %v6751
        %v7401 = vpop.f32.mrf.mxu0
        %v7402 = vadd.f32 0.0, %v7401
        %v7403 = vpop.f32.mrf.mxu0
        %v7404 = vpop.f32.mrf.mxu0
        %v7405 = vadd.f32 0.0, %v7404
        %v7406 = vpop.f32.mrf.mxu0
        %7407 = vmatprep.mubr.bf16.mxu0 0
        %7408 = vmatmul.mubr.bf16.gmra.mxu0 %v6752
        %v7409 = vpop.f32.mrf.mxu0
        %v7410 = vadd.f32 0.0, %v7409
        %v7411 = vpop.f32.mrf.mxu0
        %v7412 = vpop.f32.mrf.mxu0
        %v7413 = vadd.f32 0.0, %v7412
        %v7414 = vpop.f32.mrf.mxu0
        %7415 = vmatprep.mubr.bf16.mxu0 0
        %7416 = vmatmul.mubr.bf16.gmra.mxu0 %v6753
        %v7417 = vpop.f32.mrf.mxu0
        %v7418 = vadd.f32 0.0, %v7417
        %v7419 = vpop.f32.mrf.mxu0
        %v7420 = vpop.f32.mrf.mxu0
        %v7421 = vadd.f32 0.0, %v7420
        %v7422 = vpop.f32.mrf.mxu0
        %7423 = vmatprep.mubr.bf16.mxu0 0
        %7424 = vmatmul.mubr.bf16.gmra.mxu0 %v6754
        %v7425 = vpop.f32.mrf.mxu0
        %v7426 = vadd.f32 0.0, %v7425
        %v7427 = vpop.f32.mrf.mxu0
        %v7428 = vpop.f32.mrf.mxu0
        %v7429 = vpop.f32.mrf.mxu0
        %7430 = vdwg.mxu0
        %v7431 = vadd.f32 %v7130, %v7330
        %v7432 = vadd.f32 %v7133, %v7333
        %v7433 = vadd.f32 %v7138, %v7338
        %v7434 = vadd.f32 %v7141, %v7341
        %v7435 = vadd.f32 %v7146, %v7346
        %v7436 = vadd.f32 %v7149, %v7349
        %v7437 = vadd.f32 %v7154, %v7354
        %v7438 = vadd.f32 %v7157, %v7357
        %v7439 = vadd.f32 %v7162, %v7362
        %v7440 = vadd.f32 %v7165, %v7365
        %v7441 = vadd.f32 %v7170, %v7370
        %v7442 = vadd.f32 %v7173, %v7373
        %v7443 = vadd.f32 %v7178, %v7378
        %v7444 = vadd.f32 %v7181, %v7381
        %v7445 = vadd.f32 %v7186, %v7386
        %v7446 = vadd.f32 %v7189, %v7389
        %v7447 = vadd.f32 %v7194, %v7394
        %v7448 = vadd.f32 %v7197, %v7397
        %v7449 = vadd.f32 %v7202, %v7402
        %v7450 = vadd.f32 %v7205, %v7405
        %v7451 = vadd.f32 %v7210, %v7410
        %v7452 = vadd.f32 %v7213, %v7413
        %v7453 = vadd.f32 %v7218, %v7418
        %v7454 = vadd.f32 %v7221, %v7421
        %v7455 = vadd.f32 %v7226, %v7426
        %v7456 = vld [vmem:[#allocation2 + $0x1080] sm:$0xf]
        %v7457 = vld [vmem:[#allocation2 + $0x1088] sm:$0xf]
        %v7458 = vld [vmem:[#allocation2 + $0x1090] sm:$0xf]
        %v7459 = vld [vmem:[#allocation2 + $0x1098] sm:$0xf]
        %v7460 = vld [vmem:[#allocation2 + $0x10a0] sm:$0xf]
        %v7461 = vld [vmem:[#allocation2 + $0x10a8] sm:$0xf]
        %v7462 = vld [vmem:[#allocation2 + $0x10b0] sm:$0xf]
        %v7463 = vld [vmem:[#allocation2 + $0x10b8] sm:$0xf]
        %v7464 = vld [vmem:[#allocation2 + $0x10c0] sm:$0xf]
        %v7465 = vld [vmem:[#allocation2 + $0x10c8] sm:$0xf]
        %v7466 = vld [vmem:[#allocation2 + $0x10d0] sm:$0xf]
        %v7467 = vld [vmem:[#allocation2 + $0x10d8] sm:$0xf]
        %v7468 = vld [vmem:[#allocation2 + $0x10e0] sm:$0xf]
        %v7469 = vld [vmem:[#allocation2 + $0x10e8] sm:$0xf]
        %v7470 = vld [vmem:[#allocation2 + $0x10f0] sm:$0xf]
        %v7471 = vld [vmem:[#allocation2 + $0x10f8] sm:$0xf]
        %v7485 = vrot.slane %v6754, 4
        %v7486 = vrot.slane %v6755, 4
        %v7487 = vsel %vm4495, %v7485, %v7486
        %v7488 = vrot.slane %v6756, 4
        %v7489 = vsel %vm4495, %v7486, %v7488
        %v7490 = vrot.slane %v6757, 4
        %v7491 = vsel %vm4495, %v7488, %v7490
        %v7492 = vrot.slane %v6758, 4
        %v7493 = vsel %vm4495, %v7490, %v7492
        %v7494 = vrot.slane %v6759, 4
        %v7495 = vsel %vm4495, %v7492, %v7494
        %v7496 = vrot.slane %v6760, 4
        %v7497 = vsel %vm4495, %v7494, %v7496
        %v7498 = vrot.slane %v6761, 4
        %v7499 = vsel %vm4495, %v7496, %v7498
        %v7500 = vrot.slane %v6762, 4
        %v7501 = vsel %vm4495, %v7498, %v7500
        %v7502 = vrot.slane %v6763, 4
        %v7503 = vsel %vm4495, %v7500, %v7502
        %v7504 = vrot.slane %v6764, 4
        %v7505 = vsel %vm4495, %v7502, %v7504
        %v7506 = vrot.slane %v6765, 4
        %v7507 = vsel %vm4495, %v7504, %v7506
        %v7508 = vrot.slane %v6766, 4
        %v7509 = vsel %vm4495, %v7506, %v7508
        %v7539 = vunpack.c.l.b16 %v7456
        %v7540 = vunpack.c.l.b16 %v7457
        %v7541 = vunpack.c.l.b16 %v7458
        %v7542 = vunpack.c.l.b16 %v7459
        %v7543 = vunpack.c.l.b16 %v7460
        %v7544 = vunpack.c.l.b16 %v7461
        %v7545 = vunpack.c.l.b16 %v7462
        %v7546 = vunpack.c.l.b16 %v7463
        %v7547 = vunpack.c.l.b16 %v7464
        %v7548 = vunpack.c.l.b16 %v7465
        %v7549 = vunpack.c.l.b16 %v7466
        %v7550 = vunpack.c.l.b16 %v7467
        %v7551 = vunpack.c.l.b16 %v7468
        %v7552 = vunpack.c.l.b16 %v7469
        %v7553 = vunpack.c.l.b16 %v7470
        %v7554 = vunpack.c.l.b16 %v7471
        %v7555 = vpack.c.b16 %v7540, %v7539
        %v7556 = vpack.c.b16 %v7542, %v7541
        %v7557 = vpack.c.b16 %v7544, %v7543
        %v7558 = vpack.c.b16 %v7546, %v7545
        %v7559 = vpack.c.b16 %v7548, %v7547
        %v7560 = vpack.c.b16 %v7550, %v7549
        %v7561 = vpack.c.b16 %v7552, %v7551
        %v7562 = vpack.c.b16 %v7554, %v7553
        %7571 = vmatprep.subr.bf16.mxu0 0
        %7572 = vmatpush1.bf16.msra.mxu0 %v7562
        %7573 = vmatprep.subr.bf16.mxu0 0
        %7574 = vmatpush1.bf16.msra.mxu0 %v7561
        %7575 = vmatprep.subr.bf16.mxu0 0
        %7576 = vmatpush1.bf16.msra.mxu0 %v7560
        %7577 = vmatprep.subr.bf16.mxu0 0
        %7578 = vmatpush1.bf16.msra.mxu0 %v7559
        %7579 = vmatprep.subr.bf16.mxu0 0
        %7580 = vmatpush1.bf16.msra.mxu0 %v7558
        %7581 = vmatprep.subr.bf16.mxu0 0
        %7582 = vmatpush1.bf16.msra.mxu0 %v7557
        %7583 = vmatprep.subr.bf16.mxu0 0
        %7584 = vmatpush1.bf16.msra.mxu0 %v7556
        %7585 = vmatprep.subr.bf16.mxu0 0
        %7586 = vmatpush1.bf16.msra.mxu0 %v7555
        %7587 = vmatprep.subr.bf16.mxu0 0
        %7588 = vmatpush2.bf16.msra.mxu0 0
        %7589 = vmatprep.subr.bf16.mxu0 0
        %7590 = vmatpush2.bf16.msra.mxu0 0
        %7591 = vmatprep.subr.bf16.mxu0 0
        %7592 = vmatpush2.bf16.msra.mxu0 0
        %7593 = vmatprep.subr.bf16.mxu0 0
        %7594 = vmatpush2.bf16.msra.mxu0 0
        %7595 = vmatprep.subr.bf16.mxu0 0
        %7596 = vmatpush2.bf16.msra.mxu0 0
        %7597 = vmatprep.subr.bf16.mxu0 0
        %7598 = vmatpush2.bf16.msra.mxu0 0
        %7599 = vmatprep.subr.bf16.mxu0 0
        %7600 = vmatpush2.bf16.msra.mxu0 0
        %7601 = vmatprep.subr.bf16.mxu0 0
        %7602 = vmatpush2.bf16.msra.mxu0 0
        %7603 = vmatprep.mubr.bf16.mxu0 0
        %7604 = vmatmul.mubr.bf16.gmra.mxu0 %v7487
        %v7605 = vpop.f32.mrf.mxu0
        %v7606 = vadd.f32 0.0, %v7605
        %v7607 = vpop.f32.mrf.mxu0
        %v7608 = vpop.f32.mrf.mxu0
        %v7609 = vadd.f32 0.0, %v7608
        %v7610 = vpop.f32.mrf.mxu0
        %7611 = vmatprep.mubr.bf16.mxu0 0
        %7612 = vmatmul.mubr.bf16.gmra.mxu0 %v7489
        %v7613 = vpop.f32.mrf.mxu0
        %v7614 = vadd.f32 0.0, %v7613
        %v7615 = vpop.f32.mrf.mxu0
        %v7616 = vpop.f32.mrf.mxu0
        %v7617 = vadd.f32 0.0, %v7616
        %v7618 = vpop.f32.mrf.mxu0
        %7619 = vmatprep.mubr.bf16.mxu0 0
        %7620 = vmatmul.mubr.bf16.gmra.mxu0 %v7491
        %v7621 = vpop.f32.mrf.mxu0
        %v7622 = vadd.f32 0.0, %v7621
        %v7623 = vpop.f32.mrf.mxu0
        %v7624 = vpop.f32.mrf.mxu0
        %v7625 = vadd.f32 0.0, %v7624
        %v7626 = vpop.f32.mrf.mxu0
        %7627 = vmatprep.mubr.bf16.mxu0 0
        %7628 = vmatmul.mubr.bf16.gmra.mxu0 %v7493
        %v7629 = vpop.f32.mrf.mxu0
        %v7630 = vadd.f32 0.0, %v7629
        %v7631 = vpop.f32.mrf.mxu0
        %v7632 = vpop.f32.mrf.mxu0
        %v7633 = vadd.f32 0.0, %v7632
        %v7634 = vpop.f32.mrf.mxu0
        %7635 = vmatprep.mubr.bf16.mxu0 0
        %7636 = vmatmul.mubr.bf16.gmra.mxu0 %v7495
        %v7637 = vpop.f32.mrf.mxu0
        %v7638 = vadd.f32 0.0, %v7637
        %v7639 = vpop.f32.mrf.mxu0
        %v7640 = vpop.f32.mrf.mxu0
        %v7641 = vadd.f32 0.0, %v7640
        %v7642 = vpop.f32.mrf.mxu0
        %7643 = vmatprep.mubr.bf16.mxu0 0
        %7644 = vmatmul.mubr.bf16.gmra.mxu0 %v7497
        %v7645 = vpop.f32.mrf.mxu0
        %v7646 = vadd.f32 0.0, %v7645
        %v7647 = vpop.f32.mrf.mxu0
        %v7648 = vpop.f32.mrf.mxu0
        %v7649 = vadd.f32 0.0, %v7648
        %v7650 = vpop.f32.mrf.mxu0
        %7651 = vmatprep.mubr.bf16.mxu0 0
        %7652 = vmatmul.mubr.bf16.gmra.mxu0 %v7499
        %v7653 = vpop.f32.mrf.mxu0
        %v7654 = vadd.f32 0.0, %v7653
        %v7655 = vpop.f32.mrf.mxu0
        %v7656 = vpop.f32.mrf.mxu0
        %v7657 = vadd.f32 0.0, %v7656
        %v7658 = vpop.f32.mrf.mxu0
        %7659 = vmatprep.mubr.bf16.mxu0 0
        %7660 = vmatmul.mubr.bf16.gmra.mxu0 %v7501
        %v7661 = vpop.f32.mrf.mxu0
        %v7662 = vadd.f32 0.0, %v7661
        %v7663 = vpop.f32.mrf.mxu0
        %v7664 = vpop.f32.mrf.mxu0
        %v7665 = vadd.f32 0.0, %v7664
        %v7666 = vpop.f32.mrf.mxu0
        %7667 = vmatprep.mubr.bf16.mxu0 0
        %7668 = vmatmul.mubr.bf16.gmra.mxu0 %v7503
        %v7669 = vpop.f32.mrf.mxu0
        %v7670 = vadd.f32 0.0, %v7669
        %v7671 = vpop.f32.mrf.mxu0
        %v7672 = vpop.f32.mrf.mxu0
        %v7673 = vadd.f32 0.0, %v7672
        %v7674 = vpop.f32.mrf.mxu0
        %7675 = vmatprep.mubr.bf16.mxu0 0
        %7676 = vmatmul.mubr.bf16.gmra.mxu0 %v7505
        %v7677 = vpop.f32.mrf.mxu0
        %v7678 = vadd.f32 0.0, %v7677
        %v7679 = vpop.f32.mrf.mxu0
        %v7680 = vpop.f32.mrf.mxu0
        %v7681 = vadd.f32 0.0, %v7680
        %v7682 = vpop.f32.mrf.mxu0
        %7683 = vmatprep.mubr.bf16.mxu0 0
        %7684 = vmatmul.mubr.bf16.gmra.mxu0 %v7507
        %v7685 = vpop.f32.mrf.mxu0
        %v7686 = vadd.f32 0.0, %v7685
        %v7687 = vpop.f32.mrf.mxu0
        %v7688 = vpop.f32.mrf.mxu0
        %v7689 = vadd.f32 0.0, %v7688
        %v7690 = vpop.f32.mrf.mxu0
        %7691 = vmatprep.mubr.bf16.mxu0 0
        %7692 = vmatmul.mubr.bf16.gmra.mxu0 %v7509
        %v7693 = vpop.f32.mrf.mxu0
        %v7694 = vadd.f32 0.0, %v7693
        %v7695 = vpop.f32.mrf.mxu0
        %v7696 = vpop.f32.mrf.mxu0
        %v7697 = vadd.f32 0.0, %v7696
        %v7698 = vpop.f32.mrf.mxu0
        %7699 = vmatprep.mubr.bf16.mxu0 0
        %7700 = vmatmul.mubr.bf16.gmra.mxu0 %v7508
        %v7701 = vpop.f32.mrf.mxu0
        %v7702 = vadd.f32 0.0, %v7701
        %v7703 = vpop.f32.mrf.mxu0
        %v7704 = vpop.f32.mrf.mxu0
        %v7705 = vpop.f32.mrf.mxu0
        %7706 = vdwg.mxu0
        %v7707 = vadd.f32 %v7431, %v7606
        %v7708 = vadd.f32 %v7432, %v7609
        %v7709 = vadd.f32 %v7433, %v7614
        %v7710 = vadd.f32 %v7434, %v7617
        %v7711 = vadd.f32 %v7435, %v7622
        %v7712 = vadd.f32 %v7436, %v7625
        %v7713 = vadd.f32 %v7437, %v7630
        %v7714 = vadd.f32 %v7438, %v7633
        %v7715 = vadd.f32 %v7439, %v7638
        %v7716 = vadd.f32 %v7440, %v7641
        %v7717 = vadd.f32 %v7441, %v7646
        %v7718 = vadd.f32 %v7442, %v7649
        %v7719 = vadd.f32 %v7443, %v7654
        %v7720 = vadd.f32 %v7444, %v7657
        %v7721 = vadd.f32 %v7445, %v7662
        %v7722 = vadd.f32 %v7446, %v7665
        %v7723 = vadd.f32 %v7447, %v7670
        %v7724 = vadd.f32 %v7448, %v7673
        %v7725 = vadd.f32 %v7449, %v7678
        %v7726 = vadd.f32 %v7450, %v7681
        %v7727 = vadd.f32 %v7451, %v7686
        %v7728 = vadd.f32 %v7452, %v7689
        %v7729 = vadd.f32 %v7453, %v7694
        %v7730 = vadd.f32 %v7454, %v7697
        %v7731 = vadd.f32 %v7455, %v7702
        %v7732 = vld [vmem:[#allocation2 + $0x1100] sm:$0xf]
        %v7733 = vld [vmem:[#allocation2 + $0x1108] sm:$0xf]
        %v7734 = vld [vmem:[#allocation2 + $0x1110] sm:$0xf]
        %v7735 = vld [vmem:[#allocation2 + $0x1118] sm:$0xf]
        %v7736 = vld [vmem:[#allocation2 + $0x1120] sm:$0xf]
        %v7737 = vld [vmem:[#allocation2 + $0x1128] sm:$0xf]
        %v7738 = vld [vmem:[#allocation2 + $0x1130] sm:$0xf]
        %v7739 = vld [vmem:[#allocation2 + $0x1138] sm:$0xf]
        %v7740 = vld [vmem:[#allocation2 + $0x1140] sm:$0xf]
        %v7741 = vld [vmem:[#allocation2 + $0x1148] sm:$0xf]
        %v7742 = vld [vmem:[#allocation2 + $0x1150] sm:$0xf]
        %v7743 = vld [vmem:[#allocation2 + $0x1158] sm:$0xf]
        %v7744 = vld [vmem:[#allocation2 + $0x1160] sm:$0xf]
        %v7745 = vld [vmem:[#allocation2 + $0x1168] sm:$0xf]
        %v7746 = vld [vmem:[#allocation2 + $0x1170] sm:$0xf]
        %v7747 = vld [vmem:[#allocation2 + $0x1178] sm:$0xf]
        %v7764 = vunpack.c.l.b16 %v7732
        %v7765 = vunpack.c.l.b16 %v7733
        %v7766 = vunpack.c.l.b16 %v7734
        %v7767 = vunpack.c.l.b16 %v7735
        %v7768 = vunpack.c.l.b16 %v7736
        %v7769 = vunpack.c.l.b16 %v7737
        %v7770 = vunpack.c.l.b16 %v7738
        %v7771 = vunpack.c.l.b16 %v7739
        %v7772 = vunpack.c.l.b16 %v7740
        %v7773 = vunpack.c.l.b16 %v7741
        %v7774 = vunpack.c.l.b16 %v7742
        %v7775 = vunpack.c.l.b16 %v7743
        %v7776 = vunpack.c.l.b16 %v7744
        %v7777 = vunpack.c.l.b16 %v7745
        %v7778 = vunpack.c.l.b16 %v7746
        %v7779 = vunpack.c.l.b16 %v7747
        %v7780 = vpack.c.b16 %v7765, %v7764
        %v7781 = vpack.c.b16 %v7767, %v7766
        %v7782 = vpack.c.b16 %v7769, %v7768
        %v7783 = vpack.c.b16 %v7771, %v7770
        %v7784 = vpack.c.b16 %v7773, %v7772
        %v7785 = vpack.c.b16 %v7775, %v7774
        %v7786 = vpack.c.b16 %v7777, %v7776
        %v7787 = vpack.c.b16 %v7779, %v7778
        %7796 = vmatprep.subr.bf16.mxu0 0
        %7797 = vmatpush1.bf16.msra.mxu0 %v7787
        %7798 = vmatprep.subr.bf16.mxu0 0
        %7799 = vmatpush1.bf16.msra.mxu0 %v7786
        %7800 = vmatprep.subr.bf16.mxu0 0
        %7801 = vmatpush1.bf16.msra.mxu0 %v7785
        %7802 = vmatprep.subr.bf16.mxu0 0
        %7803 = vmatpush1.bf16.msra.mxu0 %v7784
        %7804 = vmatprep.subr.bf16.mxu0 0
        %7805 = vmatpush1.bf16.msra.mxu0 %v7783
        %7806 = vmatprep.subr.bf16.mxu0 0
        %7807 = vmatpush1.bf16.msra.mxu0 %v7782
        %7808 = vmatprep.subr.bf16.mxu0 0
        %7809 = vmatpush1.bf16.msra.mxu0 %v7781
        %7810 = vmatprep.subr.bf16.mxu0 0
        %7811 = vmatpush1.bf16.msra.mxu0 %v7780
        %7812 = vmatprep.subr.bf16.mxu0 0
        %7813 = vmatpush2.bf16.msra.mxu0 0
        %7814 = vmatprep.subr.bf16.mxu0 0
        %7815 = vmatpush2.bf16.msra.mxu0 0
        %7816 = vmatprep.subr.bf16.mxu0 0
        %7817 = vmatpush2.bf16.msra.mxu0 0
        %7818 = vmatprep.subr.bf16.mxu0 0
        %7819 = vmatpush2.bf16.msra.mxu0 0
        %7820 = vmatprep.subr.bf16.mxu0 0
        %7821 = vmatpush2.bf16.msra.mxu0 0
        %7822 = vmatprep.subr.bf16.mxu0 0
        %7823 = vmatpush2.bf16.msra.mxu0 0
        %7824 = vmatprep.subr.bf16.mxu0 0
        %7825 = vmatpush2.bf16.msra.mxu0 0
        %7826 = vmatprep.subr.bf16.mxu0 0
        %7827 = vmatpush2.bf16.msra.mxu0 0
        %7828 = vmatprep.mubr.bf16.mxu0 0
        %7829 = vmatmul.mubr.bf16.gmra.mxu0 %v6767
        %v7830 = vpop.f32.mrf.mxu0
        %v7831 = vadd.f32 0.0, %v7830
        %v7832 = vpop.f32.mrf.mxu0
        %v7833 = vpop.f32.mrf.mxu0
        %v7834 = vadd.f32 0.0, %v7833
        %v7835 = vpop.f32.mrf.mxu0
        %7836 = vmatprep.mubr.bf16.mxu0 0
        %7837 = vmatmul.mubr.bf16.gmra.mxu0 %v6768
        %v7838 = vpop.f32.mrf.mxu0
        %v7839 = vadd.f32 0.0, %v7838
        %v7840 = vpop.f32.mrf.mxu0
        %v7841 = vpop.f32.mrf.mxu0
        %v7842 = vadd.f32 0.0, %v7841
        %v7843 = vpop.f32.mrf.mxu0
        %7844 = vmatprep.mubr.bf16.mxu0 0
        %7845 = vmatmul.mubr.bf16.gmra.mxu0 %v6769
        %v7846 = vpop.f32.mrf.mxu0
        %v7847 = vadd.f32 0.0, %v7846
        %v7848 = vpop.f32.mrf.mxu0
        %v7849 = vpop.f32.mrf.mxu0
        %v7850 = vadd.f32 0.0, %v7849
        %v7851 = vpop.f32.mrf.mxu0
        %7852 = vmatprep.mubr.bf16.mxu0 0
        %7853 = vmatmul.mubr.bf16.gmra.mxu0 %v6770
        %v7854 = vpop.f32.mrf.mxu0
        %v7855 = vadd.f32 0.0, %v7854
        %v7856 = vpop.f32.mrf.mxu0
        %v7857 = vpop.f32.mrf.mxu0
        %v7858 = vadd.f32 0.0, %v7857
        %v7859 = vpop.f32.mrf.mxu0
        %7860 = vmatprep.mubr.bf16.mxu0 0
        %7861 = vmatmul.mubr.bf16.gmra.mxu0 %v6771
        %v7862 = vpop.f32.mrf.mxu0
        %v7863 = vadd.f32 0.0, %v7862
        %v7864 = vpop.f32.mrf.mxu0
        %v7865 = vpop.f32.mrf.mxu0
        %v7866 = vadd.f32 0.0, %v7865
        %v7867 = vpop.f32.mrf.mxu0
        %7868 = vmatprep.mubr.bf16.mxu0 0
        %7869 = vmatmul.mubr.bf16.gmra.mxu0 %v6772
        %v7870 = vpop.f32.mrf.mxu0
        %v7871 = vadd.f32 0.0, %v7870
        %v7872 = vpop.f32.mrf.mxu0
        %v7873 = vpop.f32.mrf.mxu0
        %v7874 = vadd.f32 0.0, %v7873
        %v7875 = vpop.f32.mrf.mxu0
        %7876 = vmatprep.mubr.bf16.mxu0 0
        %7877 = vmatmul.mubr.bf16.gmra.mxu0 %v6773
        %v7878 = vpop.f32.mrf.mxu0
        %v7879 = vadd.f32 0.0, %v7878
        %v7880 = vpop.f32.mrf.mxu0
        %v7881 = vpop.f32.mrf.mxu0
        %v7882 = vadd.f32 0.0, %v7881
        %v7883 = vpop.f32.mrf.mxu0
        %7884 = vmatprep.mubr.bf16.mxu0 0
        %7885 = vmatmul.mubr.bf16.gmra.mxu0 %v6774
        %v7886 = vpop.f32.mrf.mxu0
        %v7887 = vadd.f32 0.0, %v7886
        %v7888 = vpop.f32.mrf.mxu0
        %v7889 = vpop.f32.mrf.mxu0
        %v7890 = vadd.f32 0.0, %v7889
        %v7891 = vpop.f32.mrf.mxu0
        %7892 = vmatprep.mubr.bf16.mxu0 0
        %7893 = vmatmul.mubr.bf16.gmra.mxu0 %v6775
        %v7894 = vpop.f32.mrf.mxu0
        %v7895 = vadd.f32 0.0, %v7894
        %v7896 = vpop.f32.mrf.mxu0
        %v7897 = vpop.f32.mrf.mxu0
        %v7898 = vadd.f32 0.0, %v7897
        %v7899 = vpop.f32.mrf.mxu0
        %7900 = vmatprep.mubr.bf16.mxu0 0
        %7901 = vmatmul.mubr.bf16.gmra.mxu0 %v6776
        %v7902 = vpop.f32.mrf.mxu0
        %v7903 = vadd.f32 0.0, %v7902
        %v7904 = vpop.f32.mrf.mxu0
        %v7905 = vpop.f32.mrf.mxu0
        %v7906 = vadd.f32 0.0, %v7905
        %v7907 = vpop.f32.mrf.mxu0
        %7908 = vmatprep.mubr.bf16.mxu0 0
        %7909 = vmatmul.mubr.bf16.gmra.mxu0 %v6777
        %v7910 = vpop.f32.mrf.mxu0
        %v7911 = vadd.f32 0.0, %v7910
        %v7912 = vpop.f32.mrf.mxu0
        %v7913 = vpop.f32.mrf.mxu0
        %v7914 = vadd.f32 0.0, %v7913
        %v7915 = vpop.f32.mrf.mxu0
        %7916 = vmatprep.mubr.bf16.mxu0 0
        %7917 = vmatmul.mubr.bf16.gmra.mxu0 %v6778
        %v7918 = vpop.f32.mrf.mxu0
        %v7919 = vadd.f32 0.0, %v7918
        %v7920 = vpop.f32.mrf.mxu0
        %v7921 = vpop.f32.mrf.mxu0
        %v7922 = vadd.f32 0.0, %v7921
        %v7923 = vpop.f32.mrf.mxu0
        %7924 = vmatprep.mubr.bf16.mxu0 0
        %7925 = vmatmul.mubr.bf16.gmra.mxu0 %v6779
        %v7926 = vpop.f32.mrf.mxu0
        %v7927 = vadd.f32 0.0, %v7926
        %v7928 = vpop.f32.mrf.mxu0
        %v7929 = vpop.f32.mrf.mxu0
        %v7930 = vpop.f32.mrf.mxu0
        %7931 = vdwg.mxu0
        %v7932 = vadd.f32 %v7707, %v7831
        %v7933 = vadd.f32 %v7708, %v7834
        %v7934 = vadd.f32 %v7709, %v7839
        %v7935 = vadd.f32 %v7710, %v7842
        %v7936 = vadd.f32 %v7711, %v7847
        %v7937 = vadd.f32 %v7712, %v7850
        %v7938 = vadd.f32 %v7713, %v7855
        %v7939 = vadd.f32 %v7714, %v7858
        %v7940 = vadd.f32 %v7715, %v7863
        %v7941 = vadd.f32 %v7716, %v7866
        %v7942 = vadd.f32 %v7717, %v7871
        %v7943 = vadd.f32 %v7718, %v7874
        %v7944 = vadd.f32 %v7719, %v7879
        %v7945 = vadd.f32 %v7720, %v7882
        %v7946 = vadd.f32 %v7721, %v7887
        %v7947 = vadd.f32 %v7722, %v7890
        %v7948 = vadd.f32 %v7723, %v7895
        %v7949 = vadd.f32 %v7724, %v7898
        %v7950 = vadd.f32 %v7725, %v7903
        %v7951 = vadd.f32 %v7726, %v7906
        %v7952 = vadd.f32 %v7727, %v7911
        %v7953 = vadd.f32 %v7728, %v7914
        %v7954 = vadd.f32 %v7729, %v7919
        %v7955 = vadd.f32 %v7730, %v7922
        %v7956 = vadd.f32 %v7731, %v7927
        %v7957 = vld [vmem:[#allocation4 + $0x6] ss:$0 sm:$0xff]
        %v7958 = vadd.f32 %v7932, %v7957
        %v7959 = vadd.f32 %v7933, %v7957
        %v7960 = vadd.f32 %v7934, %v7957
        %v7961 = vadd.f32 %v7935, %v7957
        %v7962 = vadd.f32 %v7936, %v7957
        %v7963 = vadd.f32 %v7937, %v7957
        %v7964 = vadd.f32 %v7938, %v7957
        %v7965 = vadd.f32 %v7939, %v7957
        %v7966 = vadd.f32 %v7940, %v7957
        %v7967 = vadd.f32 %v7941, %v7957
        %v7968 = vadd.f32 %v7942, %v7957
        %v7969 = vadd.f32 %v7943, %v7957
        %v7970 = vadd.f32 %v7944, %v7957
        %v7971 = vadd.f32 %v7945, %v7957
        %v7972 = vadd.f32 %v7946, %v7957
        %v7973 = vadd.f32 %v7947, %v7957
        %v7974 = vadd.f32 %v7948, %v7957
        %v7975 = vadd.f32 %v7949, %v7957
        %v7976 = vadd.f32 %v7950, %v7957
        %v7977 = vadd.f32 %v7951, %v7957
        %v7978 = vadd.f32 %v7952, %v7957
        %v7979 = vadd.f32 %v7953, %v7957
        %v7980 = vadd.f32 %v7954, %v7957
        %v7981 = vadd.f32 %v7955, %v7957
        %v7982 = vadd.f32 %v7956, %v7957
        %v7983 = vtanh.pop %v7958
        %v7984 = vtanh.pop %v7959
        %v7985 = vtanh.pop %v7960
        %v7986 = vtanh.pop %v7961
        %v7987 = vtanh.pop %v7962
        %v7988 = vtanh.pop %v7963
        %v7989 = vtanh.pop %v7964
        %v7990 = vtanh.pop %v7965
        %v7991 = vtanh.pop %v7966
        %v7992 = vtanh.pop %v7967
        %v7993 = vtanh.pop %v7968
        %v7994 = vtanh.pop %v7969
        %v7995 = vtanh.pop %v7970
        %v7996 = vtanh.pop %v7971
        %v7997 = vtanh.pop %v7972
        %v7998 = vtanh.pop %v7973
        %v7999 = vtanh.pop %v7974
        %v8000 = vtanh.pop %v7975
        %v8001 = vtanh.pop %v7976
        %v8002 = vtanh.pop %v7977
        %v8003 = vtanh.pop %v7978
        %v8004 = vtanh.pop %v7979
        %v8005 = vtanh.pop %v7980
        %v8006 = vtanh.pop %v7981
        %v8007 = vtanh.pop %v7982
        %8008 = vst [vmem:[%s227] sm:$0xff] %v7983
        %8009 = vst [vmem:[%s227 + $0x8] sm:$0xff] %v7984
        %8010 = vst [vmem:[%s227 + $0x10] sm:$0xff] %v7985
        %8011 = vst [vmem:[%s227 + $0x18] sm:$0xff] %v7986
        %8012 = vst [vmem:[%s227 + $0x20] sm:$0xff] %v7987
        %8013 = vst [vmem:[%s227 + $0x28] sm:$0xff] %v7988
        %8014 = vst [vmem:[%s227 + $0x30] sm:$0xff] %v7989
        %8015 = vst [vmem:[%s227 + $0x38] sm:$0xff] %v7990
        %8016 = vst [vmem:[%s227 + $0x40] sm:$0xff] %v7991
        %8017 = vst [vmem:[%s227 + $0x48] sm:$0xff] %v7992
        %8018 = vst [vmem:[%s227 + $0x50] sm:$0xff] %v7993
        %8019 = vst [vmem:[%s227 + $0x58] sm:$0xff] %v7994
        %8020 = vst [vmem:[%s227 + $0x60] sm:$0xff] %v7995
        %8021 = vst [vmem:[%s227 + $0x68] sm:$0xff] %v7996
        %8022 = vst [vmem:[%s227 + $0x70] sm:$0xff] %v7997
        %8023 = vst [vmem:[%s227 + $0x78] sm:$0xff] %v7998
        %8024 = vst [vmem:[%s227 + $0x80] sm:$0xff] %v7999
        %8025 = vst [vmem:[%s227 + $0x88] sm:$0xff] %v8000
        %8026 = vst [vmem:[%s227 + $0x90] sm:$0xff] %v8001
        %8027 = vst [vmem:[%s227 + $0x98] sm:$0xff] %v8002
        %8028 = vst [vmem:[%s227 + $0xa0] sm:$0xff] %v8003
        %8029 = vst [vmem:[%s227 + $0xa8] sm:$0xff] %v8004
        %8030 = vst [vmem:[%s227 + $0xb0] sm:$0xff] %v8005
        %8031 = vst [vmem:[%s227 + $0xb8] sm:$0xff] %v8006
        %8032 = vst [vmem:[%s227 + $0xc0] sm:$0xff] %v8007
        %s8033 = smul.u32 25, %s17
        %p8034 = scmp.lt.s32.totalorder %s8033, 49
        %s8035 = scalar_select %p8034, %s8033, 49
        %s8036 = smul.addr %s8035, 8
        %s8037 = scalar_lea.vmem %s4, %s8036
        // Predicated region
        $region45: #{fwd.1} parent=35 // pred_check
          %p8038 = pneg %p124
        $region46: #{fwd.1} parent=35 // pred_check_branch
          %8040 = sbr.rel (%p8038) target = $region48
        $region47: #{fwd.1} parent=35 // pred_region
          %s8041 = smul.u32 25, %s17
        $region48: #{fwd.1} parent=35 // pred_fallthru
          _
      $region36: #{fwd.1} parent=5 // pred_fallthru
        _
      %p8042 = scmp.le.s32.totalorder 2, %s12
      // Predicated region
      $region49: #{fwd.1} parent=5 // pred_check
        %p8043 = pneg %p8042
      $region50: #{fwd.1} parent=5 // pred_check_branch
        %8045 = sbr.rel (%p8043) target = $region52
      $region51: #{fwd.1} parent=5 // pred_region
        %s8046 = ssub.s32 %s12, 2
        // Predicated region
        $region53: #{fwd.1} parent=51 // pred_check
          %p8047 = pneg %p130
        $region54: #{fwd.1} parent=51 // pred_check_branch
          %8049 = sbr.rel (%p8047) target = $region56
        $region55: #{fwd.1} parent=51 // pred_region
          %s8050 = smul.u32 25, %s18
          %p8051 = scmp.lt.s32.totalorder %s8050, 49
          %s8052 = scalar_select %p8051, %s8050, 49
          %s8053 = smul.addr %s8052, 8
          %s8054 = scalar_lea.vmem %s4, %s8053
        $region56: #{fwd.1} parent=51 // pred_fallthru
          _
      $region52: #{fwd.1} parent=5 // pred_fallthru
        _
    $region6: #{fwd.1} parent=1 // loop_footer
      %s16 = sadd.s32 1, %s12
    $region7: #{fwd.1} parent=1 // loop_footer_branch
      %11 = sbr.rel target = $region3
    $region8: #{fwd.1} parent=1 // loop_exit
      _
    %8055 = vsyncpa [#allocation3], 1
    %s8056 = scalar_lea.sflag [#allocation3], 1
    %8057 = vsyncpa %s8056, 1
    %8058 = vsyncpa [#allocation5], 1

</llo_original>
